<compile_context>
chip_gen: v6e
topology: v6e:2x2x1
jax: 0.10.0
libtpu: 0.0.40
codegen_flags: <defaults>
</compile_context>

<pallas_src>
import math
from functools import partial

import jax
import jax.numpy as jnp
from jax.experimental import pallas as pl
from jax.experimental.pallas import tpu as pltpu

_CPAD = 128  # lane-padded width of the combined classifier output


# ---------------------------------------------------------------------------
# Fused two-branch kernel:  fc -> relu -> fc1 -> relu -> [classifier | classifier_a]
# grid = (branch,); one full-width weight tile per branch (weight-BW bound).
# ---------------------------------------------------------------------------
def _fused_branch_kernel(x_ref, w0_ref, b0_ref, w1_ref, b1_ref, wc_ref, bc_ref,
                         h_ref, cls_ref):
    x = x_ref[...]                                                     # (M, D) bf16

    # fc + relu
    h0 = jnp.maximum(
        jnp.dot(x, w0_ref[0], preferred_element_type=jnp.float32) + b0_ref[0],
        0.0)                                                           # (M, D) f32
    # fc1 + relu
    h1 = jnp.maximum(
        jnp.dot(h0.astype(jnp.bfloat16), w1_ref[0],
                preferred_element_type=jnp.float32) + b1_ref[0],
        0.0)                                                           # (M, D) f32
    h_ref[0] = h1
    # single combined classifier matmul: [classifier | classifier_a | 0-pad] -> (M, 128)
    cls_ref[0] = (jnp.dot(h1.astype(jnp.bfloat16), wc_ref[0],
                          preferred_element_type=jnp.float32) + bc_ref[0])


def fused_branches(x2d, w0, b0, w1, b1, wc, bc):
    M, D2 = x2d.shape
    D = D2 // 2
    nb = w0.shape[0]
    CP = wc.shape[2]
    assert nb == 2

    # Advisory cost for XLA's scheduler (tiny JAX epilogue overlaps the call).
    flops = 2 * nb * (M * D * D * 2 + M * D * CP)
    bytes_accessed = ((w0.size + w1.size + wc.size) * 2      # bf16 weights
                      + x2d.size * 2                          # bf16 activations
                      + nb * M * D * 4 + nb * M * CP * 4      # f32 outputs
                      + (b0.size + b1.size + bc.size) * 4)    # f32 biases

    grid_spec = pltpu.PrefetchScalarGridSpec(
        num_scalar_prefetch=0,
        grid=(nb,),
        in_specs=[
            pl.BlockSpec((M, D),     lambda b: (0, b)),    # branch half of x (bf16)
            pl.BlockSpec((1, D, D),  lambda b: (b, 0, 0)), # W_fc   (bf16)
            pl.BlockSpec((1, 1, D),  lambda b: (b, 0, 0)), # b_fc
            pl.BlockSpec((1, D, D),  lambda b: (b, 0, 0)), # W_fc1  (bf16)
            pl.BlockSpec((1, 1, D),  lambda b: (b, 0, 0)), # b_fc1
            pl.BlockSpec((1, D, CP), lambda b: (b, 0, 0)), # combined classifier W (bf16, padded)
            pl.BlockSpec((1, 1, CP), lambda b: (b, 0, 0)), # combined classifier b (padded)
        ],
        out_specs=(
            pl.BlockSpec((1, M, D),  lambda b: (b, 0, 0)),  # h1 (== returned x_r / x_f)
            pl.BlockSpec((1, M, CP), lambda b: (b, 0, 0)),  # [cls | cls_a | 0-pad]
        ),
    )
    return pl.pallas_call(
        _fused_branch_kernel,
        out_shape=(jax.ShapeDtypeStruct((nb, M, D), jnp.float32),
                   jax.ShapeDtypeStruct((nb, M, CP), jnp.float32)),
        grid_spec=grid_spec,
        compiler_params=pltpu.CompilerParams(
            dimension_semantics=("parallel",),      # one branch per TC on v7x
            vmem_limit_bytes=32 * 1024 * 1024),     # working set ~9 MiB incl. double-buffering
        cost_estimate=pl.CostEstimate(flops=flops, transcendentals=0,
                                      bytes_accessed=bytes_accessed),
    )(x2d, w0, b0, w1, b1, wc, bc)


# ---------------------------------------------------------------------------
# Full forward
# ---------------------------------------------------------------------------
def model_forward(params, inputs, *, num_class, s, omega):
    N, T, D2 = inputs.shape
    D = D2 // 2
    C = num_class
    M = N * T

    # One reshape + bf16 cast in the wrapper; branch halves selected by BlockSpec.
    x2d = inputs.reshape(M, D2).astype(jnp.bfloat16)

    h, cls_pad = fused_branches(
        x2d, params['w0'], params['b0'], params['w1'], params['b1'],
        params['wc'], params['bc'])
    # TODO(synk): dropout_r / dropout_f (p=0.7) are treated as inference-mode identity.

    x_r_out = h[0].reshape(N, T, D)            # == x_r.permute(0, 2, 1) in the torch code
    x_f_out = h[1].reshape(N, T, D)
    cls_r  = cls_pad[0, :, :C].reshape(N, T, C)
    clsa_r = cls_pad[0, :, C:2 * C].reshape(N, T, C)
    cls_f  = cls_pad[1, :, :C].reshape(N, T, C)
    clsa_f = cls_pad[1, :, C:2 * C].reshape(N, T, C)

    # kth-value thresholding / erase masking / tcam fusion.
    # These tensors are (N, T, C) = (2, 8, 5): a dedicated Pallas call is pure
    # launch + DMA overhead, so this stage runs in plain JAX/XLA with an
    # O(T log T) sort (== torch.kthvalue along T).
    k = max(T - math.floor(T / s), 1)
    mask_value = jnp.float32(-100.0)
    thr_r = jnp.sort(cls_r, axis=1)[:, k - 1:k, :]   # kth smallest along T
    thr_f = jnp.sort(cls_f, axis=1)[:, k - 1:k, :]
    cls_ra = jnp.where(cls_r > thr_r, mask_value, clsa_r)
    cls_fa = jnp.where(cls_f > thr_f, mask_value, clsa_f)
    tcam = ((cls_r + omega * clsa_r) * params['mul_r']
            + (cls_f + omega * clsa_f) * params['mul_f'])

    return (x_r_out, [cls_r, cls_ra], x_f_out, [cls_f, cls_fa], tcam)


# ---------------------------------------------------------------------------
# Parameter init (xavier_uniform weights, zero biases, ones mul) + packing
# ---------------------------------------------------------------------------
def init_raw_params(key, D, C):
    def xavier(k, fan_in, fan_out, shape):
        limit = math.sqrt(6.0 / (fan_in + fan_out))
        return jax.random.uniform(k, shape, jnp.float32, -limit, limit)

    keys = jax.random.split(key, 8)
    zD = jnp.zeros((1, D), jnp.float32)
    zC = jnp.zeros((1, C), jnp.float32)
    return dict(
        w_fc_r=xavier(keys[0], D, D, (D, D)), b_fc_r=zD,
        w_fc1_r=xavier(keys[1], D, D, (D, D)), b_fc1_r=zD,
        w_fc_f=xavier(keys[2], D, D, (D, D)), b_fc_f=zD,
        w_fc1_f=xavier(keys[3], D, D, (D, D)), b_fc1_f=zD,
        w_cls_r=xavier(keys[4], D, C, (D, C)), b_cls_r=zC,     # Conv1d(D, C, 1)
        w_cls_f=xavier(keys[5], D, C, (D, C)), b_cls_f=zC,
        # classifier_ra / classifier_fa: C independent Conv1d(D, 1, 1) stacked -> (D, C)
        w_ra=xavier(keys[6], D, 1, (D, C)), b_ra=zC,
        w_fa=xavier(keys[7], D, 1, (D, C)), b_fa=zC,
        mul_r=jnp.ones((C,), jnp.float32),
        mul_f=jnp.ones((C,), jnp.float32),
    )


def pack_params(raw, *, cpad=_CPAD):
    """Stack per-branch weights along a leading branch axis, cast the big matmul
    weights to bf16 (streamed as bf16, accumulated in fp32), and zero-pad the
    combined classifier weight/bias to `cpad` lanes for lane-dense DMA/stores."""
    D, C = raw['w_cls_r'].shape
    pad = cpad - 2 * C
    assert pad >= 0
    zW = jnp.zeros((D, pad), jnp.float32)
    zB = jnp.zeros((1, pad), jnp.float32)

    w0 = jnp.stack([raw['w_fc_r'], raw['w_fc_f']]).astype(jnp.bfloat16)    # (2, D, D)
    b0 = jnp.stack([raw['b_fc_r'], raw['b_fc_f']])                         # (2, 1, D)
    w1 = jnp.stack([raw['w_fc1_r'], raw['w_fc1_f']]).astype(jnp.bfloat16)  # (2, D, D)
    b1 = jnp.stack([raw['b_fc1_r'], raw['b_fc1_f']])                       # (2, 1, D)
    wc = jnp.stack([jnp.concatenate([raw['w_cls_r'], raw['w_ra'], zW], axis=1),
                    jnp.concatenate([raw['w_cls_f'], raw['w_fa'], zW], axis=1)]
                   ).astype(jnp.bfloat16)                                  # (2, D, 128)
    bc = jnp.stack([jnp.concatenate([raw['b_cls_r'], raw['b_ra'], zB], axis=1),
                    jnp.concatenate([raw['b_cls_f'], raw['b_fa'], zB], axis=1)])  # (2, 1, 128)
    return dict(w0=w0, b0=b0, w1=w1, b1=b1, wc=wc, bc=bc,
                mul_r=raw['mul_r'], mul_f=raw['mul_f'])


if __name__ == "__main__":
    num_class, s, omega = 5, 8, 0.6
    N, T, D = 2, 8, 1024                       # input feature dim is 2*D = 2048
    key = jax.random.PRNGKey(0)
    pkey, xkey = jax.random.split(key)
    raw = init_raw_params(pkey, D, num_class)
    params = pack_params(raw)
    inputs = jax.random.normal(xkey, (N, T, 2 * D), jnp.float32)

    fwd = jax.jit(partial(model_forward, num_class=num_class, s=s, omega=omega))
    x_r, (cls_x_r, cls_x_ra), x_f, (cls_x_f, cls_x_fa), tcam = fwd(params, inputs)
    jax.block_until_ready(tcam)

    # shape checks
    assert x_r.shape == (N, T, D) and x_f.shape == (N, T, D)
    assert cls_x_r.shape == (N, T, num_class) and cls_x_ra.shape == (N, T, num_class)
    assert cls_x_f.shape == (N, T, num_class) and cls_x_fa.shape == (N, T, num_class)
    assert tcam.shape == (N, T, num_class)

    # numeric check vs an fp32 reference that uses the SAME (bf16-quantized) weights/inputs
    def reference(pp, x):
        relu = jax.nn.relu
        xq = x.astype(jnp.bfloat16).astype(jnp.float32)
        w0 = pp['w0'].astype(jnp.float32)
        w1 = pp['w1'].astype(jnp.float32)
        wc = pp['wc'].astype(jnp.float32)
        outs = []
        for i, xb in enumerate((xq[:, :, :D], xq[:, :, D:])):
            h0 = relu(xb @ w0[i] + pp['b0'][i])
            h1 = relu(h0 @ w1[i] + pp['b1'][i])
            cc = h1 @ wc[i] + pp['bc'][i]
            outs.append((h1, cc[..., :num_class], cc[..., num_class:2 * num_class]))
        (hr, cr, car), (hf, cf, caf) = outs
        tc = (cr + omega * car) * pp['mul_r'] + (cf + omega * caf) * pp['mul_f']
        return hr, hf, cr, cf, tc

    h_r_ref, h_f_ref, cls_r_ref, cls_f_ref, tcam_ref = reference(params, inputs)
    assert jnp.allclose(x_r, h_r_ref, rtol=5e-2, atol=5e-2)
    assert jnp.allclose(x_f, h_f_ref, rtol=5e-2, atol=5e-2)
    assert jnp.allclose(cls_x_r, cls_r_ref, rtol=5e-2, atol=5e-2)
    assert jnp.allclose(cls_x_f, cls_f_ref, rtol=5e-2, atol=5e-2)
    assert jnp.allclose(tcam, tcam_ref, rtol=5e-2, atol=5e-2)
    assert bool(jnp.all(jnp.isfinite(tcam)))

    # erasing semantics: exactly T - k positions per (n, class) are masked to -100
    k = max(T - math.floor(T / s), 1)
    assert bool(jnp.all(jnp.sum(cls_x_ra == -100.0, axis=1) == T - k))
    assert bool(jnp.all(jnp.sum(cls_x_fa == -100.0, axis=1) == T - k))

    print("KERNEL_OK")
</pallas_src>

<mosaic_0001>
module attributes {stable_mosaic.version = 11 : i64} {
  func.func @_fused_branch_kernel(%arg0: i32, %arg1: memref<16x1024xbf16, #tpu.memory_space<vmem>>, %arg2: memref<1x1024x1024xbf16, #tpu.memory_space<vmem>>, %arg3: memref<1x1x1024xf32, #tpu.memory_space<vmem>>, %arg4: memref<1x1024x1024xbf16, #tpu.memory_space<vmem>>, %arg5: memref<1x1x1024xf32, #tpu.memory_space<vmem>>, %arg6: memref<1x1024x128xbf16, #tpu.memory_space<vmem>>, %arg7: memref<1x1x128xf32, #tpu.memory_space<vmem>>, %arg8: memref<1x16x1024xf32, #tpu.memory_space<vmem>>, %arg9: memref<1x16x128xf32, #tpu.memory_space<vmem>>) attributes {dimension_semantics = [#tpu.dimension_semantics<parallel>], iteration_bounds = array<i64: 2>, scalar_prefetch = 0 : i64, scratch_operands = 0 : i64, tpu.core_type = #tpu.core_type<tc>, window_params = [{transform_indices = @transform_0, window_bounds = array<i64: 16, 1024>}, {transform_indices = @transform_1, window_bounds = array<i64: 1, 1024, 1024>}, {transform_indices = @transform_2, window_bounds = array<i64: 1, 1, 1024>}, {transform_indices = @transform_3, window_bounds = array<i64: 1, 1024, 1024>}, {transform_indices = @transform_4, window_bounds = array<i64: 1, 1, 1024>}, {transform_indices = @transform_5, window_bounds = array<i64: 1, 1024, 128>}, {transform_indices = @transform_6, window_bounds = array<i64: 1, 1, 128>}, {transform_indices = @transform_7, window_bounds = array<i64: 1, 16, 1024>}, {transform_indices = @transform_8, window_bounds = array<i64: 1, 16, 128>}]} {
    %c0 = arith.constant 0 : index
    %c0_0 = arith.constant 0 : index
    %0 = vector.load %arg1[%c0, %c0_0] : memref<16x1024xbf16, #tpu.memory_space<vmem>>, vector<16x1024xbf16>
    %c0_1 = arith.constant 0 : index
    %c0_2 = arith.constant 0 : index
    %c0_3 = arith.constant 0 : index
    %1 = vector.load %arg2[%c0_1, %c0_2, %c0_3] : memref<1x1024x1024xbf16, #tpu.memory_space<vmem>>, vector<1x1024x1024xbf16>
    %2 = vector.shape_cast %1 : vector<1x1024x1024xbf16> to vector<1024x1024xbf16>
    %cst = arith.constant dense<0.000000e+00> : vector<16x1024xf32>
    %3 = tpu.matmul %0, %2, %cst {dimension_numbers = #tpu.dot_dimension_numbers<[1], [0], [0], [1], [0, 0, 1, 1], [], []>} : vector<16x1024xbf16>, vector<1024x1024xbf16>, vector<16x1024xf32> -> vector<16x1024xf32>
    %c0_4 = arith.constant 0 : index
    %c0_5 = arith.constant 0 : index
    %c0_6 = arith.constant 0 : index
    %4 = vector.load %arg3[%c0_4, %c0_5, %c0_6] : memref<1x1x1024xf32, #tpu.memory_space<vmem>>, vector<1x1x1024xf32>
    %5 = vector.shape_cast %4 : vector<1x1x1024xf32> to vector<1x1024xf32>
    %6 = vector.broadcast %5 : vector<1x1024xf32> to vector<16x1024xf32>
    %7 = arith.addf %3, %6 : vector<16x1024xf32>
    %cst_7 = arith.constant 0.000000e+00 : f32
    %8 = vector.broadcast %cst_7 : f32 to vector<16x1024xf32>
    %9 = arith.maximumf %7, %8 : vector<16x1024xf32>
    %10 = arith.truncf %9 : vector<16x1024xf32> to vector<16x1024xbf16>
    %c0_8 = arith.constant 0 : index
    %c0_9 = arith.constant 0 : index
    %c0_10 = arith.constant 0 : index
    %11 = vector.load %arg4[%c0_8, %c0_9, %c0_10] : memref<1x1024x1024xbf16, #tpu.memory_space<vmem>>, vector<1x1024x1024xbf16>
    %12 = vector.shape_cast %11 : vector<1x1024x1024xbf16> to vector<1024x1024xbf16>
    %cst_11 = arith.constant dense<0.000000e+00> : vector<16x1024xf32>
    %13 = tpu.matmul %10, %12, %cst_11 {dimension_numbers = #tpu.dot_dimension_numbers<[1], [0], [0], [1], [0, 0, 1, 1], [], []>} : vector<16x1024xbf16>, vector<1024x1024xbf16>, vector<16x1024xf32> -> vector<16x1024xf32>
    %c0_12 = arith.constant 0 : index
    %c0_13 = arith.constant 0 : index
    %c0_14 = arith.constant 0 : index
    %14 = vector.load %arg5[%c0_12, %c0_13, %c0_14] : memref<1x1x1024xf32, #tpu.memory_space<vmem>>, vector<1x1x1024xf32>
    %15 = vector.shape_cast %14 : vector<1x1x1024xf32> to vector<1x1024xf32>
    %16 = vector.broadcast %15 : vector<1x1024xf32> to vector<16x1024xf32>
    %17 = arith.addf %13, %16 : vector<16x1024xf32>
    %cst_15 = arith.constant 0.000000e+00 : f32
    %18 = vector.broadcast %cst_15 : f32 to vector<16x1024xf32>
    %19 = arith.maximumf %17, %18 : vector<16x1024xf32>
    %c0_16 = arith.constant 0 : index
    %c0_17 = arith.constant 0 : index
    %c0_18 = arith.constant 0 : index
    %20 = vector.load %arg8[%c0_16, %c0_17, %c0_18] : memref<1x16x1024xf32, #tpu.memory_space<vmem>>, vector<1x16x1024xf32>
    %21 = vector.shape_cast %20 : vector<1x16x1024xf32> to vector<16x1024xf32>
    %22 = vector.shape_cast %19 : vector<16x1024xf32> to vector<1x16x1024xf32>
    tpu.vector_store %arg8[%c0_16, %c0_17, %c0_18], %22 {strides = array<i32>} : memref<1x16x1024xf32, #tpu.memory_space<vmem>>, vector<1x16x1024xf32>,
    %23 = arith.truncf %19 : vector<16x1024xf32> to vector<16x1024xbf16>
    %c0_19 = arith.constant 0 : index
    %c0_20 = arith.constant 0 : index
    %c0_21 = arith.constant 0 : index
    %24 = vector.load %arg6[%c0_19, %c0_20, %c0_21] : memref<1x1024x128xbf16, #tpu.memory_space<vmem>>, vector<1x1024x128xbf16>
    %25 = vector.shape_cast %24 : vector<1x1024x128xbf16> to vector<1024x128xbf16>
    %cst_22 = arith.constant dense<0.000000e+00> : vector<16x128xf32>
    %26 = tpu.matmul %23, %25, %cst_22 {dimension_numbers = #tpu.dot_dimension_numbers<[1], [0], [0], [1], [0, 0, 1, 1], [], []>} : vector<16x1024xbf16>, vector<1024x128xbf16>, vector<16x128xf32> -> vector<16x128xf32>
    %c0_23 = arith.constant 0 : index
    %c0_24 = arith.constant 0 : index
    %c0_25 = arith.constant 0 : index
    %27 = vector.load %arg7[%c0_23, %c0_24, %c0_25] : memref<1x1x128xf32, #tpu.memory_space<vmem>>, vector<1x1x128xf32>
    %28 = vector.shape_cast %27 : vector<1x1x128xf32> to vector<1x128xf32>
    %29 = vector.broadcast %28 : vector<1x128xf32> to vector<16x128xf32>
    %30 = arith.addf %26, %29 : vector<16x128xf32>
    %c0_26 = arith.constant 0 : index
    %c0_27 = arith.constant 0 : index
    %c0_28 = arith.constant 0 : index
    %31 = vector.load %arg9[%c0_26, %c0_27, %c0_28] : memref<1x16x128xf32, #tpu.memory_space<vmem>>, vector<1x16x128xf32>
    %32 = vector.shape_cast %31 : vector<1x16x128xf32> to vector<16x128xf32>
    %33 = vector.shape_cast %30 : vector<16x128xf32> to vector<1x16x128xf32>
    tpu.vector_store %arg9[%c0_26, %c0_27, %c0_28], %33 {strides = array<i32>} : memref<1x16x128xf32, #tpu.memory_space<vmem>>, vector<1x16x128xf32>,
    return
  }
  func.func @transform_0(%arg0: i32) -> (i32, i32) {
    %c0_i32 = arith.constant 0 : i32
    %c0_i32_0 = arith.constant 0 : i32
    return %c0_i32, %arg0 : i32, i32
  }
  func.func @transform_1(%arg0: i32) -> (i32, i32, i32) {
    %c0_i32 = arith.constant 0 : i32
    %c0_i32_0 = arith.constant 0 : i32
    %c0_i32_1 = arith.constant 0 : i32
    return %arg0, %c0_i32, %c0_i32_0 : i32, i32, i32
  }
  func.func @transform_2(%arg0: i32) -> (i32, i32, i32) {
    %c0_i32 = arith.constant 0 : i32
    %c0_i32_0 = arith.constant 0 : i32
    %c0_i32_1 = arith.constant 0 : i32
    return %arg0, %c0_i32, %c0_i32_0 : i32, i32, i32
  }
  func.func @transform_3(%arg0: i32) -> (i32, i32, i32) {
    %c0_i32 = arith.constant 0 : i32
    %c0_i32_0 = arith.constant 0 : i32
    %c0_i32_1 = arith.constant 0 : i32
    return %arg0, %c0_i32, %c0_i32_0 : i32, i32, i32
  }
  func.func @transform_4(%arg0: i32) -> (i32, i32, i32) {
    %c0_i32 = arith.constant 0 : i32
    %c0_i32_0 = arith.constant 0 : i32
    %c0_i32_1 = arith.constant 0 : i32
    return %arg0, %c0_i32, %c0_i32_0 : i32, i32, i32
  }
  func.func @transform_5(%arg0: i32) -> (i32, i32, i32) {
    %c0_i32 = arith.constant 0 : i32
    %c0_i32_0 = arith.constant 0 : i32
    %c0_i32_1 = arith.constant 0 : i32
    return %arg0, %c0_i32, %c0_i32_0 : i32, i32, i32
  }
  func.func @transform_6(%arg0: i32) -> (i32, i32, i32) {
    %c0_i32 = arith.constant 0 : i32
    %c0_i32_0 = arith.constant 0 : i32
    %c0_i32_1 = arith.constant 0 : i32
    return %arg0, %c0_i32, %c0_i32_0 : i32, i32, i32
  }
  func.func @transform_7(%arg0: i32) -> (i32, i32, i32) {
    %c0_i32 = arith.constant 0 : i32
    %c0_i32_0 = arith.constant 0 : i32
    %c0_i32_1 = arith.constant 0 : i32
    return %arg0, %c0_i32, %c0_i32_0 : i32, i32, i32
  }
  func.func @transform_8(%arg0: i32) -> (i32, i32, i32) {
    %c0_i32 = arith.constant 0 : i32
    %c0_i32_0 = arith.constant 0 : i32
    %c0_i32_1 = arith.constant 0 : i32
    return %arg0, %c0_i32, %c0_i32_0 : i32, i32, i32
  }
}

</mosaic_0001>

<llo_original>
// kernel: model_forward.1
$region0: #{model_forward.1}
  #allocation0 [shape = 'u32[]', space=smem, size = 0x4, offset = 0x4, fixed_abs, tag = 'smem constant byte address 0x4 - core index']
  #allocation1 [shape = 'u32[144,128]{1,0:T(1,128)}', space=vmem, size = 0x12000, scoped, tag = 'internal scratch']
  %s0 = inlined_call_operand.vmem [shape: bf16[16,2048], index: 0, kind: input, shape index: {}]
  %s1 = inlined_call_operand.hbm [shape: bf16[2,1024,1024], index: 1, kind: input, shape index: {}]
  %s2 = inlined_call_operand.hbm [shape: f32[2,1,1024], index: 2, kind: input, shape index: {}]
  %s3 = inlined_call_operand.hbm [shape: bf16[2,1024,1024], index: 3, kind: input, shape index: {}]
  %s4 = inlined_call_operand.hbm [shape: f32[2,1,1024], index: 4, kind: input, shape index: {}]
  %s5 = inlined_call_operand.hbm [shape: bf16[2,1024,128], index: 5, kind: input, shape index: {}]
  %s6 = inlined_call_operand.hbm [shape: f32[2,1,128], index: 6, kind: input, shape index: {}]
  %s7 = inlined_call_operand.vmem [shape: f32[2,16,1024], index: 7, kind: output, shape index: {0}]
  %s8 = inlined_call_operand.vmem [shape: f32[2,16,128], index: 8, kind: output, shape index: {1}]
  %9 = xla_tuple %s7, %s8
  %s10 = sld [smem:[#allocation0]]
  $region116: #{model_forward.1} parent=0
    _
  %s12 = ssub.s32 1, %s10
  %s13 = scalar_select 0, %s12, %s10
  $region1: #{model_forward.1} parent=0
    #allocation2 [shape = 'u8[65536]{0}', space=vmem, size = 0x10000, scoped, tag = 'input window, operand 0']
    #allocation3 [shape = 'u8[4194304]{0}', space=vmem, size = 0x400000, scoped, tag = 'input window, operand 1']
    #allocation4 [shape = 's32[2]{0}', space=sflag, size = 0x8, scoped, tag = 'scoped memory for model_forward.1']
    #allocation5 [shape = 'u8[8192]{0}', space=vmem, size = 0x2000, scoped, tag = 'input window, operand 2']
    #allocation6 [shape = 's32[2]{0}', space=sflag, size = 0x8, scoped, tag = 'scoped memory for model_forward.1']
    #allocation7 [shape = 'u8[4194304]{0}', space=vmem, size = 0x400000, scoped, tag = 'input window, operand 3']
    #allocation8 [shape = 'u8[8192]{0}', space=vmem, size = 0x2000, scoped, tag = 'input window, operand 4']
    #allocation9 [shape = 's32[2]{0}', space=sflag, size = 0x8, scoped, tag = 'scoped memory for model_forward.1']
    #allocation10 [shape = 'u8[524288]{0}', space=vmem, size = 0x80000, scoped, tag = 'input window, operand 5']
    #allocation11 [shape = 'u8[1024]{0}', space=vmem, size = 0x400, scoped, tag = 'input window, operand 6']
    #allocation12 [shape = 's32[2]{0}', space=sflag, size = 0x8, scoped, tag = 'scoped memory for model_forward.1']
    %14 = vsyncpa [#allocation4], 0
    %s15 = scalar_lea.sflag [#allocation4], 1
    %16 = vsyncpa %s15, 0
    %17 = vsyncpa [#allocation6], 0
    %s18 = scalar_lea.sflag [#allocation6], 1
    %19 = vsyncpa %s18, 0
    %20 = vsyncpa [#allocation9], 0
    %s21 = scalar_lea.sflag [#allocation9], 1
    %22 = vsyncpa %s21, 0
    %23 = vsyncpa [#allocation12], 0
    %s24 = scalar_lea.sflag [#allocation12], 1
    %25 = vsyncpa %s24, 0
    loop: start=0, step=1, limit=4
    $region2: #{model_forward.1} parent=1 // loop_pre_header
      _
    $region3: #{model_forward.1} parent=1 // loop_header
      %s27 = sphi 0, %s31
      %p28 = scmp.ge.s32.totalorder %s27, 4
      %s37 = sphi 0, %s39
      %s40 = sphi 0, %s37
      %s41 = sphi 0, %s40
      %s57 = sphi 0, %s41
      %s63 = sphi 0, %s65
      %s66 = sphi 0, %s63
      %s67 = sphi 0, %s66
      %s83 = sphi 0, %s67
      %s89 = sphi 0, %s91
      %s92 = sphi 0, %s89
      %s93 = sphi 0, %s92
      %s109 = sphi 0, %s93
      %s115 = sphi 0, %s117
      %s118 = sphi 0, %s115
      %s119 = sphi 0, %s118
      %s135 = sphi 0, %s119
      %s141 = sphi 0, %s143
      %s144 = sphi 0, %s141
      %s145 = sphi 0, %s144
      %s161 = sphi 0, %s145
      %s167 = sphi 0, %s169
      %s170 = sphi 0, %s167
      %s171 = sphi 0, %s170
      %s187 = sphi 0, %s171
      %s193 = sphi 0, %s195
      %s196 = sphi 0, %s193
      %s197 = sphi 0, %s196
      %s213 = sphi 0, %s197
      %s219 = sphi 0, %s221
      %s222 = sphi 0, %s219
      %s223 = sphi 0, %s222
      %s239 = sphi 0, %s223
      %s245 = sphi 0, %s247
      %s248 = sphi 0, %s245
      %s249 = sphi 0, %s248
      %s265 = sphi 0, %s249
    $region4: #{model_forward.1} parent=1 // loop_header_branch
      %30 = sbr.rel (%p28) target = $region8
    $region5: #{model_forward.1} parent=1 // loop_body
      %s32 = ssub.s32 %s27, 1
      %s33 = ssub.s32 %s27, 2
      %s34 = sadd.s32 %s27, 1
      %s35 = ssub.s32 %s27, %s34
      %p36 = scmp.eq.s32.totalorder %s35, 0
      %s38 = sadd.s32 %s37, 1
      %s39 = scalar_select %p36, %s37, %s38
      %p42 = pneg %p36
      %p43 = scmp.eq.s32.totalorder %s27, 1
      %p44 = por %p42, %p43
      %p45 = scmp.ne.s32.totalorder %s37, %s40
      %p46 = scmp.eq.s32.totalorder %s27, 0
      %p47 = por %p45, %p46
      %p48 = scmp.ne.s32.totalorder %s37, %s40
      %p49 = scmp.eq.s32.totalorder %s32, 1
      %p50 = por %p48, %p49
      %p51 = scmp.ne.s32.totalorder %s40, %s41
      %p52 = scmp.eq.s32.totalorder %s32, 0
      %p53 = por %p51, %p52
      %p54 = scmp.ne.s32.totalorder %s40, %s41
      %p55 = scmp.eq.s32.totalorder %s33, 1
      %p56 = por %p54, %p55
      %p58 = scmp.ne.s32.totalorder %s41, %s57
      %p59 = scmp.eq.s32.totalorder %s33, 0
      %p60 = por %p58, %p59
      %s61 = ssub.s32 %s27, %s34
      %p62 = scmp.eq.s32.totalorder %s61, 0
      %s64 = sadd.s32 %s63, 1
      %s65 = scalar_select %p62, %s63, %s64
      %p68 = pneg %p62
      %p69 = scmp.eq.s32.totalorder %s27, 1
      %p70 = por %p68, %p69
      %p71 = scmp.ne.s32.totalorder %s63, %s66
      %p72 = scmp.eq.s32.totalorder %s27, 0
      %p73 = por %p71, %p72
      %p74 = scmp.ne.s32.totalorder %s63, %s66
      %p75 = scmp.eq.s32.totalorder %s32, 1
      %p76 = por %p74, %p75
      %p77 = scmp.ne.s32.totalorder %s66, %s67
      %p78 = scmp.eq.s32.totalorder %s32, 0
      %p79 = por %p77, %p78
      %p80 = scmp.ne.s32.totalorder %s66, %s67
      %p81 = scmp.eq.s32.totalorder %s33, 1
      %p82 = por %p80, %p81
      %p84 = scmp.ne.s32.totalorder %s67, %s83
      %p85 = scmp.eq.s32.totalorder %s33, 0
      %p86 = por %p84, %p85
      %s87 = ssub.s32 %s27, %s34
      %p88 = scmp.eq.s32.totalorder %s87, 0
      %s90 = sadd.s32 %s89, 1
      %s91 = scalar_select %p88, %s89, %s90
      %p94 = pneg %p88
      %p95 = scmp.eq.s32.totalorder %s27, 1
      %p96 = por %p94, %p95
      %p97 = scmp.ne.s32.totalorder %s89, %s92
      %p98 = scmp.eq.s32.totalorder %s27, 0
      %p99 = por %p97, %p98
      %p100 = scmp.ne.s32.totalorder %s89, %s92
      %p101 = scmp.eq.s32.totalorder %s32, 1
      %p102 = por %p100, %p101
      %p103 = scmp.ne.s32.totalorder %s92, %s93
      %p104 = scmp.eq.s32.totalorder %s32, 0
      %p105 = por %p103, %p104
      %p106 = scmp.ne.s32.totalorder %s92, %s93
      %p107 = scmp.eq.s32.totalorder %s33, 1
      %p108 = por %p106, %p107
      %p110 = scmp.ne.s32.totalorder %s93, %s109
      %p111 = scmp.eq.s32.totalorder %s33, 0
      %p112 = por %p110, %p111
      %s113 = ssub.s32 %s27, %s34
      %p114 = scmp.eq.s32.totalorder %s113, 0
      %s116 = sadd.s32 %s115, 1
      %s117 = scalar_select %p114, %s115, %s116
      %p120 = pneg %p114
      %p121 = scmp.eq.s32.totalorder %s27, 1
      %p122 = por %p120, %p121
      %p123 = scmp.ne.s32.totalorder %s115, %s118
      %p124 = scmp.eq.s32.totalorder %s27, 0
      %p125 = por %p123, %p124
      %p126 = scmp.ne.s32.totalorder %s115, %s118
      %p127 = scmp.eq.s32.totalorder %s32, 1
      %p128 = por %p126, %p127
      %p129 = scmp.ne.s32.totalorder %s118, %s119
      %p130 = scmp.eq.s32.totalorder %s32, 0
      %p131 = por %p129, %p130
      %p132 = scmp.ne.s32.totalorder %s118, %s119
      %p133 = scmp.eq.s32.totalorder %s33, 1
      %p134 = por %p132, %p133
      %p136 = scmp.ne.s32.totalorder %s119, %s135
      %p137 = scmp.eq.s32.totalorder %s33, 0
      %p138 = por %p136, %p137
      %s139 = ssub.s32 %s27, %s34
      %p140 = scmp.eq.s32.totalorder %s139, 0
      %s142 = sadd.s32 %s141, 1
      %s143 = scalar_select %p140, %s141, %s142
      %p146 = pneg %p140
      %p147 = scmp.eq.s32.totalorder %s27, 1
      %p148 = por %p146, %p147
      %p149 = scmp.ne.s32.totalorder %s141, %s144
      %p150 = scmp.eq.s32.totalorder %s27, 0
      %p151 = por %p149, %p150
      %p152 = scmp.ne.s32.totalorder %s141, %s144
      %p153 = scmp.eq.s32.totalorder %s32, 1
      %p154 = por %p152, %p153
      %p155 = scmp.ne.s32.totalorder %s144, %s145
      %p156 = scmp.eq.s32.totalorder %s32, 0
      %p157 = por %p155, %p156
      %p158 = scmp.ne.s32.totalorder %s144, %s145
      %p159 = scmp.eq.s32.totalorder %s33, 1
      %p160 = por %p158, %p159
      %p162 = scmp.ne.s32.totalorder %s145, %s161
      %p163 = scmp.eq.s32.totalorder %s33, 0
      %p164 = por %p162, %p163
      %s165 = ssub.s32 %s27, %s34
      %p166 = scmp.eq.s32.totalorder %s165, 0
      %s168 = sadd.s32 %s167, 1
      %s169 = scalar_select %p166, %s167, %s168
      %p172 = pneg %p166
      %p173 = scmp.eq.s32.totalorder %s27, 1
      %p174 = por %p172, %p173
      %p175 = scmp.ne.s32.totalorder %s167, %s170
      %p176 = scmp.eq.s32.totalorder %s27, 0
      %p177 = por %p175, %p176
      %p178 = scmp.ne.s32.totalorder %s167, %s170
      %p179 = scmp.eq.s32.totalorder %s32, 1
      %p180 = por %p178, %p179
      %p181 = scmp.ne.s32.totalorder %s170, %s171
      %p182 = scmp.eq.s32.totalorder %s32, 0
      %p183 = por %p181, %p182
      %p184 = scmp.ne.s32.totalorder %s170, %s171
      %p185 = scmp.eq.s32.totalorder %s33, 1
      %p186 = por %p184, %p185
      %p188 = scmp.ne.s32.totalorder %s171, %s187
      %p189 = scmp.eq.s32.totalorder %s33, 0
      %p190 = por %p188, %p189
      %s191 = ssub.s32 %s27, %s34
      %p192 = scmp.eq.s32.totalorder %s191, 0
      %s194 = sadd.s32 %s193, 1
      %s195 = scalar_select %p192, %s193, %s194
      %p198 = pneg %p192
      %p199 = scmp.eq.s32.totalorder %s27, 1
      %p200 = por %p198, %p199
      %p201 = scmp.ne.s32.totalorder %s193, %s196
      %p202 = scmp.eq.s32.totalorder %s27, 0
      %p203 = por %p201, %p202
      %p204 = scmp.ne.s32.totalorder %s193, %s196
      %p205 = scmp.eq.s32.totalorder %s32, 1
      %p206 = por %p204, %p205
      %p207 = scmp.ne.s32.totalorder %s196, %s197
      %p208 = scmp.eq.s32.totalorder %s32, 0
      %p209 = por %p207, %p208
      %p210 = scmp.ne.s32.totalorder %s196, %s197
      %p211 = scmp.eq.s32.totalorder %s33, 1
      %p212 = por %p210, %p211
      %p214 = scmp.ne.s32.totalorder %s197, %s213
      %p215 = scmp.eq.s32.totalorder %s33, 0
      %p216 = por %p214, %p215
      %s217 = ssub.s32 %s27, %s34
      %p218 = scmp.eq.s32.totalorder %s217, 0
      %s220 = sadd.s32 %s219, 1
      %s221 = scalar_select %p218, %s219, %s220
      %p224 = pneg %p218
      %p225 = scmp.eq.s32.totalorder %s27, 1
      %p226 = por %p224, %p225
      %p227 = scmp.ne.s32.totalorder %s219, %s222
      %p228 = scmp.eq.s32.totalorder %s27, 0
      %p229 = por %p227, %p228
      %p230 = scmp.ne.s32.totalorder %s219, %s222
      %p231 = scmp.eq.s32.totalorder %s32, 1
      %p232 = por %p230, %p231
      %p233 = scmp.ne.s32.totalorder %s222, %s223
      %p234 = scmp.eq.s32.totalorder %s32, 0
      %p235 = por %p233, %p234
      %p236 = scmp.ne.s32.totalorder %s222, %s223
      %p237 = scmp.eq.s32.totalorder %s33, 1
      %p238 = por %p236, %p237
      %p240 = scmp.ne.s32.totalorder %s223, %s239
      %p241 = scmp.eq.s32.totalorder %s33, 0
      %p242 = por %p240, %p241
      %s243 = ssub.s32 %s27, %s34
      %p244 = scmp.eq.s32.totalorder %s243, 0
      %s246 = sadd.s32 %s245, 1
      %s247 = scalar_select %p244, %s245, %s246
      %p250 = pneg %p244
      %p251 = scmp.eq.s32.totalorder %s27, 1
      %p252 = por %p250, %p251
      %p253 = scmp.ne.s32.totalorder %s245, %s248
      %p254 = scmp.eq.s32.totalorder %s27, 0
      %p255 = por %p253, %p254
      %p256 = scmp.ne.s32.totalorder %s245, %s248
      %p257 = scmp.eq.s32.totalorder %s32, 1
      %p258 = por %p256, %p257
      %p259 = scmp.ne.s32.totalorder %s248, %s249
      %p260 = scmp.eq.s32.totalorder %s32, 0
      %p261 = por %p259, %p260
      %p262 = scmp.ne.s32.totalorder %s248, %s249
      %p263 = scmp.eq.s32.totalorder %s33, 1
      %p264 = por %p262, %p263
      %p266 = scmp.ne.s32.totalorder %s249, %s265
      %p267 = scmp.eq.s32.totalorder %s33, 0
      %p268 = por %p266, %p267
      %p269 = scmp.le.s32.totalorder 1, %s27
      %p270 = scmp.lt.s32.totalorder %s27, 3
      %p271 = pnand %p269, %p270
      %p272 = pneg %p271
      // Predicated region
      $region9: #{model_forward.1} parent=5 // pred_check
        _
      $region10: #{model_forward.1} parent=5 // pred_check_branch
        %274 = sbr.rel (%p271) target = $region12
      $region11: #{model_forward.1} parent=5 // pred_region
        %s275 = ssub.s32 %s27, 1
      $region12: #{model_forward.1} parent=5 // pred_fallthru
        _
      %p276 = scmp.lt.s32.totalorder %s27, 2
      // Predicated region
      $region13: #{model_forward.1} parent=5 // pred_check
        %p277 = pneg %p276
      $region14: #{model_forward.1} parent=5 // pred_check_branch
        %279 = sbr.rel (%p277) target = $region16
      $region15: #{model_forward.1} parent=5 // pred_region
        // Predicated region
        $region17: #{model_forward.1} parent=15 // pred_check
          %p280 = pneg %p47
        $region18: #{model_forward.1} parent=15 // pred_check_branch
          %282 = sbr.rel (%p280) target = $region20
        $region19: #{model_forward.1} parent=15 // pred_region
          %s283 = sand.u32 %s37, 1
          %s284 = sand.u32 %s37, 1
          %s285 = smul.addr %s284, 64
          %s286 = scalar_lea.vmem [#allocation2], %s285
          %s287 = smul.u32 8, %s27
          %s288 = smul.addr %s287, 4
          %s289 = scalar_lea.vmem %s0, %s288
          // Predicated region
          $region21: #{model_forward.1} parent=19 // pred_check
            _
          $region22: #{model_forward.1} parent=19 // pred_check_branch
            %291 = sbr.rel (0) target = $region24
          $region23: #{model_forward.1} parent=19 // pred_region
            // Predicated region
            $region25: #{model_forward.1} parent=23 // pred_check
              _
            $region26: #{model_forward.1} parent=23 // pred_check_branch
              %293 = sbr.rel (0) target = $region28
            $region27: #{model_forward.1} parent=23 // pred_region
              loop: start=0, step=1, limit=1
              $region29: #{model_forward.1} parent=27 // loop_pre_header
                _
              $region30: #{model_forward.1} parent=27 // loop_header
                %s295 = sphi 0, %s299
                %p296 = scmp.ge.s32.totalorder %s295, 1
                %s300 = sphi %s289, %s289
                %s301 = sphi %s286, %s286
              $region31: #{model_forward.1} parent=27 // loop_header_branch
                %298 = sbr.rel (%p296) target = $region35
              $region32: #{model_forward.1} parent=27 // loop_body
                %v302 = vld [vmem:[%s300] sm:$0xff]
                %303 = vst [vmem:[%s301] sm:$0xff] %v302
                %v304 = vld [vmem:[%s300 + $0x8] sm:$0xff]
                %305 = vst [vmem:[%s301 + $0x8] sm:$0xff] %v304
                %v306 = vld [vmem:[%s300 + $0x10] sm:$0xff]
                %307 = vst [vmem:[%s301 + $0x10] sm:$0xff] %v306
                %v308 = vld [vmem:[%s300 + $0x18] sm:$0xff]
                %309 = vst [vmem:[%s301 + $0x18] sm:$0xff] %v308
                %v310 = vld [vmem:[%s300 + $0x40] sm:$0xff]
                %311 = vst [vmem:[%s301 + $0x20] sm:$0xff] %v310
                %v312 = vld [vmem:[%s300 + $0x48] sm:$0xff]
                %313 = vst [vmem:[%s301 + $0x28] sm:$0xff] %v312
                %v314 = vld [vmem:[%s300 + $0x50] sm:$0xff]
                %315 = vst [vmem:[%s301 + $0x30] sm:$0xff] %v314
                %v316 = vld [vmem:[%s300 + $0x58] sm:$0xff]
                %317 = vst [vmem:[%s301 + $0x38] sm:$0xff] %v316
              $region33: #{model_forward.1} parent=27 // loop_footer
                %s299 = sadd.s32 1, %s295
              $region34: #{model_forward.1} parent=27 // loop_footer_branch
                %294 = sbr.rel target = $region30
              $region35: #{model_forward.1} parent=27 // loop_exit
                _
            $region28: #{model_forward.1} parent=23 // pred_fallthru
              _
            // Predicated region
            $region36: #{model_forward.1} parent=23 // pred_check
              _
            $region37: #{model_forward.1} parent=23 // pred_check_branch
              %319 = sbr.rel target = $region39
            $region38: #{model_forward.1} parent=23 // pred_region
              _
            $region39: #{model_forward.1} parent=23 // pred_fallthru
              _
          $region24: #{model_forward.1} parent=19 // pred_fallthru
            _
          %320 = vnop
        $region20: #{model_forward.1} parent=15 // pred_fallthru
          _
        // Predicated region
        $region40: #{model_forward.1} parent=15 // pred_check
          %p321 = pneg %p73
        $region41: #{model_forward.1} parent=15 // pred_check_branch
          %323 = sbr.rel (%p321) target = $region43
        $region42: #{model_forward.1} parent=15 // pred_region
          %s324 = sand.u32 %s63, 1
          %s325 = scalar_lea.sflag [#allocation4], %s324
          %s326 = sand.u32 %s63, 1
          %s327 = smul.addr %s326, 4096
          %s328 = scalar_lea.vmem [#allocation3], %s327
          %s330 = ssub.s32 65536, 65536
          %331 = vsyncadd %s325, %s330
          %s332 = smul.addr %s27, 1024
          %s333 = smul.addr %s332, 64
          %s334 = scalar_lea.hbm %s1, %s333
          %s335 = sshll.u32 %s328, 4
          %s336 = int_to_ptr.vmem [resolvable:$true] %s335
          %341 = dma.hbm_to_vmem [thread:$0]  %s334, 65536, %s336, %s325, 512, 512, 32
        $region43: #{model_forward.1} parent=15 // pred_fallthru
          _
        // Predicated region
        $region44: #{model_forward.1} parent=15 // pred_check
          %p342 = pneg %p99
        $region45: #{model_forward.1} parent=15 // pred_check_branch
          %344 = sbr.rel (%p342) target = $region47
        $region46: #{model_forward.1} parent=15 // pred_region
          %s345 = sand.u32 %s27, 1
          %s346 = scalar_lea.sflag [#allocation6], %s345
          %s347 = sand.u32 %s89, 1
          %s348 = smul.addr %s347, 8
          %s349 = scalar_lea.vmem [#allocation5], %s348
          %s351 = ssub.s32 128, 128
          %352 = vsyncadd %s346, %s351
          %s353 = smul.addr %s27, 8
          %s354 = smul.addr %s353, 16
          %s355 = scalar_lea.hbm %s2, %s354
          %s357 = sshll.u32 %s349, 4
          %s358 = int_to_ptr.vmem [resolvable:$true] %s357
          %360 = dma.hbm_to_vmem [thread:$0]  %s355, 128, %s358, %s346
        $region47: #{model_forward.1} parent=15 // pred_fallthru
          _
        // Predicated region
        $region48: #{model_forward.1} parent=15 // pred_check
          %p361 = pneg %p125
        $region49: #{model_forward.1} parent=15 // pred_check_branch
          %363 = sbr.rel (%p361) target = $region51
        $region50: #{model_forward.1} parent=15 // pred_region
          %s364 = sand.u32 %s27, 1
          %s365 = scalar_lea.sflag [#allocation6], %s364
          %s366 = sand.u32 %s115, 1
          %s367 = smul.addr %s366, 4096
          %s368 = scalar_lea.vmem [#allocation7], %s367
          %s370 = ssub.s32 65536, 65536
          %371 = vsyncadd %s365, %s370
          %s372 = smul.addr %s27, 1024
          %s373 = smul.addr %s372, 64
          %s374 = scalar_lea.hbm %s3, %s373
          %s375 = sshll.u32 %s368, 4
          %s376 = int_to_ptr.vmem [resolvable:$true] %s375
          %381 = dma.hbm_to_vmem [thread:$0]  %s374, 65536, %s376, %s365, 512, 512, 32
        $region51: #{model_forward.1} parent=15 // pred_fallthru
          _
        // Predicated region
        $region52: #{model_forward.1} parent=15 // pred_check
          %p382 = pneg %p151
        $region53: #{model_forward.1} parent=15 // pred_check_branch
          %384 = sbr.rel (%p382) target = $region55
        $region54: #{model_forward.1} parent=15 // pred_region
          %s385 = sand.u32 %s27, 1
          %s386 = scalar_lea.sflag [#allocation9], %s385
          %s387 = sand.u32 %s141, 1
          %s388 = smul.addr %s387, 8
          %s389 = scalar_lea.vmem [#allocation8], %s388
          %s391 = ssub.s32 128, 128
          %392 = vsyncadd %s386, %s391
          %s393 = smul.addr %s27, 8
          %s394 = smul.addr %s393, 16
          %s395 = scalar_lea.hbm %s4, %s394
          %s397 = sshll.u32 %s389, 4
          %s398 = int_to_ptr.vmem [resolvable:$true] %s397
          %400 = dma.hbm_to_vmem [thread:$0]  %s395, 128, %s398, %s386
        $region55: #{model_forward.1} parent=15 // pred_fallthru
          _
        // Predicated region
        $region56: #{model_forward.1} parent=15 // pred_check
          %p401 = pneg %p177
        $region57: #{model_forward.1} parent=15 // pred_check_branch
          %403 = sbr.rel (%p401) target = $region59
        $region58: #{model_forward.1} parent=15 // pred_region
          %s404 = sand.u32 %s27, 1
          %s405 = scalar_lea.sflag [#allocation9], %s404
          %s406 = sand.u32 %s167, 1
          %s407 = smul.addr %s406, 512
          %s408 = scalar_lea.vmem [#allocation10], %s407
          %s410 = ssub.s32 8192, 8192
          %411 = vsyncadd %s405, %s410
          %s412 = smul.addr %s27, 128
          %s413 = smul.addr %s412, 64
          %s414 = scalar_lea.hbm %s5, %s413
          %s415 = sshll.u32 %s408, 4
          %s416 = int_to_ptr.vmem [resolvable:$true] %s415
          %421 = dma.hbm_to_vmem [thread:$0]  %s414, 8192, %s416, %s405, 64, 64, 4
        $region59: #{model_forward.1} parent=15 // pred_fallthru
          _
        // Predicated region
        $region60: #{model_forward.1} parent=15 // pred_check
          %p422 = pneg %p203
        $region61: #{model_forward.1} parent=15 // pred_check_branch
          %424 = sbr.rel (%p422) target = $region63
        $region62: #{model_forward.1} parent=15 // pred_region
          %s425 = sand.u32 %s193, 1
          %s426 = scalar_lea.sflag [#allocation12], %s425
          %s427 = sand.u32 %s193, 1
          %s428 = scalar_lea.vmem [#allocation11], %s427
          %s430 = ssub.s32 16, 16
          %431 = vsyncadd %s426, %s430
          %s432 = smul.addr %s27, 16
          %s433 = scalar_lea.hbm %s6, %s432
          %s435 = sshll.u32 %s428, 4
          %s436 = int_to_ptr.vmem [resolvable:$true] %s435
          %438 = dma.hbm_to_vmem [thread:$0]  %s433, 16, %s436, %s426
        $region63: #{model_forward.1} parent=15 // pred_fallthru
          _
      $region16: #{model_forward.1} parent=5 // pred_fallthru
        _
      %p439 = scmp.le.s32.totalorder 1, %s27
      %p440 = scmp.lt.s32.totalorder %s27, 3
      %p441 = pnand %p439, %p440
      %p442 = pneg %p441
      // Predicated region
      $region64: #{model_forward.1} parent=5 // pred_check
        _
      $region65: #{model_forward.1} parent=5 // pred_check_branch
        %444 = sbr.rel (%p441) target = $region67
      $region66: #{model_forward.1} parent=5 // pred_region
        %s445 = ssub.s32 %s27, 1
        %s446 = sand.u32 %s40, 1
        %s447 = sand.u32 %s40, 1
        %s448 = smul.addr %s447, 64
        %s449 = scalar_lea.vmem [#allocation2], %s448
        // Predicated region
        $region68: #{model_forward.1} parent=66 // pred_check
          %p450 = pneg %p53
        $region69: #{model_forward.1} parent=66 // pred_check_branch
          %452 = sbr.rel (%p450) target = $region71
        $region70: #{model_forward.1} parent=66 // pred_region
          _
        $region71: #{model_forward.1} parent=66 // pred_fallthru
          _
        %s453 = sand.u32 %s66, 1
        %s454 = scalar_lea.sflag [#allocation4], %s453
        %s455 = sand.u32 %s66, 1
        %s456 = smul.addr %s455, 4096
        %s457 = scalar_lea.vmem [#allocation3], %s456
        // Predicated region
        $region72: #{model_forward.1} parent=66 // pred_check
          %p458 = pneg %p79
        $region73: #{model_forward.1} parent=66 // pred_check_branch
          %460 = sbr.rel (%p458) target = $region75
        $region74: #{model_forward.1} parent=66 // pred_region
          %461 = dma.done %s454, 65536
        $region75: #{model_forward.1} parent=66 // pred_fallthru
          _
        %s462 = sand.u32 %s32, 1
        %s463 = scalar_lea.sflag [#allocation6], %s462
        %s464 = sand.u32 %s92, 1
        %s465 = smul.addr %s464, 8
        %s466 = scalar_lea.vmem [#allocation5], %s465
        // Predicated region
        $region76: #{model_forward.1} parent=66 // pred_check
          %p467 = pneg %p105
        $region77: #{model_forward.1} parent=66 // pred_check_branch
          %469 = sbr.rel (%p467) target = $region79
        $region78: #{model_forward.1} parent=66 // pred_region
          %470 = dma.done %s463, 128
        $region79: #{model_forward.1} parent=66 // pred_fallthru
          _
        %s471 = sand.u32 %s32, 1
        %s472 = scalar_lea.sflag [#allocation6], %s471
        %s473 = sand.u32 %s118, 1
        %s474 = smul.addr %s473, 4096
        %s475 = scalar_lea.vmem [#allocation7], %s474
        // Predicated region
        $region80: #{model_forward.1} parent=66 // pred_check
          %p476 = pneg %p131
        $region81: #{model_forward.1} parent=66 // pred_check_branch
          %478 = sbr.rel (%p476) target = $region83
        $region82: #{model_forward.1} parent=66 // pred_region
          %479 = dma.done %s472, 65536
        $region83: #{model_forward.1} parent=66 // pred_fallthru
          _
        %s480 = sand.u32 %s32, 1
        %s481 = scalar_lea.sflag [#allocation9], %s480
        %s482 = sand.u32 %s144, 1
        %s483 = smul.addr %s482, 8
        %s484 = scalar_lea.vmem [#allocation8], %s483
        // Predicated region
        $region84: #{model_forward.1} parent=66 // pred_check
          %p485 = pneg %p157
        $region85: #{model_forward.1} parent=66 // pred_check_branch
          %487 = sbr.rel (%p485) target = $region87
        $region86: #{model_forward.1} parent=66 // pred_region
          %488 = dma.done %s481, 128
        $region87: #{model_forward.1} parent=66 // pred_fallthru
          _
        %s489 = sand.u32 %s32, 1
        %s490 = scalar_lea.sflag [#allocation9], %s489
        %s491 = sand.u32 %s170, 1
        %s492 = smul.addr %s491, 512
        %s493 = scalar_lea.vmem [#allocation10], %s492
        // Predicated region
        $region88: #{model_forward.1} parent=66 // pred_check
          %p494 = pneg %p183
        $region89: #{model_forward.1} parent=66 // pred_check_branch
          %496 = sbr.rel (%p494) target = $region91
        $region90: #{model_forward.1} parent=66 // pred_region
          %497 = dma.done %s490, 8192
        $region91: #{model_forward.1} parent=66 // pred_fallthru
          _
        %s498 = sand.u32 %s196, 1
        %s499 = scalar_lea.sflag [#allocation12], %s498
        %s500 = sand.u32 %s196, 1
        %s501 = scalar_lea.vmem [#allocation11], %s500
        // Predicated region
        $region92: #{model_forward.1} parent=66 // pred_check
          %p502 = pneg %p209
        $region93: #{model_forward.1} parent=66 // pred_check_branch
          %504 = sbr.rel (%p502) target = $region95
        $region94: #{model_forward.1} parent=66 // pred_region
          %505 = dma.done %s499, 16
        $region95: #{model_forward.1} parent=66 // pred_fallthru
          _
        %s506 = sand.u32 %s40, 1
        %s507 = sand.u32 %s40, 1
        %s508 = smul.addr %s507, 64
        %s509 = scalar_lea.vmem [#allocation2], %s508
        %p510 = pneg %p53
        %p511 = pneg %p50
        %s512 = sand.u32 %s66, 1
        %s513 = scalar_lea.sflag [#allocation4], %s512
        %s514 = sand.u32 %s66, 1
        %s515 = smul.addr %s514, 4096
        %s516 = scalar_lea.vmem [#allocation3], %s515
        %p517 = pneg %p79
        %p518 = pneg %p76
        %s519 = sand.u32 %s32, 1
        %s520 = scalar_lea.sflag [#allocation6], %s519
        %s521 = sand.u32 %s92, 1
        %s522 = smul.addr %s521, 8
        %s523 = scalar_lea.vmem [#allocation5], %s522
        %p524 = pneg %p105
        %p525 = pneg %p102
        %s526 = sand.u32 %s32, 1
        %s527 = scalar_lea.sflag [#allocation6], %s526
        %s528 = sand.u32 %s118, 1
        %s529 = smul.addr %s528, 4096
        %s530 = scalar_lea.vmem [#allocation7], %s529
        %p531 = pneg %p131
        %p532 = pneg %p128
        %s533 = sand.u32 %s32, 1
        %s534 = scalar_lea.sflag [#allocation9], %s533
        %s535 = sand.u32 %s144, 1
        %s536 = smul.addr %s535, 8
        %s537 = scalar_lea.vmem [#allocation8], %s536
        %p538 = pneg %p157
        %p539 = pneg %p154
        %s540 = sand.u32 %s32, 1
        %s541 = scalar_lea.sflag [#allocation9], %s540
        %s542 = sand.u32 %s170, 1
        %s543 = smul.addr %s542, 512
        %s544 = scalar_lea.vmem [#allocation10], %s543
        %p545 = pneg %p183
        %p546 = pneg %p180
        %s547 = sand.u32 %s196, 1
        %s548 = scalar_lea.sflag [#allocation12], %s547
        %s549 = sand.u32 %s196, 1
        %s550 = scalar_lea.vmem [#allocation11], %s549
        %p551 = pneg %p209
        %p552 = pneg %p206
        %p553 = pneg %p235
        %p554 = pneg %p232
        %p555 = scmp.lt.s32.totalorder %s32, 1
        %s556 = scalar_select %p555, %s32, 1
        %s557 = smul.addr %s556, 16
        %s558 = smul.addr %s557, 8
        %s559 = scalar_lea.vmem %s7, %s558
        %p560 = pneg %p261
        %p561 = pneg %p258
        %p562 = scmp.lt.s32.totalorder %s32, 1
        %s563 = scalar_select %p562, %s32, 1
        %s564 = smul.addr %s563, 2
        %s565 = smul.addr %s564, 8
        %s566 = scalar_lea.vmem %s8, %s565
        %s567 = smul.u32 8, %s32
        %p568 = scmp.lt.s32.totalorder %s32, 1
        %s569 = scalar_select %p568, %s32, 1
        %s570 = smul.addr %s569, 16
        %s571 = smul.addr %s570, 8
        %s572 = scalar_lea.vmem %s7, %s571
        %p573 = scmp.lt.s32.totalorder %s32, 1
        %s574 = scalar_select %p573, %s32, 1
        %s575 = smul.addr %s574, 2
        %s576 = smul.addr %s575, 8
        %s577 = scalar_lea.vmem %s8, %s576
        %v579 = vld [vmem:[%s449] sm:$0xff]
        %v580 = vld [vmem:[%s449 + $0x8] sm:$0xff]
        %v581 = vld [vmem:[%s449 + $0x10] sm:$0xff]
        %v582 = vld [vmem:[%s449 + $0x18] sm:$0xff]
        %v583 = vld [vmem:[%s449 + $0x20] sm:$0xff]
        %v584 = vld [vmem:[%s449 + $0x28] sm:$0xff]
        %v585 = vld [vmem:[%s449 + $0x30] sm:$0xff]
        %v586 = vld [vmem:[%s449 + $0x38] sm:$0xff]
        %v587 = vld [vmem:[%s457] sm:$0xff]
        %v588 = vld [vmem:[%s457 + $0x8] sm:$0xff]
        %v589 = vld [vmem:[%s457 + $0x10] sm:$0xff]
        %v590 = vld [vmem:[%s457 + $0x18] sm:$0xff]
        %v591 = vld [vmem:[%s457 + $0x20] sm:$0xff]
        %v592 = vld [vmem:[%s457 + $0x28] sm:$0xff]
        %v593 = vld [vmem:[%s457 + $0x30] sm:$0xff]
        %v594 = vld [vmem:[%s457 + $0x38] sm:$0xff]
        %v595 = vld [vmem:[%s457 + $0x40] sm:$0xff]
        %v596 = vld [vmem:[%s457 + $0x48] sm:$0xff]
        %v597 = vld [vmem:[%s457 + $0x50] sm:$0xff]
        %v598 = vld [vmem:[%s457 + $0x58] sm:$0xff]
        %v599 = vld [vmem:[%s457 + $0x60] sm:$0xff]
        %v600 = vld [vmem:[%s457 + $0x68] sm:$0xff]
        %v601 = vld [vmem:[%s457 + $0x70] sm:$0xff]
        %v602 = vld [vmem:[%s457 + $0x78] sm:$0xff]
        %v603 = vld [vmem:[%s457 + $0x80] sm:$0xff]
        %v604 = vld [vmem:[%s457 + $0x88] sm:$0xff]
        %v605 = vld [vmem:[%s457 + $0x90] sm:$0xff]
        %v606 = vld [vmem:[%s457 + $0x98] sm:$0xff]
        %v607 = vld [vmem:[%s457 + $0xa0] sm:$0xff]
        %v608 = vld [vmem:[%s457 + $0xa8] sm:$0xff]
        %v609 = vld [vmem:[%s457 + $0xb0] sm:$0xff]
        %v610 = vld [vmem:[%s457 + $0xb8] sm:$0xff]
        %v611 = vld [vmem:[%s457 + $0xc0] sm:$0xff]
        %v612 = vld [vmem:[%s457 + $0xc8] sm:$0xff]
        %v613 = vld [vmem:[%s457 + $0xd0] sm:$0xff]
        %v614 = vld [vmem:[%s457 + $0xd8] sm:$0xff]
        %v615 = vld [vmem:[%s457 + $0xe0] sm:$0xff]
        %v616 = vld [vmem:[%s457 + $0xe8] sm:$0xff]
        %v617 = vld [vmem:[%s457 + $0xf0] sm:$0xff]
        %v618 = vld [vmem:[%s457 + $0xf8] sm:$0xff]
        %v619 = vld [vmem:[%s457 + $0x100] sm:$0xff]
        %v620 = vld [vmem:[%s457 + $0x108] sm:$0xff]
        %v621 = vld [vmem:[%s457 + $0x110] sm:$0xff]
        %v622 = vld [vmem:[%s457 + $0x118] sm:$0xff]
        %v623 = vld [vmem:[%s457 + $0x120] sm:$0xff]
        %v624 = vld [vmem:[%s457 + $0x128] sm:$0xff]
        %v625 = vld [vmem:[%s457 + $0x130] sm:$0xff]
        %v626 = vld [vmem:[%s457 + $0x138] sm:$0xff]
        %v627 = vld [vmem:[%s457 + $0x140] sm:$0xff]
        %v628 = vld [vmem:[%s457 + $0x148] sm:$0xff]
        %v629 = vld [vmem:[%s457 + $0x150] sm:$0xff]
        %v630 = vld [vmem:[%s457 + $0x158] sm:$0xff]
        %v631 = vld [vmem:[%s457 + $0x160] sm:$0xff]
        %v632 = vld [vmem:[%s457 + $0x168] sm:$0xff]
        %v633 = vld [vmem:[%s457 + $0x170] sm:$0xff]
        %v634 = vld [vmem:[%s457 + $0x178] sm:$0xff]
        %v635 = vld [vmem:[%s457 + $0x180] sm:$0xff]
        %v636 = vld [vmem:[%s457 + $0x188] sm:$0xff]
        %v637 = vld [vmem:[%s457 + $0x190] sm:$0xff]
        %v638 = vld [vmem:[%s457 + $0x198] sm:$0xff]
        %v639 = vld [vmem:[%s457 + $0x1a0] sm:$0xff]
        %v640 = vld [vmem:[%s457 + $0x1a8] sm:$0xff]
        %v641 = vld [vmem:[%s457 + $0x1b0] sm:$0xff]
        %v642 = vld [vmem:[%s457 + $0x1b8] sm:$0xff]
        %v643 = vld [vmem:[%s457 + $0x1c0] sm:$0xff]
        %v644 = vld [vmem:[%s457 + $0x1c8] sm:$0xff]
        %v645 = vld [vmem:[%s457 + $0x1d0] sm:$0xff]
        %v646 = vld [vmem:[%s457 + $0x1d8] sm:$0xff]
        %v647 = vld [vmem:[%s457 + $0x1e0] sm:$0xff]
        %v648 = vld [vmem:[%s457 + $0x1e8] sm:$0xff]
        %v649 = vld [vmem:[%s457 + $0x1f0] sm:$0xff]
        %v650 = vld [vmem:[%s457 + $0x1f8] sm:$0xff]
        %v651 = vld [vmem:[%s457 + $0x200] sm:$0xff]
        %v652 = vld [vmem:[%s457 + $0x208] sm:$0xff]
        %v653 = vld [vmem:[%s457 + $0x210] sm:$0xff]
        %v654 = vld [vmem:[%s457 + $0x218] sm:$0xff]
        %v655 = vld [vmem:[%s457 + $0x220] sm:$0xff]
        %v656 = vld [vmem:[%s457 + $0x228] sm:$0xff]
        %v657 = vld [vmem:[%s457 + $0x230] sm:$0xff]
        %v658 = vld [vmem:[%s457 + $0x238] sm:$0xff]
        %v659 = vld [vmem:[%s457 + $0x240] sm:$0xff]
        %v660 = vld [vmem:[%s457 + $0x248] sm:$0xff]
        %v661 = vld [vmem:[%s457 + $0x250] sm:$0xff]
        %v662 = vld [vmem:[%s457 + $0x258] sm:$0xff]
        %v663 = vld [vmem:[%s457 + $0x260] sm:$0xff]
        %v664 = vld [vmem:[%s457 + $0x268] sm:$0xff]
        %v665 = vld [vmem:[%s457 + $0x270] sm:$0xff]
        %v666 = vld [vmem:[%s457 + $0x278] sm:$0xff]
        %v667 = vld [vmem:[%s457 + $0x280] sm:$0xff]
        %v668 = vld [vmem:[%s457 + $0x288] sm:$0xff]
        %v669 = vld [vmem:[%s457 + $0x290] sm:$0xff]
        %v670 = vld [vmem:[%s457 + $0x298] sm:$0xff]
        %v671 = vld [vmem:[%s457 + $0x2a0] sm:$0xff]
        %v672 = vld [vmem:[%s457 + $0x2a8] sm:$0xff]
        %v673 = vld [vmem:[%s457 + $0x2b0] sm:$0xff]
        %v674 = vld [vmem:[%s457 + $0x2b8] sm:$0xff]
        %v675 = vld [vmem:[%s457 + $0x2c0] sm:$0xff]
        %v676 = vld [vmem:[%s457 + $0x2c8] sm:$0xff]
        %v677 = vld [vmem:[%s457 + $0x2d0] sm:$0xff]
        %v678 = vld [vmem:[%s457 + $0x2d8] sm:$0xff]
        %v679 = vld [vmem:[%s457 + $0x2e0] sm:$0xff]
        %v680 = vld [vmem:[%s457 + $0x2e8] sm:$0xff]
        %v681 = vld [vmem:[%s457 + $0x2f0] sm:$0xff]
        %v682 = vld [vmem:[%s457 + $0x2f8] sm:$0xff]
        %v683 = vld [vmem:[%s457 + $0x300] sm:$0xff]
        %v684 = vld [vmem:[%s457 + $0x308] sm:$0xff]
        %v685 = vld [vmem:[%s457 + $0x310] sm:$0xff]
        %v686 = vld [vmem:[%s457 + $0x318] sm:$0xff]
        %v687 = vld [vmem:[%s457 + $0x320] sm:$0xff]
        %v688 = vld [vmem:[%s457 + $0x328] sm:$0xff]
        %v689 = vld [vmem:[%s457 + $0x330] sm:$0xff]
        %v690 = vld [vmem:[%s457 + $0x338] sm:$0xff]
        %v691 = vld [vmem:[%s457 + $0x340] sm:$0xff]
        %v692 = vld [vmem:[%s457 + $0x348] sm:$0xff]
        %v693 = vld [vmem:[%s457 + $0x350] sm:$0xff]
        %v694 = vld [vmem:[%s457 + $0x358] sm:$0xff]
        %v695 = vld [vmem:[%s457 + $0x360] sm:$0xff]
        %v696 = vld [vmem:[%s457 + $0x368] sm:$0xff]
        %v697 = vld [vmem:[%s457 + $0x370] sm:$0xff]
        %v698 = vld [vmem:[%s457 + $0x378] sm:$0xff]
        %v699 = vld [vmem:[%s457 + $0x380] sm:$0xff]
        %v700 = vld [vmem:[%s457 + $0x388] sm:$0xff]
        %v701 = vld [vmem:[%s457 + $0x390] sm:$0xff]
        %v702 = vld [vmem:[%s457 + $0x398] sm:$0xff]
        %v703 = vld [vmem:[%s457 + $0x3a0] sm:$0xff]
        %v704 = vld [vmem:[%s457 + $0x3a8] sm:$0xff]
        %v705 = vld [vmem:[%s457 + $0x3b0] sm:$0xff]
        %v706 = vld [vmem:[%s457 + $0x3b8] sm:$0xff]
        %v707 = vld [vmem:[%s457 + $0x3c0] sm:$0xff]
        %v708 = vld [vmem:[%s457 + $0x3c8] sm:$0xff]
        %v709 = vld [vmem:[%s457 + $0x3d0] sm:$0xff]
        %v710 = vld [vmem:[%s457 + $0x3d8] sm:$0xff]
        %v711 = vld [vmem:[%s457 + $0x3e0] sm:$0xff]
        %v712 = vld [vmem:[%s457 + $0x3e8] sm:$0xff]
        %v713 = vld [vmem:[%s457 + $0x3f0] sm:$0xff]
        %v714 = vld [vmem:[%s457 + $0x3f8] sm:$0xff]
        %v715 = vld [vmem:[%s457 + $0x400] sm:$0xff]
        %v716 = vld [vmem:[%s457 + $0x408] sm:$0xff]
        %v717 = vld [vmem:[%s457 + $0x410] sm:$0xff]
        %v718 = vld [vmem:[%s457 + $0x418] sm:$0xff]
        %v719 = vld [vmem:[%s457 + $0x420] sm:$0xff]
        %v720 = vld [vmem:[%s457 + $0x428] sm:$0xff]
        %v721 = vld [vmem:[%s457 + $0x430] sm:$0xff]
        %v722 = vld [vmem:[%s457 + $0x438] sm:$0xff]
        %v723 = vld [vmem:[%s457 + $0x440] sm:$0xff]
        %v724 = vld [vmem:[%s457 + $0x448] sm:$0xff]
        %v725 = vld [vmem:[%s457 + $0x450] sm:$0xff]
        %v726 = vld [vmem:[%s457 + $0x458] sm:$0xff]
        %v727 = vld [vmem:[%s457 + $0x460] sm:$0xff]
        %v728 = vld [vmem:[%s457 + $0x468] sm:$0xff]
        %v729 = vld [vmem:[%s457 + $0x470] sm:$0xff]
        %v730 = vld [vmem:[%s457 + $0x478] sm:$0xff]
        %v731 = vld [vmem:[%s457 + $0x480] sm:$0xff]
        %v732 = vld [vmem:[%s457 + $0x488] sm:$0xff]
        %v733 = vld [vmem:[%s457 + $0x490] sm:$0xff]
        %v734 = vld [vmem:[%s457 + $0x498] sm:$0xff]
        %v735 = vld [vmem:[%s457 + $0x4a0] sm:$0xff]
        %v736 = vld [vmem:[%s457 + $0x4a8] sm:$0xff]
        %v737 = vld [vmem:[%s457 + $0x4b0] sm:$0xff]
        %v738 = vld [vmem:[%s457 + $0x4b8] sm:$0xff]
        %v739 = vld [vmem:[%s457 + $0x4c0] sm:$0xff]
        %v740 = vld [vmem:[%s457 + $0x4c8] sm:$0xff]
        %v741 = vld [vmem:[%s457 + $0x4d0] sm:$0xff]
        %v742 = vld [vmem:[%s457 + $0x4d8] sm:$0xff]
        %v743 = vld [vmem:[%s457 + $0x4e0] sm:$0xff]
        %v744 = vld [vmem:[%s457 + $0x4e8] sm:$0xff]
        %v745 = vld [vmem:[%s457 + $0x4f0] sm:$0xff]
        %v746 = vld [vmem:[%s457 + $0x4f8] sm:$0xff]
        %v747 = vld [vmem:[%s457 + $0x500] sm:$0xff]
        %v748 = vld [vmem:[%s457 + $0x508] sm:$0xff]
        %v749 = vld [vmem:[%s457 + $0x510] sm:$0xff]
        %v750 = vld [vmem:[%s457 + $0x518] sm:$0xff]
        %v751 = vld [vmem:[%s457 + $0x520] sm:$0xff]
        %v752 = vld [vmem:[%s457 + $0x528] sm:$0xff]
        %v753 = vld [vmem:[%s457 + $0x530] sm:$0xff]
        %v754 = vld [vmem:[%s457 + $0x538] sm:$0xff]
        %v755 = vld [vmem:[%s457 + $0x540] sm:$0xff]
        %v756 = vld [vmem:[%s457 + $0x548] sm:$0xff]
        %v757 = vld [vmem:[%s457 + $0x550] sm:$0xff]
        %v758 = vld [vmem:[%s457 + $0x558] sm:$0xff]
        %v759 = vld [vmem:[%s457 + $0x560] sm:$0xff]
        %v760 = vld [vmem:[%s457 + $0x568] sm:$0xff]
        %v761 = vld [vmem:[%s457 + $0x570] sm:$0xff]
        %v762 = vld [vmem:[%s457 + $0x578] sm:$0xff]
        %v763 = vld [vmem:[%s457 + $0x580] sm:$0xff]
        %v764 = vld [vmem:[%s457 + $0x588] sm:$0xff]
        %v765 = vld [vmem:[%s457 + $0x590] sm:$0xff]
        %v766 = vld [vmem:[%s457 + $0x598] sm:$0xff]
        %v767 = vld [vmem:[%s457 + $0x5a0] sm:$0xff]
        %v768 = vld [vmem:[%s457 + $0x5a8] sm:$0xff]
        %v769 = vld [vmem:[%s457 + $0x5b0] sm:$0xff]
        %v770 = vld [vmem:[%s457 + $0x5b8] sm:$0xff]
        %v771 = vld [vmem:[%s457 + $0x5c0] sm:$0xff]
        %v772 = vld [vmem:[%s457 + $0x5c8] sm:$0xff]
        %v773 = vld [vmem:[%s457 + $0x5d0] sm:$0xff]
        %v774 = vld [vmem:[%s457 + $0x5d8] sm:$0xff]
        %v775 = vld [vmem:[%s457 + $0x5e0] sm:$0xff]
        %v776 = vld [vmem:[%s457 + $0x5e8] sm:$0xff]
        %v777 = vld [vmem:[%s457 + $0x5f0] sm:$0xff]
        %v778 = vld [vmem:[%s457 + $0x5f8] sm:$0xff]
        %v779 = vld [vmem:[%s457 + $0x600] sm:$0xff]
        %v780 = vld [vmem:[%s457 + $0x608] sm:$0xff]
        %v781 = vld [vmem:[%s457 + $0x610] sm:$0xff]
        %v782 = vld [vmem:[%s457 + $0x618] sm:$0xff]
        %v783 = vld [vmem:[%s457 + $0x620] sm:$0xff]
        %v784 = vld [vmem:[%s457 + $0x628] sm:$0xff]
        %v785 = vld [vmem:[%s457 + $0x630] sm:$0xff]
        %v786 = vld [vmem:[%s457 + $0x638] sm:$0xff]
        %v787 = vld [vmem:[%s457 + $0x640] sm:$0xff]
        %v788 = vld [vmem:[%s457 + $0x648] sm:$0xff]
        %v789 = vld [vmem:[%s457 + $0x650] sm:$0xff]
        %v790 = vld [vmem:[%s457 + $0x658] sm:$0xff]
        %v791 = vld [vmem:[%s457 + $0x660] sm:$0xff]
        %v792 = vld [vmem:[%s457 + $0x668] sm:$0xff]
        %v793 = vld [vmem:[%s457 + $0x670] sm:$0xff]
        %v794 = vld [vmem:[%s457 + $0x678] sm:$0xff]
        %v795 = vld [vmem:[%s457 + $0x680] sm:$0xff]
        %v796 = vld [vmem:[%s457 + $0x688] sm:$0xff]
        %v797 = vld [vmem:[%s457 + $0x690] sm:$0xff]
        %v798 = vld [vmem:[%s457 + $0x698] sm:$0xff]
        %v799 = vld [vmem:[%s457 + $0x6a0] sm:$0xff]
        %v800 = vld [vmem:[%s457 + $0x6a8] sm:$0xff]
        %v801 = vld [vmem:[%s457 + $0x6b0] sm:$0xff]
        %v802 = vld [vmem:[%s457 + $0x6b8] sm:$0xff]
        %v803 = vld [vmem:[%s457 + $0x6c0] sm:$0xff]
        %v804 = vld [vmem:[%s457 + $0x6c8] sm:$0xff]
        %v805 = vld [vmem:[%s457 + $0x6d0] sm:$0xff]
        %v806 = vld [vmem:[%s457 + $0x6d8] sm:$0xff]
        %v807 = vld [vmem:[%s457 + $0x6e0] sm:$0xff]
        %v808 = vld [vmem:[%s457 + $0x6e8] sm:$0xff]
        %v809 = vld [vmem:[%s457 + $0x6f0] sm:$0xff]
        %v810 = vld [vmem:[%s457 + $0x6f8] sm:$0xff]
        %v811 = vld [vmem:[%s457 + $0x700] sm:$0xff]
        %v812 = vld [vmem:[%s457 + $0x708] sm:$0xff]
        %v813 = vld [vmem:[%s457 + $0x710] sm:$0xff]
        %v814 = vld [vmem:[%s457 + $0x718] sm:$0xff]
        %v815 = vld [vmem:[%s457 + $0x720] sm:$0xff]
        %v816 = vld [vmem:[%s457 + $0x728] sm:$0xff]
        %v817 = vld [vmem:[%s457 + $0x730] sm:$0xff]
        %v818 = vld [vmem:[%s457 + $0x738] sm:$0xff]
        %v819 = vld [vmem:[%s457 + $0x740] sm:$0xff]
        %v820 = vld [vmem:[%s457 + $0x748] sm:$0xff]
        %v821 = vld [vmem:[%s457 + $0x750] sm:$0xff]
        %v822 = vld [vmem:[%s457 + $0x758] sm:$0xff]
        %v823 = vld [vmem:[%s457 + $0x760] sm:$0xff]
        %v824 = vld [vmem:[%s457 + $0x768] sm:$0xff]
        %v825 = vld [vmem:[%s457 + $0x770] sm:$0xff]
        %v826 = vld [vmem:[%s457 + $0x778] sm:$0xff]
        %v827 = vld [vmem:[%s457 + $0x780] sm:$0xff]
        %v828 = vld [vmem:[%s457 + $0x788] sm:$0xff]
        %v829 = vld [vmem:[%s457 + $0x790] sm:$0xff]
        %v830 = vld [vmem:[%s457 + $0x798] sm:$0xff]
        %v831 = vld [vmem:[%s457 + $0x7a0] sm:$0xff]
        %v832 = vld [vmem:[%s457 + $0x7a8] sm:$0xff]
        %v833 = vld [vmem:[%s457 + $0x7b0] sm:$0xff]
        %v834 = vld [vmem:[%s457 + $0x7b8] sm:$0xff]
        %v835 = vld [vmem:[%s457 + $0x7c0] sm:$0xff]
        %v836 = vld [vmem:[%s457 + $0x7c8] sm:$0xff]
        %v837 = vld [vmem:[%s457 + $0x7d0] sm:$0xff]
        %v838 = vld [vmem:[%s457 + $0x7d8] sm:$0xff]
        %v839 = vld [vmem:[%s457 + $0x7e0] sm:$0xff]
        %v840 = vld [vmem:[%s457 + $0x7e8] sm:$0xff]
        %v841 = vld [vmem:[%s457 + $0x7f0] sm:$0xff]
        %v842 = vld [vmem:[%s457 + $0x7f8] sm:$0xff]
        %v843 = vld [vmem:[%s457 + $0x800] sm:$0xff]
        %v844 = vld [vmem:[%s457 + $0x808] sm:$0xff]
        %v845 = vld [vmem:[%s457 + $0x810] sm:$0xff]
        %v846 = vld [vmem:[%s457 + $0x818] sm:$0xff]
        %v847 = vld [vmem:[%s457 + $0x820] sm:$0xff]
        %v848 = vld [vmem:[%s457 + $0x828] sm:$0xff]
        %v849 = vld [vmem:[%s457 + $0x830] sm:$0xff]
        %v850 = vld [vmem:[%s457 + $0x838] sm:$0xff]
        %v851 = vld [vmem:[%s457 + $0x840] sm:$0xff]
        %v852 = vld [vmem:[%s457 + $0x848] sm:$0xff]
        %v853 = vld [vmem:[%s457 + $0x850] sm:$0xff]
        %v854 = vld [vmem:[%s457 + $0x858] sm:$0xff]
        %v855 = vld [vmem:[%s457 + $0x860] sm:$0xff]
        %v856 = vld [vmem:[%s457 + $0x868] sm:$0xff]
        %v857 = vld [vmem:[%s457 + $0x870] sm:$0xff]
        %v858 = vld [vmem:[%s457 + $0x878] sm:$0xff]
        %v859 = vld [vmem:[%s457 + $0x880] sm:$0xff]
        %v860 = vld [vmem:[%s457 + $0x888] sm:$0xff]
        %v861 = vld [vmem:[%s457 + $0x890] sm:$0xff]
        %v862 = vld [vmem:[%s457 + $0x898] sm:$0xff]
        %v863 = vld [vmem:[%s457 + $0x8a0] sm:$0xff]
        %v864 = vld [vmem:[%s457 + $0x8a8] sm:$0xff]
        %v865 = vld [vmem:[%s457 + $0x8b0] sm:$0xff]
        %v866 = vld [vmem:[%s457 + $0x8b8] sm:$0xff]
        %v867 = vld [vmem:[%s457 + $0x8c0] sm:$0xff]
        %v868 = vld [vmem:[%s457 + $0x8c8] sm:$0xff]
        %v869 = vld [vmem:[%s457 + $0x8d0] sm:$0xff]
        %v870 = vld [vmem:[%s457 + $0x8d8] sm:$0xff]
        %v871 = vld [vmem:[%s457 + $0x8e0] sm:$0xff]
        %v872 = vld [vmem:[%s457 + $0x8e8] sm:$0xff]
        %v873 = vld [vmem:[%s457 + $0x8f0] sm:$0xff]
        %v874 = vld [vmem:[%s457 + $0x8f8] sm:$0xff]
        %v875 = vld [vmem:[%s457 + $0x900] sm:$0xff]
        %v876 = vld [vmem:[%s457 + $0x908] sm:$0xff]
        %v877 = vld [vmem:[%s457 + $0x910] sm:$0xff]
        %v878 = vld [vmem:[%s457 + $0x918] sm:$0xff]
        %v879 = vld [vmem:[%s457 + $0x920] sm:$0xff]
        %v880 = vld [vmem:[%s457 + $0x928] sm:$0xff]
        %v881 = vld [vmem:[%s457 + $0x930] sm:$0xff]
        %v882 = vld [vmem:[%s457 + $0x938] sm:$0xff]
        %v883 = vld [vmem:[%s457 + $0x940] sm:$0xff]
        %v884 = vld [vmem:[%s457 + $0x948] sm:$0xff]
        %v885 = vld [vmem:[%s457 + $0x950] sm:$0xff]
        %v886 = vld [vmem:[%s457 + $0x958] sm:$0xff]
        %v887 = vld [vmem:[%s457 + $0x960] sm:$0xff]
        %v888 = vld [vmem:[%s457 + $0x968] sm:$0xff]
        %v889 = vld [vmem:[%s457 + $0x970] sm:$0xff]
        %v890 = vld [vmem:[%s457 + $0x978] sm:$0xff]
        %v891 = vld [vmem:[%s457 + $0x980] sm:$0xff]
        %v892 = vld [vmem:[%s457 + $0x988] sm:$0xff]
        %v893 = vld [vmem:[%s457 + $0x990] sm:$0xff]
        %v894 = vld [vmem:[%s457 + $0x998] sm:$0xff]
        %v895 = vld [vmem:[%s457 + $0x9a0] sm:$0xff]
        %v896 = vld [vmem:[%s457 + $0x9a8] sm:$0xff]
        %v897 = vld [vmem:[%s457 + $0x9b0] sm:$0xff]
        %v898 = vld [vmem:[%s457 + $0x9b8] sm:$0xff]
        %v899 = vld [vmem:[%s457 + $0x9c0] sm:$0xff]
        %v900 = vld [vmem:[%s457 + $0x9c8] sm:$0xff]
        %v901 = vld [vmem:[%s457 + $0x9d0] sm:$0xff]
        %v902 = vld [vmem:[%s457 + $0x9d8] sm:$0xff]
        %v903 = vld [vmem:[%s457 + $0x9e0] sm:$0xff]
        %v904 = vld [vmem:[%s457 + $0x9e8] sm:$0xff]
        %v905 = vld [vmem:[%s457 + $0x9f0] sm:$0xff]
        %v906 = vld [vmem:[%s457 + $0x9f8] sm:$0xff]
        %v907 = vld [vmem:[%s457 + $0xa00] sm:$0xff]
        %v908 = vld [vmem:[%s457 + $0xa08] sm:$0xff]
        %v909 = vld [vmem:[%s457 + $0xa10] sm:$0xff]
        %v910 = vld [vmem:[%s457 + $0xa18] sm:$0xff]
        %v911 = vld [vmem:[%s457 + $0xa20] sm:$0xff]
        %v912 = vld [vmem:[%s457 + $0xa28] sm:$0xff]
        %v913 = vld [vmem:[%s457 + $0xa30] sm:$0xff]
        %v914 = vld [vmem:[%s457 + $0xa38] sm:$0xff]
        %v915 = vld [vmem:[%s457 + $0xa40] sm:$0xff]
        %v916 = vld [vmem:[%s457 + $0xa48] sm:$0xff]
        %v917 = vld [vmem:[%s457 + $0xa50] sm:$0xff]
        %v918 = vld [vmem:[%s457 + $0xa58] sm:$0xff]
        %v919 = vld [vmem:[%s457 + $0xa60] sm:$0xff]
        %v920 = vld [vmem:[%s457 + $0xa68] sm:$0xff]
        %v921 = vld [vmem:[%s457 + $0xa70] sm:$0xff]
        %v922 = vld [vmem:[%s457 + $0xa78] sm:$0xff]
        %v923 = vld [vmem:[%s457 + $0xa80] sm:$0xff]
        %v924 = vld [vmem:[%s457 + $0xa88] sm:$0xff]
        %v925 = vld [vmem:[%s457 + $0xa90] sm:$0xff]
        %v926 = vld [vmem:[%s457 + $0xa98] sm:$0xff]
        %v927 = vld [vmem:[%s457 + $0xaa0] sm:$0xff]
        %v928 = vld [vmem:[%s457 + $0xaa8] sm:$0xff]
        %v929 = vld [vmem:[%s457 + $0xab0] sm:$0xff]
        %v930 = vld [vmem:[%s457 + $0xab8] sm:$0xff]
        %v931 = vld [vmem:[%s457 + $0xac0] sm:$0xff]
        %v932 = vld [vmem:[%s457 + $0xac8] sm:$0xff]
        %v933 = vld [vmem:[%s457 + $0xad0] sm:$0xff]
        %v934 = vld [vmem:[%s457 + $0xad8] sm:$0xff]
        %v935 = vld [vmem:[%s457 + $0xae0] sm:$0xff]
        %v936 = vld [vmem:[%s457 + $0xae8] sm:$0xff]
        %v937 = vld [vmem:[%s457 + $0xaf0] sm:$0xff]
        %v938 = vld [vmem:[%s457 + $0xaf8] sm:$0xff]
        %v939 = vld [vmem:[%s457 + $0xb00] sm:$0xff]
        %v940 = vld [vmem:[%s457 + $0xb08] sm:$0xff]
        %v941 = vld [vmem:[%s457 + $0xb10] sm:$0xff]
        %v942 = vld [vmem:[%s457 + $0xb18] sm:$0xff]
        %v943 = vld [vmem:[%s457 + $0xb20] sm:$0xff]
        %v944 = vld [vmem:[%s457 + $0xb28] sm:$0xff]
        %v945 = vld [vmem:[%s457 + $0xb30] sm:$0xff]
        %v946 = vld [vmem:[%s457 + $0xb38] sm:$0xff]
        %v947 = vld [vmem:[%s457 + $0xb40] sm:$0xff]
        %v948 = vld [vmem:[%s457 + $0xb48] sm:$0xff]
        %v949 = vld [vmem:[%s457 + $0xb50] sm:$0xff]
        %v950 = vld [vmem:[%s457 + $0xb58] sm:$0xff]
        %v951 = vld [vmem:[%s457 + $0xb60] sm:$0xff]
        %v952 = vld [vmem:[%s457 + $0xb68] sm:$0xff]
        %v953 = vld [vmem:[%s457 + $0xb70] sm:$0xff]
        %v954 = vld [vmem:[%s457 + $0xb78] sm:$0xff]
        %v955 = vld [vmem:[%s457 + $0xb80] sm:$0xff]
        %v956 = vld [vmem:[%s457 + $0xb88] sm:$0xff]
        %v957 = vld [vmem:[%s457 + $0xb90] sm:$0xff]
        %v958 = vld [vmem:[%s457 + $0xb98] sm:$0xff]
        %v959 = vld [vmem:[%s457 + $0xba0] sm:$0xff]
        %v960 = vld [vmem:[%s457 + $0xba8] sm:$0xff]
        %v961 = vld [vmem:[%s457 + $0xbb0] sm:$0xff]
        %v962 = vld [vmem:[%s457 + $0xbb8] sm:$0xff]
        %v963 = vld [vmem:[%s457 + $0xbc0] sm:$0xff]
        %v964 = vld [vmem:[%s457 + $0xbc8] sm:$0xff]
        %v965 = vld [vmem:[%s457 + $0xbd0] sm:$0xff]
        %v966 = vld [vmem:[%s457 + $0xbd8] sm:$0xff]
        %v967 = vld [vmem:[%s457 + $0xbe0] sm:$0xff]
        %v968 = vld [vmem:[%s457 + $0xbe8] sm:$0xff]
        %v969 = vld [vmem:[%s457 + $0xbf0] sm:$0xff]
        %v970 = vld [vmem:[%s457 + $0xbf8] sm:$0xff]
        %v971 = vld [vmem:[%s457 + $0xc00] sm:$0xff]
        %v972 = vld [vmem:[%s457 + $0xc08] sm:$0xff]
        %v973 = vld [vmem:[%s457 + $0xc10] sm:$0xff]
        %v974 = vld [vmem:[%s457 + $0xc18] sm:$0xff]
        %v975 = vld [vmem:[%s457 + $0xc20] sm:$0xff]
        %v976 = vld [vmem:[%s457 + $0xc28] sm:$0xff]
        %v977 = vld [vmem:[%s457 + $0xc30] sm:$0xff]
        %v978 = vld [vmem:[%s457 + $0xc38] sm:$0xff]
        %v979 = vld [vmem:[%s457 + $0xc40] sm:$0xff]
        %v980 = vld [vmem:[%s457 + $0xc48] sm:$0xff]
        %v981 = vld [vmem:[%s457 + $0xc50] sm:$0xff]
        %v982 = vld [vmem:[%s457 + $0xc58] sm:$0xff]
        %v983 = vld [vmem:[%s457 + $0xc60] sm:$0xff]
        %v984 = vld [vmem:[%s457 + $0xc68] sm:$0xff]
        %v985 = vld [vmem:[%s457 + $0xc70] sm:$0xff]
        %v986 = vld [vmem:[%s457 + $0xc78] sm:$0xff]
        %v987 = vld [vmem:[%s457 + $0xc80] sm:$0xff]
        %v988 = vld [vmem:[%s457 + $0xc88] sm:$0xff]
        %v989 = vld [vmem:[%s457 + $0xc90] sm:$0xff]
        %v990 = vld [vmem:[%s457 + $0xc98] sm:$0xff]
        %v991 = vld [vmem:[%s457 + $0xca0] sm:$0xff]
        %v992 = vld [vmem:[%s457 + $0xca8] sm:$0xff]
        %v993 = vld [vmem:[%s457 + $0xcb0] sm:$0xff]
        %v994 = vld [vmem:[%s457 + $0xcb8] sm:$0xff]
        %v995 = vld [vmem:[%s457 + $0xcc0] sm:$0xff]
        %v996 = vld [vmem:[%s457 + $0xcc8] sm:$0xff]
        %v997 = vld [vmem:[%s457 + $0xcd0] sm:$0xff]
        %v998 = vld [vmem:[%s457 + $0xcd8] sm:$0xff]
        %v999 = vld [vmem:[%s457 + $0xce0] sm:$0xff]
        %v1000 = vld [vmem:[%s457 + $0xce8] sm:$0xff]
        %v1001 = vld [vmem:[%s457 + $0xcf0] sm:$0xff]
        %v1002 = vld [vmem:[%s457 + $0xcf8] sm:$0xff]
        %v1003 = vld [vmem:[%s457 + $0xd00] sm:$0xff]
        %v1004 = vld [vmem:[%s457 + $0xd08] sm:$0xff]
        %v1005 = vld [vmem:[%s457 + $0xd10] sm:$0xff]
        %v1006 = vld [vmem:[%s457 + $0xd18] sm:$0xff]
        %v1007 = vld [vmem:[%s457 + $0xd20] sm:$0xff]
        %v1008 = vld [vmem:[%s457 + $0xd28] sm:$0xff]
        %v1009 = vld [vmem:[%s457 + $0xd30] sm:$0xff]
        %v1010 = vld [vmem:[%s457 + $0xd38] sm:$0xff]
        %v1011 = vld [vmem:[%s457 + $0xd40] sm:$0xff]
        %v1012 = vld [vmem:[%s457 + $0xd48] sm:$0xff]
        %v1013 = vld [vmem:[%s457 + $0xd50] sm:$0xff]
        %v1014 = vld [vmem:[%s457 + $0xd58] sm:$0xff]
        %v1015 = vld [vmem:[%s457 + $0xd60] sm:$0xff]
        %v1016 = vld [vmem:[%s457 + $0xd68] sm:$0xff]
        %v1017 = vld [vmem:[%s457 + $0xd70] sm:$0xff]
        %v1018 = vld [vmem:[%s457 + $0xd78] sm:$0xff]
        %v1019 = vld [vmem:[%s457 + $0xd80] sm:$0xff]
        %v1020 = vld [vmem:[%s457 + $0xd88] sm:$0xff]
        %v1021 = vld [vmem:[%s457 + $0xd90] sm:$0xff]
        %v1022 = vld [vmem:[%s457 + $0xd98] sm:$0xff]
        %v1023 = vld [vmem:[%s457 + $0xda0] sm:$0xff]
        %v1024 = vld [vmem:[%s457 + $0xda8] sm:$0xff]
        %v1025 = vld [vmem:[%s457 + $0xdb0] sm:$0xff]
        %v1026 = vld [vmem:[%s457 + $0xdb8] sm:$0xff]
        %v1027 = vld [vmem:[%s457 + $0xdc0] sm:$0xff]
        %v1028 = vld [vmem:[%s457 + $0xdc8] sm:$0xff]
        %v1029 = vld [vmem:[%s457 + $0xdd0] sm:$0xff]
        %v1030 = vld [vmem:[%s457 + $0xdd8] sm:$0xff]
        %v1031 = vld [vmem:[%s457 + $0xde0] sm:$0xff]
        %v1032 = vld [vmem:[%s457 + $0xde8] sm:$0xff]
        %v1033 = vld [vmem:[%s457 + $0xdf0] sm:$0xff]
        %v1034 = vld [vmem:[%s457 + $0xdf8] sm:$0xff]
        %v1035 = vld [vmem:[%s457 + $0xe00] sm:$0xff]
        %v1036 = vld [vmem:[%s457 + $0xe08] sm:$0xff]
        %v1037 = vld [vmem:[%s457 + $0xe10] sm:$0xff]
        %v1038 = vld [vmem:[%s457 + $0xe18] sm:$0xff]
        %v1039 = vld [vmem:[%s457 + $0xe20] sm:$0xff]
        %v1040 = vld [vmem:[%s457 + $0xe28] sm:$0xff]
        %v1041 = vld [vmem:[%s457 + $0xe30] sm:$0xff]
        %v1042 = vld [vmem:[%s457 + $0xe38] sm:$0xff]
        %v1043 = vld [vmem:[%s457 + $0xe40] sm:$0xff]
        %v1044 = vld [vmem:[%s457 + $0xe48] sm:$0xff]
        %v1045 = vld [vmem:[%s457 + $0xe50] sm:$0xff]
        %v1046 = vld [vmem:[%s457 + $0xe58] sm:$0xff]
        %v1047 = vld [vmem:[%s457 + $0xe60] sm:$0xff]
        %v1048 = vld [vmem:[%s457 + $0xe68] sm:$0xff]
        %v1049 = vld [vmem:[%s457 + $0xe70] sm:$0xff]
        %v1050 = vld [vmem:[%s457 + $0xe78] sm:$0xff]
        %v1051 = vld [vmem:[%s457 + $0xe80] sm:$0xff]
        %v1052 = vld [vmem:[%s457 + $0xe88] sm:$0xff]
        %v1053 = vld [vmem:[%s457 + $0xe90] sm:$0xff]
        %v1054 = vld [vmem:[%s457 + $0xe98] sm:$0xff]
        %v1055 = vld [vmem:[%s457 + $0xea0] sm:$0xff]
        %v1056 = vld [vmem:[%s457 + $0xea8] sm:$0xff]
        %v1057 = vld [vmem:[%s457 + $0xeb0] sm:$0xff]
        %v1058 = vld [vmem:[%s457 + $0xeb8] sm:$0xff]
        %v1059 = vld [vmem:[%s457 + $0xec0] sm:$0xff]
        %v1060 = vld [vmem:[%s457 + $0xec8] sm:$0xff]
        %v1061 = vld [vmem:[%s457 + $0xed0] sm:$0xff]
        %v1062 = vld [vmem:[%s457 + $0xed8] sm:$0xff]
        %v1063 = vld [vmem:[%s457 + $0xee0] sm:$0xff]
        %v1064 = vld [vmem:[%s457 + $0xee8] sm:$0xff]
        %v1065 = vld [vmem:[%s457 + $0xef0] sm:$0xff]
        %v1066 = vld [vmem:[%s457 + $0xef8] sm:$0xff]
        %v1067 = vld [vmem:[%s457 + $0xf00] sm:$0xff]
        %v1068 = vld [vmem:[%s457 + $0xf08] sm:$0xff]
        %v1069 = vld [vmem:[%s457 + $0xf10] sm:$0xff]
        %v1070 = vld [vmem:[%s457 + $0xf18] sm:$0xff]
        %v1071 = vld [vmem:[%s457 + $0xf20] sm:$0xff]
        %v1072 = vld [vmem:[%s457 + $0xf28] sm:$0xff]
        %v1073 = vld [vmem:[%s457 + $0xf30] sm:$0xff]
        %v1074 = vld [vmem:[%s457 + $0xf38] sm:$0xff]
        %v1075 = vld [vmem:[%s457 + $0xf40] sm:$0xff]
        %v1076 = vld [vmem:[%s457 + $0xf48] sm:$0xff]
        %v1077 = vld [vmem:[%s457 + $0xf50] sm:$0xff]
        %v1078 = vld [vmem:[%s457 + $0xf58] sm:$0xff]
        %v1079 = vld [vmem:[%s457 + $0xf60] sm:$0xff]
        %v1080 = vld [vmem:[%s457 + $0xf68] sm:$0xff]
        %v1081 = vld [vmem:[%s457 + $0xf70] sm:$0xff]
        %v1082 = vld [vmem:[%s457 + $0xf78] sm:$0xff]
        %v1083 = vld [vmem:[%s457 + $0xf80] sm:$0xff]
        %v1084 = vld [vmem:[%s457 + $0xf88] sm:$0xff]
        %v1085 = vld [vmem:[%s457 + $0xf90] sm:$0xff]
        %v1086 = vld [vmem:[%s457 + $0xf98] sm:$0xff]
        %v1087 = vld [vmem:[%s457 + $0xfa0] sm:$0xff]
        %v1088 = vld [vmem:[%s457 + $0xfa8] sm:$0xff]
        %v1089 = vld [vmem:[%s457 + $0xfb0] sm:$0xff]
        %v1090 = vld [vmem:[%s457 + $0xfb8] sm:$0xff]
        %v1091 = vld [vmem:[%s457 + $0xfc0] sm:$0xff]
        %v1092 = vld [vmem:[%s457 + $0xfc8] sm:$0xff]
        %v1093 = vld [vmem:[%s457 + $0xfd0] sm:$0xff]
        %v1094 = vld [vmem:[%s457 + $0xfd8] sm:$0xff]
        %v1095 = vld [vmem:[%s457 + $0xfe0] sm:$0xff]
        %v1096 = vld [vmem:[%s457 + $0xfe8] sm:$0xff]
        %v1097 = vld [vmem:[%s457 + $0xff0] sm:$0xff]
        %v1098 = vld [vmem:[%s457 + $0xff8] sm:$0xff]
        %v1099 = vld [vmem:[%s466] sm:$0xff]
        %v1101 = vlaneseq
        %v1102 = vshrl.u32 %v1101, 7
        %v1103 = vsub.s32 0, %v1102
        %v1104 = vrot.slane %v1099, %v1103
        %v1105 = vlaneseq
        %v1106 = vshrl.u32 %v1105, 7
        %v1107 = vsub.s32 1, %v1106
        %v1108 = vrot.slane %v1099, %v1107
        %v1109 = vlaneseq
        %v1110 = vshrl.u32 %v1109, 7
        %v1111 = vsub.s32 2, %v1110
        %v1112 = vrot.slane %v1099, %v1111
        %v1113 = vlaneseq
        %v1114 = vshrl.u32 %v1113, 7
        %v1115 = vsub.s32 3, %v1114
        %v1116 = vrot.slane %v1099, %v1115
        %v1117 = vlaneseq
        %v1118 = vshrl.u32 %v1117, 7
        %v1119 = vsub.s32 4, %v1118
        %v1120 = vrot.slane %v1099, %v1119
        %v1121 = vlaneseq
        %v1122 = vshrl.u32 %v1121, 7
        %v1123 = vsub.s32 5, %v1122
        %v1124 = vrot.slane %v1099, %v1123
        %v1125 = vlaneseq
        %v1126 = vshrl.u32 %v1125, 7
        %v1127 = vsub.s32 6, %v1126
        %v1128 = vrot.slane %v1099, %v1127
        %v1129 = vlaneseq
        %v1130 = vshrl.u32 %v1129, 7
        %v1131 = vsub.s32 7, %v1130
        %v1132 = vrot.slane %v1099, %v1131
        %v1149 = vunpack.c.l.b16 %v579
        %v1150 = vunpack.c.h.b16 %v579
        %v1151 = vunpack.c.l.b16 %v580
        %v1152 = vunpack.c.h.b16 %v580
        %v1153 = vunpack.c.l.b16 %v581
        %v1154 = vunpack.c.h.b16 %v581
        %v1155 = vunpack.c.l.b16 %v582
        %v1156 = vunpack.c.h.b16 %v582
        %v1157 = vunpack.c.l.b16 %v583
        %v1158 = vunpack.c.h.b16 %v583
        %v1159 = vunpack.c.l.b16 %v584
        %v1160 = vunpack.c.h.b16 %v584
        %v1161 = vunpack.c.l.b16 %v585
        %v1162 = vunpack.c.h.b16 %v585
        %v1163 = vunpack.c.l.b16 %v586
        %v1164 = vunpack.c.h.b16 %v586
        %v1165 = vpack.c.b16 %v1157, %v1149
        %v1166 = vpack.c.b16 %v1158, %v1150
        %v1167 = vpack.c.b16 %v1159, %v1151
        %v1168 = vpack.c.b16 %v1160, %v1152
        %v1169 = vpack.c.b16 %v1161, %v1153
        %v1170 = vpack.c.b16 %v1162, %v1154
        %v1171 = vpack.c.b16 %v1163, %v1155
        %v1172 = vpack.c.b16 %v1164, %v1156
        %v1693 = vunpack.c.l.b16 %v587
        %v1694 = vunpack.c.h.b16 %v587
        %v1695 = vunpack.c.l.b16 %v588
        %v1696 = vunpack.c.h.b16 %v588
        %v1697 = vunpack.c.l.b16 %v589
        %v1698 = vunpack.c.h.b16 %v589
        %v1699 = vunpack.c.l.b16 %v590
        %v1700 = vunpack.c.h.b16 %v590
        %v1701 = vunpack.c.l.b16 %v591
        %v1702 = vunpack.c.h.b16 %v591
        %v1703 = vunpack.c.l.b16 %v592
        %v1704 = vunpack.c.h.b16 %v592
        %v1705 = vunpack.c.l.b16 %v593
        %v1706 = vunpack.c.h.b16 %v593
        %v1707 = vunpack.c.l.b16 %v594
        %v1708 = vunpack.c.h.b16 %v594
        %v1709 = vunpack.c.l.b16 %v595
        %v1710 = vunpack.c.h.b16 %v595
        %v1711 = vunpack.c.l.b16 %v596
        %v1712 = vunpack.c.h.b16 %v596
        %v1713 = vunpack.c.l.b16 %v597
        %v1714 = vunpack.c.h.b16 %v597
        %v1715 = vunpack.c.l.b16 %v598
        %v1716 = vunpack.c.h.b16 %v598
        %v1717 = vunpack.c.l.b16 %v599
        %v1718 = vunpack.c.h.b16 %v599
        %v1719 = vunpack.c.l.b16 %v600
        %v1720 = vunpack.c.h.b16 %v600
        %v1721 = vunpack.c.l.b16 %v601
        %v1722 = vunpack.c.h.b16 %v601
        %v1723 = vunpack.c.l.b16 %v602
        %v1724 = vunpack.c.h.b16 %v602
        %v1725 = vunpack.c.l.b16 %v603
        %v1726 = vunpack.c.h.b16 %v603
        %v1727 = vunpack.c.l.b16 %v604
        %v1728 = vunpack.c.h.b16 %v604
        %v1729 = vunpack.c.l.b16 %v605
        %v1730 = vunpack.c.h.b16 %v605
        %v1731 = vunpack.c.l.b16 %v606
        %v1732 = vunpack.c.h.b16 %v606
        %v1733 = vunpack.c.l.b16 %v607
        %v1734 = vunpack.c.h.b16 %v607
        %v1735 = vunpack.c.l.b16 %v608
        %v1736 = vunpack.c.h.b16 %v608
        %v1737 = vunpack.c.l.b16 %v609
        %v1738 = vunpack.c.h.b16 %v609
        %v1739 = vunpack.c.l.b16 %v610
        %v1740 = vunpack.c.h.b16 %v610
        %v1741 = vunpack.c.l.b16 %v611
        %v1742 = vunpack.c.h.b16 %v611
        %v1743 = vunpack.c.l.b16 %v612
        %v1744 = vunpack.c.h.b16 %v612
        %v1745 = vunpack.c.l.b16 %v613
        %v1746 = vunpack.c.h.b16 %v613
        %v1747 = vunpack.c.l.b16 %v614
        %v1748 = vunpack.c.h.b16 %v614
        %v1749 = vunpack.c.l.b16 %v615
        %v1750 = vunpack.c.h.b16 %v615
        %v1751 = vunpack.c.l.b16 %v616
        %v1752 = vunpack.c.h.b16 %v616
        %v1753 = vunpack.c.l.b16 %v617
        %v1754 = vunpack.c.h.b16 %v617
        %v1755 = vunpack.c.l.b16 %v618
        %v1756 = vunpack.c.h.b16 %v618
        %v1757 = vunpack.c.l.b16 %v619
        %v1758 = vunpack.c.h.b16 %v619
        %v1759 = vunpack.c.l.b16 %v620
        %v1760 = vunpack.c.h.b16 %v620
        %v1761 = vunpack.c.l.b16 %v621
        %v1762 = vunpack.c.h.b16 %v621
        %v1763 = vunpack.c.l.b16 %v622
        %v1764 = vunpack.c.h.b16 %v622
        %v1765 = vunpack.c.l.b16 %v623
        %v1766 = vunpack.c.h.b16 %v623
        %v1767 = vunpack.c.l.b16 %v624
        %v1768 = vunpack.c.h.b16 %v624
        %v1769 = vunpack.c.l.b16 %v625
        %v1770 = vunpack.c.h.b16 %v625
        %v1771 = vunpack.c.l.b16 %v626
        %v1772 = vunpack.c.h.b16 %v626
        %v1773 = vunpack.c.l.b16 %v627
        %v1774 = vunpack.c.h.b16 %v627
        %v1775 = vunpack.c.l.b16 %v628
        %v1776 = vunpack.c.h.b16 %v628
        %v1777 = vunpack.c.l.b16 %v629
        %v1778 = vunpack.c.h.b16 %v629
        %v1779 = vunpack.c.l.b16 %v630
        %v1780 = vunpack.c.h.b16 %v630
        %v1781 = vunpack.c.l.b16 %v631
        %v1782 = vunpack.c.h.b16 %v631
        %v1783 = vunpack.c.l.b16 %v632
        %v1784 = vunpack.c.h.b16 %v632
        %v1785 = vunpack.c.l.b16 %v633
        %v1786 = vunpack.c.h.b16 %v633
        %v1787 = vunpack.c.l.b16 %v634
        %v1788 = vunpack.c.h.b16 %v634
        %v1789 = vunpack.c.l.b16 %v635
        %v1790 = vunpack.c.h.b16 %v635
        %v1791 = vunpack.c.l.b16 %v636
        %v1792 = vunpack.c.h.b16 %v636
        %v1793 = vunpack.c.l.b16 %v637
        %v1794 = vunpack.c.h.b16 %v637
        %v1795 = vunpack.c.l.b16 %v638
        %v1796 = vunpack.c.h.b16 %v638
        %v1797 = vunpack.c.l.b16 %v639
        %v1798 = vunpack.c.h.b16 %v639
        %v1799 = vunpack.c.l.b16 %v640
        %v1800 = vunpack.c.h.b16 %v640
        %v1801 = vunpack.c.l.b16 %v641
        %v1802 = vunpack.c.h.b16 %v641
        %v1803 = vunpack.c.l.b16 %v642
        %v1804 = vunpack.c.h.b16 %v642
        %v1805 = vunpack.c.l.b16 %v643
        %v1806 = vunpack.c.h.b16 %v643
        %v1807 = vunpack.c.l.b16 %v644
        %v1808 = vunpack.c.h.b16 %v644
        %v1809 = vunpack.c.l.b16 %v645
        %v1810 = vunpack.c.h.b16 %v645
        %v1811 = vunpack.c.l.b16 %v646
        %v1812 = vunpack.c.h.b16 %v646
        %v1813 = vunpack.c.l.b16 %v647
        %v1814 = vunpack.c.h.b16 %v647
        %v1815 = vunpack.c.l.b16 %v648
        %v1816 = vunpack.c.h.b16 %v648
        %v1817 = vunpack.c.l.b16 %v649
        %v1818 = vunpack.c.h.b16 %v649
        %v1819 = vunpack.c.l.b16 %v650
        %v1820 = vunpack.c.h.b16 %v650
        %v1821 = vunpack.c.l.b16 %v651
        %v1822 = vunpack.c.h.b16 %v651
        %v1823 = vunpack.c.l.b16 %v652
        %v1824 = vunpack.c.h.b16 %v652
        %v1825 = vunpack.c.l.b16 %v653
        %v1826 = vunpack.c.h.b16 %v653
        %v1827 = vunpack.c.l.b16 %v654
        %v1828 = vunpack.c.h.b16 %v654
        %v1829 = vunpack.c.l.b16 %v655
        %v1830 = vunpack.c.h.b16 %v655
        %v1831 = vunpack.c.l.b16 %v656
        %v1832 = vunpack.c.h.b16 %v656
        %v1833 = vunpack.c.l.b16 %v657
        %v1834 = vunpack.c.h.b16 %v657
        %v1835 = vunpack.c.l.b16 %v658
        %v1836 = vunpack.c.h.b16 %v658
        %v1837 = vunpack.c.l.b16 %v659
        %v1838 = vunpack.c.h.b16 %v659
        %v1839 = vunpack.c.l.b16 %v660
        %v1840 = vunpack.c.h.b16 %v660
        %v1841 = vunpack.c.l.b16 %v661
        %v1842 = vunpack.c.h.b16 %v661
        %v1843 = vunpack.c.l.b16 %v662
        %v1844 = vunpack.c.h.b16 %v662
        %v1845 = vunpack.c.l.b16 %v663
        %v1846 = vunpack.c.h.b16 %v663
        %v1847 = vunpack.c.l.b16 %v664
        %v1848 = vunpack.c.h.b16 %v664
        %v1849 = vunpack.c.l.b16 %v665
        %v1850 = vunpack.c.h.b16 %v665
        %v1851 = vunpack.c.l.b16 %v666
        %v1852 = vunpack.c.h.b16 %v666
        %v1853 = vunpack.c.l.b16 %v667
        %v1854 = vunpack.c.h.b16 %v667
        %v1855 = vunpack.c.l.b16 %v668
        %v1856 = vunpack.c.h.b16 %v668
        %v1857 = vunpack.c.l.b16 %v669
        %v1858 = vunpack.c.h.b16 %v669
        %v1859 = vunpack.c.l.b16 %v670
        %v1860 = vunpack.c.h.b16 %v670
        %v1861 = vunpack.c.l.b16 %v671
        %v1862 = vunpack.c.h.b16 %v671
        %v1863 = vunpack.c.l.b16 %v672
        %v1864 = vunpack.c.h.b16 %v672
        %v1865 = vunpack.c.l.b16 %v673
        %v1866 = vunpack.c.h.b16 %v673
        %v1867 = vunpack.c.l.b16 %v674
        %v1868 = vunpack.c.h.b16 %v674
        %v1869 = vunpack.c.l.b16 %v675
        %v1870 = vunpack.c.h.b16 %v675
        %v1871 = vunpack.c.l.b16 %v676
        %v1872 = vunpack.c.h.b16 %v676
        %v1873 = vunpack.c.l.b16 %v677
        %v1874 = vunpack.c.h.b16 %v677
        %v1875 = vunpack.c.l.b16 %v678
        %v1876 = vunpack.c.h.b16 %v678
        %v1877 = vunpack.c.l.b16 %v679
        %v1878 = vunpack.c.h.b16 %v679
        %v1879 = vunpack.c.l.b16 %v680
        %v1880 = vunpack.c.h.b16 %v680
        %v1881 = vunpack.c.l.b16 %v681
        %v1882 = vunpack.c.h.b16 %v681
        %v1883 = vunpack.c.l.b16 %v682
        %v1884 = vunpack.c.h.b16 %v682
        %v1885 = vunpack.c.l.b16 %v683
        %v1886 = vunpack.c.h.b16 %v683
        %v1887 = vunpack.c.l.b16 %v684
        %v1888 = vunpack.c.h.b16 %v684
        %v1889 = vunpack.c.l.b16 %v685
        %v1890 = vunpack.c.h.b16 %v685
        %v1891 = vunpack.c.l.b16 %v686
        %v1892 = vunpack.c.h.b16 %v686
        %v1893 = vunpack.c.l.b16 %v687
        %v1894 = vunpack.c.h.b16 %v687
        %v1895 = vunpack.c.l.b16 %v688
        %v1896 = vunpack.c.h.b16 %v688
        %v1897 = vunpack.c.l.b16 %v689
        %v1898 = vunpack.c.h.b16 %v689
        %v1899 = vunpack.c.l.b16 %v690
        %v1900 = vunpack.c.h.b16 %v690
        %v1901 = vunpack.c.l.b16 %v691
        %v1902 = vunpack.c.h.b16 %v691
        %v1903 = vunpack.c.l.b16 %v692
        %v1904 = vunpack.c.h.b16 %v692
        %v1905 = vunpack.c.l.b16 %v693
        %v1906 = vunpack.c.h.b16 %v693
        %v1907 = vunpack.c.l.b16 %v694
        %v1908 = vunpack.c.h.b16 %v694
        %v1909 = vunpack.c.l.b16 %v695
        %v1910 = vunpack.c.h.b16 %v695
        %v1911 = vunpack.c.l.b16 %v696
        %v1912 = vunpack.c.h.b16 %v696
        %v1913 = vunpack.c.l.b16 %v697
        %v1914 = vunpack.c.h.b16 %v697
        %v1915 = vunpack.c.l.b16 %v698
        %v1916 = vunpack.c.h.b16 %v698
        %v1917 = vunpack.c.l.b16 %v699
        %v1918 = vunpack.c.h.b16 %v699
        %v1919 = vunpack.c.l.b16 %v700
        %v1920 = vunpack.c.h.b16 %v700
        %v1921 = vunpack.c.l.b16 %v701
        %v1922 = vunpack.c.h.b16 %v701
        %v1923 = vunpack.c.l.b16 %v702
        %v1924 = vunpack.c.h.b16 %v702
        %v1925 = vunpack.c.l.b16 %v703
        %v1926 = vunpack.c.h.b16 %v703
        %v1927 = vunpack.c.l.b16 %v704
        %v1928 = vunpack.c.h.b16 %v704
        %v1929 = vunpack.c.l.b16 %v705
        %v1930 = vunpack.c.h.b16 %v705
        %v1931 = vunpack.c.l.b16 %v706
        %v1932 = vunpack.c.h.b16 %v706
        %v1933 = vunpack.c.l.b16 %v707
        %v1934 = vunpack.c.h.b16 %v707
        %v1935 = vunpack.c.l.b16 %v708
        %v1936 = vunpack.c.h.b16 %v708
        %v1937 = vunpack.c.l.b16 %v709
        %v1938 = vunpack.c.h.b16 %v709
        %v1939 = vunpack.c.l.b16 %v710
        %v1940 = vunpack.c.h.b16 %v710
        %v1941 = vunpack.c.l.b16 %v711
        %v1942 = vunpack.c.h.b16 %v711
        %v1943 = vunpack.c.l.b16 %v712
        %v1944 = vunpack.c.h.b16 %v712
        %v1945 = vunpack.c.l.b16 %v713
        %v1946 = vunpack.c.h.b16 %v713
        %v1947 = vunpack.c.l.b16 %v714
        %v1948 = vunpack.c.h.b16 %v714
        %v1949 = vunpack.c.l.b16 %v715
        %v1950 = vunpack.c.h.b16 %v715
        %v1951 = vunpack.c.l.b16 %v716
        %v1952 = vunpack.c.h.b16 %v716
        %v1953 = vunpack.c.l.b16 %v717
        %v1954 = vunpack.c.h.b16 %v717
        %v1955 = vunpack.c.l.b16 %v718
        %v1956 = vunpack.c.h.b16 %v718
        %v1957 = vunpack.c.l.b16 %v719
        %v1958 = vunpack.c.h.b16 %v719
        %v1959 = vunpack.c.l.b16 %v720
        %v1960 = vunpack.c.h.b16 %v720
        %v1961 = vunpack.c.l.b16 %v721
        %v1962 = vunpack.c.h.b16 %v721
        %v1963 = vunpack.c.l.b16 %v722
        %v1964 = vunpack.c.h.b16 %v722
        %v1965 = vunpack.c.l.b16 %v723
        %v1966 = vunpack.c.h.b16 %v723
        %v1967 = vunpack.c.l.b16 %v724
        %v1968 = vunpack.c.h.b16 %v724
        %v1969 = vunpack.c.l.b16 %v725
        %v1970 = vunpack.c.h.b16 %v725
        %v1971 = vunpack.c.l.b16 %v726
        %v1972 = vunpack.c.h.b16 %v726
        %v1973 = vunpack.c.l.b16 %v727
        %v1974 = vunpack.c.h.b16 %v727
        %v1975 = vunpack.c.l.b16 %v728
        %v1976 = vunpack.c.h.b16 %v728
        %v1977 = vunpack.c.l.b16 %v729
        %v1978 = vunpack.c.h.b16 %v729
        %v1979 = vunpack.c.l.b16 %v730
        %v1980 = vunpack.c.h.b16 %v730
        %v1981 = vunpack.c.l.b16 %v731
        %v1982 = vunpack.c.h.b16 %v731
        %v1983 = vunpack.c.l.b16 %v732
        %v1984 = vunpack.c.h.b16 %v732
        %v1985 = vunpack.c.l.b16 %v733
        %v1986 = vunpack.c.h.b16 %v733
        %v1987 = vunpack.c.l.b16 %v734
        %v1988 = vunpack.c.h.b16 %v734
        %v1989 = vunpack.c.l.b16 %v735
        %v1990 = vunpack.c.h.b16 %v735
        %v1991 = vunpack.c.l.b16 %v736
        %v1992 = vunpack.c.h.b16 %v736
        %v1993 = vunpack.c.l.b16 %v737
        %v1994 = vunpack.c.h.b16 %v737
        %v1995 = vunpack.c.l.b16 %v738
        %v1996 = vunpack.c.h.b16 %v738
        %v1997 = vunpack.c.l.b16 %v739
        %v1998 = vunpack.c.h.b16 %v739
        %v1999 = vunpack.c.l.b16 %v740
        %v2000 = vunpack.c.h.b16 %v740
        %v2001 = vunpack.c.l.b16 %v741
        %v2002 = vunpack.c.h.b16 %v741
        %v2003 = vunpack.c.l.b16 %v742
        %v2004 = vunpack.c.h.b16 %v742
        %v2005 = vunpack.c.l.b16 %v743
        %v2006 = vunpack.c.h.b16 %v743
        %v2007 = vunpack.c.l.b16 %v744
        %v2008 = vunpack.c.h.b16 %v744
        %v2009 = vunpack.c.l.b16 %v745
        %v2010 = vunpack.c.h.b16 %v745
        %v2011 = vunpack.c.l.b16 %v746
        %v2012 = vunpack.c.h.b16 %v746
        %v2013 = vunpack.c.l.b16 %v747
        %v2014 = vunpack.c.h.b16 %v747
        %v2015 = vunpack.c.l.b16 %v748
        %v2016 = vunpack.c.h.b16 %v748
        %v2017 = vunpack.c.l.b16 %v749
        %v2018 = vunpack.c.h.b16 %v749
        %v2019 = vunpack.c.l.b16 %v750
        %v2020 = vunpack.c.h.b16 %v750
        %v2021 = vunpack.c.l.b16 %v751
        %v2022 = vunpack.c.h.b16 %v751
        %v2023 = vunpack.c.l.b16 %v752
        %v2024 = vunpack.c.h.b16 %v752
        %v2025 = vunpack.c.l.b16 %v753
        %v2026 = vunpack.c.h.b16 %v753
        %v2027 = vunpack.c.l.b16 %v754
        %v2028 = vunpack.c.h.b16 %v754
        %v2029 = vunpack.c.l.b16 %v755
        %v2030 = vunpack.c.h.b16 %v755
        %v2031 = vunpack.c.l.b16 %v756
        %v2032 = vunpack.c.h.b16 %v756
        %v2033 = vunpack.c.l.b16 %v757
        %v2034 = vunpack.c.h.b16 %v757
        %v2035 = vunpack.c.l.b16 %v758
        %v2036 = vunpack.c.h.b16 %v758
        %v2037 = vunpack.c.l.b16 %v759
        %v2038 = vunpack.c.h.b16 %v759
        %v2039 = vunpack.c.l.b16 %v760
        %v2040 = vunpack.c.h.b16 %v760
        %v2041 = vunpack.c.l.b16 %v761
        %v2042 = vunpack.c.h.b16 %v761
        %v2043 = vunpack.c.l.b16 %v762
        %v2044 = vunpack.c.h.b16 %v762
        %v2045 = vunpack.c.l.b16 %v763
        %v2046 = vunpack.c.h.b16 %v763
        %v2047 = vunpack.c.l.b16 %v764
        %v2048 = vunpack.c.h.b16 %v764
        %v2049 = vunpack.c.l.b16 %v765
        %v2050 = vunpack.c.h.b16 %v765
        %v2051 = vunpack.c.l.b16 %v766
        %v2052 = vunpack.c.h.b16 %v766
        %v2053 = vunpack.c.l.b16 %v767
        %v2054 = vunpack.c.h.b16 %v767
        %v2055 = vunpack.c.l.b16 %v768
        %v2056 = vunpack.c.h.b16 %v768
        %v2057 = vunpack.c.l.b16 %v769
        %v2058 = vunpack.c.h.b16 %v769
        %v2059 = vunpack.c.l.b16 %v770
        %v2060 = vunpack.c.h.b16 %v770
        %v2061 = vunpack.c.l.b16 %v771
        %v2062 = vunpack.c.h.b16 %v771
        %v2063 = vunpack.c.l.b16 %v772
        %v2064 = vunpack.c.h.b16 %v772
        %v2065 = vunpack.c.l.b16 %v773
        %v2066 = vunpack.c.h.b16 %v773
        %v2067 = vunpack.c.l.b16 %v774
        %v2068 = vunpack.c.h.b16 %v774
        %v2069 = vunpack.c.l.b16 %v775
        %v2070 = vunpack.c.h.b16 %v775
        %v2071 = vunpack.c.l.b16 %v776
        %v2072 = vunpack.c.h.b16 %v776
        %v2073 = vunpack.c.l.b16 %v777
        %v2074 = vunpack.c.h.b16 %v777
        %v2075 = vunpack.c.l.b16 %v778
        %v2076 = vunpack.c.h.b16 %v778
        %v2077 = vunpack.c.l.b16 %v779
        %v2078 = vunpack.c.h.b16 %v779
        %v2079 = vunpack.c.l.b16 %v780
        %v2080 = vunpack.c.h.b16 %v780
        %v2081 = vunpack.c.l.b16 %v781
        %v2082 = vunpack.c.h.b16 %v781
        %v2083 = vunpack.c.l.b16 %v782
        %v2084 = vunpack.c.h.b16 %v782
        %v2085 = vunpack.c.l.b16 %v783
        %v2086 = vunpack.c.h.b16 %v783
        %v2087 = vunpack.c.l.b16 %v784
        %v2088 = vunpack.c.h.b16 %v784
        %v2089 = vunpack.c.l.b16 %v785
        %v2090 = vunpack.c.h.b16 %v785
        %v2091 = vunpack.c.l.b16 %v786
        %v2092 = vunpack.c.h.b16 %v786
        %v2093 = vunpack.c.l.b16 %v787
        %v2094 = vunpack.c.h.b16 %v787
        %v2095 = vunpack.c.l.b16 %v788
        %v2096 = vunpack.c.h.b16 %v788
        %v2097 = vunpack.c.l.b16 %v789
        %v2098 = vunpack.c.h.b16 %v789
        %v2099 = vunpack.c.l.b16 %v790
        %v2100 = vunpack.c.h.b16 %v790
        %v2101 = vunpack.c.l.b16 %v791
        %v2102 = vunpack.c.h.b16 %v791
        %v2103 = vunpack.c.l.b16 %v792
        %v2104 = vunpack.c.h.b16 %v792
        %v2105 = vunpack.c.l.b16 %v793
        %v2106 = vunpack.c.h.b16 %v793
        %v2107 = vunpack.c.l.b16 %v794
        %v2108 = vunpack.c.h.b16 %v794
        %v2109 = vunpack.c.l.b16 %v795
        %v2110 = vunpack.c.h.b16 %v795
        %v2111 = vunpack.c.l.b16 %v796
        %v2112 = vunpack.c.h.b16 %v796
        %v2113 = vunpack.c.l.b16 %v797
        %v2114 = vunpack.c.h.b16 %v797
        %v2115 = vunpack.c.l.b16 %v798
        %v2116 = vunpack.c.h.b16 %v798
        %v2117 = vunpack.c.l.b16 %v799
        %v2118 = vunpack.c.h.b16 %v799
        %v2119 = vunpack.c.l.b16 %v800
        %v2120 = vunpack.c.h.b16 %v800
        %v2121 = vunpack.c.l.b16 %v801
        %v2122 = vunpack.c.h.b16 %v801
        %v2123 = vunpack.c.l.b16 %v802
        %v2124 = vunpack.c.h.b16 %v802
        %v2125 = vunpack.c.l.b16 %v803
        %v2126 = vunpack.c.h.b16 %v803
        %v2127 = vunpack.c.l.b16 %v804
        %v2128 = vunpack.c.h.b16 %v804
        %v2129 = vunpack.c.l.b16 %v805
        %v2130 = vunpack.c.h.b16 %v805
        %v2131 = vunpack.c.l.b16 %v806
        %v2132 = vunpack.c.h.b16 %v806
        %v2133 = vunpack.c.l.b16 %v807
        %v2134 = vunpack.c.h.b16 %v807
        %v2135 = vunpack.c.l.b16 %v808
        %v2136 = vunpack.c.h.b16 %v808
        %v2137 = vunpack.c.l.b16 %v809
        %v2138 = vunpack.c.h.b16 %v809
        %v2139 = vunpack.c.l.b16 %v810
        %v2140 = vunpack.c.h.b16 %v810
        %v2141 = vunpack.c.l.b16 %v811
        %v2142 = vunpack.c.h.b16 %v811
        %v2143 = vunpack.c.l.b16 %v812
        %v2144 = vunpack.c.h.b16 %v812
        %v2145 = vunpack.c.l.b16 %v813
        %v2146 = vunpack.c.h.b16 %v813
        %v2147 = vunpack.c.l.b16 %v814
        %v2148 = vunpack.c.h.b16 %v814
        %v2149 = vunpack.c.l.b16 %v815
        %v2150 = vunpack.c.h.b16 %v815
        %v2151 = vunpack.c.l.b16 %v816
        %v2152 = vunpack.c.h.b16 %v816
        %v2153 = vunpack.c.l.b16 %v817
        %v2154 = vunpack.c.h.b16 %v817
        %v2155 = vunpack.c.l.b16 %v818
        %v2156 = vunpack.c.h.b16 %v818
        %v2157 = vunpack.c.l.b16 %v819
        %v2158 = vunpack.c.h.b16 %v819
        %v2159 = vunpack.c.l.b16 %v820
        %v2160 = vunpack.c.h.b16 %v820
        %v2161 = vunpack.c.l.b16 %v821
        %v2162 = vunpack.c.h.b16 %v821
        %v2163 = vunpack.c.l.b16 %v822
        %v2164 = vunpack.c.h.b16 %v822
        %v2165 = vunpack.c.l.b16 %v823
        %v2166 = vunpack.c.h.b16 %v823
        %v2167 = vunpack.c.l.b16 %v824
        %v2168 = vunpack.c.h.b16 %v824
        %v2169 = vunpack.c.l.b16 %v825
        %v2170 = vunpack.c.h.b16 %v825
        %v2171 = vunpack.c.l.b16 %v826
        %v2172 = vunpack.c.h.b16 %v826
        %v2173 = vunpack.c.l.b16 %v827
        %v2174 = vunpack.c.h.b16 %v827
        %v2175 = vunpack.c.l.b16 %v828
        %v2176 = vunpack.c.h.b16 %v828
        %v2177 = vunpack.c.l.b16 %v829
        %v2178 = vunpack.c.h.b16 %v829
        %v2179 = vunpack.c.l.b16 %v830
        %v2180 = vunpack.c.h.b16 %v830
        %v2181 = vunpack.c.l.b16 %v831
        %v2182 = vunpack.c.h.b16 %v831
        %v2183 = vunpack.c.l.b16 %v832
        %v2184 = vunpack.c.h.b16 %v832
        %v2185 = vunpack.c.l.b16 %v833
        %v2186 = vunpack.c.h.b16 %v833
        %v2187 = vunpack.c.l.b16 %v834
        %v2188 = vunpack.c.h.b16 %v834
        %v2189 = vunpack.c.l.b16 %v835
        %v2190 = vunpack.c.h.b16 %v835
        %v2191 = vunpack.c.l.b16 %v836
        %v2192 = vunpack.c.h.b16 %v836
        %v2193 = vunpack.c.l.b16 %v837
        %v2194 = vunpack.c.h.b16 %v837
        %v2195 = vunpack.c.l.b16 %v838
        %v2196 = vunpack.c.h.b16 %v838
        %v2197 = vunpack.c.l.b16 %v839
        %v2198 = vunpack.c.h.b16 %v839
        %v2199 = vunpack.c.l.b16 %v840
        %v2200 = vunpack.c.h.b16 %v840
        %v2201 = vunpack.c.l.b16 %v841
        %v2202 = vunpack.c.h.b16 %v841
        %v2203 = vunpack.c.l.b16 %v842
        %v2204 = vunpack.c.h.b16 %v842
        %v2205 = vunpack.c.l.b16 %v843
        %v2206 = vunpack.c.h.b16 %v843
        %v2207 = vunpack.c.l.b16 %v844
        %v2208 = vunpack.c.h.b16 %v844
        %v2209 = vunpack.c.l.b16 %v845
        %v2210 = vunpack.c.h.b16 %v845
        %v2211 = vunpack.c.l.b16 %v846
        %v2212 = vunpack.c.h.b16 %v846
        %v2213 = vunpack.c.l.b16 %v847
        %v2214 = vunpack.c.h.b16 %v847
        %v2215 = vunpack.c.l.b16 %v848
        %v2216 = vunpack.c.h.b16 %v848
        %v2217 = vunpack.c.l.b16 %v849
        %v2218 = vunpack.c.h.b16 %v849
        %v2219 = vunpack.c.l.b16 %v850
        %v2220 = vunpack.c.h.b16 %v850
        %v2221 = vunpack.c.l.b16 %v851
        %v2222 = vunpack.c.h.b16 %v851
        %v2223 = vunpack.c.l.b16 %v852
        %v2224 = vunpack.c.h.b16 %v852
        %v2225 = vunpack.c.l.b16 %v853
        %v2226 = vunpack.c.h.b16 %v853
        %v2227 = vunpack.c.l.b16 %v854
        %v2228 = vunpack.c.h.b16 %v854
        %v2229 = vunpack.c.l.b16 %v855
        %v2230 = vunpack.c.h.b16 %v855
        %v2231 = vunpack.c.l.b16 %v856
        %v2232 = vunpack.c.h.b16 %v856
        %v2233 = vunpack.c.l.b16 %v857
        %v2234 = vunpack.c.h.b16 %v857
        %v2235 = vunpack.c.l.b16 %v858
        %v2236 = vunpack.c.h.b16 %v858
        %v2237 = vunpack.c.l.b16 %v859
        %v2238 = vunpack.c.h.b16 %v859
        %v2239 = vunpack.c.l.b16 %v860
        %v2240 = vunpack.c.h.b16 %v860
        %v2241 = vunpack.c.l.b16 %v861
        %v2242 = vunpack.c.h.b16 %v861
        %v2243 = vunpack.c.l.b16 %v862
        %v2244 = vunpack.c.h.b16 %v862
        %v2245 = vunpack.c.l.b16 %v863
        %v2246 = vunpack.c.h.b16 %v863
        %v2247 = vunpack.c.l.b16 %v864
        %v2248 = vunpack.c.h.b16 %v864
        %v2249 = vunpack.c.l.b16 %v865
        %v2250 = vunpack.c.h.b16 %v865
        %v2251 = vunpack.c.l.b16 %v866
        %v2252 = vunpack.c.h.b16 %v866
        %v2253 = vunpack.c.l.b16 %v867
        %v2254 = vunpack.c.h.b16 %v867
        %v2255 = vunpack.c.l.b16 %v868
        %v2256 = vunpack.c.h.b16 %v868
        %v2257 = vunpack.c.l.b16 %v869
        %v2258 = vunpack.c.h.b16 %v869
        %v2259 = vunpack.c.l.b16 %v870
        %v2260 = vunpack.c.h.b16 %v870
        %v2261 = vunpack.c.l.b16 %v871
        %v2262 = vunpack.c.h.b16 %v871
        %v2263 = vunpack.c.l.b16 %v872
        %v2264 = vunpack.c.h.b16 %v872
        %v2265 = vunpack.c.l.b16 %v873
        %v2266 = vunpack.c.h.b16 %v873
        %v2267 = vunpack.c.l.b16 %v874
        %v2268 = vunpack.c.h.b16 %v874
        %v2269 = vunpack.c.l.b16 %v875
        %v2270 = vunpack.c.h.b16 %v875
        %v2271 = vunpack.c.l.b16 %v876
        %v2272 = vunpack.c.h.b16 %v876
        %v2273 = vunpack.c.l.b16 %v877
        %v2274 = vunpack.c.h.b16 %v877
        %v2275 = vunpack.c.l.b16 %v878
        %v2276 = vunpack.c.h.b16 %v878
        %v2277 = vunpack.c.l.b16 %v879
        %v2278 = vunpack.c.h.b16 %v879
        %v2279 = vunpack.c.l.b16 %v880
        %v2280 = vunpack.c.h.b16 %v880
        %v2281 = vunpack.c.l.b16 %v881
        %v2282 = vunpack.c.h.b16 %v881
        %v2283 = vunpack.c.l.b16 %v882
        %v2284 = vunpack.c.h.b16 %v882
        %v2285 = vunpack.c.l.b16 %v883
        %v2286 = vunpack.c.h.b16 %v883
        %v2287 = vunpack.c.l.b16 %v884
        %v2288 = vunpack.c.h.b16 %v884
        %v2289 = vunpack.c.l.b16 %v885
        %v2290 = vunpack.c.h.b16 %v885
        %v2291 = vunpack.c.l.b16 %v886
        %v2292 = vunpack.c.h.b16 %v886
        %v2293 = vunpack.c.l.b16 %v887
        %v2294 = vunpack.c.h.b16 %v887
        %v2295 = vunpack.c.l.b16 %v888
        %v2296 = vunpack.c.h.b16 %v888
        %v2297 = vunpack.c.l.b16 %v889
        %v2298 = vunpack.c.h.b16 %v889
        %v2299 = vunpack.c.l.b16 %v890
        %v2300 = vunpack.c.h.b16 %v890
        %v2301 = vunpack.c.l.b16 %v891
        %v2302 = vunpack.c.h.b16 %v891
        %v2303 = vunpack.c.l.b16 %v892
        %v2304 = vunpack.c.h.b16 %v892
        %v2305 = vunpack.c.l.b16 %v893
        %v2306 = vunpack.c.h.b16 %v893
        %v2307 = vunpack.c.l.b16 %v894
        %v2308 = vunpack.c.h.b16 %v894
        %v2309 = vunpack.c.l.b16 %v895
        %v2310 = vunpack.c.h.b16 %v895
        %v2311 = vunpack.c.l.b16 %v896
        %v2312 = vunpack.c.h.b16 %v896
        %v2313 = vunpack.c.l.b16 %v897
        %v2314 = vunpack.c.h.b16 %v897
        %v2315 = vunpack.c.l.b16 %v898
        %v2316 = vunpack.c.h.b16 %v898
        %v2317 = vunpack.c.l.b16 %v899
        %v2318 = vunpack.c.h.b16 %v899
        %v2319 = vunpack.c.l.b16 %v900
        %v2320 = vunpack.c.h.b16 %v900
        %v2321 = vunpack.c.l.b16 %v901
        %v2322 = vunpack.c.h.b16 %v901
        %v2323 = vunpack.c.l.b16 %v902
        %v2324 = vunpack.c.h.b16 %v902
        %v2325 = vunpack.c.l.b16 %v903
        %v2326 = vunpack.c.h.b16 %v903
        %v2327 = vunpack.c.l.b16 %v904
        %v2328 = vunpack.c.h.b16 %v904
        %v2329 = vunpack.c.l.b16 %v905
        %v2330 = vunpack.c.h.b16 %v905
        %v2331 = vunpack.c.l.b16 %v906
        %v2332 = vunpack.c.h.b16 %v906
        %v2333 = vunpack.c.l.b16 %v907
        %v2334 = vunpack.c.h.b16 %v907
        %v2335 = vunpack.c.l.b16 %v908
        %v2336 = vunpack.c.h.b16 %v908
        %v2337 = vunpack.c.l.b16 %v909
        %v2338 = vunpack.c.h.b16 %v909
        %v2339 = vunpack.c.l.b16 %v910
        %v2340 = vunpack.c.h.b16 %v910
        %v2341 = vunpack.c.l.b16 %v911
        %v2342 = vunpack.c.h.b16 %v911
        %v2343 = vunpack.c.l.b16 %v912
        %v2344 = vunpack.c.h.b16 %v912
        %v2345 = vunpack.c.l.b16 %v913
        %v2346 = vunpack.c.h.b16 %v913
        %v2347 = vunpack.c.l.b16 %v914
        %v2348 = vunpack.c.h.b16 %v914
        %v2349 = vunpack.c.l.b16 %v915
        %v2350 = vunpack.c.h.b16 %v915
        %v2351 = vunpack.c.l.b16 %v916
        %v2352 = vunpack.c.h.b16 %v916
        %v2353 = vunpack.c.l.b16 %v917
        %v2354 = vunpack.c.h.b16 %v917
        %v2355 = vunpack.c.l.b16 %v918
        %v2356 = vunpack.c.h.b16 %v918
        %v2357 = vunpack.c.l.b16 %v919
        %v2358 = vunpack.c.h.b16 %v919
        %v2359 = vunpack.c.l.b16 %v920
        %v2360 = vunpack.c.h.b16 %v920
        %v2361 = vunpack.c.l.b16 %v921
        %v2362 = vunpack.c.h.b16 %v921
        %v2363 = vunpack.c.l.b16 %v922
        %v2364 = vunpack.c.h.b16 %v922
        %v2365 = vunpack.c.l.b16 %v923
        %v2366 = vunpack.c.h.b16 %v923
        %v2367 = vunpack.c.l.b16 %v924
        %v2368 = vunpack.c.h.b16 %v924
        %v2369 = vunpack.c.l.b16 %v925
        %v2370 = vunpack.c.h.b16 %v925
        %v2371 = vunpack.c.l.b16 %v926
        %v2372 = vunpack.c.h.b16 %v926
        %v2373 = vunpack.c.l.b16 %v927
        %v2374 = vunpack.c.h.b16 %v927
        %v2375 = vunpack.c.l.b16 %v928
        %v2376 = vunpack.c.h.b16 %v928
        %v2377 = vunpack.c.l.b16 %v929
        %v2378 = vunpack.c.h.b16 %v929
        %v2379 = vunpack.c.l.b16 %v930
        %v2380 = vunpack.c.h.b16 %v930
        %v2381 = vunpack.c.l.b16 %v931
        %v2382 = vunpack.c.h.b16 %v931
        %v2383 = vunpack.c.l.b16 %v932
        %v2384 = vunpack.c.h.b16 %v932
        %v2385 = vunpack.c.l.b16 %v933
        %v2386 = vunpack.c.h.b16 %v933
        %v2387 = vunpack.c.l.b16 %v934
        %v2388 = vunpack.c.h.b16 %v934
        %v2389 = vunpack.c.l.b16 %v935
        %v2390 = vunpack.c.h.b16 %v935
        %v2391 = vunpack.c.l.b16 %v936
        %v2392 = vunpack.c.h.b16 %v936
        %v2393 = vunpack.c.l.b16 %v937
        %v2394 = vunpack.c.h.b16 %v937
        %v2395 = vunpack.c.l.b16 %v938
        %v2396 = vunpack.c.h.b16 %v938
        %v2397 = vunpack.c.l.b16 %v939
        %v2398 = vunpack.c.h.b16 %v939
        %v2399 = vunpack.c.l.b16 %v940
        %v2400 = vunpack.c.h.b16 %v940
        %v2401 = vunpack.c.l.b16 %v941
        %v2402 = vunpack.c.h.b16 %v941
        %v2403 = vunpack.c.l.b16 %v942
        %v2404 = vunpack.c.h.b16 %v942
        %v2405 = vunpack.c.l.b16 %v943
        %v2406 = vunpack.c.h.b16 %v943
        %v2407 = vunpack.c.l.b16 %v944
        %v2408 = vunpack.c.h.b16 %v944
        %v2409 = vunpack.c.l.b16 %v945
        %v2410 = vunpack.c.h.b16 %v945
        %v2411 = vunpack.c.l.b16 %v946
        %v2412 = vunpack.c.h.b16 %v946
        %v2413 = vunpack.c.l.b16 %v947
        %v2414 = vunpack.c.h.b16 %v947
        %v2415 = vunpack.c.l.b16 %v948
        %v2416 = vunpack.c.h.b16 %v948
        %v2417 = vunpack.c.l.b16 %v949
        %v2418 = vunpack.c.h.b16 %v949
        %v2419 = vunpack.c.l.b16 %v950
        %v2420 = vunpack.c.h.b16 %v950
        %v2421 = vunpack.c.l.b16 %v951
        %v2422 = vunpack.c.h.b16 %v951
        %v2423 = vunpack.c.l.b16 %v952
        %v2424 = vunpack.c.h.b16 %v952
        %v2425 = vunpack.c.l.b16 %v953
        %v2426 = vunpack.c.h.b16 %v953
        %v2427 = vunpack.c.l.b16 %v954
        %v2428 = vunpack.c.h.b16 %v954
        %v2429 = vunpack.c.l.b16 %v955
        %v2430 = vunpack.c.h.b16 %v955
        %v2431 = vunpack.c.l.b16 %v956
        %v2432 = vunpack.c.h.b16 %v956
        %v2433 = vunpack.c.l.b16 %v957
        %v2434 = vunpack.c.h.b16 %v957
        %v2435 = vunpack.c.l.b16 %v958
        %v2436 = vunpack.c.h.b16 %v958
        %v2437 = vunpack.c.l.b16 %v959
        %v2438 = vunpack.c.h.b16 %v959
        %v2439 = vunpack.c.l.b16 %v960
        %v2440 = vunpack.c.h.b16 %v960
        %v2441 = vunpack.c.l.b16 %v961
        %v2442 = vunpack.c.h.b16 %v961
        %v2443 = vunpack.c.l.b16 %v962
        %v2444 = vunpack.c.h.b16 %v962
        %v2445 = vunpack.c.l.b16 %v963
        %v2446 = vunpack.c.h.b16 %v963
        %v2447 = vunpack.c.l.b16 %v964
        %v2448 = vunpack.c.h.b16 %v964
        %v2449 = vunpack.c.l.b16 %v965
        %v2450 = vunpack.c.h.b16 %v965
        %v2451 = vunpack.c.l.b16 %v966
        %v2452 = vunpack.c.h.b16 %v966
        %v2453 = vunpack.c.l.b16 %v967
        %v2454 = vunpack.c.h.b16 %v967
        %v2455 = vunpack.c.l.b16 %v968
        %v2456 = vunpack.c.h.b16 %v968
        %v2457 = vunpack.c.l.b16 %v969
        %v2458 = vunpack.c.h.b16 %v969
        %v2459 = vunpack.c.l.b16 %v970
        %v2460 = vunpack.c.h.b16 %v970
        %v2461 = vunpack.c.l.b16 %v971
        %v2462 = vunpack.c.h.b16 %v971
        %v2463 = vunpack.c.l.b16 %v972
        %v2464 = vunpack.c.h.b16 %v972
        %v2465 = vunpack.c.l.b16 %v973
        %v2466 = vunpack.c.h.b16 %v973
        %v2467 = vunpack.c.l.b16 %v974
        %v2468 = vunpack.c.h.b16 %v974
        %v2469 = vunpack.c.l.b16 %v975
        %v2470 = vunpack.c.h.b16 %v975
        %v2471 = vunpack.c.l.b16 %v976
        %v2472 = vunpack.c.h.b16 %v976
        %v2473 = vunpack.c.l.b16 %v977
        %v2474 = vunpack.c.h.b16 %v977
        %v2475 = vunpack.c.l.b16 %v978
        %v2476 = vunpack.c.h.b16 %v978
        %v2477 = vunpack.c.l.b16 %v979
        %v2478 = vunpack.c.h.b16 %v979
        %v2479 = vunpack.c.l.b16 %v980
        %v2480 = vunpack.c.h.b16 %v980
        %v2481 = vunpack.c.l.b16 %v981
        %v2482 = vunpack.c.h.b16 %v981
        %v2483 = vunpack.c.l.b16 %v982
        %v2484 = vunpack.c.h.b16 %v982
        %v2485 = vunpack.c.l.b16 %v983
        %v2486 = vunpack.c.h.b16 %v983
        %v2487 = vunpack.c.l.b16 %v984
        %v2488 = vunpack.c.h.b16 %v984
        %v2489 = vunpack.c.l.b16 %v985
        %v2490 = vunpack.c.h.b16 %v985
        %v2491 = vunpack.c.l.b16 %v986
        %v2492 = vunpack.c.h.b16 %v986
        %v2493 = vunpack.c.l.b16 %v987
        %v2494 = vunpack.c.h.b16 %v987
        %v2495 = vunpack.c.l.b16 %v988
        %v2496 = vunpack.c.h.b16 %v988
        %v2497 = vunpack.c.l.b16 %v989
        %v2498 = vunpack.c.h.b16 %v989
        %v2499 = vunpack.c.l.b16 %v990
        %v2500 = vunpack.c.h.b16 %v990
        %v2501 = vunpack.c.l.b16 %v991
        %v2502 = vunpack.c.h.b16 %v991
        %v2503 = vunpack.c.l.b16 %v992
        %v2504 = vunpack.c.h.b16 %v992
        %v2505 = vunpack.c.l.b16 %v993
        %v2506 = vunpack.c.h.b16 %v993
        %v2507 = vunpack.c.l.b16 %v994
        %v2508 = vunpack.c.h.b16 %v994
        %v2509 = vunpack.c.l.b16 %v995
        %v2510 = vunpack.c.h.b16 %v995
        %v2511 = vunpack.c.l.b16 %v996
        %v2512 = vunpack.c.h.b16 %v996
        %v2513 = vunpack.c.l.b16 %v997
        %v2514 = vunpack.c.h.b16 %v997
        %v2515 = vunpack.c.l.b16 %v998
        %v2516 = vunpack.c.h.b16 %v998
        %v2517 = vunpack.c.l.b16 %v999
        %v2518 = vunpack.c.h.b16 %v999
        %v2519 = vunpack.c.l.b16 %v1000
        %v2520 = vunpack.c.h.b16 %v1000
        %v2521 = vunpack.c.l.b16 %v1001
        %v2522 = vunpack.c.h.b16 %v1001
        %v2523 = vunpack.c.l.b16 %v1002
        %v2524 = vunpack.c.h.b16 %v1002
        %v2525 = vunpack.c.l.b16 %v1003
        %v2526 = vunpack.c.h.b16 %v1003
        %v2527 = vunpack.c.l.b16 %v1004
        %v2528 = vunpack.c.h.b16 %v1004
        %v2529 = vunpack.c.l.b16 %v1005
        %v2530 = vunpack.c.h.b16 %v1005
        %v2531 = vunpack.c.l.b16 %v1006
        %v2532 = vunpack.c.h.b16 %v1006
        %v2533 = vunpack.c.l.b16 %v1007
        %v2534 = vunpack.c.h.b16 %v1007
        %v2535 = vunpack.c.l.b16 %v1008
        %v2536 = vunpack.c.h.b16 %v1008
        %v2537 = vunpack.c.l.b16 %v1009
        %v2538 = vunpack.c.h.b16 %v1009
        %v2539 = vunpack.c.l.b16 %v1010
        %v2540 = vunpack.c.h.b16 %v1010
        %v2541 = vunpack.c.l.b16 %v1011
        %v2542 = vunpack.c.h.b16 %v1011
        %v2543 = vunpack.c.l.b16 %v1012
        %v2544 = vunpack.c.h.b16 %v1012
        %v2545 = vunpack.c.l.b16 %v1013
        %v2546 = vunpack.c.h.b16 %v1013
        %v2547 = vunpack.c.l.b16 %v1014
        %v2548 = vunpack.c.h.b16 %v1014
        %v2549 = vunpack.c.l.b16 %v1015
        %v2550 = vunpack.c.h.b16 %v1015
        %v2551 = vunpack.c.l.b16 %v1016
        %v2552 = vunpack.c.h.b16 %v1016
        %v2553 = vunpack.c.l.b16 %v1017
        %v2554 = vunpack.c.h.b16 %v1017
        %v2555 = vunpack.c.l.b16 %v1018
        %v2556 = vunpack.c.h.b16 %v1018
        %v2557 = vunpack.c.l.b16 %v1019
        %v2558 = vunpack.c.h.b16 %v1019
        %v2559 = vunpack.c.l.b16 %v1020
        %v2560 = vunpack.c.h.b16 %v1020
        %v2561 = vunpack.c.l.b16 %v1021
        %v2562 = vunpack.c.h.b16 %v1021
        %v2563 = vunpack.c.l.b16 %v1022
        %v2564 = vunpack.c.h.b16 %v1022
        %v2565 = vunpack.c.l.b16 %v1023
        %v2566 = vunpack.c.h.b16 %v1023
        %v2567 = vunpack.c.l.b16 %v1024
        %v2568 = vunpack.c.h.b16 %v1024
        %v2569 = vunpack.c.l.b16 %v1025
        %v2570 = vunpack.c.h.b16 %v1025
        %v2571 = vunpack.c.l.b16 %v1026
        %v2572 = vunpack.c.h.b16 %v1026
        %v2573 = vunpack.c.l.b16 %v1027
        %v2574 = vunpack.c.h.b16 %v1027
        %v2575 = vunpack.c.l.b16 %v1028
        %v2576 = vunpack.c.h.b16 %v1028
        %v2577 = vunpack.c.l.b16 %v1029
        %v2578 = vunpack.c.h.b16 %v1029
        %v2579 = vunpack.c.l.b16 %v1030
        %v2580 = vunpack.c.h.b16 %v1030
        %v2581 = vunpack.c.l.b16 %v1031
        %v2582 = vunpack.c.h.b16 %v1031
        %v2583 = vunpack.c.l.b16 %v1032
        %v2584 = vunpack.c.h.b16 %v1032
        %v2585 = vunpack.c.l.b16 %v1033
        %v2586 = vunpack.c.h.b16 %v1033
        %v2587 = vunpack.c.l.b16 %v1034
        %v2588 = vunpack.c.h.b16 %v1034
        %v2589 = vunpack.c.l.b16 %v1035
        %v2590 = vunpack.c.h.b16 %v1035
        %v2591 = vunpack.c.l.b16 %v1036
        %v2592 = vunpack.c.h.b16 %v1036
        %v2593 = vunpack.c.l.b16 %v1037
        %v2594 = vunpack.c.h.b16 %v1037
        %v2595 = vunpack.c.l.b16 %v1038
        %v2596 = vunpack.c.h.b16 %v1038
        %v2597 = vunpack.c.l.b16 %v1039
        %v2598 = vunpack.c.h.b16 %v1039
        %v2599 = vunpack.c.l.b16 %v1040
        %v2600 = vunpack.c.h.b16 %v1040
        %v2601 = vunpack.c.l.b16 %v1041
        %v2602 = vunpack.c.h.b16 %v1041
        %v2603 = vunpack.c.l.b16 %v1042
        %v2604 = vunpack.c.h.b16 %v1042
        %v2605 = vunpack.c.l.b16 %v1043
        %v2606 = vunpack.c.h.b16 %v1043
        %v2607 = vunpack.c.l.b16 %v1044
        %v2608 = vunpack.c.h.b16 %v1044
        %v2609 = vunpack.c.l.b16 %v1045
        %v2610 = vunpack.c.h.b16 %v1045
        %v2611 = vunpack.c.l.b16 %v1046
        %v2612 = vunpack.c.h.b16 %v1046
        %v2613 = vunpack.c.l.b16 %v1047
        %v2614 = vunpack.c.h.b16 %v1047
        %v2615 = vunpack.c.l.b16 %v1048
        %v2616 = vunpack.c.h.b16 %v1048
        %v2617 = vunpack.c.l.b16 %v1049
        %v2618 = vunpack.c.h.b16 %v1049
        %v2619 = vunpack.c.l.b16 %v1050
        %v2620 = vunpack.c.h.b16 %v1050
        %v2621 = vunpack.c.l.b16 %v1051
        %v2622 = vunpack.c.h.b16 %v1051
        %v2623 = vunpack.c.l.b16 %v1052
        %v2624 = vunpack.c.h.b16 %v1052
        %v2625 = vunpack.c.l.b16 %v1053
        %v2626 = vunpack.c.h.b16 %v1053
        %v2627 = vunpack.c.l.b16 %v1054
        %v2628 = vunpack.c.h.b16 %v1054
        %v2629 = vunpack.c.l.b16 %v1055
        %v2630 = vunpack.c.h.b16 %v1055
        %v2631 = vunpack.c.l.b16 %v1056
        %v2632 = vunpack.c.h.b16 %v1056
        %v2633 = vunpack.c.l.b16 %v1057
        %v2634 = vunpack.c.h.b16 %v1057
        %v2635 = vunpack.c.l.b16 %v1058
        %v2636 = vunpack.c.h.b16 %v1058
        %v2637 = vunpack.c.l.b16 %v1059
        %v2638 = vunpack.c.h.b16 %v1059
        %v2639 = vunpack.c.l.b16 %v1060
        %v2640 = vunpack.c.h.b16 %v1060
        %v2641 = vunpack.c.l.b16 %v1061
        %v2642 = vunpack.c.h.b16 %v1061
        %v2643 = vunpack.c.l.b16 %v1062
        %v2644 = vunpack.c.h.b16 %v1062
        %v2645 = vunpack.c.l.b16 %v1063
        %v2646 = vunpack.c.h.b16 %v1063
        %v2647 = vunpack.c.l.b16 %v1064
        %v2648 = vunpack.c.h.b16 %v1064
        %v2649 = vunpack.c.l.b16 %v1065
        %v2650 = vunpack.c.h.b16 %v1065
        %v2651 = vunpack.c.l.b16 %v1066
        %v2652 = vunpack.c.h.b16 %v1066
        %v2653 = vunpack.c.l.b16 %v1067
        %v2654 = vunpack.c.h.b16 %v1067
        %v2655 = vunpack.c.l.b16 %v1068
        %v2656 = vunpack.c.h.b16 %v1068
        %v2657 = vunpack.c.l.b16 %v1069
        %v2658 = vunpack.c.h.b16 %v1069
        %v2659 = vunpack.c.l.b16 %v1070
        %v2660 = vunpack.c.h.b16 %v1070
        %v2661 = vunpack.c.l.b16 %v1071
        %v2662 = vunpack.c.h.b16 %v1071
        %v2663 = vunpack.c.l.b16 %v1072
        %v2664 = vunpack.c.h.b16 %v1072
        %v2665 = vunpack.c.l.b16 %v1073
        %v2666 = vunpack.c.h.b16 %v1073
        %v2667 = vunpack.c.l.b16 %v1074
        %v2668 = vunpack.c.h.b16 %v1074
        %v2669 = vunpack.c.l.b16 %v1075
        %v2670 = vunpack.c.h.b16 %v1075
        %v2671 = vunpack.c.l.b16 %v1076
        %v2672 = vunpack.c.h.b16 %v1076
        %v2673 = vunpack.c.l.b16 %v1077
        %v2674 = vunpack.c.h.b16 %v1077
        %v2675 = vunpack.c.l.b16 %v1078
        %v2676 = vunpack.c.h.b16 %v1078
        %v2677 = vunpack.c.l.b16 %v1079
        %v2678 = vunpack.c.h.b16 %v1079
        %v2679 = vunpack.c.l.b16 %v1080
        %v2680 = vunpack.c.h.b16 %v1080
        %v2681 = vunpack.c.l.b16 %v1081
        %v2682 = vunpack.c.h.b16 %v1081
        %v2683 = vunpack.c.l.b16 %v1082
        %v2684 = vunpack.c.h.b16 %v1082
        %v2685 = vunpack.c.l.b16 %v1083
        %v2686 = vunpack.c.h.b16 %v1083
        %v2687 = vunpack.c.l.b16 %v1084
        %v2688 = vunpack.c.h.b16 %v1084
        %v2689 = vunpack.c.l.b16 %v1085
        %v2690 = vunpack.c.h.b16 %v1085
        %v2691 = vunpack.c.l.b16 %v1086
        %v2692 = vunpack.c.h.b16 %v1086
        %v2693 = vunpack.c.l.b16 %v1087
        %v2694 = vunpack.c.h.b16 %v1087
        %v2695 = vunpack.c.l.b16 %v1088
        %v2696 = vunpack.c.h.b16 %v1088
        %v2697 = vunpack.c.l.b16 %v1089
        %v2698 = vunpack.c.h.b16 %v1089
        %v2699 = vunpack.c.l.b16 %v1090
        %v2700 = vunpack.c.h.b16 %v1090
        %v2701 = vunpack.c.l.b16 %v1091
        %v2702 = vunpack.c.h.b16 %v1091
        %v2703 = vunpack.c.l.b16 %v1092
        %v2704 = vunpack.c.h.b16 %v1092
        %v2705 = vunpack.c.l.b16 %v1093
        %v2706 = vunpack.c.h.b16 %v1093
        %v2707 = vunpack.c.l.b16 %v1094
        %v2708 = vunpack.c.h.b16 %v1094
        %v2709 = vunpack.c.l.b16 %v1095
        %v2710 = vunpack.c.h.b16 %v1095
        %v2711 = vunpack.c.l.b16 %v1096
        %v2712 = vunpack.c.h.b16 %v1096
        %v2713 = vunpack.c.l.b16 %v1097
        %v2714 = vunpack.c.h.b16 %v1097
        %v2715 = vunpack.c.l.b16 %v1098
        %v2716 = vunpack.c.h.b16 %v1098
        %v2717 = vpack.c.b16 %v1701, %v1693
        %v2718 = vpack.c.b16 %v1702, %v1694
        %v2719 = vpack.c.b16 %v1703, %v1695
        %v2720 = vpack.c.b16 %v1704, %v1696
        %v2721 = vpack.c.b16 %v1705, %v1697
        %v2722 = vpack.c.b16 %v1706, %v1698
        %v2723 = vpack.c.b16 %v1707, %v1699
        %v2724 = vpack.c.b16 %v1708, %v1700
        %v2725 = vpack.c.b16 %v1717, %v1709
        %v2726 = vpack.c.b16 %v1718, %v1710
        %v2727 = vpack.c.b16 %v1719, %v1711
        %v2728 = vpack.c.b16 %v1720, %v1712
        %v2729 = vpack.c.b16 %v1721, %v1713
        %v2730 = vpack.c.b16 %v1722, %v1714
        %v2731 = vpack.c.b16 %v1723, %v1715
        %v2732 = vpack.c.b16 %v1724, %v1716
        %v2733 = vpack.c.b16 %v1733, %v1725
        %v2734 = vpack.c.b16 %v1734, %v1726
        %v2735 = vpack.c.b16 %v1735, %v1727
        %v2736 = vpack.c.b16 %v1736, %v1728
        %v2737 = vpack.c.b16 %v1737, %v1729
        %v2738 = vpack.c.b16 %v1738, %v1730
        %v2739 = vpack.c.b16 %v1739, %v1731
        %v2740 = vpack.c.b16 %v1740, %v1732
        %v2741 = vpack.c.b16 %v1749, %v1741
        %v2742 = vpack.c.b16 %v1750, %v1742
        %v2743 = vpack.c.b16 %v1751, %v1743
        %v2744 = vpack.c.b16 %v1752, %v1744
        %v2745 = vpack.c.b16 %v1753, %v1745
        %v2746 = vpack.c.b16 %v1754, %v1746
        %v2747 = vpack.c.b16 %v1755, %v1747
        %v2748 = vpack.c.b16 %v1756, %v1748
        %v2749 = vpack.c.b16 %v1765, %v1757
        %v2750 = vpack.c.b16 %v1766, %v1758
        %v2751 = vpack.c.b16 %v1767, %v1759
        %v2752 = vpack.c.b16 %v1768, %v1760
        %v2753 = vpack.c.b16 %v1769, %v1761
        %v2754 = vpack.c.b16 %v1770, %v1762
        %v2755 = vpack.c.b16 %v1771, %v1763
        %v2756 = vpack.c.b16 %v1772, %v1764
        %v2757 = vpack.c.b16 %v1781, %v1773
        %v2758 = vpack.c.b16 %v1782, %v1774
        %v2759 = vpack.c.b16 %v1783, %v1775
        %v2760 = vpack.c.b16 %v1784, %v1776
        %v2761 = vpack.c.b16 %v1785, %v1777
        %v2762 = vpack.c.b16 %v1786, %v1778
        %v2763 = vpack.c.b16 %v1787, %v1779
        %v2764 = vpack.c.b16 %v1788, %v1780
        %v2765 = vpack.c.b16 %v1797, %v1789
        %v2766 = vpack.c.b16 %v1798, %v1790
        %v2767 = vpack.c.b16 %v1799, %v1791
        %v2768 = vpack.c.b16 %v1800, %v1792
        %v2769 = vpack.c.b16 %v1801, %v1793
        %v2770 = vpack.c.b16 %v1802, %v1794
        %v2771 = vpack.c.b16 %v1803, %v1795
        %v2772 = vpack.c.b16 %v1804, %v1796
        %v2773 = vpack.c.b16 %v1813, %v1805
        %v2774 = vpack.c.b16 %v1814, %v1806
        %v2775 = vpack.c.b16 %v1815, %v1807
        %v2776 = vpack.c.b16 %v1816, %v1808
        %v2777 = vpack.c.b16 %v1817, %v1809
        %v2778 = vpack.c.b16 %v1818, %v1810
        %v2779 = vpack.c.b16 %v1819, %v1811
        %v2780 = vpack.c.b16 %v1820, %v1812
        %v2781 = vpack.c.b16 %v1829, %v1821
        %v2782 = vpack.c.b16 %v1830, %v1822
        %v2783 = vpack.c.b16 %v1831, %v1823
        %v2784 = vpack.c.b16 %v1832, %v1824
        %v2785 = vpack.c.b16 %v1833, %v1825
        %v2786 = vpack.c.b16 %v1834, %v1826
        %v2787 = vpack.c.b16 %v1835, %v1827
        %v2788 = vpack.c.b16 %v1836, %v1828
        %v2789 = vpack.c.b16 %v1845, %v1837
        %v2790 = vpack.c.b16 %v1846, %v1838
        %v2791 = vpack.c.b16 %v1847, %v1839
        %v2792 = vpack.c.b16 %v1848, %v1840
        %v2793 = vpack.c.b16 %v1849, %v1841
        %v2794 = vpack.c.b16 %v1850, %v1842
        %v2795 = vpack.c.b16 %v1851, %v1843
        %v2796 = vpack.c.b16 %v1852, %v1844
        %v2797 = vpack.c.b16 %v1861, %v1853
        %v2798 = vpack.c.b16 %v1862, %v1854
        %v2799 = vpack.c.b16 %v1863, %v1855
        %v2800 = vpack.c.b16 %v1864, %v1856
        %v2801 = vpack.c.b16 %v1865, %v1857
        %v2802 = vpack.c.b16 %v1866, %v1858
        %v2803 = vpack.c.b16 %v1867, %v1859
        %v2804 = vpack.c.b16 %v1868, %v1860
        %v2805 = vpack.c.b16 %v1877, %v1869
        %v2806 = vpack.c.b16 %v1878, %v1870
        %v2807 = vpack.c.b16 %v1879, %v1871
        %v2808 = vpack.c.b16 %v1880, %v1872
        %v2809 = vpack.c.b16 %v1881, %v1873
        %v2810 = vpack.c.b16 %v1882, %v1874
        %v2811 = vpack.c.b16 %v1883, %v1875
        %v2812 = vpack.c.b16 %v1884, %v1876
        %v2813 = vpack.c.b16 %v1893, %v1885
        %v2814 = vpack.c.b16 %v1894, %v1886
        %v2815 = vpack.c.b16 %v1895, %v1887
        %v2816 = vpack.c.b16 %v1896, %v1888
        %v2817 = vpack.c.b16 %v1897, %v1889
        %v2818 = vpack.c.b16 %v1898, %v1890
        %v2819 = vpack.c.b16 %v1899, %v1891
        %v2820 = vpack.c.b16 %v1900, %v1892
        %v2821 = vpack.c.b16 %v1909, %v1901
        %v2822 = vpack.c.b16 %v1910, %v1902
        %v2823 = vpack.c.b16 %v1911, %v1903
        %v2824 = vpack.c.b16 %v1912, %v1904
        %v2825 = vpack.c.b16 %v1913, %v1905
        %v2826 = vpack.c.b16 %v1914, %v1906
        %v2827 = vpack.c.b16 %v1915, %v1907
        %v2828 = vpack.c.b16 %v1916, %v1908
        %v2829 = vpack.c.b16 %v1925, %v1917
        %v2830 = vpack.c.b16 %v1926, %v1918
        %v2831 = vpack.c.b16 %v1927, %v1919
        %v2832 = vpack.c.b16 %v1928, %v1920
        %v2833 = vpack.c.b16 %v1929, %v1921
        %v2834 = vpack.c.b16 %v1930, %v1922
        %v2835 = vpack.c.b16 %v1931, %v1923
        %v2836 = vpack.c.b16 %v1932, %v1924
        %v2837 = vpack.c.b16 %v1941, %v1933
        %v2838 = vpack.c.b16 %v1942, %v1934
        %v2839 = vpack.c.b16 %v1943, %v1935
        %v2840 = vpack.c.b16 %v1944, %v1936
        %v2841 = vpack.c.b16 %v1945, %v1937
        %v2842 = vpack.c.b16 %v1946, %v1938
        %v2843 = vpack.c.b16 %v1947, %v1939
        %v2844 = vpack.c.b16 %v1948, %v1940
        %v2845 = vpack.c.b16 %v1957, %v1949
        %v2846 = vpack.c.b16 %v1958, %v1950
        %v2847 = vpack.c.b16 %v1959, %v1951
        %v2848 = vpack.c.b16 %v1960, %v1952
        %v2849 = vpack.c.b16 %v1961, %v1953
        %v2850 = vpack.c.b16 %v1962, %v1954
        %v2851 = vpack.c.b16 %v1963, %v1955
        %v2852 = vpack.c.b16 %v1964, %v1956
        %v2853 = vpack.c.b16 %v1973, %v1965
        %v2854 = vpack.c.b16 %v1974, %v1966
        %v2855 = vpack.c.b16 %v1975, %v1967
        %v2856 = vpack.c.b16 %v1976, %v1968
        %v2857 = vpack.c.b16 %v1977, %v1969
        %v2858 = vpack.c.b16 %v1978, %v1970
        %v2859 = vpack.c.b16 %v1979, %v1971
        %v2860 = vpack.c.b16 %v1980, %v1972
        %v2861 = vpack.c.b16 %v1989, %v1981
        %v2862 = vpack.c.b16 %v1990, %v1982
        %v2863 = vpack.c.b16 %v1991, %v1983
        %v2864 = vpack.c.b16 %v1992, %v1984
        %v2865 = vpack.c.b16 %v1993, %v1985
        %v2866 = vpack.c.b16 %v1994, %v1986
        %v2867 = vpack.c.b16 %v1995, %v1987
        %v2868 = vpack.c.b16 %v1996, %v1988
        %v2869 = vpack.c.b16 %v2005, %v1997
        %v2870 = vpack.c.b16 %v2006, %v1998
        %v2871 = vpack.c.b16 %v2007, %v1999
        %v2872 = vpack.c.b16 %v2008, %v2000
        %v2873 = vpack.c.b16 %v2009, %v2001
        %v2874 = vpack.c.b16 %v2010, %v2002
        %v2875 = vpack.c.b16 %v2011, %v2003
        %v2876 = vpack.c.b16 %v2012, %v2004
        %v2877 = vpack.c.b16 %v2021, %v2013
        %v2878 = vpack.c.b16 %v2022, %v2014
        %v2879 = vpack.c.b16 %v2023, %v2015
        %v2880 = vpack.c.b16 %v2024, %v2016
        %v2881 = vpack.c.b16 %v2025, %v2017
        %v2882 = vpack.c.b16 %v2026, %v2018
        %v2883 = vpack.c.b16 %v2027, %v2019
        %v2884 = vpack.c.b16 %v2028, %v2020
        %v2885 = vpack.c.b16 %v2037, %v2029
        %v2886 = vpack.c.b16 %v2038, %v2030
        %v2887 = vpack.c.b16 %v2039, %v2031
        %v2888 = vpack.c.b16 %v2040, %v2032
        %v2889 = vpack.c.b16 %v2041, %v2033
        %v2890 = vpack.c.b16 %v2042, %v2034
        %v2891 = vpack.c.b16 %v2043, %v2035
        %v2892 = vpack.c.b16 %v2044, %v2036
        %v2893 = vpack.c.b16 %v2053, %v2045
        %v2894 = vpack.c.b16 %v2054, %v2046
        %v2895 = vpack.c.b16 %v2055, %v2047
        %v2896 = vpack.c.b16 %v2056, %v2048
        %v2897 = vpack.c.b16 %v2057, %v2049
        %v2898 = vpack.c.b16 %v2058, %v2050
        %v2899 = vpack.c.b16 %v2059, %v2051
        %v2900 = vpack.c.b16 %v2060, %v2052
        %v2901 = vpack.c.b16 %v2069, %v2061
        %v2902 = vpack.c.b16 %v2070, %v2062
        %v2903 = vpack.c.b16 %v2071, %v2063
        %v2904 = vpack.c.b16 %v2072, %v2064
        %v2905 = vpack.c.b16 %v2073, %v2065
        %v2906 = vpack.c.b16 %v2074, %v2066
        %v2907 = vpack.c.b16 %v2075, %v2067
        %v2908 = vpack.c.b16 %v2076, %v2068
        %v2909 = vpack.c.b16 %v2085, %v2077
        %v2910 = vpack.c.b16 %v2086, %v2078
        %v2911 = vpack.c.b16 %v2087, %v2079
        %v2912 = vpack.c.b16 %v2088, %v2080
        %v2913 = vpack.c.b16 %v2089, %v2081
        %v2914 = vpack.c.b16 %v2090, %v2082
        %v2915 = vpack.c.b16 %v2091, %v2083
        %v2916 = vpack.c.b16 %v2092, %v2084
        %v2917 = vpack.c.b16 %v2101, %v2093
        %v2918 = vpack.c.b16 %v2102, %v2094
        %v2919 = vpack.c.b16 %v2103, %v2095
        %v2920 = vpack.c.b16 %v2104, %v2096
        %v2921 = vpack.c.b16 %v2105, %v2097
        %v2922 = vpack.c.b16 %v2106, %v2098
        %v2923 = vpack.c.b16 %v2107, %v2099
        %v2924 = vpack.c.b16 %v2108, %v2100
        %v2925 = vpack.c.b16 %v2117, %v2109
        %v2926 = vpack.c.b16 %v2118, %v2110
        %v2927 = vpack.c.b16 %v2119, %v2111
        %v2928 = vpack.c.b16 %v2120, %v2112
        %v2929 = vpack.c.b16 %v2121, %v2113
        %v2930 = vpack.c.b16 %v2122, %v2114
        %v2931 = vpack.c.b16 %v2123, %v2115
        %v2932 = vpack.c.b16 %v2124, %v2116
        %v2933 = vpack.c.b16 %v2133, %v2125
        %v2934 = vpack.c.b16 %v2134, %v2126
        %v2935 = vpack.c.b16 %v2135, %v2127
        %v2936 = vpack.c.b16 %v2136, %v2128
        %v2937 = vpack.c.b16 %v2137, %v2129
        %v2938 = vpack.c.b16 %v2138, %v2130
        %v2939 = vpack.c.b16 %v2139, %v2131
        %v2940 = vpack.c.b16 %v2140, %v2132
        %v2941 = vpack.c.b16 %v2149, %v2141
        %v2942 = vpack.c.b16 %v2150, %v2142
        %v2943 = vpack.c.b16 %v2151, %v2143
        %v2944 = vpack.c.b16 %v2152, %v2144
        %v2945 = vpack.c.b16 %v2153, %v2145
        %v2946 = vpack.c.b16 %v2154, %v2146
        %v2947 = vpack.c.b16 %v2155, %v2147
        %v2948 = vpack.c.b16 %v2156, %v2148
        %v2949 = vpack.c.b16 %v2165, %v2157
        %v2950 = vpack.c.b16 %v2166, %v2158
        %v2951 = vpack.c.b16 %v2167, %v2159
        %v2952 = vpack.c.b16 %v2168, %v2160
        %v2953 = vpack.c.b16 %v2169, %v2161
        %v2954 = vpack.c.b16 %v2170, %v2162
        %v2955 = vpack.c.b16 %v2171, %v2163
        %v2956 = vpack.c.b16 %v2172, %v2164
        %v2957 = vpack.c.b16 %v2181, %v2173
        %v2958 = vpack.c.b16 %v2182, %v2174
        %v2959 = vpack.c.b16 %v2183, %v2175
        %v2960 = vpack.c.b16 %v2184, %v2176
        %v2961 = vpack.c.b16 %v2185, %v2177
        %v2962 = vpack.c.b16 %v2186, %v2178
        %v2963 = vpack.c.b16 %v2187, %v2179
        %v2964 = vpack.c.b16 %v2188, %v2180
        %v2965 = vpack.c.b16 %v2197, %v2189
        %v2966 = vpack.c.b16 %v2198, %v2190
        %v2967 = vpack.c.b16 %v2199, %v2191
        %v2968 = vpack.c.b16 %v2200, %v2192
        %v2969 = vpack.c.b16 %v2201, %v2193
        %v2970 = vpack.c.b16 %v2202, %v2194
        %v2971 = vpack.c.b16 %v2203, %v2195
        %v2972 = vpack.c.b16 %v2204, %v2196
        %v2973 = vpack.c.b16 %v2213, %v2205
        %v2974 = vpack.c.b16 %v2214, %v2206
        %v2975 = vpack.c.b16 %v2215, %v2207
        %v2976 = vpack.c.b16 %v2216, %v2208
        %v2977 = vpack.c.b16 %v2217, %v2209
        %v2978 = vpack.c.b16 %v2218, %v2210
        %v2979 = vpack.c.b16 %v2219, %v2211
        %v2980 = vpack.c.b16 %v2220, %v2212
        %v2981 = vpack.c.b16 %v2229, %v2221
        %v2982 = vpack.c.b16 %v2230, %v2222
        %v2983 = vpack.c.b16 %v2231, %v2223
        %v2984 = vpack.c.b16 %v2232, %v2224
        %v2985 = vpack.c.b16 %v2233, %v2225
        %v2986 = vpack.c.b16 %v2234, %v2226
        %v2987 = vpack.c.b16 %v2235, %v2227
        %v2988 = vpack.c.b16 %v2236, %v2228
        %v2989 = vpack.c.b16 %v2245, %v2237
        %v2990 = vpack.c.b16 %v2246, %v2238
        %v2991 = vpack.c.b16 %v2247, %v2239
        %v2992 = vpack.c.b16 %v2248, %v2240
        %v2993 = vpack.c.b16 %v2249, %v2241
        %v2994 = vpack.c.b16 %v2250, %v2242
        %v2995 = vpack.c.b16 %v2251, %v2243
        %v2996 = vpack.c.b16 %v2252, %v2244
        %v2997 = vpack.c.b16 %v2261, %v2253
        %v2998 = vpack.c.b16 %v2262, %v2254
        %v2999 = vpack.c.b16 %v2263, %v2255
        %v3000 = vpack.c.b16 %v2264, %v2256
        %v3001 = vpack.c.b16 %v2265, %v2257
        %v3002 = vpack.c.b16 %v2266, %v2258
        %v3003 = vpack.c.b16 %v2267, %v2259
        %v3004 = vpack.c.b16 %v2268, %v2260
        %v3005 = vpack.c.b16 %v2277, %v2269
        %v3006 = vpack.c.b16 %v2278, %v2270
        %v3007 = vpack.c.b16 %v2279, %v2271
        %v3008 = vpack.c.b16 %v2280, %v2272
        %v3009 = vpack.c.b16 %v2281, %v2273
        %v3010 = vpack.c.b16 %v2282, %v2274
        %v3011 = vpack.c.b16 %v2283, %v2275
        %v3012 = vpack.c.b16 %v2284, %v2276
        %v3013 = vpack.c.b16 %v2293, %v2285
        %v3014 = vpack.c.b16 %v2294, %v2286
        %v3015 = vpack.c.b16 %v2295, %v2287
        %v3016 = vpack.c.b16 %v2296, %v2288
        %v3017 = vpack.c.b16 %v2297, %v2289
        %v3018 = vpack.c.b16 %v2298, %v2290
        %v3019 = vpack.c.b16 %v2299, %v2291
        %v3020 = vpack.c.b16 %v2300, %v2292
        %v3021 = vpack.c.b16 %v2309, %v2301
        %v3022 = vpack.c.b16 %v2310, %v2302
        %v3023 = vpack.c.b16 %v2311, %v2303
        %v3024 = vpack.c.b16 %v2312, %v2304
        %v3025 = vpack.c.b16 %v2313, %v2305
        %v3026 = vpack.c.b16 %v2314, %v2306
        %v3027 = vpack.c.b16 %v2315, %v2307
        %v3028 = vpack.c.b16 %v2316, %v2308
        %v3029 = vpack.c.b16 %v2325, %v2317
        %v3030 = vpack.c.b16 %v2326, %v2318
        %v3031 = vpack.c.b16 %v2327, %v2319
        %v3032 = vpack.c.b16 %v2328, %v2320
        %v3033 = vpack.c.b16 %v2329, %v2321
        %v3034 = vpack.c.b16 %v2330, %v2322
        %v3035 = vpack.c.b16 %v2331, %v2323
        %v3036 = vpack.c.b16 %v2332, %v2324
        %v3037 = vpack.c.b16 %v2341, %v2333
        %v3038 = vpack.c.b16 %v2342, %v2334
        %v3039 = vpack.c.b16 %v2343, %v2335
        %v3040 = vpack.c.b16 %v2344, %v2336
        %v3041 = vpack.c.b16 %v2345, %v2337
        %v3042 = vpack.c.b16 %v2346, %v2338
        %v3043 = vpack.c.b16 %v2347, %v2339
        %v3044 = vpack.c.b16 %v2348, %v2340
        %v3045 = vpack.c.b16 %v2357, %v2349
        %v3046 = vpack.c.b16 %v2358, %v2350
        %v3047 = vpack.c.b16 %v2359, %v2351
        %v3048 = vpack.c.b16 %v2360, %v2352
        %v3049 = vpack.c.b16 %v2361, %v2353
        %v3050 = vpack.c.b16 %v2362, %v2354
        %v3051 = vpack.c.b16 %v2363, %v2355
        %v3052 = vpack.c.b16 %v2364, %v2356
        %v3053 = vpack.c.b16 %v2373, %v2365
        %v3054 = vpack.c.b16 %v2374, %v2366
        %v3055 = vpack.c.b16 %v2375, %v2367
        %v3056 = vpack.c.b16 %v2376, %v2368
        %v3057 = vpack.c.b16 %v2377, %v2369
        %v3058 = vpack.c.b16 %v2378, %v2370
        %v3059 = vpack.c.b16 %v2379, %v2371
        %v3060 = vpack.c.b16 %v2380, %v2372
        %v3061 = vpack.c.b16 %v2389, %v2381
        %v3062 = vpack.c.b16 %v2390, %v2382
        %v3063 = vpack.c.b16 %v2391, %v2383
        %v3064 = vpack.c.b16 %v2392, %v2384
        %v3065 = vpack.c.b16 %v2393, %v2385
        %v3066 = vpack.c.b16 %v2394, %v2386
        %v3067 = vpack.c.b16 %v2395, %v2387
        %v3068 = vpack.c.b16 %v2396, %v2388
        %v3069 = vpack.c.b16 %v2405, %v2397
        %v3070 = vpack.c.b16 %v2406, %v2398
        %v3071 = vpack.c.b16 %v2407, %v2399
        %v3072 = vpack.c.b16 %v2408, %v2400
        %v3073 = vpack.c.b16 %v2409, %v2401
        %v3074 = vpack.c.b16 %v2410, %v2402
        %v3075 = vpack.c.b16 %v2411, %v2403
        %v3076 = vpack.c.b16 %v2412, %v2404
        %v3077 = vpack.c.b16 %v2421, %v2413
        %v3078 = vpack.c.b16 %v2422, %v2414
        %v3079 = vpack.c.b16 %v2423, %v2415
        %v3080 = vpack.c.b16 %v2424, %v2416
        %v3081 = vpack.c.b16 %v2425, %v2417
        %v3082 = vpack.c.b16 %v2426, %v2418
        %v3083 = vpack.c.b16 %v2427, %v2419
        %v3084 = vpack.c.b16 %v2428, %v2420
        %v3085 = vpack.c.b16 %v2437, %v2429
        %v3086 = vpack.c.b16 %v2438, %v2430
        %v3087 = vpack.c.b16 %v2439, %v2431
        %v3088 = vpack.c.b16 %v2440, %v2432
        %v3089 = vpack.c.b16 %v2441, %v2433
        %v3090 = vpack.c.b16 %v2442, %v2434
        %v3091 = vpack.c.b16 %v2443, %v2435
        %v3092 = vpack.c.b16 %v2444, %v2436
        %v3093 = vpack.c.b16 %v2453, %v2445
        %v3094 = vpack.c.b16 %v2454, %v2446
        %v3095 = vpack.c.b16 %v2455, %v2447
        %v3096 = vpack.c.b16 %v2456, %v2448
        %v3097 = vpack.c.b16 %v2457, %v2449
        %v3098 = vpack.c.b16 %v2458, %v2450
        %v3099 = vpack.c.b16 %v2459, %v2451
        %v3100 = vpack.c.b16 %v2460, %v2452
        %v3101 = vpack.c.b16 %v2469, %v2461
        %v3102 = vpack.c.b16 %v2470, %v2462
        %v3103 = vpack.c.b16 %v2471, %v2463
        %v3104 = vpack.c.b16 %v2472, %v2464
        %v3105 = vpack.c.b16 %v2473, %v2465
        %v3106 = vpack.c.b16 %v2474, %v2466
        %v3107 = vpack.c.b16 %v2475, %v2467
        %v3108 = vpack.c.b16 %v2476, %v2468
        %v3109 = vpack.c.b16 %v2485, %v2477
        %v3110 = vpack.c.b16 %v2486, %v2478
        %v3111 = vpack.c.b16 %v2487, %v2479
        %v3112 = vpack.c.b16 %v2488, %v2480
        %v3113 = vpack.c.b16 %v2489, %v2481
        %v3114 = vpack.c.b16 %v2490, %v2482
        %v3115 = vpack.c.b16 %v2491, %v2483
        %v3116 = vpack.c.b16 %v2492, %v2484
        %v3117 = vpack.c.b16 %v2501, %v2493
        %v3118 = vpack.c.b16 %v2502, %v2494
        %v3119 = vpack.c.b16 %v2503, %v2495
        %v3120 = vpack.c.b16 %v2504, %v2496
        %v3121 = vpack.c.b16 %v2505, %v2497
        %v3122 = vpack.c.b16 %v2506, %v2498
        %v3123 = vpack.c.b16 %v2507, %v2499
        %v3124 = vpack.c.b16 %v2508, %v2500
        %v3125 = vpack.c.b16 %v2517, %v2509
        %v3126 = vpack.c.b16 %v2518, %v2510
        %v3127 = vpack.c.b16 %v2519, %v2511
        %v3128 = vpack.c.b16 %v2520, %v2512
        %v3129 = vpack.c.b16 %v2521, %v2513
        %v3130 = vpack.c.b16 %v2522, %v2514
        %v3131 = vpack.c.b16 %v2523, %v2515
        %v3132 = vpack.c.b16 %v2524, %v2516
        %v3133 = vpack.c.b16 %v2533, %v2525
        %v3134 = vpack.c.b16 %v2534, %v2526
        %v3135 = vpack.c.b16 %v2535, %v2527
        %v3136 = vpack.c.b16 %v2536, %v2528
        %v3137 = vpack.c.b16 %v2537, %v2529
        %v3138 = vpack.c.b16 %v2538, %v2530
        %v3139 = vpack.c.b16 %v2539, %v2531
        %v3140 = vpack.c.b16 %v2540, %v2532
        %v3141 = vpack.c.b16 %v2549, %v2541
        %v3142 = vpack.c.b16 %v2550, %v2542
        %v3143 = vpack.c.b16 %v2551, %v2543
        %v3144 = vpack.c.b16 %v2552, %v2544
        %v3145 = vpack.c.b16 %v2553, %v2545
        %v3146 = vpack.c.b16 %v2554, %v2546
        %v3147 = vpack.c.b16 %v2555, %v2547
        %v3148 = vpack.c.b16 %v2556, %v2548
        %v3149 = vpack.c.b16 %v2565, %v2557
        %v3150 = vpack.c.b16 %v2566, %v2558
        %v3151 = vpack.c.b16 %v2567, %v2559
        %v3152 = vpack.c.b16 %v2568, %v2560
        %v3153 = vpack.c.b16 %v2569, %v2561
        %v3154 = vpack.c.b16 %v2570, %v2562
        %v3155 = vpack.c.b16 %v2571, %v2563
        %v3156 = vpack.c.b16 %v2572, %v2564
        %v3157 = vpack.c.b16 %v2581, %v2573
        %v3158 = vpack.c.b16 %v2582, %v2574
        %v3159 = vpack.c.b16 %v2583, %v2575
        %v3160 = vpack.c.b16 %v2584, %v2576
        %v3161 = vpack.c.b16 %v2585, %v2577
        %v3162 = vpack.c.b16 %v2586, %v2578
        %v3163 = vpack.c.b16 %v2587, %v2579
        %v3164 = vpack.c.b16 %v2588, %v2580
        %v3165 = vpack.c.b16 %v2597, %v2589
        %v3166 = vpack.c.b16 %v2598, %v2590
        %v3167 = vpack.c.b16 %v2599, %v2591
        %v3168 = vpack.c.b16 %v2600, %v2592
        %v3169 = vpack.c.b16 %v2601, %v2593
        %v3170 = vpack.c.b16 %v2602, %v2594
        %v3171 = vpack.c.b16 %v2603, %v2595
        %v3172 = vpack.c.b16 %v2604, %v2596
        %v3173 = vpack.c.b16 %v2613, %v2605
        %v3174 = vpack.c.b16 %v2614, %v2606
        %v3175 = vpack.c.b16 %v2615, %v2607
        %v3176 = vpack.c.b16 %v2616, %v2608
        %v3177 = vpack.c.b16 %v2617, %v2609
        %v3178 = vpack.c.b16 %v2618, %v2610
        %v3179 = vpack.c.b16 %v2619, %v2611
        %v3180 = vpack.c.b16 %v2620, %v2612
        %v3181 = vpack.c.b16 %v2629, %v2621
        %v3182 = vpack.c.b16 %v2630, %v2622
        %v3183 = vpack.c.b16 %v2631, %v2623
        %v3184 = vpack.c.b16 %v2632, %v2624
        %v3185 = vpack.c.b16 %v2633, %v2625
        %v3186 = vpack.c.b16 %v2634, %v2626
        %v3187 = vpack.c.b16 %v2635, %v2627
        %v3188 = vpack.c.b16 %v2636, %v2628
        %v3189 = vpack.c.b16 %v2645, %v2637
        %v3190 = vpack.c.b16 %v2646, %v2638
        %v3191 = vpack.c.b16 %v2647, %v2639
        %v3192 = vpack.c.b16 %v2648, %v2640
        %v3193 = vpack.c.b16 %v2649, %v2641
        %v3194 = vpack.c.b16 %v2650, %v2642
        %v3195 = vpack.c.b16 %v2651, %v2643
        %v3196 = vpack.c.b16 %v2652, %v2644
        %v3197 = vpack.c.b16 %v2661, %v2653
        %v3198 = vpack.c.b16 %v2662, %v2654
        %v3199 = vpack.c.b16 %v2663, %v2655
        %v3200 = vpack.c.b16 %v2664, %v2656
        %v3201 = vpack.c.b16 %v2665, %v2657
        %v3202 = vpack.c.b16 %v2666, %v2658
        %v3203 = vpack.c.b16 %v2667, %v2659
        %v3204 = vpack.c.b16 %v2668, %v2660
        %v3205 = vpack.c.b16 %v2677, %v2669
        %v3206 = vpack.c.b16 %v2678, %v2670
        %v3207 = vpack.c.b16 %v2679, %v2671
        %v3208 = vpack.c.b16 %v2680, %v2672
        %v3209 = vpack.c.b16 %v2681, %v2673
        %v3210 = vpack.c.b16 %v2682, %v2674
        %v3211 = vpack.c.b16 %v2683, %v2675
        %v3212 = vpack.c.b16 %v2684, %v2676
        %v3213 = vpack.c.b16 %v2693, %v2685
        %v3214 = vpack.c.b16 %v2694, %v2686
        %v3215 = vpack.c.b16 %v2695, %v2687
        %v3216 = vpack.c.b16 %v2696, %v2688
        %v3217 = vpack.c.b16 %v2697, %v2689
        %v3218 = vpack.c.b16 %v2698, %v2690
        %v3219 = vpack.c.b16 %v2699, %v2691
        %v3220 = vpack.c.b16 %v2700, %v2692
        %v3221 = vpack.c.b16 %v2709, %v2701
        %v3222 = vpack.c.b16 %v2710, %v2702
        %v3223 = vpack.c.b16 %v2711, %v2703
        %v3224 = vpack.c.b16 %v2712, %v2704
        %v3225 = vpack.c.b16 %v2713, %v2705
        %v3226 = vpack.c.b16 %v2714, %v2706
        %v3227 = vpack.c.b16 %v2715, %v2707
        %v3228 = vpack.c.b16 %v2716, %v2708
        %3741 = vmatprep.subr.bf16.mxu0 %v2774
        %3742 = vmatpush1.bf16.msra.mxu0 %v2773
        %3743 = vmatprep.subr.bf16.mxu0 %v2766
        %3744 = vmatpush1.bf16.msra.mxu0 %v2765
        %3745 = vmatprep.subr.bf16.mxu0 %v2758
        %3746 = vmatpush1.bf16.msra.mxu0 %v2757
        %3747 = vmatprep.subr.bf16.mxu0 %v2750
        %3748 = vmatpush1.bf16.msra.mxu0 %v2749
        %3749 = vmatprep.subr.bf16.mxu0 %v2742
        %3750 = vmatpush1.bf16.msra.mxu0 %v2741
        %3751 = vmatprep.subr.bf16.mxu0 %v2734
        %3752 = vmatpush1.bf16.msra.mxu0 %v2733
        %3753 = vmatprep.subr.bf16.mxu0 %v2726
        %3754 = vmatpush1.bf16.msra.mxu0 %v2725
        %3755 = vmatprep.subr.bf16.mxu0 %v2718
        %3756 = vmatpush1.bf16.msra.mxu0 %v2717
        %3757 = vmatprep.subr.bf16.mxu0 %v2838
        %3758 = vmatpush2.bf16.msra.mxu0 %v2837
        %3759 = vmatprep.subr.bf16.mxu0 %v2830
        %3760 = vmatpush2.bf16.msra.mxu0 %v2829
        %3761 = vmatprep.subr.bf16.mxu0 %v2822
        %3762 = vmatpush2.bf16.msra.mxu0 %v2821
        %3763 = vmatprep.subr.bf16.mxu0 %v2814
        %3764 = vmatpush2.bf16.msra.mxu0 %v2813
        %3765 = vmatprep.subr.bf16.mxu0 %v2806
        %3766 = vmatpush2.bf16.msra.mxu0 %v2805
        %3767 = vmatprep.subr.bf16.mxu0 %v2798
        %3768 = vmatpush2.bf16.msra.mxu0 %v2797
        %3769 = vmatprep.subr.bf16.mxu0 %v2790
        %3770 = vmatpush2.bf16.msra.mxu0 %v2789
        %3771 = vmatprep.subr.bf16.mxu0 %v2782
        %3772 = vmatpush2.bf16.msra.mxu0 %v2781
        %3773 = vmatprep.mubr.bf16.mxu0 %v1166
        %3774 = vmatmul.mubr.bf16.gmra.mxu0 %v1165
        %v3775 = vpop.f32.mrf.mxu0
        %v3776 = vadd.f32 %v1104, %v3775
        %v3777 = vpop.f32.mrf.mxu0
        %v3778 = vadd.f32 %v1108, %v3777
        %v3779 = vpop.f32.mrf.mxu0
        %v3780 = vadd.f32 %v1104, %v3779
        %v3781 = vpop.f32.mrf.mxu0
        %v3782 = vadd.f32 %v1108, %v3781
        %3783 = vdwg.mxu0
        %3784 = vmatprep.subr.bf16.mxu0 %v2902
        %3785 = vmatpush1.bf16.msra.mxu0 %v2901
        %3786 = vmatprep.subr.bf16.mxu0 %v2894
        %3787 = vmatpush1.bf16.msra.mxu0 %v2893
        %3788 = vmatprep.subr.bf16.mxu0 %v2886
        %3789 = vmatpush1.bf16.msra.mxu0 %v2885
        %3790 = vmatprep.subr.bf16.mxu0 %v2878
        %3791 = vmatpush1.bf16.msra.mxu0 %v2877
        %3792 = vmatprep.subr.bf16.mxu0 %v2870
        %3793 = vmatpush1.bf16.msra.mxu0 %v2869
        %3794 = vmatprep.subr.bf16.mxu0 %v2862
        %3795 = vmatpush1.bf16.msra.mxu0 %v2861
        %3796 = vmatprep.subr.bf16.mxu0 %v2854
        %3797 = vmatpush1.bf16.msra.mxu0 %v2853
        %3798 = vmatprep.subr.bf16.mxu0 %v2846
        %3799 = vmatpush1.bf16.msra.mxu0 %v2845
        %3800 = vmatprep.subr.bf16.mxu0 %v2966
        %3801 = vmatpush2.bf16.msra.mxu0 %v2965
        %3802 = vmatprep.subr.bf16.mxu0 %v2958
        %3803 = vmatpush2.bf16.msra.mxu0 %v2957
        %3804 = vmatprep.subr.bf16.mxu0 %v2950
        %3805 = vmatpush2.bf16.msra.mxu0 %v2949
        %3806 = vmatprep.subr.bf16.mxu0 %v2942
        %3807 = vmatpush2.bf16.msra.mxu0 %v2941
        %3808 = vmatprep.subr.bf16.mxu0 %v2934
        %3809 = vmatpush2.bf16.msra.mxu0 %v2933
        %3810 = vmatprep.subr.bf16.mxu0 %v2926
        %3811 = vmatpush2.bf16.msra.mxu0 %v2925
        %3812 = vmatprep.subr.bf16.mxu0 %v2918
        %3813 = vmatpush2.bf16.msra.mxu0 %v2917
        %3814 = vmatprep.subr.bf16.mxu0 %v2910
        %3815 = vmatpush2.bf16.msra.mxu0 %v2909
        %3816 = vmatprep.mubr.bf16.mxu0 %v1168
        %3817 = vmatmul.mubr.bf16.gmra.mxu0 %v1167
        %v3818 = vpop.f32.mrf.mxu0
        %v3819 = vadd.f32 %v3776, %v3818
        %v3820 = vpop.f32.mrf.mxu0
        %v3821 = vadd.f32 %v3778, %v3820
        %v3822 = vpop.f32.mrf.mxu0
        %v3823 = vadd.f32 %v3780, %v3822
        %v3824 = vpop.f32.mrf.mxu0
        %v3825 = vadd.f32 %v3782, %v3824
        %3826 = vdwg.mxu0
        %3827 = vmatprep.subr.bf16.mxu0 %v3030
        %3828 = vmatpush1.bf16.msra.mxu0 %v3029
        %3829 = vmatprep.subr.bf16.mxu0 %v3022
        %3830 = vmatpush1.bf16.msra.mxu0 %v3021
        %3831 = vmatprep.subr.bf16.mxu0 %v3014
        %3832 = vmatpush1.bf16.msra.mxu0 %v3013
        %3833 = vmatprep.subr.bf16.mxu0 %v3006
        %3834 = vmatpush1.bf16.msra.mxu0 %v3005
        %3835 = vmatprep.subr.bf16.mxu0 %v2998
        %3836 = vmatpush1.bf16.msra.mxu0 %v2997
        %3837 = vmatprep.subr.bf16.mxu0 %v2990
        %3838 = vmatpush1.bf16.msra.mxu0 %v2989
        %3839 = vmatprep.subr.bf16.mxu0 %v2982
        %3840 = vmatpush1.bf16.msra.mxu0 %v2981
        %3841 = vmatprep.subr.bf16.mxu0 %v2974
        %3842 = vmatpush1.bf16.msra.mxu0 %v2973
        %3843 = vmatprep.subr.bf16.mxu0 %v3094
        %3844 = vmatpush2.bf16.msra.mxu0 %v3093
        %3845 = vmatprep.subr.bf16.mxu0 %v3086
        %3846 = vmatpush2.bf16.msra.mxu0 %v3085
        %3847 = vmatprep.subr.bf16.mxu0 %v3078
        %3848 = vmatpush2.bf16.msra.mxu0 %v3077
        %3849 = vmatprep.subr.bf16.mxu0 %v3070
        %3850 = vmatpush2.bf16.msra.mxu0 %v3069
        %3851 = vmatprep.subr.bf16.mxu0 %v3062
        %3852 = vmatpush2.bf16.msra.mxu0 %v3061
        %3853 = vmatprep.subr.bf16.mxu0 %v3054
        %3854 = vmatpush2.bf16.msra.mxu0 %v3053
        %3855 = vmatprep.subr.bf16.mxu0 %v3046
        %3856 = vmatpush2.bf16.msra.mxu0 %v3045
        %3857 = vmatprep.subr.bf16.mxu0 %v3038
        %3858 = vmatpush2.bf16.msra.mxu0 %v3037
        %3859 = vmatprep.mubr.bf16.mxu0 %v1170
        %3860 = vmatmul.mubr.bf16.gmra.mxu0 %v1169
        %v3861 = vpop.f32.mrf.mxu0
        %v3862 = vadd.f32 %v3819, %v3861
        %v3863 = vpop.f32.mrf.mxu0
        %v3864 = vadd.f32 %v3821, %v3863
        %v3865 = vpop.f32.mrf.mxu0
        %v3866 = vadd.f32 %v3823, %v3865
        %v3867 = vpop.f32.mrf.mxu0
        %v3868 = vadd.f32 %v3825, %v3867
        %3869 = vdwg.mxu0
        %3870 = vmatprep.subr.bf16.mxu0 %v3158
        %3871 = vmatpush1.bf16.msra.mxu0 %v3157
        %3872 = vmatprep.subr.bf16.mxu0 %v3150
        %3873 = vmatpush1.bf16.msra.mxu0 %v3149
        %3874 = vmatprep.subr.bf16.mxu0 %v3142
        %3875 = vmatpush1.bf16.msra.mxu0 %v3141
        %3876 = vmatprep.subr.bf16.mxu0 %v3134
        %3877 = vmatpush1.bf16.msra.mxu0 %v3133
        %3878 = vmatprep.subr.bf16.mxu0 %v3126
        %3879 = vmatpush1.bf16.msra.mxu0 %v3125
        %3880 = vmatprep.subr.bf16.mxu0 %v3118
        %3881 = vmatpush1.bf16.msra.mxu0 %v3117
        %3882 = vmatprep.subr.bf16.mxu0 %v3110
        %3883 = vmatpush1.bf16.msra.mxu0 %v3109
        %3884 = vmatprep.subr.bf16.mxu0 %v3102
        %3885 = vmatpush1.bf16.msra.mxu0 %v3101
        %3886 = vmatprep.subr.bf16.mxu0 %v3222
        %3887 = vmatpush2.bf16.msra.mxu0 %v3221
        %3888 = vmatprep.subr.bf16.mxu0 %v3214
        %3889 = vmatpush2.bf16.msra.mxu0 %v3213
        %3890 = vmatprep.subr.bf16.mxu0 %v3206
        %3891 = vmatpush2.bf16.msra.mxu0 %v3205
        %3892 = vmatprep.subr.bf16.mxu0 %v3198
        %3893 = vmatpush2.bf16.msra.mxu0 %v3197
        %3894 = vmatprep.subr.bf16.mxu0 %v3190
        %3895 = vmatpush2.bf16.msra.mxu0 %v3189
        %3896 = vmatprep.subr.bf16.mxu0 %v3182
        %3897 = vmatpush2.bf16.msra.mxu0 %v3181
        %3898 = vmatprep.subr.bf16.mxu0 %v3174
        %3899 = vmatpush2.bf16.msra.mxu0 %v3173
        %3900 = vmatprep.subr.bf16.mxu0 %v3166
        %3901 = vmatpush2.bf16.msra.mxu0 %v3165
        %3902 = vmatprep.mubr.bf16.mxu0 %v1172
        %3903 = vmatmul.mubr.bf16.gmra.mxu0 %v1171
        %v3904 = vpop.f32.mrf.mxu0
        %v3905 = vadd.f32 %v3862, %v3904
        %v3906 = vpop.f32.mrf.mxu0
        %v3907 = vadd.f32 %v3864, %v3906
        %v3908 = vpop.f32.mrf.mxu0
        %v3909 = vadd.f32 %v3866, %v3908
        %v3910 = vpop.f32.mrf.mxu0
        %v3911 = vadd.f32 %v3868, %v3910
        %3912 = vdwg.mxu0
        %3913 = vmatprep.subr.bf16.mxu0 %v2776
        %3914 = vmatpush1.bf16.msra.mxu0 %v2775
        %3915 = vmatprep.subr.bf16.mxu0 %v2768
        %3916 = vmatpush1.bf16.msra.mxu0 %v2767
        %3917 = vmatprep.subr.bf16.mxu0 %v2760
        %3918 = vmatpush1.bf16.msra.mxu0 %v2759
        %3919 = vmatprep.subr.bf16.mxu0 %v2752
        %3920 = vmatpush1.bf16.msra.mxu0 %v2751
        %3921 = vmatprep.subr.bf16.mxu0 %v2744
        %3922 = vmatpush1.bf16.msra.mxu0 %v2743
        %3923 = vmatprep.subr.bf16.mxu0 %v2736
        %3924 = vmatpush1.bf16.msra.mxu0 %v2735
        %3925 = vmatprep.subr.bf16.mxu0 %v2728
        %3926 = vmatpush1.bf16.msra.mxu0 %v2727
        %3927 = vmatprep.subr.bf16.mxu0 %v2720
        %3928 = vmatpush1.bf16.msra.mxu0 %v2719
        %3929 = vmatprep.subr.bf16.mxu0 %v2840
        %3930 = vmatpush2.bf16.msra.mxu0 %v2839
        %3931 = vmatprep.subr.bf16.mxu0 %v2832
        %3932 = vmatpush2.bf16.msra.mxu0 %v2831
        %3933 = vmatprep.subr.bf16.mxu0 %v2824
        %3934 = vmatpush2.bf16.msra.mxu0 %v2823
        %3935 = vmatprep.subr.bf16.mxu0 %v2816
        %3936 = vmatpush2.bf16.msra.mxu0 %v2815
        %3937 = vmatprep.subr.bf16.mxu0 %v2808
        %3938 = vmatpush2.bf16.msra.mxu0 %v2807
        %3939 = vmatprep.subr.bf16.mxu0 %v2800
        %3940 = vmatpush2.bf16.msra.mxu0 %v2799
        %3941 = vmatprep.subr.bf16.mxu0 %v2792
        %3942 = vmatpush2.bf16.msra.mxu0 %v2791
        %3943 = vmatprep.subr.bf16.mxu0 %v2784
        %3944 = vmatpush2.bf16.msra.mxu0 %v2783
        %3945 = vmatprep.mubr.bf16.mxu0 %v1166
        %3946 = vmatmul.mubr.bf16.gmra.mxu0 %v1165
        %v3947 = vpop.f32.mrf.mxu0
        %v3948 = vadd.f32 %v1112, %v3947
        %v3949 = vpop.f32.mrf.mxu0
        %v3950 = vadd.f32 %v1116, %v3949
        %v3951 = vpop.f32.mrf.mxu0
        %v3952 = vadd.f32 %v1112, %v3951
        %v3953 = vpop.f32.mrf.mxu0
        %v3954 = vadd.f32 %v1116, %v3953
        %3955 = vdwg.mxu0
        %3956 = vmatprep.subr.bf16.mxu0 %v2904
        %3957 = vmatpush1.bf16.msra.mxu0 %v2903
        %3958 = vmatprep.subr.bf16.mxu0 %v2896
        %3959 = vmatpush1.bf16.msra.mxu0 %v2895
        %3960 = vmatprep.subr.bf16.mxu0 %v2888
        %3961 = vmatpush1.bf16.msra.mxu0 %v2887
        %3962 = vmatprep.subr.bf16.mxu0 %v2880
        %3963 = vmatpush1.bf16.msra.mxu0 %v2879
        %3964 = vmatprep.subr.bf16.mxu0 %v2872
        %3965 = vmatpush1.bf16.msra.mxu0 %v2871
        %3966 = vmatprep.subr.bf16.mxu0 %v2864
        %3967 = vmatpush1.bf16.msra.mxu0 %v2863
        %3968 = vmatprep.subr.bf16.mxu0 %v2856
        %3969 = vmatpush1.bf16.msra.mxu0 %v2855
        %3970 = vmatprep.subr.bf16.mxu0 %v2848
        %3971 = vmatpush1.bf16.msra.mxu0 %v2847
        %3972 = vmatprep.subr.bf16.mxu0 %v2968
        %3973 = vmatpush2.bf16.msra.mxu0 %v2967
        %3974 = vmatprep.subr.bf16.mxu0 %v2960
        %3975 = vmatpush2.bf16.msra.mxu0 %v2959
        %3976 = vmatprep.subr.bf16.mxu0 %v2952
        %3977 = vmatpush2.bf16.msra.mxu0 %v2951
        %3978 = vmatprep.subr.bf16.mxu0 %v2944
        %3979 = vmatpush2.bf16.msra.mxu0 %v2943
        %3980 = vmatprep.subr.bf16.mxu0 %v2936
        %3981 = vmatpush2.bf16.msra.mxu0 %v2935
        %3982 = vmatprep.subr.bf16.mxu0 %v2928
        %3983 = vmatpush2.bf16.msra.mxu0 %v2927
        %3984 = vmatprep.subr.bf16.mxu0 %v2920
        %3985 = vmatpush2.bf16.msra.mxu0 %v2919
        %3986 = vmatprep.subr.bf16.mxu0 %v2912
        %3987 = vmatpush2.bf16.msra.mxu0 %v2911
        %3988 = vmatprep.mubr.bf16.mxu0 %v1168
        %3989 = vmatmul.mubr.bf16.gmra.mxu0 %v1167
        %v3990 = vpop.f32.mrf.mxu0
        %v3991 = vadd.f32 %v3948, %v3990
        %v3992 = vpop.f32.mrf.mxu0
        %v3993 = vadd.f32 %v3950, %v3992
        %v3994 = vpop.f32.mrf.mxu0
        %v3995 = vadd.f32 %v3952, %v3994
        %v3996 = vpop.f32.mrf.mxu0
        %v3997 = vadd.f32 %v3954, %v3996
        %3998 = vdwg.mxu0
        %3999 = vmatprep.subr.bf16.mxu0 %v3032
        %4000 = vmatpush1.bf16.msra.mxu0 %v3031
        %4001 = vmatprep.subr.bf16.mxu0 %v3024
        %4002 = vmatpush1.bf16.msra.mxu0 %v3023
        %4003 = vmatprep.subr.bf16.mxu0 %v3016
        %4004 = vmatpush1.bf16.msra.mxu0 %v3015
        %4005 = vmatprep.subr.bf16.mxu0 %v3008
        %4006 = vmatpush1.bf16.msra.mxu0 %v3007
        %4007 = vmatprep.subr.bf16.mxu0 %v3000
        %4008 = vmatpush1.bf16.msra.mxu0 %v2999
        %4009 = vmatprep.subr.bf16.mxu0 %v2992
        %4010 = vmatpush1.bf16.msra.mxu0 %v2991
        %4011 = vmatprep.subr.bf16.mxu0 %v2984
        %4012 = vmatpush1.bf16.msra.mxu0 %v2983
        %4013 = vmatprep.subr.bf16.mxu0 %v2976
        %4014 = vmatpush1.bf16.msra.mxu0 %v2975
        %4015 = vmatprep.subr.bf16.mxu0 %v3096
        %4016 = vmatpush2.bf16.msra.mxu0 %v3095
        %4017 = vmatprep.subr.bf16.mxu0 %v3088
        %4018 = vmatpush2.bf16.msra.mxu0 %v3087
        %4019 = vmatprep.subr.bf16.mxu0 %v3080
        %4020 = vmatpush2.bf16.msra.mxu0 %v3079
        %4021 = vmatprep.subr.bf16.mxu0 %v3072
        %4022 = vmatpush2.bf16.msra.mxu0 %v3071
        %4023 = vmatprep.subr.bf16.mxu0 %v3064
        %4024 = vmatpush2.bf16.msra.mxu0 %v3063
        %4025 = vmatprep.subr.bf16.mxu0 %v3056
        %4026 = vmatpush2.bf16.msra.mxu0 %v3055
        %4027 = vmatprep.subr.bf16.mxu0 %v3048
        %4028 = vmatpush2.bf16.msra.mxu0 %v3047
        %4029 = vmatprep.subr.bf16.mxu0 %v3040
        %4030 = vmatpush2.bf16.msra.mxu0 %v3039
        %4031 = vmatprep.mubr.bf16.mxu0 %v1170
        %4032 = vmatmul.mubr.bf16.gmra.mxu0 %v1169
        %v4033 = vpop.f32.mrf.mxu0
        %v4034 = vadd.f32 %v3991, %v4033
        %v4035 = vpop.f32.mrf.mxu0
        %v4036 = vadd.f32 %v3993, %v4035
        %v4037 = vpop.f32.mrf.mxu0
        %v4038 = vadd.f32 %v3995, %v4037
        %v4039 = vpop.f32.mrf.mxu0
        %v4040 = vadd.f32 %v3997, %v4039
        %4041 = vdwg.mxu0
        %4042 = vmatprep.subr.bf16.mxu0 %v3160
        %4043 = vmatpush1.bf16.msra.mxu0 %v3159
        %4044 = vmatprep.subr.bf16.mxu0 %v3152
        %4045 = vmatpush1.bf16.msra.mxu0 %v3151
        %4046 = vmatprep.subr.bf16.mxu0 %v3144
        %4047 = vmatpush1.bf16.msra.mxu0 %v3143
        %4048 = vmatprep.subr.bf16.mxu0 %v3136
        %4049 = vmatpush1.bf16.msra.mxu0 %v3135
        %4050 = vmatprep.subr.bf16.mxu0 %v3128
        %4051 = vmatpush1.bf16.msra.mxu0 %v3127
        %4052 = vmatprep.subr.bf16.mxu0 %v3120
        %4053 = vmatpush1.bf16.msra.mxu0 %v3119
        %4054 = vmatprep.subr.bf16.mxu0 %v3112
        %4055 = vmatpush1.bf16.msra.mxu0 %v3111
        %4056 = vmatprep.subr.bf16.mxu0 %v3104
        %4057 = vmatpush1.bf16.msra.mxu0 %v3103
        %4058 = vmatprep.subr.bf16.mxu0 %v3224
        %4059 = vmatpush2.bf16.msra.mxu0 %v3223
        %4060 = vmatprep.subr.bf16.mxu0 %v3216
        %4061 = vmatpush2.bf16.msra.mxu0 %v3215
        %4062 = vmatprep.subr.bf16.mxu0 %v3208
        %4063 = vmatpush2.bf16.msra.mxu0 %v3207
        %4064 = vmatprep.subr.bf16.mxu0 %v3200
        %4065 = vmatpush2.bf16.msra.mxu0 %v3199
        %4066 = vmatprep.subr.bf16.mxu0 %v3192
        %4067 = vmatpush2.bf16.msra.mxu0 %v3191
        %4068 = vmatprep.subr.bf16.mxu0 %v3184
        %4069 = vmatpush2.bf16.msra.mxu0 %v3183
        %4070 = vmatprep.subr.bf16.mxu0 %v3176
        %4071 = vmatpush2.bf16.msra.mxu0 %v3175
        %4072 = vmatprep.subr.bf16.mxu0 %v3168
        %4073 = vmatpush2.bf16.msra.mxu0 %v3167
        %4074 = vmatprep.mubr.bf16.mxu0 %v1172
        %4075 = vmatmul.mubr.bf16.gmra.mxu0 %v1171
        %v4076 = vpop.f32.mrf.mxu0
        %v4077 = vadd.f32 %v4034, %v4076
        %v4078 = vpop.f32.mrf.mxu0
        %v4079 = vadd.f32 %v4036, %v4078
        %v4080 = vpop.f32.mrf.mxu0
        %v4081 = vadd.f32 %v4038, %v4080
        %v4082 = vpop.f32.mrf.mxu0
        %v4083 = vadd.f32 %v4040, %v4082
        %4084 = vdwg.mxu0
        %4085 = vmatprep.subr.bf16.mxu0 %v2778
        %4086 = vmatpush1.bf16.msra.mxu0 %v2777
        %4087 = vmatprep.subr.bf16.mxu0 %v2770
        %4088 = vmatpush1.bf16.msra.mxu0 %v2769
        %4089 = vmatprep.subr.bf16.mxu0 %v2762
        %4090 = vmatpush1.bf16.msra.mxu0 %v2761
        %4091 = vmatprep.subr.bf16.mxu0 %v2754
        %4092 = vmatpush1.bf16.msra.mxu0 %v2753
        %4093 = vmatprep.subr.bf16.mxu0 %v2746
        %4094 = vmatpush1.bf16.msra.mxu0 %v2745
        %4095 = vmatprep.subr.bf16.mxu0 %v2738
        %4096 = vmatpush1.bf16.msra.mxu0 %v2737
        %4097 = vmatprep.subr.bf16.mxu0 %v2730
        %4098 = vmatpush1.bf16.msra.mxu0 %v2729
        %4099 = vmatprep.subr.bf16.mxu0 %v2722
        %4100 = vmatpush1.bf16.msra.mxu0 %v2721
        %4101 = vmatprep.subr.bf16.mxu0 %v2842
        %4102 = vmatpush2.bf16.msra.mxu0 %v2841
        %4103 = vmatprep.subr.bf16.mxu0 %v2834
        %4104 = vmatpush2.bf16.msra.mxu0 %v2833
        %4105 = vmatprep.subr.bf16.mxu0 %v2826
        %4106 = vmatpush2.bf16.msra.mxu0 %v2825
        %4107 = vmatprep.subr.bf16.mxu0 %v2818
        %4108 = vmatpush2.bf16.msra.mxu0 %v2817
        %4109 = vmatprep.subr.bf16.mxu0 %v2810
        %4110 = vmatpush2.bf16.msra.mxu0 %v2809
        %4111 = vmatprep.subr.bf16.mxu0 %v2802
        %4112 = vmatpush2.bf16.msra.mxu0 %v2801
        %4113 = vmatprep.subr.bf16.mxu0 %v2794
        %4114 = vmatpush2.bf16.msra.mxu0 %v2793
        %4115 = vmatprep.subr.bf16.mxu0 %v2786
        %4116 = vmatpush2.bf16.msra.mxu0 %v2785
        %4117 = vmatprep.mubr.bf16.mxu0 %v1166
        %4118 = vmatmul.mubr.bf16.gmra.mxu0 %v1165
        %v4119 = vpop.f32.mrf.mxu0
        %v4120 = vadd.f32 %v1120, %v4119
        %v4121 = vpop.f32.mrf.mxu0
        %v4122 = vadd.f32 %v1124, %v4121
        %v4123 = vpop.f32.mrf.mxu0
        %v4124 = vadd.f32 %v1120, %v4123
        %v4125 = vpop.f32.mrf.mxu0
        %v4126 = vadd.f32 %v1124, %v4125
        %4127 = vdwg.mxu0
        %4128 = vmatprep.subr.bf16.mxu0 %v2906
        %4129 = vmatpush1.bf16.msra.mxu0 %v2905
        %4130 = vmatprep.subr.bf16.mxu0 %v2898
        %4131 = vmatpush1.bf16.msra.mxu0 %v2897
        %4132 = vmatprep.subr.bf16.mxu0 %v2890
        %4133 = vmatpush1.bf16.msra.mxu0 %v2889
        %4134 = vmatprep.subr.bf16.mxu0 %v2882
        %4135 = vmatpush1.bf16.msra.mxu0 %v2881
        %4136 = vmatprep.subr.bf16.mxu0 %v2874
        %4137 = vmatpush1.bf16.msra.mxu0 %v2873
        %4138 = vmatprep.subr.bf16.mxu0 %v2866
        %4139 = vmatpush1.bf16.msra.mxu0 %v2865
        %4140 = vmatprep.subr.bf16.mxu0 %v2858
        %4141 = vmatpush1.bf16.msra.mxu0 %v2857
        %4142 = vmatprep.subr.bf16.mxu0 %v2850
        %4143 = vmatpush1.bf16.msra.mxu0 %v2849
        %4144 = vmatprep.subr.bf16.mxu0 %v2970
        %4145 = vmatpush2.bf16.msra.mxu0 %v2969
        %4146 = vmatprep.subr.bf16.mxu0 %v2962
        %4147 = vmatpush2.bf16.msra.mxu0 %v2961
        %4148 = vmatprep.subr.bf16.mxu0 %v2954
        %4149 = vmatpush2.bf16.msra.mxu0 %v2953
        %4150 = vmatprep.subr.bf16.mxu0 %v2946
        %4151 = vmatpush2.bf16.msra.mxu0 %v2945
        %4152 = vmatprep.subr.bf16.mxu0 %v2938
        %4153 = vmatpush2.bf16.msra.mxu0 %v2937
        %4154 = vmatprep.subr.bf16.mxu0 %v2930
        %4155 = vmatpush2.bf16.msra.mxu0 %v2929
        %4156 = vmatprep.subr.bf16.mxu0 %v2922
        %4157 = vmatpush2.bf16.msra.mxu0 %v2921
        %4158 = vmatprep.subr.bf16.mxu0 %v2914
        %4159 = vmatpush2.bf16.msra.mxu0 %v2913
        %4160 = vmatprep.mubr.bf16.mxu0 %v1168
        %4161 = vmatmul.mubr.bf16.gmra.mxu0 %v1167
        %v4162 = vpop.f32.mrf.mxu0
        %v4163 = vadd.f32 %v4120, %v4162
        %v4164 = vpop.f32.mrf.mxu0
        %v4165 = vadd.f32 %v4122, %v4164
        %v4166 = vpop.f32.mrf.mxu0
        %v4167 = vadd.f32 %v4124, %v4166
        %v4168 = vpop.f32.mrf.mxu0
        %v4169 = vadd.f32 %v4126, %v4168
        %4170 = vdwg.mxu0
        %4171 = vmatprep.subr.bf16.mxu0 %v3034
        %4172 = vmatpush1.bf16.msra.mxu0 %v3033
        %4173 = vmatprep.subr.bf16.mxu0 %v3026
        %4174 = vmatpush1.bf16.msra.mxu0 %v3025
        %4175 = vmatprep.subr.bf16.mxu0 %v3018
        %4176 = vmatpush1.bf16.msra.mxu0 %v3017
        %4177 = vmatprep.subr.bf16.mxu0 %v3010
        %4178 = vmatpush1.bf16.msra.mxu0 %v3009
        %4179 = vmatprep.subr.bf16.mxu0 %v3002
        %4180 = vmatpush1.bf16.msra.mxu0 %v3001
        %4181 = vmatprep.subr.bf16.mxu0 %v2994
        %4182 = vmatpush1.bf16.msra.mxu0 %v2993
        %4183 = vmatprep.subr.bf16.mxu0 %v2986
        %4184 = vmatpush1.bf16.msra.mxu0 %v2985
        %4185 = vmatprep.subr.bf16.mxu0 %v2978
        %4186 = vmatpush1.bf16.msra.mxu0 %v2977
        %4187 = vmatprep.subr.bf16.mxu0 %v3098
        %4188 = vmatpush2.bf16.msra.mxu0 %v3097
        %4189 = vmatprep.subr.bf16.mxu0 %v3090
        %4190 = vmatpush2.bf16.msra.mxu0 %v3089
        %4191 = vmatprep.subr.bf16.mxu0 %v3082
        %4192 = vmatpush2.bf16.msra.mxu0 %v3081
        %4193 = vmatprep.subr.bf16.mxu0 %v3074
        %4194 = vmatpush2.bf16.msra.mxu0 %v3073
        %4195 = vmatprep.subr.bf16.mxu0 %v3066
        %4196 = vmatpush2.bf16.msra.mxu0 %v3065
        %4197 = vmatprep.subr.bf16.mxu0 %v3058
        %4198 = vmatpush2.bf16.msra.mxu0 %v3057
        %4199 = vmatprep.subr.bf16.mxu0 %v3050
        %4200 = vmatpush2.bf16.msra.mxu0 %v3049
        %4201 = vmatprep.subr.bf16.mxu0 %v3042
        %4202 = vmatpush2.bf16.msra.mxu0 %v3041
        %4203 = vmatprep.mubr.bf16.mxu0 %v1170
        %4204 = vmatmul.mubr.bf16.gmra.mxu0 %v1169
        %v4205 = vpop.f32.mrf.mxu0
        %v4206 = vadd.f32 %v4163, %v4205
        %v4207 = vpop.f32.mrf.mxu0
        %v4208 = vadd.f32 %v4165, %v4207
        %v4209 = vpop.f32.mrf.mxu0
        %v4210 = vadd.f32 %v4167, %v4209
        %v4211 = vpop.f32.mrf.mxu0
        %v4212 = vadd.f32 %v4169, %v4211
        %4213 = vdwg.mxu0
        %4214 = vmatprep.subr.bf16.mxu0 %v3162
        %4215 = vmatpush1.bf16.msra.mxu0 %v3161
        %4216 = vmatprep.subr.bf16.mxu0 %v3154
        %4217 = vmatpush1.bf16.msra.mxu0 %v3153
        %4218 = vmatprep.subr.bf16.mxu0 %v3146
        %4219 = vmatpush1.bf16.msra.mxu0 %v3145
        %4220 = vmatprep.subr.bf16.mxu0 %v3138
        %4221 = vmatpush1.bf16.msra.mxu0 %v3137
        %4222 = vmatprep.subr.bf16.mxu0 %v3130
        %4223 = vmatpush1.bf16.msra.mxu0 %v3129
        %4224 = vmatprep.subr.bf16.mxu0 %v3122
        %4225 = vmatpush1.bf16.msra.mxu0 %v3121
        %4226 = vmatprep.subr.bf16.mxu0 %v3114
        %4227 = vmatpush1.bf16.msra.mxu0 %v3113
        %4228 = vmatprep.subr.bf16.mxu0 %v3106
        %4229 = vmatpush1.bf16.msra.mxu0 %v3105
        %4230 = vmatprep.subr.bf16.mxu0 %v3226
        %4231 = vmatpush2.bf16.msra.mxu0 %v3225
        %4232 = vmatprep.subr.bf16.mxu0 %v3218
        %4233 = vmatpush2.bf16.msra.mxu0 %v3217
        %4234 = vmatprep.subr.bf16.mxu0 %v3210
        %4235 = vmatpush2.bf16.msra.mxu0 %v3209
        %4236 = vmatprep.subr.bf16.mxu0 %v3202
        %4237 = vmatpush2.bf16.msra.mxu0 %v3201
        %4238 = vmatprep.subr.bf16.mxu0 %v3194
        %4239 = vmatpush2.bf16.msra.mxu0 %v3193
        %4240 = vmatprep.subr.bf16.mxu0 %v3186
        %4241 = vmatpush2.bf16.msra.mxu0 %v3185
        %4242 = vmatprep.subr.bf16.mxu0 %v3178
        %4243 = vmatpush2.bf16.msra.mxu0 %v3177
        %4244 = vmatprep.subr.bf16.mxu0 %v3170
        %4245 = vmatpush2.bf16.msra.mxu0 %v3169
        %4246 = vmatprep.mubr.bf16.mxu0 %v1172
        %4247 = vmatmul.mubr.bf16.gmra.mxu0 %v1171
        %v4248 = vpop.f32.mrf.mxu0
        %v4249 = vadd.f32 %v4206, %v4248
        %v4250 = vpop.f32.mrf.mxu0
        %v4251 = vadd.f32 %v4208, %v4250
        %v4252 = vpop.f32.mrf.mxu0
        %v4253 = vadd.f32 %v4210, %v4252
        %v4254 = vpop.f32.mrf.mxu0
        %v4255 = vadd.f32 %v4212, %v4254
        %4256 = vdwg.mxu0
        %4257 = vmatprep.subr.bf16.mxu0 %v2780
        %4258 = vmatpush1.bf16.msra.mxu0 %v2779
        %4259 = vmatprep.subr.bf16.mxu0 %v2772
        %4260 = vmatpush1.bf16.msra.mxu0 %v2771
        %4261 = vmatprep.subr.bf16.mxu0 %v2764
        %4262 = vmatpush1.bf16.msra.mxu0 %v2763
        %4263 = vmatprep.subr.bf16.mxu0 %v2756
        %4264 = vmatpush1.bf16.msra.mxu0 %v2755
        %4265 = vmatprep.subr.bf16.mxu0 %v2748
        %4266 = vmatpush1.bf16.msra.mxu0 %v2747
        %4267 = vmatprep.subr.bf16.mxu0 %v2740
        %4268 = vmatpush1.bf16.msra.mxu0 %v2739
        %4269 = vmatprep.subr.bf16.mxu0 %v2732
        %4270 = vmatpush1.bf16.msra.mxu0 %v2731
        %4271 = vmatprep.subr.bf16.mxu0 %v2724
        %4272 = vmatpush1.bf16.msra.mxu0 %v2723
        %4273 = vmatprep.subr.bf16.mxu0 %v2844
        %4274 = vmatpush2.bf16.msra.mxu0 %v2843
        %4275 = vmatprep.subr.bf16.mxu0 %v2836
        %4276 = vmatpush2.bf16.msra.mxu0 %v2835
        %4277 = vmatprep.subr.bf16.mxu0 %v2828
        %4278 = vmatpush2.bf16.msra.mxu0 %v2827
        %4279 = vmatprep.subr.bf16.mxu0 %v2820
        %4280 = vmatpush2.bf16.msra.mxu0 %v2819
        %4281 = vmatprep.subr.bf16.mxu0 %v2812
        %4282 = vmatpush2.bf16.msra.mxu0 %v2811
        %4283 = vmatprep.subr.bf16.mxu0 %v2804
        %4284 = vmatpush2.bf16.msra.mxu0 %v2803
        %4285 = vmatprep.subr.bf16.mxu0 %v2796
        %4286 = vmatpush2.bf16.msra.mxu0 %v2795
        %4287 = vmatprep.subr.bf16.mxu0 %v2788
        %4288 = vmatpush2.bf16.msra.mxu0 %v2787
        %4289 = vmatprep.mubr.bf16.mxu0 %v1166
        %4290 = vmatmul.mubr.bf16.gmra.mxu0 %v1165
        %v4291 = vpop.f32.mrf.mxu0
        %v4292 = vadd.f32 %v1128, %v4291
        %v4293 = vpop.f32.mrf.mxu0
        %v4294 = vadd.f32 %v1132, %v4293
        %v4295 = vpop.f32.mrf.mxu0
        %v4296 = vadd.f32 %v1128, %v4295
        %v4297 = vpop.f32.mrf.mxu0
        %v4298 = vadd.f32 %v1132, %v4297
        %4299 = vdwg.mxu0
        %4300 = vmatprep.subr.bf16.mxu0 %v2908
        %4301 = vmatpush1.bf16.msra.mxu0 %v2907
        %4302 = vmatprep.subr.bf16.mxu0 %v2900
        %4303 = vmatpush1.bf16.msra.mxu0 %v2899
        %4304 = vmatprep.subr.bf16.mxu0 %v2892
        %4305 = vmatpush1.bf16.msra.mxu0 %v2891
        %4306 = vmatprep.subr.bf16.mxu0 %v2884
        %4307 = vmatpush1.bf16.msra.mxu0 %v2883
        %4308 = vmatprep.subr.bf16.mxu0 %v2876
        %4309 = vmatpush1.bf16.msra.mxu0 %v2875
        %4310 = vmatprep.subr.bf16.mxu0 %v2868
        %4311 = vmatpush1.bf16.msra.mxu0 %v2867
        %4312 = vmatprep.subr.bf16.mxu0 %v2860
        %4313 = vmatpush1.bf16.msra.mxu0 %v2859
        %4314 = vmatprep.subr.bf16.mxu0 %v2852
        %4315 = vmatpush1.bf16.msra.mxu0 %v2851
        %4316 = vmatprep.subr.bf16.mxu0 %v2972
        %4317 = vmatpush2.bf16.msra.mxu0 %v2971
        %4318 = vmatprep.subr.bf16.mxu0 %v2964
        %4319 = vmatpush2.bf16.msra.mxu0 %v2963
        %4320 = vmatprep.subr.bf16.mxu0 %v2956
        %4321 = vmatpush2.bf16.msra.mxu0 %v2955
        %4322 = vmatprep.subr.bf16.mxu0 %v2948
        %4323 = vmatpush2.bf16.msra.mxu0 %v2947
        %4324 = vmatprep.subr.bf16.mxu0 %v2940
        %4325 = vmatpush2.bf16.msra.mxu0 %v2939
        %4326 = vmatprep.subr.bf16.mxu0 %v2932
        %4327 = vmatpush2.bf16.msra.mxu0 %v2931
        %4328 = vmatprep.subr.bf16.mxu0 %v2924
        %4329 = vmatpush2.bf16.msra.mxu0 %v2923
        %4330 = vmatprep.subr.bf16.mxu0 %v2916
        %4331 = vmatpush2.bf16.msra.mxu0 %v2915
        %4332 = vmatprep.mubr.bf16.mxu0 %v1168
        %4333 = vmatmul.mubr.bf16.gmra.mxu0 %v1167
        %v4334 = vpop.f32.mrf.mxu0
        %v4335 = vadd.f32 %v4292, %v4334
        %v4336 = vpop.f32.mrf.mxu0
        %v4337 = vadd.f32 %v4294, %v4336
        %v4338 = vpop.f32.mrf.mxu0
        %v4339 = vadd.f32 %v4296, %v4338
        %v4340 = vpop.f32.mrf.mxu0
        %v4341 = vadd.f32 %v4298, %v4340
        %4342 = vdwg.mxu0
        %4343 = vmatprep.subr.bf16.mxu0 %v3036
        %4344 = vmatpush1.bf16.msra.mxu0 %v3035
        %4345 = vmatprep.subr.bf16.mxu0 %v3028
        %4346 = vmatpush1.bf16.msra.mxu0 %v3027
        %4347 = vmatprep.subr.bf16.mxu0 %v3020
        %4348 = vmatpush1.bf16.msra.mxu0 %v3019
        %4349 = vmatprep.subr.bf16.mxu0 %v3012
        %4350 = vmatpush1.bf16.msra.mxu0 %v3011
        %4351 = vmatprep.subr.bf16.mxu0 %v3004
        %4352 = vmatpush1.bf16.msra.mxu0 %v3003
        %4353 = vmatprep.subr.bf16.mxu0 %v2996
        %4354 = vmatpush1.bf16.msra.mxu0 %v2995
        %4355 = vmatprep.subr.bf16.mxu0 %v2988
        %4356 = vmatpush1.bf16.msra.mxu0 %v2987
        %4357 = vmatprep.subr.bf16.mxu0 %v2980
        %4358 = vmatpush1.bf16.msra.mxu0 %v2979
        %4359 = vmatprep.subr.bf16.mxu0 %v3100
        %4360 = vmatpush2.bf16.msra.mxu0 %v3099
        %4361 = vmatprep.subr.bf16.mxu0 %v3092
        %4362 = vmatpush2.bf16.msra.mxu0 %v3091
        %4363 = vmatprep.subr.bf16.mxu0 %v3084
        %4364 = vmatpush2.bf16.msra.mxu0 %v3083
        %4365 = vmatprep.subr.bf16.mxu0 %v3076
        %4366 = vmatpush2.bf16.msra.mxu0 %v3075
        %4367 = vmatprep.subr.bf16.mxu0 %v3068
        %4368 = vmatpush2.bf16.msra.mxu0 %v3067
        %4369 = vmatprep.subr.bf16.mxu0 %v3060
        %4370 = vmatpush2.bf16.msra.mxu0 %v3059
        %4371 = vmatprep.subr.bf16.mxu0 %v3052
        %4372 = vmatpush2.bf16.msra.mxu0 %v3051
        %4373 = vmatprep.subr.bf16.mxu0 %v3044
        %4374 = vmatpush2.bf16.msra.mxu0 %v3043
        %4375 = vmatprep.mubr.bf16.mxu0 %v1170
        %4376 = vmatmul.mubr.bf16.gmra.mxu0 %v1169
        %v4377 = vpop.f32.mrf.mxu0
        %v4378 = vadd.f32 %v4335, %v4377
        %v4379 = vpop.f32.mrf.mxu0
        %v4380 = vadd.f32 %v4337, %v4379
        %v4381 = vpop.f32.mrf.mxu0
        %v4382 = vadd.f32 %v4339, %v4381
        %v4383 = vpop.f32.mrf.mxu0
        %v4384 = vadd.f32 %v4341, %v4383
        %4385 = vdwg.mxu0
        %4386 = vmatprep.subr.bf16.mxu0 %v3164
        %4387 = vmatpush1.bf16.msra.mxu0 %v3163
        %4388 = vmatprep.subr.bf16.mxu0 %v3156
        %4389 = vmatpush1.bf16.msra.mxu0 %v3155
        %4390 = vmatprep.subr.bf16.mxu0 %v3148
        %4391 = vmatpush1.bf16.msra.mxu0 %v3147
        %4392 = vmatprep.subr.bf16.mxu0 %v3140
        %4393 = vmatpush1.bf16.msra.mxu0 %v3139
        %4394 = vmatprep.subr.bf16.mxu0 %v3132
        %4395 = vmatpush1.bf16.msra.mxu0 %v3131
        %4396 = vmatprep.subr.bf16.mxu0 %v3124
        %4397 = vmatpush1.bf16.msra.mxu0 %v3123
        %4398 = vmatprep.subr.bf16.mxu0 %v3116
        %4399 = vmatpush1.bf16.msra.mxu0 %v3115
        %4400 = vmatprep.subr.bf16.mxu0 %v3108
        %4401 = vmatpush1.bf16.msra.mxu0 %v3107
        %4402 = vmatprep.subr.bf16.mxu0 %v3228
        %4403 = vmatpush2.bf16.msra.mxu0 %v3227
        %4404 = vmatprep.subr.bf16.mxu0 %v3220
        %4405 = vmatpush2.bf16.msra.mxu0 %v3219
        %4406 = vmatprep.subr.bf16.mxu0 %v3212
        %4407 = vmatpush2.bf16.msra.mxu0 %v3211
        %4408 = vmatprep.subr.bf16.mxu0 %v3204
        %4409 = vmatpush2.bf16.msra.mxu0 %v3203
        %4410 = vmatprep.subr.bf16.mxu0 %v3196
        %4411 = vmatpush2.bf16.msra.mxu0 %v3195
        %4412 = vmatprep.subr.bf16.mxu0 %v3188
        %4413 = vmatpush2.bf16.msra.mxu0 %v3187
        %4414 = vmatprep.subr.bf16.mxu0 %v3180
        %4415 = vmatpush2.bf16.msra.mxu0 %v3179
        %4416 = vmatprep.subr.bf16.mxu0 %v3172
        %4417 = vmatpush2.bf16.msra.mxu0 %v3171
        %4418 = vmatprep.mubr.bf16.mxu0 %v1172
        %4419 = vmatmul.mubr.bf16.gmra.mxu0 %v1171
        %v4420 = vpop.f32.mrf.mxu0
        %v4421 = vadd.f32 %v4378, %v4420
        %v4422 = vpop.f32.mrf.mxu0
        %v4423 = vadd.f32 %v4380, %v4422
        %v4424 = vpop.f32.mrf.mxu0
        %v4425 = vadd.f32 %v4382, %v4424
        %v4426 = vpop.f32.mrf.mxu0
        %v4427 = vadd.f32 %v4384, %v4426
        %4428 = vdwg.mxu0
        %v4429 = vmax.f32 %v3905, 0.0
        %v4430 = vmax.f32 %v3907, 0.0
        %v4431 = vmax.f32 %v4077, 0.0
        %v4432 = vmax.f32 %v4079, 0.0
        %v4433 = vmax.f32 %v4249, 0.0
        %v4434 = vmax.f32 %v4251, 0.0
        %v4435 = vmax.f32 %v4421, 0.0
        %v4436 = vmax.f32 %v4423, 0.0
        %v4437 = vmax.f32 %v3909, 0.0
        %v4438 = vmax.f32 %v3911, 0.0
        %v4439 = vmax.f32 %v4081, 0.0
        %v4440 = vmax.f32 %v4083, 0.0
        %v4441 = vmax.f32 %v4253, 0.0
        %v4442 = vmax.f32 %v4255, 0.0
        %v4443 = vmax.f32 %v4425, 0.0
        %v4444 = vmax.f32 %v4427, 0.0
        %v4445 = vpack.c.bf16 %v4437, %v4429
        %v4446 = vpack.c.bf16 %v4438, %v4430
        %v4447 = vpack.c.bf16 %v4439, %v4431
        %v4448 = vpack.c.bf16 %v4440, %v4432
        %v4449 = vpack.c.bf16 %v4441, %v4433
        %v4450 = vpack.c.bf16 %v4442, %v4434
        %v4451 = vpack.c.bf16 %v4443, %v4435
        %v4452 = vpack.c.bf16 %v4444, %v4436
        %v4453 = vld [vmem:[%s475] sm:$0xff]
        %v4454 = vld [vmem:[%s475 + $0x8] sm:$0xff]
        %v4455 = vld [vmem:[%s475 + $0x10] sm:$0xff]
        %v4456 = vld [vmem:[%s475 + $0x18] sm:$0xff]
        %v4457 = vld [vmem:[%s475 + $0x20] sm:$0xff]
        %v4458 = vld [vmem:[%s475 + $0x28] sm:$0xff]
        %v4459 = vld [vmem:[%s475 + $0x30] sm:$0xff]
        %v4460 = vld [vmem:[%s475 + $0x38] sm:$0xff]
        %v4461 = vld [vmem:[%s475 + $0x40] sm:$0xff]
        %v4462 = vld [vmem:[%s475 + $0x48] sm:$0xff]
        %v4463 = vld [vmem:[%s475 + $0x50] sm:$0xff]
        %v4464 = vld [vmem:[%s475 + $0x58] sm:$0xff]
        %v4465 = vld [vmem:[%s475 + $0x60] sm:$0xff]
        %v4466 = vld [vmem:[%s475 + $0x68] sm:$0xff]
        %v4467 = vld [vmem:[%s475 + $0x70] sm:$0xff]
        %v4468 = vld [vmem:[%s475 + $0x78] sm:$0xff]
        %v4469 = vld [vmem:[%s475 + $0x80] sm:$0xff]
        %v4470 = vld [vmem:[%s475 + $0x88] sm:$0xff]
        %v4471 = vld [vmem:[%s475 + $0x90] sm:$0xff]
        %v4472 = vld [vmem:[%s475 + $0x98] sm:$0xff]
        %v4473 = vld [vmem:[%s475 + $0xa0] sm:$0xff]
        %v4474 = vld [vmem:[%s475 + $0xa8] sm:$0xff]
        %v4475 = vld [vmem:[%s475 + $0xb0] sm:$0xff]
        %v4476 = vld [vmem:[%s475 + $0xb8] sm:$0xff]
        %v4477 = vld [vmem:[%s475 + $0xc0] sm:$0xff]
        %v4478 = vld [vmem:[%s475 + $0xc8] sm:$0xff]
        %v4479 = vld [vmem:[%s475 + $0xd0] sm:$0xff]
        %v4480 = vld [vmem:[%s475 + $0xd8] sm:$0xff]
        %v4481 = vld [vmem:[%s475 + $0xe0] sm:$0xff]
        %v4482 = vld [vmem:[%s475 + $0xe8] sm:$0xff]
        %v4483 = vld [vmem:[%s475 + $0xf0] sm:$0xff]
        %v4484 = vld [vmem:[%s475 + $0xf8] sm:$0xff]
        %v4485 = vld [vmem:[%s475 + $0x100] sm:$0xff]
        %v4486 = vld [vmem:[%s475 + $0x108] sm:$0xff]
        %v4487 = vld [vmem:[%s475 + $0x110] sm:$0xff]
        %v4488 = vld [vmem:[%s475 + $0x118] sm:$0xff]
        %v4489 = vld [vmem:[%s475 + $0x120] sm:$0xff]
        %v4490 = vld [vmem:[%s475 + $0x128] sm:$0xff]
        %v4491 = vld [vmem:[%s475 + $0x130] sm:$0xff]
        %v4492 = vld [vmem:[%s475 + $0x138] sm:$0xff]
        %v4493 = vld [vmem:[%s475 + $0x140] sm:$0xff]
        %v4494 = vld [vmem:[%s475 + $0x148] sm:$0xff]
        %v4495 = vld [vmem:[%s475 + $0x150] sm:$0xff]
        %v4496 = vld [vmem:[%s475 + $0x158] sm:$0xff]
        %v4497 = vld [vmem:[%s475 + $0x160] sm:$0xff]
        %v4498 = vld [vmem:[%s475 + $0x168] sm:$0xff]
        %v4499 = vld [vmem:[%s475 + $0x170] sm:$0xff]
        %v4500 = vld [vmem:[%s475 + $0x178] sm:$0xff]
        %v4501 = vld [vmem:[%s475 + $0x180] sm:$0xff]
        %v4502 = vld [vmem:[%s475 + $0x188] sm:$0xff]
        %v4503 = vld [vmem:[%s475 + $0x190] sm:$0xff]
        %v4504 = vld [vmem:[%s475 + $0x198] sm:$0xff]
        %v4505 = vld [vmem:[%s475 + $0x1a0] sm:$0xff]
        %v4506 = vld [vmem:[%s475 + $0x1a8] sm:$0xff]
        %v4507 = vld [vmem:[%s475 + $0x1b0] sm:$0xff]
        %v4508 = vld [vmem:[%s475 + $0x1b8] sm:$0xff]
        %v4509 = vld [vmem:[%s475 + $0x1c0] sm:$0xff]
        %v4510 = vld [vmem:[%s475 + $0x1c8] sm:$0xff]
        %v4511 = vld [vmem:[%s475 + $0x1d0] sm:$0xff]
        %v4512 = vld [vmem:[%s475 + $0x1d8] sm:$0xff]
        %v4513 = vld [vmem:[%s475 + $0x1e0] sm:$0xff]
        %v4514 = vld [vmem:[%s475 + $0x1e8] sm:$0xff]
        %v4515 = vld [vmem:[%s475 + $0x1f0] sm:$0xff]
        %v4516 = vld [vmem:[%s475 + $0x1f8] sm:$0xff]
        %v4517 = vld [vmem:[%s475 + $0x200] sm:$0xff]
        %v4518 = vld [vmem:[%s475 + $0x208] sm:$0xff]
        %v4519 = vld [vmem:[%s475 + $0x210] sm:$0xff]
        %v4520 = vld [vmem:[%s475 + $0x218] sm:$0xff]
        %v4521 = vld [vmem:[%s475 + $0x220] sm:$0xff]
        %v4522 = vld [vmem:[%s475 + $0x228] sm:$0xff]
        %v4523 = vld [vmem:[%s475 + $0x230] sm:$0xff]
        %v4524 = vld [vmem:[%s475 + $0x238] sm:$0xff]
        %v4525 = vld [vmem:[%s475 + $0x240] sm:$0xff]
        %v4526 = vld [vmem:[%s475 + $0x248] sm:$0xff]
        %v4527 = vld [vmem:[%s475 + $0x250] sm:$0xff]
        %v4528 = vld [vmem:[%s475 + $0x258] sm:$0xff]
        %v4529 = vld [vmem:[%s475 + $0x260] sm:$0xff]
        %v4530 = vld [vmem:[%s475 + $0x268] sm:$0xff]
        %v4531 = vld [vmem:[%s475 + $0x270] sm:$0xff]
        %v4532 = vld [vmem:[%s475 + $0x278] sm:$0xff]
        %v4533 = vld [vmem:[%s475 + $0x280] sm:$0xff]
        %v4534 = vld [vmem:[%s475 + $0x288] sm:$0xff]
        %v4535 = vld [vmem:[%s475 + $0x290] sm:$0xff]
        %v4536 = vld [vmem:[%s475 + $0x298] sm:$0xff]
        %v4537 = vld [vmem:[%s475 + $0x2a0] sm:$0xff]
        %v4538 = vld [vmem:[%s475 + $0x2a8] sm:$0xff]
        %v4539 = vld [vmem:[%s475 + $0x2b0] sm:$0xff]
        %v4540 = vld [vmem:[%s475 + $0x2b8] sm:$0xff]
        %v4541 = vld [vmem:[%s475 + $0x2c0] sm:$0xff]
        %v4542 = vld [vmem:[%s475 + $0x2c8] sm:$0xff]
        %v4543 = vld [vmem:[%s475 + $0x2d0] sm:$0xff]
        %v4544 = vld [vmem:[%s475 + $0x2d8] sm:$0xff]
        %v4545 = vld [vmem:[%s475 + $0x2e0] sm:$0xff]
        %v4546 = vld [vmem:[%s475 + $0x2e8] sm:$0xff]
        %v4547 = vld [vmem:[%s475 + $0x2f0] sm:$0xff]
        %v4548 = vld [vmem:[%s475 + $0x2f8] sm:$0xff]
        %v4549 = vld [vmem:[%s475 + $0x300] sm:$0xff]
        %v4550 = vld [vmem:[%s475 + $0x308] sm:$0xff]
        %v4551 = vld [vmem:[%s475 + $0x310] sm:$0xff]
        %v4552 = vld [vmem:[%s475 + $0x318] sm:$0xff]
        %v4553 = vld [vmem:[%s475 + $0x320] sm:$0xff]
        %v4554 = vld [vmem:[%s475 + $0x328] sm:$0xff]
        %v4555 = vld [vmem:[%s475 + $0x330] sm:$0xff]
        %v4556 = vld [vmem:[%s475 + $0x338] sm:$0xff]
        %v4557 = vld [vmem:[%s475 + $0x340] sm:$0xff]
        %v4558 = vld [vmem:[%s475 + $0x348] sm:$0xff]
        %v4559 = vld [vmem:[%s475 + $0x350] sm:$0xff]
        %v4560 = vld [vmem:[%s475 + $0x358] sm:$0xff]
        %v4561 = vld [vmem:[%s475 + $0x360] sm:$0xff]
        %v4562 = vld [vmem:[%s475 + $0x368] sm:$0xff]
        %v4563 = vld [vmem:[%s475 + $0x370] sm:$0xff]
        %v4564 = vld [vmem:[%s475 + $0x378] sm:$0xff]
        %v4565 = vld [vmem:[%s475 + $0x380] sm:$0xff]
        %v4566 = vld [vmem:[%s475 + $0x388] sm:$0xff]
        %v4567 = vld [vmem:[%s475 + $0x390] sm:$0xff]
        %v4568 = vld [vmem:[%s475 + $0x398] sm:$0xff]
        %v4569 = vld [vmem:[%s475 + $0x3a0] sm:$0xff]
        %v4570 = vld [vmem:[%s475 + $0x3a8] sm:$0xff]
        %v4571 = vld [vmem:[%s475 + $0x3b0] sm:$0xff]
        %v4572 = vld [vmem:[%s475 + $0x3b8] sm:$0xff]
        %v4573 = vld [vmem:[%s475 + $0x3c0] sm:$0xff]
        %v4574 = vld [vmem:[%s475 + $0x3c8] sm:$0xff]
        %v4575 = vld [vmem:[%s475 + $0x3d0] sm:$0xff]
        %v4576 = vld [vmem:[%s475 + $0x3d8] sm:$0xff]
        %v4577 = vld [vmem:[%s475 + $0x3e0] sm:$0xff]
        %v4578 = vld [vmem:[%s475 + $0x3e8] sm:$0xff]
        %v4579 = vld [vmem:[%s475 + $0x3f0] sm:$0xff]
        %v4580 = vld [vmem:[%s475 + $0x3f8] sm:$0xff]
        %v4581 = vld [vmem:[%s475 + $0x400] sm:$0xff]
        %v4582 = vld [vmem:[%s475 + $0x408] sm:$0xff]
        %v4583 = vld [vmem:[%s475 + $0x410] sm:$0xff]
        %v4584 = vld [vmem:[%s475 + $0x418] sm:$0xff]
        %v4585 = vld [vmem:[%s475 + $0x420] sm:$0xff]
        %v4586 = vld [vmem:[%s475 + $0x428] sm:$0xff]
        %v4587 = vld [vmem:[%s475 + $0x430] sm:$0xff]
        %v4588 = vld [vmem:[%s475 + $0x438] sm:$0xff]
        %v4589 = vld [vmem:[%s475 + $0x440] sm:$0xff]
        %v4590 = vld [vmem:[%s475 + $0x448] sm:$0xff]
        %v4591 = vld [vmem:[%s475 + $0x450] sm:$0xff]
        %v4592 = vld [vmem:[%s475 + $0x458] sm:$0xff]
        %v4593 = vld [vmem:[%s475 + $0x460] sm:$0xff]
        %v4594 = vld [vmem:[%s475 + $0x468] sm:$0xff]
        %v4595 = vld [vmem:[%s475 + $0x470] sm:$0xff]
        %v4596 = vld [vmem:[%s475 + $0x478] sm:$0xff]
        %v4597 = vld [vmem:[%s475 + $0x480] sm:$0xff]
        %v4598 = vld [vmem:[%s475 + $0x488] sm:$0xff]
        %v4599 = vld [vmem:[%s475 + $0x490] sm:$0xff]
        %v4600 = vld [vmem:[%s475 + $0x498] sm:$0xff]
        %v4601 = vld [vmem:[%s475 + $0x4a0] sm:$0xff]
        %v4602 = vld [vmem:[%s475 + $0x4a8] sm:$0xff]
        %v4603 = vld [vmem:[%s475 + $0x4b0] sm:$0xff]
        %v4604 = vld [vmem:[%s475 + $0x4b8] sm:$0xff]
        %v4605 = vld [vmem:[%s475 + $0x4c0] sm:$0xff]
        %v4606 = vld [vmem:[%s475 + $0x4c8] sm:$0xff]
        %v4607 = vld [vmem:[%s475 + $0x4d0] sm:$0xff]
        %v4608 = vld [vmem:[%s475 + $0x4d8] sm:$0xff]
        %v4609 = vld [vmem:[%s475 + $0x4e0] sm:$0xff]
        %v4610 = vld [vmem:[%s475 + $0x4e8] sm:$0xff]
        %v4611 = vld [vmem:[%s475 + $0x4f0] sm:$0xff]
        %v4612 = vld [vmem:[%s475 + $0x4f8] sm:$0xff]
        %v4613 = vld [vmem:[%s475 + $0x500] sm:$0xff]
        %v4614 = vld [vmem:[%s475 + $0x508] sm:$0xff]
        %v4615 = vld [vmem:[%s475 + $0x510] sm:$0xff]
        %v4616 = vld [vmem:[%s475 + $0x518] sm:$0xff]
        %v4617 = vld [vmem:[%s475 + $0x520] sm:$0xff]
        %v4618 = vld [vmem:[%s475 + $0x528] sm:$0xff]
        %v4619 = vld [vmem:[%s475 + $0x530] sm:$0xff]
        %v4620 = vld [vmem:[%s475 + $0x538] sm:$0xff]
        %v4621 = vld [vmem:[%s475 + $0x540] sm:$0xff]
        %v4622 = vld [vmem:[%s475 + $0x548] sm:$0xff]
        %v4623 = vld [vmem:[%s475 + $0x550] sm:$0xff]
        %v4624 = vld [vmem:[%s475 + $0x558] sm:$0xff]
        %v4625 = vld [vmem:[%s475 + $0x560] sm:$0xff]
        %v4626 = vld [vmem:[%s475 + $0x568] sm:$0xff]
        %v4627 = vld [vmem:[%s475 + $0x570] sm:$0xff]
        %v4628 = vld [vmem:[%s475 + $0x578] sm:$0xff]
        %v4629 = vld [vmem:[%s475 + $0x580] sm:$0xff]
        %v4630 = vld [vmem:[%s475 + $0x588] sm:$0xff]
        %v4631 = vld [vmem:[%s475 + $0x590] sm:$0xff]
        %v4632 = vld [vmem:[%s475 + $0x598] sm:$0xff]
        %v4633 = vld [vmem:[%s475 + $0x5a0] sm:$0xff]
        %v4634 = vld [vmem:[%s475 + $0x5a8] sm:$0xff]
        %v4635 = vld [vmem:[%s475 + $0x5b0] sm:$0xff]
        %v4636 = vld [vmem:[%s475 + $0x5b8] sm:$0xff]
        %v4637 = vld [vmem:[%s475 + $0x5c0] sm:$0xff]
        %v4638 = vld [vmem:[%s475 + $0x5c8] sm:$0xff]
        %v4639 = vld [vmem:[%s475 + $0x5d0] sm:$0xff]
        %v4640 = vld [vmem:[%s475 + $0x5d8] sm:$0xff]
        %v4641 = vld [vmem:[%s475 + $0x5e0] sm:$0xff]
        %v4642 = vld [vmem:[%s475 + $0x5e8] sm:$0xff]
        %v4643 = vld [vmem:[%s475 + $0x5f0] sm:$0xff]
        %v4644 = vld [vmem:[%s475 + $0x5f8] sm:$0xff]
        %v4645 = vld [vmem:[%s475 + $0x600] sm:$0xff]
        %v4646 = vld [vmem:[%s475 + $0x608] sm:$0xff]
        %v4647 = vld [vmem:[%s475 + $0x610] sm:$0xff]
        %v4648 = vld [vmem:[%s475 + $0x618] sm:$0xff]
        %v4649 = vld [vmem:[%s475 + $0x620] sm:$0xff]
        %v4650 = vld [vmem:[%s475 + $0x628] sm:$0xff]
        %v4651 = vld [vmem:[%s475 + $0x630] sm:$0xff]
        %v4652 = vld [vmem:[%s475 + $0x638] sm:$0xff]
        %v4653 = vld [vmem:[%s475 + $0x640] sm:$0xff]
        %v4654 = vld [vmem:[%s475 + $0x648] sm:$0xff]
        %v4655 = vld [vmem:[%s475 + $0x650] sm:$0xff]
        %v4656 = vld [vmem:[%s475 + $0x658] sm:$0xff]
        %v4657 = vld [vmem:[%s475 + $0x660] sm:$0xff]
        %v4658 = vld [vmem:[%s475 + $0x668] sm:$0xff]
        %v4659 = vld [vmem:[%s475 + $0x670] sm:$0xff]
        %v4660 = vld [vmem:[%s475 + $0x678] sm:$0xff]
        %v4661 = vld [vmem:[%s475 + $0x680] sm:$0xff]
        %v4662 = vld [vmem:[%s475 + $0x688] sm:$0xff]
        %v4663 = vld [vmem:[%s475 + $0x690] sm:$0xff]
        %v4664 = vld [vmem:[%s475 + $0x698] sm:$0xff]
        %v4665 = vld [vmem:[%s475 + $0x6a0] sm:$0xff]
        %v4666 = vld [vmem:[%s475 + $0x6a8] sm:$0xff]
        %v4667 = vld [vmem:[%s475 + $0x6b0] sm:$0xff]
        %v4668 = vld [vmem:[%s475 + $0x6b8] sm:$0xff]
        %v4669 = vld [vmem:[%s475 + $0x6c0] sm:$0xff]
        %v4670 = vld [vmem:[%s475 + $0x6c8] sm:$0xff]
        %v4671 = vld [vmem:[%s475 + $0x6d0] sm:$0xff]
        %v4672 = vld [vmem:[%s475 + $0x6d8] sm:$0xff]
        %v4673 = vld [vmem:[%s475 + $0x6e0] sm:$0xff]
        %v4674 = vld [vmem:[%s475 + $0x6e8] sm:$0xff]
        %v4675 = vld [vmem:[%s475 + $0x6f0] sm:$0xff]
        %v4676 = vld [vmem:[%s475 + $0x6f8] sm:$0xff]
        %v4677 = vld [vmem:[%s475 + $0x700] sm:$0xff]
        %v4678 = vld [vmem:[%s475 + $0x708] sm:$0xff]
        %v4679 = vld [vmem:[%s475 + $0x710] sm:$0xff]
        %v4680 = vld [vmem:[%s475 + $0x718] sm:$0xff]
        %v4681 = vld [vmem:[%s475 + $0x720] sm:$0xff]
        %v4682 = vld [vmem:[%s475 + $0x728] sm:$0xff]
        %v4683 = vld [vmem:[%s475 + $0x730] sm:$0xff]
        %v4684 = vld [vmem:[%s475 + $0x738] sm:$0xff]
        %v4685 = vld [vmem:[%s475 + $0x740] sm:$0xff]
        %v4686 = vld [vmem:[%s475 + $0x748] sm:$0xff]
        %v4687 = vld [vmem:[%s475 + $0x750] sm:$0xff]
        %v4688 = vld [vmem:[%s475 + $0x758] sm:$0xff]
        %v4689 = vld [vmem:[%s475 + $0x760] sm:$0xff]
        %v4690 = vld [vmem:[%s475 + $0x768] sm:$0xff]
        %v4691 = vld [vmem:[%s475 + $0x770] sm:$0xff]
        %v4692 = vld [vmem:[%s475 + $0x778] sm:$0xff]
        %v4693 = vld [vmem:[%s475 + $0x780] sm:$0xff]
        %v4694 = vld [vmem:[%s475 + $0x788] sm:$0xff]
        %v4695 = vld [vmem:[%s475 + $0x790] sm:$0xff]
        %v4696 = vld [vmem:[%s475 + $0x798] sm:$0xff]
        %v4697 = vld [vmem:[%s475 + $0x7a0] sm:$0xff]
        %v4698 = vld [vmem:[%s475 + $0x7a8] sm:$0xff]
        %v4699 = vld [vmem:[%s475 + $0x7b0] sm:$0xff]
        %v4700 = vld [vmem:[%s475 + $0x7b8] sm:$0xff]
        %v4701 = vld [vmem:[%s475 + $0x7c0] sm:$0xff]
        %v4702 = vld [vmem:[%s475 + $0x7c8] sm:$0xff]
        %v4703 = vld [vmem:[%s475 + $0x7d0] sm:$0xff]
        %v4704 = vld [vmem:[%s475 + $0x7d8] sm:$0xff]
        %v4705 = vld [vmem:[%s475 + $0x7e0] sm:$0xff]
        %v4706 = vld [vmem:[%s475 + $0x7e8] sm:$0xff]
        %v4707 = vld [vmem:[%s475 + $0x7f0] sm:$0xff]
        %v4708 = vld [vmem:[%s475 + $0x7f8] sm:$0xff]
        %v4709 = vld [vmem:[%s475 + $0x800] sm:$0xff]
        %v4710 = vld [vmem:[%s475 + $0x808] sm:$0xff]
        %v4711 = vld [vmem:[%s475 + $0x810] sm:$0xff]
        %v4712 = vld [vmem:[%s475 + $0x818] sm:$0xff]
        %v4713 = vld [vmem:[%s475 + $0x820] sm:$0xff]
        %v4714 = vld [vmem:[%s475 + $0x828] sm:$0xff]
        %v4715 = vld [vmem:[%s475 + $0x830] sm:$0xff]
        %v4716 = vld [vmem:[%s475 + $0x838] sm:$0xff]
        %v4717 = vld [vmem:[%s475 + $0x840] sm:$0xff]
        %v4718 = vld [vmem:[%s475 + $0x848] sm:$0xff]
        %v4719 = vld [vmem:[%s475 + $0x850] sm:$0xff]
        %v4720 = vld [vmem:[%s475 + $0x858] sm:$0xff]
        %v4721 = vld [vmem:[%s475 + $0x860] sm:$0xff]
        %v4722 = vld [vmem:[%s475 + $0x868] sm:$0xff]
        %v4723 = vld [vmem:[%s475 + $0x870] sm:$0xff]
        %v4724 = vld [vmem:[%s475 + $0x878] sm:$0xff]
        %v4725 = vld [vmem:[%s475 + $0x880] sm:$0xff]
        %v4726 = vld [vmem:[%s475 + $0x888] sm:$0xff]
        %v4727 = vld [vmem:[%s475 + $0x890] sm:$0xff]
        %v4728 = vld [vmem:[%s475 + $0x898] sm:$0xff]
        %v4729 = vld [vmem:[%s475 + $0x8a0] sm:$0xff]
        %v4730 = vld [vmem:[%s475 + $0x8a8] sm:$0xff]
        %v4731 = vld [vmem:[%s475 + $0x8b0] sm:$0xff]
        %v4732 = vld [vmem:[%s475 + $0x8b8] sm:$0xff]
        %v4733 = vld [vmem:[%s475 + $0x8c0] sm:$0xff]
        %v4734 = vld [vmem:[%s475 + $0x8c8] sm:$0xff]
        %v4735 = vld [vmem:[%s475 + $0x8d0] sm:$0xff]
        %v4736 = vld [vmem:[%s475 + $0x8d8] sm:$0xff]
        %v4737 = vld [vmem:[%s475 + $0x8e0] sm:$0xff]
        %v4738 = vld [vmem:[%s475 + $0x8e8] sm:$0xff]
        %v4739 = vld [vmem:[%s475 + $0x8f0] sm:$0xff]
        %v4740 = vld [vmem:[%s475 + $0x8f8] sm:$0xff]
        %v4741 = vld [vmem:[%s475 + $0x900] sm:$0xff]
        %v4742 = vld [vmem:[%s475 + $0x908] sm:$0xff]
        %v4743 = vld [vmem:[%s475 + $0x910] sm:$0xff]
        %v4744 = vld [vmem:[%s475 + $0x918] sm:$0xff]
        %v4745 = vld [vmem:[%s475 + $0x920] sm:$0xff]
        %v4746 = vld [vmem:[%s475 + $0x928] sm:$0xff]
        %v4747 = vld [vmem:[%s475 + $0x930] sm:$0xff]
        %v4748 = vld [vmem:[%s475 + $0x938] sm:$0xff]
        %v4749 = vld [vmem:[%s475 + $0x940] sm:$0xff]
        %v4750 = vld [vmem:[%s475 + $0x948] sm:$0xff]
        %v4751 = vld [vmem:[%s475 + $0x950] sm:$0xff]
        %v4752 = vld [vmem:[%s475 + $0x958] sm:$0xff]
        %v4753 = vld [vmem:[%s475 + $0x960] sm:$0xff]
        %v4754 = vld [vmem:[%s475 + $0x968] sm:$0xff]
        %v4755 = vld [vmem:[%s475 + $0x970] sm:$0xff]
        %v4756 = vld [vmem:[%s475 + $0x978] sm:$0xff]
        %v4757 = vld [vmem:[%s475 + $0x980] sm:$0xff]
        %v4758 = vld [vmem:[%s475 + $0x988] sm:$0xff]
        %v4759 = vld [vmem:[%s475 + $0x990] sm:$0xff]
        %v4760 = vld [vmem:[%s475 + $0x998] sm:$0xff]
        %v4761 = vld [vmem:[%s475 + $0x9a0] sm:$0xff]
        %v4762 = vld [vmem:[%s475 + $0x9a8] sm:$0xff]
        %v4763 = vld [vmem:[%s475 + $0x9b0] sm:$0xff]
        %v4764 = vld [vmem:[%s475 + $0x9b8] sm:$0xff]
        %v4765 = vld [vmem:[%s475 + $0x9c0] sm:$0xff]
        %v4766 = vld [vmem:[%s475 + $0x9c8] sm:$0xff]
        %v4767 = vld [vmem:[%s475 + $0x9d0] sm:$0xff]
        %v4768 = vld [vmem:[%s475 + $0x9d8] sm:$0xff]
        %v4769 = vld [vmem:[%s475 + $0x9e0] sm:$0xff]
        %v4770 = vld [vmem:[%s475 + $0x9e8] sm:$0xff]
        %v4771 = vld [vmem:[%s475 + $0x9f0] sm:$0xff]
        %v4772 = vld [vmem:[%s475 + $0x9f8] sm:$0xff]
        %v4773 = vld [vmem:[%s475 + $0xa00] sm:$0xff]
        %v4774 = vld [vmem:[%s475 + $0xa08] sm:$0xff]
        %v4775 = vld [vmem:[%s475 + $0xa10] sm:$0xff]
        %v4776 = vld [vmem:[%s475 + $0xa18] sm:$0xff]
        %v4777 = vld [vmem:[%s475 + $0xa20] sm:$0xff]
        %v4778 = vld [vmem:[%s475 + $0xa28] sm:$0xff]
        %v4779 = vld [vmem:[%s475 + $0xa30] sm:$0xff]
        %v4780 = vld [vmem:[%s475 + $0xa38] sm:$0xff]
        %v4781 = vld [vmem:[%s475 + $0xa40] sm:$0xff]
        %v4782 = vld [vmem:[%s475 + $0xa48] sm:$0xff]
        %v4783 = vld [vmem:[%s475 + $0xa50] sm:$0xff]
        %v4784 = vld [vmem:[%s475 + $0xa58] sm:$0xff]
        %v4785 = vld [vmem:[%s475 + $0xa60] sm:$0xff]
        %v4786 = vld [vmem:[%s475 + $0xa68] sm:$0xff]
        %v4787 = vld [vmem:[%s475 + $0xa70] sm:$0xff]
        %v4788 = vld [vmem:[%s475 + $0xa78] sm:$0xff]
        %v4789 = vld [vmem:[%s475 + $0xa80] sm:$0xff]
        %v4790 = vld [vmem:[%s475 + $0xa88] sm:$0xff]
        %v4791 = vld [vmem:[%s475 + $0xa90] sm:$0xff]
        %v4792 = vld [vmem:[%s475 + $0xa98] sm:$0xff]
        %v4793 = vld [vmem:[%s475 + $0xaa0] sm:$0xff]
        %v4794 = vld [vmem:[%s475 + $0xaa8] sm:$0xff]
        %v4795 = vld [vmem:[%s475 + $0xab0] sm:$0xff]
        %v4796 = vld [vmem:[%s475 + $0xab8] sm:$0xff]
        %v4797 = vld [vmem:[%s475 + $0xac0] sm:$0xff]
        %v4798 = vld [vmem:[%s475 + $0xac8] sm:$0xff]
        %v4799 = vld [vmem:[%s475 + $0xad0] sm:$0xff]
        %v4800 = vld [vmem:[%s475 + $0xad8] sm:$0xff]
        %v4801 = vld [vmem:[%s475 + $0xae0] sm:$0xff]
        %v4802 = vld [vmem:[%s475 + $0xae8] sm:$0xff]
        %v4803 = vld [vmem:[%s475 + $0xaf0] sm:$0xff]
        %v4804 = vld [vmem:[%s475 + $0xaf8] sm:$0xff]
        %v4805 = vld [vmem:[%s475 + $0xb00] sm:$0xff]
        %v4806 = vld [vmem:[%s475 + $0xb08] sm:$0xff]
        %v4807 = vld [vmem:[%s475 + $0xb10] sm:$0xff]
        %v4808 = vld [vmem:[%s475 + $0xb18] sm:$0xff]
        %v4809 = vld [vmem:[%s475 + $0xb20] sm:$0xff]
        %v4810 = vld [vmem:[%s475 + $0xb28] sm:$0xff]
        %v4811 = vld [vmem:[%s475 + $0xb30] sm:$0xff]
        %v4812 = vld [vmem:[%s475 + $0xb38] sm:$0xff]
        %v4813 = vld [vmem:[%s475 + $0xb40] sm:$0xff]
        %v4814 = vld [vmem:[%s475 + $0xb48] sm:$0xff]
        %v4815 = vld [vmem:[%s475 + $0xb50] sm:$0xff]
        %v4816 = vld [vmem:[%s475 + $0xb58] sm:$0xff]
        %v4817 = vld [vmem:[%s475 + $0xb60] sm:$0xff]
        %v4818 = vld [vmem:[%s475 + $0xb68] sm:$0xff]
        %v4819 = vld [vmem:[%s475 + $0xb70] sm:$0xff]
        %v4820 = vld [vmem:[%s475 + $0xb78] sm:$0xff]
        %v4821 = vld [vmem:[%s475 + $0xb80] sm:$0xff]
        %v4822 = vld [vmem:[%s475 + $0xb88] sm:$0xff]
        %v4823 = vld [vmem:[%s475 + $0xb90] sm:$0xff]
        %v4824 = vld [vmem:[%s475 + $0xb98] sm:$0xff]
        %v4825 = vld [vmem:[%s475 + $0xba0] sm:$0xff]
        %v4826 = vld [vmem:[%s475 + $0xba8] sm:$0xff]
        %v4827 = vld [vmem:[%s475 + $0xbb0] sm:$0xff]
        %v4828 = vld [vmem:[%s475 + $0xbb8] sm:$0xff]
        %v4829 = vld [vmem:[%s475 + $0xbc0] sm:$0xff]
        %v4830 = vld [vmem:[%s475 + $0xbc8] sm:$0xff]
        %v4831 = vld [vmem:[%s475 + $0xbd0] sm:$0xff]
        %v4832 = vld [vmem:[%s475 + $0xbd8] sm:$0xff]
        %v4833 = vld [vmem:[%s475 + $0xbe0] sm:$0xff]
        %v4834 = vld [vmem:[%s475 + $0xbe8] sm:$0xff]
        %v4835 = vld [vmem:[%s475 + $0xbf0] sm:$0xff]
        %v4836 = vld [vmem:[%s475 + $0xbf8] sm:$0xff]
        %v4837 = vld [vmem:[%s475 + $0xc00] sm:$0xff]
        %v4838 = vld [vmem:[%s475 + $0xc08] sm:$0xff]
        %v4839 = vld [vmem:[%s475 + $0xc10] sm:$0xff]
        %v4840 = vld [vmem:[%s475 + $0xc18] sm:$0xff]
        %v4841 = vld [vmem:[%s475 + $0xc20] sm:$0xff]
        %v4842 = vld [vmem:[%s475 + $0xc28] sm:$0xff]
        %v4843 = vld [vmem:[%s475 + $0xc30] sm:$0xff]
        %v4844 = vld [vmem:[%s475 + $0xc38] sm:$0xff]
        %v4845 = vld [vmem:[%s475 + $0xc40] sm:$0xff]
        %v4846 = vld [vmem:[%s475 + $0xc48] sm:$0xff]
        %v4847 = vld [vmem:[%s475 + $0xc50] sm:$0xff]
        %v4848 = vld [vmem:[%s475 + $0xc58] sm:$0xff]
        %v4849 = vld [vmem:[%s475 + $0xc60] sm:$0xff]
        %v4850 = vld [vmem:[%s475 + $0xc68] sm:$0xff]
        %v4851 = vld [vmem:[%s475 + $0xc70] sm:$0xff]
        %v4852 = vld [vmem:[%s475 + $0xc78] sm:$0xff]
        %v4853 = vld [vmem:[%s475 + $0xc80] sm:$0xff]
        %v4854 = vld [vmem:[%s475 + $0xc88] sm:$0xff]
        %v4855 = vld [vmem:[%s475 + $0xc90] sm:$0xff]
        %v4856 = vld [vmem:[%s475 + $0xc98] sm:$0xff]
        %v4857 = vld [vmem:[%s475 + $0xca0] sm:$0xff]
        %v4858 = vld [vmem:[%s475 + $0xca8] sm:$0xff]
        %v4859 = vld [vmem:[%s475 + $0xcb0] sm:$0xff]
        %v4860 = vld [vmem:[%s475 + $0xcb8] sm:$0xff]
        %v4861 = vld [vmem:[%s475 + $0xcc0] sm:$0xff]
        %v4862 = vld [vmem:[%s475 + $0xcc8] sm:$0xff]
        %v4863 = vld [vmem:[%s475 + $0xcd0] sm:$0xff]
        %v4864 = vld [vmem:[%s475 + $0xcd8] sm:$0xff]
        %v4865 = vld [vmem:[%s475 + $0xce0] sm:$0xff]
        %v4866 = vld [vmem:[%s475 + $0xce8] sm:$0xff]
        %v4867 = vld [vmem:[%s475 + $0xcf0] sm:$0xff]
        %v4868 = vld [vmem:[%s475 + $0xcf8] sm:$0xff]
        %v4869 = vld [vmem:[%s475 + $0xd00] sm:$0xff]
        %v4870 = vld [vmem:[%s475 + $0xd08] sm:$0xff]
        %v4871 = vld [vmem:[%s475 + $0xd10] sm:$0xff]
        %v4872 = vld [vmem:[%s475 + $0xd18] sm:$0xff]
        %v4873 = vld [vmem:[%s475 + $0xd20] sm:$0xff]
        %v4874 = vld [vmem:[%s475 + $0xd28] sm:$0xff]
        %v4875 = vld [vmem:[%s475 + $0xd30] sm:$0xff]
        %v4876 = vld [vmem:[%s475 + $0xd38] sm:$0xff]
        %v4877 = vld [vmem:[%s475 + $0xd40] sm:$0xff]
        %v4878 = vld [vmem:[%s475 + $0xd48] sm:$0xff]
        %v4879 = vld [vmem:[%s475 + $0xd50] sm:$0xff]
        %v4880 = vld [vmem:[%s475 + $0xd58] sm:$0xff]
        %v4881 = vld [vmem:[%s475 + $0xd60] sm:$0xff]
        %v4882 = vld [vmem:[%s475 + $0xd68] sm:$0xff]
        %v4883 = vld [vmem:[%s475 + $0xd70] sm:$0xff]
        %v4884 = vld [vmem:[%s475 + $0xd78] sm:$0xff]
        %v4885 = vld [vmem:[%s475 + $0xd80] sm:$0xff]
        %v4886 = vld [vmem:[%s475 + $0xd88] sm:$0xff]
        %v4887 = vld [vmem:[%s475 + $0xd90] sm:$0xff]
        %v4888 = vld [vmem:[%s475 + $0xd98] sm:$0xff]
        %v4889 = vld [vmem:[%s475 + $0xda0] sm:$0xff]
        %v4890 = vld [vmem:[%s475 + $0xda8] sm:$0xff]
        %v4891 = vld [vmem:[%s475 + $0xdb0] sm:$0xff]
        %v4892 = vld [vmem:[%s475 + $0xdb8] sm:$0xff]
        %v4893 = vld [vmem:[%s475 + $0xdc0] sm:$0xff]
        %v4894 = vld [vmem:[%s475 + $0xdc8] sm:$0xff]
        %v4895 = vld [vmem:[%s475 + $0xdd0] sm:$0xff]
        %v4896 = vld [vmem:[%s475 + $0xdd8] sm:$0xff]
        %v4897 = vld [vmem:[%s475 + $0xde0] sm:$0xff]
        %v4898 = vld [vmem:[%s475 + $0xde8] sm:$0xff]
        %v4899 = vld [vmem:[%s475 + $0xdf0] sm:$0xff]
        %v4900 = vld [vmem:[%s475 + $0xdf8] sm:$0xff]
        %v4901 = vld [vmem:[%s475 + $0xe00] sm:$0xff]
        %v4902 = vld [vmem:[%s475 + $0xe08] sm:$0xff]
        %v4903 = vld [vmem:[%s475 + $0xe10] sm:$0xff]
        %v4904 = vld [vmem:[%s475 + $0xe18] sm:$0xff]
        %v4905 = vld [vmem:[%s475 + $0xe20] sm:$0xff]
        %v4906 = vld [vmem:[%s475 + $0xe28] sm:$0xff]
        %v4907 = vld [vmem:[%s475 + $0xe30] sm:$0xff]
        %v4908 = vld [vmem:[%s475 + $0xe38] sm:$0xff]
        %v4909 = vld [vmem:[%s475 + $0xe40] sm:$0xff]
        %v4910 = vld [vmem:[%s475 + $0xe48] sm:$0xff]
        %v4911 = vld [vmem:[%s475 + $0xe50] sm:$0xff]
        %v4912 = vld [vmem:[%s475 + $0xe58] sm:$0xff]
        %v4913 = vld [vmem:[%s475 + $0xe60] sm:$0xff]
        %v4914 = vld [vmem:[%s475 + $0xe68] sm:$0xff]
        %v4915 = vld [vmem:[%s475 + $0xe70] sm:$0xff]
        %v4916 = vld [vmem:[%s475 + $0xe78] sm:$0xff]
        %v4917 = vld [vmem:[%s475 + $0xe80] sm:$0xff]
        %v4918 = vld [vmem:[%s475 + $0xe88] sm:$0xff]
        %v4919 = vld [vmem:[%s475 + $0xe90] sm:$0xff]
        %v4920 = vld [vmem:[%s475 + $0xe98] sm:$0xff]
        %v4921 = vld [vmem:[%s475 + $0xea0] sm:$0xff]
        %v4922 = vld [vmem:[%s475 + $0xea8] sm:$0xff]
        %v4923 = vld [vmem:[%s475 + $0xeb0] sm:$0xff]
        %v4924 = vld [vmem:[%s475 + $0xeb8] sm:$0xff]
        %v4925 = vld [vmem:[%s475 + $0xec0] sm:$0xff]
        %v4926 = vld [vmem:[%s475 + $0xec8] sm:$0xff]
        %v4927 = vld [vmem:[%s475 + $0xed0] sm:$0xff]
        %v4928 = vld [vmem:[%s475 + $0xed8] sm:$0xff]
        %v4929 = vld [vmem:[%s475 + $0xee0] sm:$0xff]
        %v4930 = vld [vmem:[%s475 + $0xee8] sm:$0xff]
        %v4931 = vld [vmem:[%s475 + $0xef0] sm:$0xff]
        %v4932 = vld [vmem:[%s475 + $0xef8] sm:$0xff]
        %v4933 = vld [vmem:[%s475 + $0xf00] sm:$0xff]
        %v4934 = vld [vmem:[%s475 + $0xf08] sm:$0xff]
        %v4935 = vld [vmem:[%s475 + $0xf10] sm:$0xff]
        %v4936 = vld [vmem:[%s475 + $0xf18] sm:$0xff]
        %v4937 = vld [vmem:[%s475 + $0xf20] sm:$0xff]
        %v4938 = vld [vmem:[%s475 + $0xf28] sm:$0xff]
        %v4939 = vld [vmem:[%s475 + $0xf30] sm:$0xff]
        %v4940 = vld [vmem:[%s475 + $0xf38] sm:$0xff]
        %v4941 = vld [vmem:[%s475 + $0xf40] sm:$0xff]
        %v4942 = vld [vmem:[%s475 + $0xf48] sm:$0xff]
        %v4943 = vld [vmem:[%s475 + $0xf50] sm:$0xff]
        %v4944 = vld [vmem:[%s475 + $0xf58] sm:$0xff]
        %v4945 = vld [vmem:[%s475 + $0xf60] sm:$0xff]
        %v4946 = vld [vmem:[%s475 + $0xf68] sm:$0xff]
        %v4947 = vld [vmem:[%s475 + $0xf70] sm:$0xff]
        %v4948 = vld [vmem:[%s475 + $0xf78] sm:$0xff]
        %v4949 = vld [vmem:[%s475 + $0xf80] sm:$0xff]
        %v4950 = vld [vmem:[%s475 + $0xf88] sm:$0xff]
        %v4951 = vld [vmem:[%s475 + $0xf90] sm:$0xff]
        %v4952 = vld [vmem:[%s475 + $0xf98] sm:$0xff]
        %v4953 = vld [vmem:[%s475 + $0xfa0] sm:$0xff]
        %v4954 = vld [vmem:[%s475 + $0xfa8] sm:$0xff]
        %v4955 = vld [vmem:[%s475 + $0xfb0] sm:$0xff]
        %v4956 = vld [vmem:[%s475 + $0xfb8] sm:$0xff]
        %v4957 = vld [vmem:[%s475 + $0xfc0] sm:$0xff]
        %v4958 = vld [vmem:[%s475 + $0xfc8] sm:$0xff]
        %v4959 = vld [vmem:[%s475 + $0xfd0] sm:$0xff]
        %v4960 = vld [vmem:[%s475 + $0xfd8] sm:$0xff]
        %v4961 = vld [vmem:[%s475 + $0xfe0] sm:$0xff]
        %v4962 = vld [vmem:[%s475 + $0xfe8] sm:$0xff]
        %v4963 = vld [vmem:[%s475 + $0xff0] sm:$0xff]
        %v4964 = vld [vmem:[%s475 + $0xff8] sm:$0xff]
        %v4965 = vld [vmem:[%s484] sm:$0xff]
        %v4967 = vlaneseq
        %v4968 = vshrl.u32 %v4967, 7
        %v4969 = vsub.s32 0, %v4968
        %v4970 = vrot.slane %v4965, %v4969
        %v4971 = vlaneseq
        %v4972 = vshrl.u32 %v4971, 7
        %v4973 = vsub.s32 1, %v4972
        %v4974 = vrot.slane %v4965, %v4973
        %v4975 = vlaneseq
        %v4976 = vshrl.u32 %v4975, 7
        %v4977 = vsub.s32 2, %v4976
        %v4978 = vrot.slane %v4965, %v4977
        %v4979 = vlaneseq
        %v4980 = vshrl.u32 %v4979, 7
        %v4981 = vsub.s32 3, %v4980
        %v4982 = vrot.slane %v4965, %v4981
        %v4983 = vlaneseq
        %v4984 = vshrl.u32 %v4983, 7
        %v4985 = vsub.s32 4, %v4984
        %v4986 = vrot.slane %v4965, %v4985
        %v4987 = vlaneseq
        %v4988 = vshrl.u32 %v4987, 7
        %v4989 = vsub.s32 5, %v4988
        %v4990 = vrot.slane %v4965, %v4989
        %v4991 = vlaneseq
        %v4992 = vshrl.u32 %v4991, 7
        %v4993 = vsub.s32 6, %v4992
        %v4994 = vrot.slane %v4965, %v4993
        %v4995 = vlaneseq
        %v4996 = vshrl.u32 %v4995, 7
        %v4997 = vsub.s32 7, %v4996
        %v4998 = vrot.slane %v4965, %v4997
        %v5519 = vunpack.c.l.b16 %v4453
        %v5520 = vunpack.c.h.b16 %v4453
        %v5521 = vunpack.c.l.b16 %v4454
        %v5522 = vunpack.c.h.b16 %v4454
        %v5523 = vunpack.c.l.b16 %v4455
        %v5524 = vunpack.c.h.b16 %v4455
        %v5525 = vunpack.c.l.b16 %v4456
        %v5526 = vunpack.c.h.b16 %v4456
        %v5527 = vunpack.c.l.b16 %v4457
        %v5528 = vunpack.c.h.b16 %v4457
        %v5529 = vunpack.c.l.b16 %v4458
        %v5530 = vunpack.c.h.b16 %v4458
        %v5531 = vunpack.c.l.b16 %v4459
        %v5532 = vunpack.c.h.b16 %v4459
        %v5533 = vunpack.c.l.b16 %v4460
        %v5534 = vunpack.c.h.b16 %v4460
        %v5535 = vunpack.c.l.b16 %v4461
        %v5536 = vunpack.c.h.b16 %v4461
        %v5537 = vunpack.c.l.b16 %v4462
        %v5538 = vunpack.c.h.b16 %v4462
        %v5539 = vunpack.c.l.b16 %v4463
        %v5540 = vunpack.c.h.b16 %v4463
        %v5541 = vunpack.c.l.b16 %v4464
        %v5542 = vunpack.c.h.b16 %v4464
        %v5543 = vunpack.c.l.b16 %v4465
        %v5544 = vunpack.c.h.b16 %v4465
        %v5545 = vunpack.c.l.b16 %v4466
        %v5546 = vunpack.c.h.b16 %v4466
        %v5547 = vunpack.c.l.b16 %v4467
        %v5548 = vunpack.c.h.b16 %v4467
        %v5549 = vunpack.c.l.b16 %v4468
        %v5550 = vunpack.c.h.b16 %v4468
        %v5551 = vunpack.c.l.b16 %v4469
        %v5552 = vunpack.c.h.b16 %v4469
        %v5553 = vunpack.c.l.b16 %v4470
        %v5554 = vunpack.c.h.b16 %v4470
        %v5555 = vunpack.c.l.b16 %v4471
        %v5556 = vunpack.c.h.b16 %v4471
        %v5557 = vunpack.c.l.b16 %v4472
        %v5558 = vunpack.c.h.b16 %v4472
        %v5559 = vunpack.c.l.b16 %v4473
        %v5560 = vunpack.c.h.b16 %v4473
        %v5561 = vunpack.c.l.b16 %v4474
        %v5562 = vunpack.c.h.b16 %v4474
        %v5563 = vunpack.c.l.b16 %v4475
        %v5564 = vunpack.c.h.b16 %v4475
        %v5565 = vunpack.c.l.b16 %v4476
        %v5566 = vunpack.c.h.b16 %v4476
        %v5567 = vunpack.c.l.b16 %v4477
        %v5568 = vunpack.c.h.b16 %v4477
        %v5569 = vunpack.c.l.b16 %v4478
        %v5570 = vunpack.c.h.b16 %v4478
        %v5571 = vunpack.c.l.b16 %v4479
        %v5572 = vunpack.c.h.b16 %v4479
        %v5573 = vunpack.c.l.b16 %v4480
        %v5574 = vunpack.c.h.b16 %v4480
        %v5575 = vunpack.c.l.b16 %v4481
        %v5576 = vunpack.c.h.b16 %v4481
        %v5577 = vunpack.c.l.b16 %v4482
        %v5578 = vunpack.c.h.b16 %v4482
        %v5579 = vunpack.c.l.b16 %v4483
        %v5580 = vunpack.c.h.b16 %v4483
        %v5581 = vunpack.c.l.b16 %v4484
        %v5582 = vunpack.c.h.b16 %v4484
        %v5583 = vunpack.c.l.b16 %v4485
        %v5584 = vunpack.c.h.b16 %v4485
        %v5585 = vunpack.c.l.b16 %v4486
        %v5586 = vunpack.c.h.b16 %v4486
        %v5587 = vunpack.c.l.b16 %v4487
        %v5588 = vunpack.c.h.b16 %v4487
        %v5589 = vunpack.c.l.b16 %v4488
        %v5590 = vunpack.c.h.b16 %v4488
        %v5591 = vunpack.c.l.b16 %v4489
        %v5592 = vunpack.c.h.b16 %v4489
        %v5593 = vunpack.c.l.b16 %v4490
        %v5594 = vunpack.c.h.b16 %v4490
        %v5595 = vunpack.c.l.b16 %v4491
        %v5596 = vunpack.c.h.b16 %v4491
        %v5597 = vunpack.c.l.b16 %v4492
        %v5598 = vunpack.c.h.b16 %v4492
        %v5599 = vunpack.c.l.b16 %v4493
        %v5600 = vunpack.c.h.b16 %v4493
        %v5601 = vunpack.c.l.b16 %v4494
        %v5602 = vunpack.c.h.b16 %v4494
        %v5603 = vunpack.c.l.b16 %v4495
        %v5604 = vunpack.c.h.b16 %v4495
        %v5605 = vunpack.c.l.b16 %v4496
        %v5606 = vunpack.c.h.b16 %v4496
        %v5607 = vunpack.c.l.b16 %v4497
        %v5608 = vunpack.c.h.b16 %v4497
        %v5609 = vunpack.c.l.b16 %v4498
        %v5610 = vunpack.c.h.b16 %v4498
        %v5611 = vunpack.c.l.b16 %v4499
        %v5612 = vunpack.c.h.b16 %v4499
        %v5613 = vunpack.c.l.b16 %v4500
        %v5614 = vunpack.c.h.b16 %v4500
        %v5615 = vunpack.c.l.b16 %v4501
        %v5616 = vunpack.c.h.b16 %v4501
        %v5617 = vunpack.c.l.b16 %v4502
        %v5618 = vunpack.c.h.b16 %v4502
        %v5619 = vunpack.c.l.b16 %v4503
        %v5620 = vunpack.c.h.b16 %v4503
        %v5621 = vunpack.c.l.b16 %v4504
        %v5622 = vunpack.c.h.b16 %v4504
        %v5623 = vunpack.c.l.b16 %v4505
        %v5624 = vunpack.c.h.b16 %v4505
        %v5625 = vunpack.c.l.b16 %v4506
        %v5626 = vunpack.c.h.b16 %v4506
        %v5627 = vunpack.c.l.b16 %v4507
        %v5628 = vunpack.c.h.b16 %v4507
        %v5629 = vunpack.c.l.b16 %v4508
        %v5630 = vunpack.c.h.b16 %v4508
        %v5631 = vunpack.c.l.b16 %v4509
        %v5632 = vunpack.c.h.b16 %v4509
        %v5633 = vunpack.c.l.b16 %v4510
        %v5634 = vunpack.c.h.b16 %v4510
        %v5635 = vunpack.c.l.b16 %v4511
        %v5636 = vunpack.c.h.b16 %v4511
        %v5637 = vunpack.c.l.b16 %v4512
        %v5638 = vunpack.c.h.b16 %v4512
        %v5639 = vunpack.c.l.b16 %v4513
        %v5640 = vunpack.c.h.b16 %v4513
        %v5641 = vunpack.c.l.b16 %v4514
        %v5642 = vunpack.c.h.b16 %v4514
        %v5643 = vunpack.c.l.b16 %v4515
        %v5644 = vunpack.c.h.b16 %v4515
        %v5645 = vunpack.c.l.b16 %v4516
        %v5646 = vunpack.c.h.b16 %v4516
        %v5647 = vunpack.c.l.b16 %v4517
        %v5648 = vunpack.c.h.b16 %v4517
        %v5649 = vunpack.c.l.b16 %v4518
        %v5650 = vunpack.c.h.b16 %v4518
        %v5651 = vunpack.c.l.b16 %v4519
        %v5652 = vunpack.c.h.b16 %v4519
        %v5653 = vunpack.c.l.b16 %v4520
        %v5654 = vunpack.c.h.b16 %v4520
        %v5655 = vunpack.c.l.b16 %v4521
        %v5656 = vunpack.c.h.b16 %v4521
        %v5657 = vunpack.c.l.b16 %v4522
        %v5658 = vunpack.c.h.b16 %v4522
        %v5659 = vunpack.c.l.b16 %v4523
        %v5660 = vunpack.c.h.b16 %v4523
        %v5661 = vunpack.c.l.b16 %v4524
        %v5662 = vunpack.c.h.b16 %v4524
        %v5663 = vunpack.c.l.b16 %v4525
        %v5664 = vunpack.c.h.b16 %v4525
        %v5665 = vunpack.c.l.b16 %v4526
        %v5666 = vunpack.c.h.b16 %v4526
        %v5667 = vunpack.c.l.b16 %v4527
        %v5668 = vunpack.c.h.b16 %v4527
        %v5669 = vunpack.c.l.b16 %v4528
        %v5670 = vunpack.c.h.b16 %v4528
        %v5671 = vunpack.c.l.b16 %v4529
        %v5672 = vunpack.c.h.b16 %v4529
        %v5673 = vunpack.c.l.b16 %v4530
        %v5674 = vunpack.c.h.b16 %v4530
        %v5675 = vunpack.c.l.b16 %v4531
        %v5676 = vunpack.c.h.b16 %v4531
        %v5677 = vunpack.c.l.b16 %v4532
        %v5678 = vunpack.c.h.b16 %v4532
        %v5679 = vunpack.c.l.b16 %v4533
        %v5680 = vunpack.c.h.b16 %v4533
        %v5681 = vunpack.c.l.b16 %v4534
        %v5682 = vunpack.c.h.b16 %v4534
        %v5683 = vunpack.c.l.b16 %v4535
        %v5684 = vunpack.c.h.b16 %v4535
        %v5685 = vunpack.c.l.b16 %v4536
        %v5686 = vunpack.c.h.b16 %v4536
        %v5687 = vunpack.c.l.b16 %v4537
        %v5688 = vunpack.c.h.b16 %v4537
        %v5689 = vunpack.c.l.b16 %v4538
        %v5690 = vunpack.c.h.b16 %v4538
        %v5691 = vunpack.c.l.b16 %v4539
        %v5692 = vunpack.c.h.b16 %v4539
        %v5693 = vunpack.c.l.b16 %v4540
        %v5694 = vunpack.c.h.b16 %v4540
        %v5695 = vunpack.c.l.b16 %v4541
        %v5696 = vunpack.c.h.b16 %v4541
        %v5697 = vunpack.c.l.b16 %v4542
        %v5698 = vunpack.c.h.b16 %v4542
        %v5699 = vunpack.c.l.b16 %v4543
        %v5700 = vunpack.c.h.b16 %v4543
        %v5701 = vunpack.c.l.b16 %v4544
        %v5702 = vunpack.c.h.b16 %v4544
        %v5703 = vunpack.c.l.b16 %v4545
        %v5704 = vunpack.c.h.b16 %v4545
        %v5705 = vunpack.c.l.b16 %v4546
        %v5706 = vunpack.c.h.b16 %v4546
        %v5707 = vunpack.c.l.b16 %v4547
        %v5708 = vunpack.c.h.b16 %v4547
        %v5709 = vunpack.c.l.b16 %v4548
        %v5710 = vunpack.c.h.b16 %v4548
        %v5711 = vunpack.c.l.b16 %v4549
        %v5712 = vunpack.c.h.b16 %v4549
        %v5713 = vunpack.c.l.b16 %v4550
        %v5714 = vunpack.c.h.b16 %v4550
        %v5715 = vunpack.c.l.b16 %v4551
        %v5716 = vunpack.c.h.b16 %v4551
        %v5717 = vunpack.c.l.b16 %v4552
        %v5718 = vunpack.c.h.b16 %v4552
        %v5719 = vunpack.c.l.b16 %v4553
        %v5720 = vunpack.c.h.b16 %v4553
        %v5721 = vunpack.c.l.b16 %v4554
        %v5722 = vunpack.c.h.b16 %v4554
        %v5723 = vunpack.c.l.b16 %v4555
        %v5724 = vunpack.c.h.b16 %v4555
        %v5725 = vunpack.c.l.b16 %v4556
        %v5726 = vunpack.c.h.b16 %v4556
        %v5727 = vunpack.c.l.b16 %v4557
        %v5728 = vunpack.c.h.b16 %v4557
        %v5729 = vunpack.c.l.b16 %v4558
        %v5730 = vunpack.c.h.b16 %v4558
        %v5731 = vunpack.c.l.b16 %v4559
        %v5732 = vunpack.c.h.b16 %v4559
        %v5733 = vunpack.c.l.b16 %v4560
        %v5734 = vunpack.c.h.b16 %v4560
        %v5735 = vunpack.c.l.b16 %v4561
        %v5736 = vunpack.c.h.b16 %v4561
        %v5737 = vunpack.c.l.b16 %v4562
        %v5738 = vunpack.c.h.b16 %v4562
        %v5739 = vunpack.c.l.b16 %v4563
        %v5740 = vunpack.c.h.b16 %v4563
        %v5741 = vunpack.c.l.b16 %v4564
        %v5742 = vunpack.c.h.b16 %v4564
        %v5743 = vunpack.c.l.b16 %v4565
        %v5744 = vunpack.c.h.b16 %v4565
        %v5745 = vunpack.c.l.b16 %v4566
        %v5746 = vunpack.c.h.b16 %v4566
        %v5747 = vunpack.c.l.b16 %v4567
        %v5748 = vunpack.c.h.b16 %v4567
        %v5749 = vunpack.c.l.b16 %v4568
        %v5750 = vunpack.c.h.b16 %v4568
        %v5751 = vunpack.c.l.b16 %v4569
        %v5752 = vunpack.c.h.b16 %v4569
        %v5753 = vunpack.c.l.b16 %v4570
        %v5754 = vunpack.c.h.b16 %v4570
        %v5755 = vunpack.c.l.b16 %v4571
        %v5756 = vunpack.c.h.b16 %v4571
        %v5757 = vunpack.c.l.b16 %v4572
        %v5758 = vunpack.c.h.b16 %v4572
        %v5759 = vunpack.c.l.b16 %v4573
        %v5760 = vunpack.c.h.b16 %v4573
        %v5761 = vunpack.c.l.b16 %v4574
        %v5762 = vunpack.c.h.b16 %v4574
        %v5763 = vunpack.c.l.b16 %v4575
        %v5764 = vunpack.c.h.b16 %v4575
        %v5765 = vunpack.c.l.b16 %v4576
        %v5766 = vunpack.c.h.b16 %v4576
        %v5767 = vunpack.c.l.b16 %v4577
        %v5768 = vunpack.c.h.b16 %v4577
        %v5769 = vunpack.c.l.b16 %v4578
        %v5770 = vunpack.c.h.b16 %v4578
        %v5771 = vunpack.c.l.b16 %v4579
        %v5772 = vunpack.c.h.b16 %v4579
        %v5773 = vunpack.c.l.b16 %v4580
        %v5774 = vunpack.c.h.b16 %v4580
        %v5775 = vunpack.c.l.b16 %v4581
        %v5776 = vunpack.c.h.b16 %v4581
        %v5777 = vunpack.c.l.b16 %v4582
        %v5778 = vunpack.c.h.b16 %v4582
        %v5779 = vunpack.c.l.b16 %v4583
        %v5780 = vunpack.c.h.b16 %v4583
        %v5781 = vunpack.c.l.b16 %v4584
        %v5782 = vunpack.c.h.b16 %v4584
        %v5783 = vunpack.c.l.b16 %v4585
        %v5784 = vunpack.c.h.b16 %v4585
        %v5785 = vunpack.c.l.b16 %v4586
        %v5786 = vunpack.c.h.b16 %v4586
        %v5787 = vunpack.c.l.b16 %v4587
        %v5788 = vunpack.c.h.b16 %v4587
        %v5789 = vunpack.c.l.b16 %v4588
        %v5790 = vunpack.c.h.b16 %v4588
        %v5791 = vunpack.c.l.b16 %v4589
        %v5792 = vunpack.c.h.b16 %v4589
        %v5793 = vunpack.c.l.b16 %v4590
        %v5794 = vunpack.c.h.b16 %v4590
        %v5795 = vunpack.c.l.b16 %v4591
        %v5796 = vunpack.c.h.b16 %v4591
        %v5797 = vunpack.c.l.b16 %v4592
        %v5798 = vunpack.c.h.b16 %v4592
        %v5799 = vunpack.c.l.b16 %v4593
        %v5800 = vunpack.c.h.b16 %v4593
        %v5801 = vunpack.c.l.b16 %v4594
        %v5802 = vunpack.c.h.b16 %v4594
        %v5803 = vunpack.c.l.b16 %v4595
        %v5804 = vunpack.c.h.b16 %v4595
        %v5805 = vunpack.c.l.b16 %v4596
        %v5806 = vunpack.c.h.b16 %v4596
        %v5807 = vunpack.c.l.b16 %v4597
        %v5808 = vunpack.c.h.b16 %v4597
        %v5809 = vunpack.c.l.b16 %v4598
        %v5810 = vunpack.c.h.b16 %v4598
        %v5811 = vunpack.c.l.b16 %v4599
        %v5812 = vunpack.c.h.b16 %v4599
        %v5813 = vunpack.c.l.b16 %v4600
        %v5814 = vunpack.c.h.b16 %v4600
        %v5815 = vunpack.c.l.b16 %v4601
        %v5816 = vunpack.c.h.b16 %v4601
        %v5817 = vunpack.c.l.b16 %v4602
        %v5818 = vunpack.c.h.b16 %v4602
        %v5819 = vunpack.c.l.b16 %v4603
        %v5820 = vunpack.c.h.b16 %v4603
        %v5821 = vunpack.c.l.b16 %v4604
        %v5822 = vunpack.c.h.b16 %v4604
        %v5823 = vunpack.c.l.b16 %v4605
        %v5824 = vunpack.c.h.b16 %v4605
        %v5825 = vunpack.c.l.b16 %v4606
        %v5826 = vunpack.c.h.b16 %v4606
        %v5827 = vunpack.c.l.b16 %v4607
        %v5828 = vunpack.c.h.b16 %v4607
        %v5829 = vunpack.c.l.b16 %v4608
        %v5830 = vunpack.c.h.b16 %v4608
        %v5831 = vunpack.c.l.b16 %v4609
        %v5832 = vunpack.c.h.b16 %v4609
        %v5833 = vunpack.c.l.b16 %v4610
        %v5834 = vunpack.c.h.b16 %v4610
        %v5835 = vunpack.c.l.b16 %v4611
        %v5836 = vunpack.c.h.b16 %v4611
        %v5837 = vunpack.c.l.b16 %v4612
        %v5838 = vunpack.c.h.b16 %v4612
        %v5839 = vunpack.c.l.b16 %v4613
        %v5840 = vunpack.c.h.b16 %v4613
        %v5841 = vunpack.c.l.b16 %v4614
        %v5842 = vunpack.c.h.b16 %v4614
        %v5843 = vunpack.c.l.b16 %v4615
        %v5844 = vunpack.c.h.b16 %v4615
        %v5845 = vunpack.c.l.b16 %v4616
        %v5846 = vunpack.c.h.b16 %v4616
        %v5847 = vunpack.c.l.b16 %v4617
        %v5848 = vunpack.c.h.b16 %v4617
        %v5849 = vunpack.c.l.b16 %v4618
        %v5850 = vunpack.c.h.b16 %v4618
        %v5851 = vunpack.c.l.b16 %v4619
        %v5852 = vunpack.c.h.b16 %v4619
        %v5853 = vunpack.c.l.b16 %v4620
        %v5854 = vunpack.c.h.b16 %v4620
        %v5855 = vunpack.c.l.b16 %v4621
        %v5856 = vunpack.c.h.b16 %v4621
        %v5857 = vunpack.c.l.b16 %v4622
        %v5858 = vunpack.c.h.b16 %v4622
        %v5859 = vunpack.c.l.b16 %v4623
        %v5860 = vunpack.c.h.b16 %v4623
        %v5861 = vunpack.c.l.b16 %v4624
        %v5862 = vunpack.c.h.b16 %v4624
        %v5863 = vunpack.c.l.b16 %v4625
        %v5864 = vunpack.c.h.b16 %v4625
        %v5865 = vunpack.c.l.b16 %v4626
        %v5866 = vunpack.c.h.b16 %v4626
        %v5867 = vunpack.c.l.b16 %v4627
        %v5868 = vunpack.c.h.b16 %v4627
        %v5869 = vunpack.c.l.b16 %v4628
        %v5870 = vunpack.c.h.b16 %v4628
        %v5871 = vunpack.c.l.b16 %v4629
        %v5872 = vunpack.c.h.b16 %v4629
        %v5873 = vunpack.c.l.b16 %v4630
        %v5874 = vunpack.c.h.b16 %v4630
        %v5875 = vunpack.c.l.b16 %v4631
        %v5876 = vunpack.c.h.b16 %v4631
        %v5877 = vunpack.c.l.b16 %v4632
        %v5878 = vunpack.c.h.b16 %v4632
        %v5879 = vunpack.c.l.b16 %v4633
        %v5880 = vunpack.c.h.b16 %v4633
        %v5881 = vunpack.c.l.b16 %v4634
        %v5882 = vunpack.c.h.b16 %v4634
        %v5883 = vunpack.c.l.b16 %v4635
        %v5884 = vunpack.c.h.b16 %v4635
        %v5885 = vunpack.c.l.b16 %v4636
        %v5886 = vunpack.c.h.b16 %v4636
        %v5887 = vunpack.c.l.b16 %v4637
        %v5888 = vunpack.c.h.b16 %v4637
        %v5889 = vunpack.c.l.b16 %v4638
        %v5890 = vunpack.c.h.b16 %v4638
        %v5891 = vunpack.c.l.b16 %v4639
        %v5892 = vunpack.c.h.b16 %v4639
        %v5893 = vunpack.c.l.b16 %v4640
        %v5894 = vunpack.c.h.b16 %v4640
        %v5895 = vunpack.c.l.b16 %v4641
        %v5896 = vunpack.c.h.b16 %v4641
        %v5897 = vunpack.c.l.b16 %v4642
        %v5898 = vunpack.c.h.b16 %v4642
        %v5899 = vunpack.c.l.b16 %v4643
        %v5900 = vunpack.c.h.b16 %v4643
        %v5901 = vunpack.c.l.b16 %v4644
        %v5902 = vunpack.c.h.b16 %v4644
        %v5903 = vunpack.c.l.b16 %v4645
        %v5904 = vunpack.c.h.b16 %v4645
        %v5905 = vunpack.c.l.b16 %v4646
        %v5906 = vunpack.c.h.b16 %v4646
        %v5907 = vunpack.c.l.b16 %v4647
        %v5908 = vunpack.c.h.b16 %v4647
        %v5909 = vunpack.c.l.b16 %v4648
        %v5910 = vunpack.c.h.b16 %v4648
        %v5911 = vunpack.c.l.b16 %v4649
        %v5912 = vunpack.c.h.b16 %v4649
        %v5913 = vunpack.c.l.b16 %v4650
        %v5914 = vunpack.c.h.b16 %v4650
        %v5915 = vunpack.c.l.b16 %v4651
        %v5916 = vunpack.c.h.b16 %v4651
        %v5917 = vunpack.c.l.b16 %v4652
        %v5918 = vunpack.c.h.b16 %v4652
        %v5919 = vunpack.c.l.b16 %v4653
        %v5920 = vunpack.c.h.b16 %v4653
        %v5921 = vunpack.c.l.b16 %v4654
        %v5922 = vunpack.c.h.b16 %v4654
        %v5923 = vunpack.c.l.b16 %v4655
        %v5924 = vunpack.c.h.b16 %v4655
        %v5925 = vunpack.c.l.b16 %v4656
        %v5926 = vunpack.c.h.b16 %v4656
        %v5927 = vunpack.c.l.b16 %v4657
        %v5928 = vunpack.c.h.b16 %v4657
        %v5929 = vunpack.c.l.b16 %v4658
        %v5930 = vunpack.c.h.b16 %v4658
        %v5931 = vunpack.c.l.b16 %v4659
        %v5932 = vunpack.c.h.b16 %v4659
        %v5933 = vunpack.c.l.b16 %v4660
        %v5934 = vunpack.c.h.b16 %v4660
        %v5935 = vunpack.c.l.b16 %v4661
        %v5936 = vunpack.c.h.b16 %v4661
        %v5937 = vunpack.c.l.b16 %v4662
        %v5938 = vunpack.c.h.b16 %v4662
        %v5939 = vunpack.c.l.b16 %v4663
        %v5940 = vunpack.c.h.b16 %v4663
        %v5941 = vunpack.c.l.b16 %v4664
        %v5942 = vunpack.c.h.b16 %v4664
        %v5943 = vunpack.c.l.b16 %v4665
        %v5944 = vunpack.c.h.b16 %v4665
        %v5945 = vunpack.c.l.b16 %v4666
        %v5946 = vunpack.c.h.b16 %v4666
        %v5947 = vunpack.c.l.b16 %v4667
        %v5948 = vunpack.c.h.b16 %v4667
        %v5949 = vunpack.c.l.b16 %v4668
        %v5950 = vunpack.c.h.b16 %v4668
        %v5951 = vunpack.c.l.b16 %v4669
        %v5952 = vunpack.c.h.b16 %v4669
        %v5953 = vunpack.c.l.b16 %v4670
        %v5954 = vunpack.c.h.b16 %v4670
        %v5955 = vunpack.c.l.b16 %v4671
        %v5956 = vunpack.c.h.b16 %v4671
        %v5957 = vunpack.c.l.b16 %v4672
        %v5958 = vunpack.c.h.b16 %v4672
        %v5959 = vunpack.c.l.b16 %v4673
        %v5960 = vunpack.c.h.b16 %v4673
        %v5961 = vunpack.c.l.b16 %v4674
        %v5962 = vunpack.c.h.b16 %v4674
        %v5963 = vunpack.c.l.b16 %v4675
        %v5964 = vunpack.c.h.b16 %v4675
        %v5965 = vunpack.c.l.b16 %v4676
        %v5966 = vunpack.c.h.b16 %v4676
        %v5967 = vunpack.c.l.b16 %v4677
        %v5968 = vunpack.c.h.b16 %v4677
        %v5969 = vunpack.c.l.b16 %v4678
        %v5970 = vunpack.c.h.b16 %v4678
        %v5971 = vunpack.c.l.b16 %v4679
        %v5972 = vunpack.c.h.b16 %v4679
        %v5973 = vunpack.c.l.b16 %v4680
        %v5974 = vunpack.c.h.b16 %v4680
        %v5975 = vunpack.c.l.b16 %v4681
        %v5976 = vunpack.c.h.b16 %v4681
        %v5977 = vunpack.c.l.b16 %v4682
        %v5978 = vunpack.c.h.b16 %v4682
        %v5979 = vunpack.c.l.b16 %v4683
        %v5980 = vunpack.c.h.b16 %v4683
        %v5981 = vunpack.c.l.b16 %v4684
        %v5982 = vunpack.c.h.b16 %v4684
        %v5983 = vunpack.c.l.b16 %v4685
        %v5984 = vunpack.c.h.b16 %v4685
        %v5985 = vunpack.c.l.b16 %v4686
        %v5986 = vunpack.c.h.b16 %v4686
        %v5987 = vunpack.c.l.b16 %v4687
        %v5988 = vunpack.c.h.b16 %v4687
        %v5989 = vunpack.c.l.b16 %v4688
        %v5990 = vunpack.c.h.b16 %v4688
        %v5991 = vunpack.c.l.b16 %v4689
        %v5992 = vunpack.c.h.b16 %v4689
        %v5993 = vunpack.c.l.b16 %v4690
        %v5994 = vunpack.c.h.b16 %v4690
        %v5995 = vunpack.c.l.b16 %v4691
        %v5996 = vunpack.c.h.b16 %v4691
        %v5997 = vunpack.c.l.b16 %v4692
        %v5998 = vunpack.c.h.b16 %v4692
        %v5999 = vunpack.c.l.b16 %v4693
        %v6000 = vunpack.c.h.b16 %v4693
        %v6001 = vunpack.c.l.b16 %v4694
        %v6002 = vunpack.c.h.b16 %v4694
        %v6003 = vunpack.c.l.b16 %v4695
        %v6004 = vunpack.c.h.b16 %v4695
        %v6005 = vunpack.c.l.b16 %v4696
        %v6006 = vunpack.c.h.b16 %v4696
        %v6007 = vunpack.c.l.b16 %v4697
        %v6008 = vunpack.c.h.b16 %v4697
        %v6009 = vunpack.c.l.b16 %v4698
        %v6010 = vunpack.c.h.b16 %v4698
        %v6011 = vunpack.c.l.b16 %v4699
        %v6012 = vunpack.c.h.b16 %v4699
        %v6013 = vunpack.c.l.b16 %v4700
        %v6014 = vunpack.c.h.b16 %v4700
        %v6015 = vunpack.c.l.b16 %v4701
        %v6016 = vunpack.c.h.b16 %v4701
        %v6017 = vunpack.c.l.b16 %v4702
        %v6018 = vunpack.c.h.b16 %v4702
        %v6019 = vunpack.c.l.b16 %v4703
        %v6020 = vunpack.c.h.b16 %v4703
        %v6021 = vunpack.c.l.b16 %v4704
        %v6022 = vunpack.c.h.b16 %v4704
        %v6023 = vunpack.c.l.b16 %v4705
        %v6024 = vunpack.c.h.b16 %v4705
        %v6025 = vunpack.c.l.b16 %v4706
        %v6026 = vunpack.c.h.b16 %v4706
        %v6027 = vunpack.c.l.b16 %v4707
        %v6028 = vunpack.c.h.b16 %v4707
        %v6029 = vunpack.c.l.b16 %v4708
        %v6030 = vunpack.c.h.b16 %v4708
        %v6031 = vunpack.c.l.b16 %v4709
        %v6032 = vunpack.c.h.b16 %v4709
        %v6033 = vunpack.c.l.b16 %v4710
        %v6034 = vunpack.c.h.b16 %v4710
        %v6035 = vunpack.c.l.b16 %v4711
        %v6036 = vunpack.c.h.b16 %v4711
        %v6037 = vunpack.c.l.b16 %v4712
        %v6038 = vunpack.c.h.b16 %v4712
        %v6039 = vunpack.c.l.b16 %v4713
        %v6040 = vunpack.c.h.b16 %v4713
        %v6041 = vunpack.c.l.b16 %v4714
        %v6042 = vunpack.c.h.b16 %v4714
        %v6043 = vunpack.c.l.b16 %v4715
        %v6044 = vunpack.c.h.b16 %v4715
        %v6045 = vunpack.c.l.b16 %v4716
        %v6046 = vunpack.c.h.b16 %v4716
        %v6047 = vunpack.c.l.b16 %v4717
        %v6048 = vunpack.c.h.b16 %v4717
        %v6049 = vunpack.c.l.b16 %v4718
        %v6050 = vunpack.c.h.b16 %v4718
        %v6051 = vunpack.c.l.b16 %v4719
        %v6052 = vunpack.c.h.b16 %v4719
        %v6053 = vunpack.c.l.b16 %v4720
        %v6054 = vunpack.c.h.b16 %v4720
        %v6055 = vunpack.c.l.b16 %v4721
        %v6056 = vunpack.c.h.b16 %v4721
        %v6057 = vunpack.c.l.b16 %v4722
        %v6058 = vunpack.c.h.b16 %v4722
        %v6059 = vunpack.c.l.b16 %v4723
        %v6060 = vunpack.c.h.b16 %v4723
        %v6061 = vunpack.c.l.b16 %v4724
        %v6062 = vunpack.c.h.b16 %v4724
        %v6063 = vunpack.c.l.b16 %v4725
        %v6064 = vunpack.c.h.b16 %v4725
        %v6065 = vunpack.c.l.b16 %v4726
        %v6066 = vunpack.c.h.b16 %v4726
        %v6067 = vunpack.c.l.b16 %v4727
        %v6068 = vunpack.c.h.b16 %v4727
        %v6069 = vunpack.c.l.b16 %v4728
        %v6070 = vunpack.c.h.b16 %v4728
        %v6071 = vunpack.c.l.b16 %v4729
        %v6072 = vunpack.c.h.b16 %v4729
        %v6073 = vunpack.c.l.b16 %v4730
        %v6074 = vunpack.c.h.b16 %v4730
        %v6075 = vunpack.c.l.b16 %v4731
        %v6076 = vunpack.c.h.b16 %v4731
        %v6077 = vunpack.c.l.b16 %v4732
        %v6078 = vunpack.c.h.b16 %v4732
        %v6079 = vunpack.c.l.b16 %v4733
        %v6080 = vunpack.c.h.b16 %v4733
        %v6081 = vunpack.c.l.b16 %v4734
        %v6082 = vunpack.c.h.b16 %v4734
        %v6083 = vunpack.c.l.b16 %v4735
        %v6084 = vunpack.c.h.b16 %v4735
        %v6085 = vunpack.c.l.b16 %v4736
        %v6086 = vunpack.c.h.b16 %v4736
        %v6087 = vunpack.c.l.b16 %v4737
        %v6088 = vunpack.c.h.b16 %v4737
        %v6089 = vunpack.c.l.b16 %v4738
        %v6090 = vunpack.c.h.b16 %v4738
        %v6091 = vunpack.c.l.b16 %v4739
        %v6092 = vunpack.c.h.b16 %v4739
        %v6093 = vunpack.c.l.b16 %v4740
        %v6094 = vunpack.c.h.b16 %v4740
        %v6095 = vunpack.c.l.b16 %v4741
        %v6096 = vunpack.c.h.b16 %v4741
        %v6097 = vunpack.c.l.b16 %v4742
        %v6098 = vunpack.c.h.b16 %v4742
        %v6099 = vunpack.c.l.b16 %v4743
        %v6100 = vunpack.c.h.b16 %v4743
        %v6101 = vunpack.c.l.b16 %v4744
        %v6102 = vunpack.c.h.b16 %v4744
        %v6103 = vunpack.c.l.b16 %v4745
        %v6104 = vunpack.c.h.b16 %v4745
        %v6105 = vunpack.c.l.b16 %v4746
        %v6106 = vunpack.c.h.b16 %v4746
        %v6107 = vunpack.c.l.b16 %v4747
        %v6108 = vunpack.c.h.b16 %v4747
        %v6109 = vunpack.c.l.b16 %v4748
        %v6110 = vunpack.c.h.b16 %v4748
        %v6111 = vunpack.c.l.b16 %v4749
        %v6112 = vunpack.c.h.b16 %v4749
        %v6113 = vunpack.c.l.b16 %v4750
        %v6114 = vunpack.c.h.b16 %v4750
        %v6115 = vunpack.c.l.b16 %v4751
        %v6116 = vunpack.c.h.b16 %v4751
        %v6117 = vunpack.c.l.b16 %v4752
        %v6118 = vunpack.c.h.b16 %v4752
        %v6119 = vunpack.c.l.b16 %v4753
        %v6120 = vunpack.c.h.b16 %v4753
        %v6121 = vunpack.c.l.b16 %v4754
        %v6122 = vunpack.c.h.b16 %v4754
        %v6123 = vunpack.c.l.b16 %v4755
        %v6124 = vunpack.c.h.b16 %v4755
        %v6125 = vunpack.c.l.b16 %v4756
        %v6126 = vunpack.c.h.b16 %v4756
        %v6127 = vunpack.c.l.b16 %v4757
        %v6128 = vunpack.c.h.b16 %v4757
        %v6129 = vunpack.c.l.b16 %v4758
        %v6130 = vunpack.c.h.b16 %v4758
        %v6131 = vunpack.c.l.b16 %v4759
        %v6132 = vunpack.c.h.b16 %v4759
        %v6133 = vunpack.c.l.b16 %v4760
        %v6134 = vunpack.c.h.b16 %v4760
        %v6135 = vunpack.c.l.b16 %v4761
        %v6136 = vunpack.c.h.b16 %v4761
        %v6137 = vunpack.c.l.b16 %v4762
        %v6138 = vunpack.c.h.b16 %v4762
        %v6139 = vunpack.c.l.b16 %v4763
        %v6140 = vunpack.c.h.b16 %v4763
        %v6141 = vunpack.c.l.b16 %v4764
        %v6142 = vunpack.c.h.b16 %v4764
        %v6143 = vunpack.c.l.b16 %v4765
        %v6144 = vunpack.c.h.b16 %v4765
        %v6145 = vunpack.c.l.b16 %v4766
        %v6146 = vunpack.c.h.b16 %v4766
        %v6147 = vunpack.c.l.b16 %v4767
        %v6148 = vunpack.c.h.b16 %v4767
        %v6149 = vunpack.c.l.b16 %v4768
        %v6150 = vunpack.c.h.b16 %v4768
        %v6151 = vunpack.c.l.b16 %v4769
        %v6152 = vunpack.c.h.b16 %v4769
        %v6153 = vunpack.c.l.b16 %v4770
        %v6154 = vunpack.c.h.b16 %v4770
        %v6155 = vunpack.c.l.b16 %v4771
        %v6156 = vunpack.c.h.b16 %v4771
        %v6157 = vunpack.c.l.b16 %v4772
        %v6158 = vunpack.c.h.b16 %v4772
        %v6159 = vunpack.c.l.b16 %v4773
        %v6160 = vunpack.c.h.b16 %v4773
        %v6161 = vunpack.c.l.b16 %v4774
        %v6162 = vunpack.c.h.b16 %v4774
        %v6163 = vunpack.c.l.b16 %v4775
        %v6164 = vunpack.c.h.b16 %v4775
        %v6165 = vunpack.c.l.b16 %v4776
        %v6166 = vunpack.c.h.b16 %v4776
        %v6167 = vunpack.c.l.b16 %v4777
        %v6168 = vunpack.c.h.b16 %v4777
        %v6169 = vunpack.c.l.b16 %v4778
        %v6170 = vunpack.c.h.b16 %v4778
        %v6171 = vunpack.c.l.b16 %v4779
        %v6172 = vunpack.c.h.b16 %v4779
        %v6173 = vunpack.c.l.b16 %v4780
        %v6174 = vunpack.c.h.b16 %v4780
        %v6175 = vunpack.c.l.b16 %v4781
        %v6176 = vunpack.c.h.b16 %v4781
        %v6177 = vunpack.c.l.b16 %v4782
        %v6178 = vunpack.c.h.b16 %v4782
        %v6179 = vunpack.c.l.b16 %v4783
        %v6180 = vunpack.c.h.b16 %v4783
        %v6181 = vunpack.c.l.b16 %v4784
        %v6182 = vunpack.c.h.b16 %v4784
        %v6183 = vunpack.c.l.b16 %v4785
        %v6184 = vunpack.c.h.b16 %v4785
        %v6185 = vunpack.c.l.b16 %v4786
        %v6186 = vunpack.c.h.b16 %v4786
        %v6187 = vunpack.c.l.b16 %v4787
        %v6188 = vunpack.c.h.b16 %v4787
        %v6189 = vunpack.c.l.b16 %v4788
        %v6190 = vunpack.c.h.b16 %v4788
        %v6191 = vunpack.c.l.b16 %v4789
        %v6192 = vunpack.c.h.b16 %v4789
        %v6193 = vunpack.c.l.b16 %v4790
        %v6194 = vunpack.c.h.b16 %v4790
        %v6195 = vunpack.c.l.b16 %v4791
        %v6196 = vunpack.c.h.b16 %v4791
        %v6197 = vunpack.c.l.b16 %v4792
        %v6198 = vunpack.c.h.b16 %v4792
        %v6199 = vunpack.c.l.b16 %v4793
        %v6200 = vunpack.c.h.b16 %v4793
        %v6201 = vunpack.c.l.b16 %v4794
        %v6202 = vunpack.c.h.b16 %v4794
        %v6203 = vunpack.c.l.b16 %v4795
        %v6204 = vunpack.c.h.b16 %v4795
        %v6205 = vunpack.c.l.b16 %v4796
        %v6206 = vunpack.c.h.b16 %v4796
        %v6207 = vunpack.c.l.b16 %v4797
        %v6208 = vunpack.c.h.b16 %v4797
        %v6209 = vunpack.c.l.b16 %v4798
        %v6210 = vunpack.c.h.b16 %v4798
        %v6211 = vunpack.c.l.b16 %v4799
        %v6212 = vunpack.c.h.b16 %v4799
        %v6213 = vunpack.c.l.b16 %v4800
        %v6214 = vunpack.c.h.b16 %v4800
        %v6215 = vunpack.c.l.b16 %v4801
        %v6216 = vunpack.c.h.b16 %v4801
        %v6217 = vunpack.c.l.b16 %v4802
        %v6218 = vunpack.c.h.b16 %v4802
        %v6219 = vunpack.c.l.b16 %v4803
        %v6220 = vunpack.c.h.b16 %v4803
        %v6221 = vunpack.c.l.b16 %v4804
        %v6222 = vunpack.c.h.b16 %v4804
        %v6223 = vunpack.c.l.b16 %v4805
        %v6224 = vunpack.c.h.b16 %v4805
        %v6225 = vunpack.c.l.b16 %v4806
        %v6226 = vunpack.c.h.b16 %v4806
        %v6227 = vunpack.c.l.b16 %v4807
        %v6228 = vunpack.c.h.b16 %v4807
        %v6229 = vunpack.c.l.b16 %v4808
        %v6230 = vunpack.c.h.b16 %v4808
        %v6231 = vunpack.c.l.b16 %v4809
        %v6232 = vunpack.c.h.b16 %v4809
        %v6233 = vunpack.c.l.b16 %v4810
        %v6234 = vunpack.c.h.b16 %v4810
        %v6235 = vunpack.c.l.b16 %v4811
        %v6236 = vunpack.c.h.b16 %v4811
        %v6237 = vunpack.c.l.b16 %v4812
        %v6238 = vunpack.c.h.b16 %v4812
        %v6239 = vunpack.c.l.b16 %v4813
        %v6240 = vunpack.c.h.b16 %v4813
        %v6241 = vunpack.c.l.b16 %v4814
        %v6242 = vunpack.c.h.b16 %v4814
        %v6243 = vunpack.c.l.b16 %v4815
        %v6244 = vunpack.c.h.b16 %v4815
        %v6245 = vunpack.c.l.b16 %v4816
        %v6246 = vunpack.c.h.b16 %v4816
        %v6247 = vunpack.c.l.b16 %v4817
        %v6248 = vunpack.c.h.b16 %v4817
        %v6249 = vunpack.c.l.b16 %v4818
        %v6250 = vunpack.c.h.b16 %v4818
        %v6251 = vunpack.c.l.b16 %v4819
        %v6252 = vunpack.c.h.b16 %v4819
        %v6253 = vunpack.c.l.b16 %v4820
        %v6254 = vunpack.c.h.b16 %v4820
        %v6255 = vunpack.c.l.b16 %v4821
        %v6256 = vunpack.c.h.b16 %v4821
        %v6257 = vunpack.c.l.b16 %v4822
        %v6258 = vunpack.c.h.b16 %v4822
        %v6259 = vunpack.c.l.b16 %v4823
        %v6260 = vunpack.c.h.b16 %v4823
        %v6261 = vunpack.c.l.b16 %v4824
        %v6262 = vunpack.c.h.b16 %v4824
        %v6263 = vunpack.c.l.b16 %v4825
        %v6264 = vunpack.c.h.b16 %v4825
        %v6265 = vunpack.c.l.b16 %v4826
        %v6266 = vunpack.c.h.b16 %v4826
        %v6267 = vunpack.c.l.b16 %v4827
        %v6268 = vunpack.c.h.b16 %v4827
        %v6269 = vunpack.c.l.b16 %v4828
        %v6270 = vunpack.c.h.b16 %v4828
        %v6271 = vunpack.c.l.b16 %v4829
        %v6272 = vunpack.c.h.b16 %v4829
        %v6273 = vunpack.c.l.b16 %v4830
        %v6274 = vunpack.c.h.b16 %v4830
        %v6275 = vunpack.c.l.b16 %v4831
        %v6276 = vunpack.c.h.b16 %v4831
        %v6277 = vunpack.c.l.b16 %v4832
        %v6278 = vunpack.c.h.b16 %v4832
        %v6279 = vunpack.c.l.b16 %v4833
        %v6280 = vunpack.c.h.b16 %v4833
        %v6281 = vunpack.c.l.b16 %v4834
        %v6282 = vunpack.c.h.b16 %v4834
        %v6283 = vunpack.c.l.b16 %v4835
        %v6284 = vunpack.c.h.b16 %v4835
        %v6285 = vunpack.c.l.b16 %v4836
        %v6286 = vunpack.c.h.b16 %v4836
        %v6287 = vunpack.c.l.b16 %v4837
        %v6288 = vunpack.c.h.b16 %v4837
        %v6289 = vunpack.c.l.b16 %v4838
        %v6290 = vunpack.c.h.b16 %v4838
        %v6291 = vunpack.c.l.b16 %v4839
        %v6292 = vunpack.c.h.b16 %v4839
        %v6293 = vunpack.c.l.b16 %v4840
        %v6294 = vunpack.c.h.b16 %v4840
        %v6295 = vunpack.c.l.b16 %v4841
        %v6296 = vunpack.c.h.b16 %v4841
        %v6297 = vunpack.c.l.b16 %v4842
        %v6298 = vunpack.c.h.b16 %v4842
        %v6299 = vunpack.c.l.b16 %v4843
        %v6300 = vunpack.c.h.b16 %v4843
        %v6301 = vunpack.c.l.b16 %v4844
        %v6302 = vunpack.c.h.b16 %v4844
        %v6303 = vunpack.c.l.b16 %v4845
        %v6304 = vunpack.c.h.b16 %v4845
        %v6305 = vunpack.c.l.b16 %v4846
        %v6306 = vunpack.c.h.b16 %v4846
        %v6307 = vunpack.c.l.b16 %v4847
        %v6308 = vunpack.c.h.b16 %v4847
        %v6309 = vunpack.c.l.b16 %v4848
        %v6310 = vunpack.c.h.b16 %v4848
        %v6311 = vunpack.c.l.b16 %v4849
        %v6312 = vunpack.c.h.b16 %v4849
        %v6313 = vunpack.c.l.b16 %v4850
        %v6314 = vunpack.c.h.b16 %v4850
        %v6315 = vunpack.c.l.b16 %v4851
        %v6316 = vunpack.c.h.b16 %v4851
        %v6317 = vunpack.c.l.b16 %v4852
        %v6318 = vunpack.c.h.b16 %v4852
        %v6319 = vunpack.c.l.b16 %v4853
        %v6320 = vunpack.c.h.b16 %v4853
        %v6321 = vunpack.c.l.b16 %v4854
        %v6322 = vunpack.c.h.b16 %v4854
        %v6323 = vunpack.c.l.b16 %v4855
        %v6324 = vunpack.c.h.b16 %v4855
        %v6325 = vunpack.c.l.b16 %v4856
        %v6326 = vunpack.c.h.b16 %v4856
        %v6327 = vunpack.c.l.b16 %v4857
        %v6328 = vunpack.c.h.b16 %v4857
        %v6329 = vunpack.c.l.b16 %v4858
        %v6330 = vunpack.c.h.b16 %v4858
        %v6331 = vunpack.c.l.b16 %v4859
        %v6332 = vunpack.c.h.b16 %v4859
        %v6333 = vunpack.c.l.b16 %v4860
        %v6334 = vunpack.c.h.b16 %v4860
        %v6335 = vunpack.c.l.b16 %v4861
        %v6336 = vunpack.c.h.b16 %v4861
        %v6337 = vunpack.c.l.b16 %v4862
        %v6338 = vunpack.c.h.b16 %v4862
        %v6339 = vunpack.c.l.b16 %v4863
        %v6340 = vunpack.c.h.b16 %v4863
        %v6341 = vunpack.c.l.b16 %v4864
        %v6342 = vunpack.c.h.b16 %v4864
        %v6343 = vunpack.c.l.b16 %v4865
        %v6344 = vunpack.c.h.b16 %v4865
        %v6345 = vunpack.c.l.b16 %v4866
        %v6346 = vunpack.c.h.b16 %v4866
        %v6347 = vunpack.c.l.b16 %v4867
        %v6348 = vunpack.c.h.b16 %v4867
        %v6349 = vunpack.c.l.b16 %v4868
        %v6350 = vunpack.c.h.b16 %v4868
        %v6351 = vunpack.c.l.b16 %v4869
        %v6352 = vunpack.c.h.b16 %v4869
        %v6353 = vunpack.c.l.b16 %v4870
        %v6354 = vunpack.c.h.b16 %v4870
        %v6355 = vunpack.c.l.b16 %v4871
        %v6356 = vunpack.c.h.b16 %v4871
        %v6357 = vunpack.c.l.b16 %v4872
        %v6358 = vunpack.c.h.b16 %v4872
        %v6359 = vunpack.c.l.b16 %v4873
        %v6360 = vunpack.c.h.b16 %v4873
        %v6361 = vunpack.c.l.b16 %v4874
        %v6362 = vunpack.c.h.b16 %v4874
        %v6363 = vunpack.c.l.b16 %v4875
        %v6364 = vunpack.c.h.b16 %v4875
        %v6365 = vunpack.c.l.b16 %v4876
        %v6366 = vunpack.c.h.b16 %v4876
        %v6367 = vunpack.c.l.b16 %v4877
        %v6368 = vunpack.c.h.b16 %v4877
        %v6369 = vunpack.c.l.b16 %v4878
        %v6370 = vunpack.c.h.b16 %v4878
        %v6371 = vunpack.c.l.b16 %v4879
        %v6372 = vunpack.c.h.b16 %v4879
        %v6373 = vunpack.c.l.b16 %v4880
        %v6374 = vunpack.c.h.b16 %v4880
        %v6375 = vunpack.c.l.b16 %v4881
        %v6376 = vunpack.c.h.b16 %v4881
        %v6377 = vunpack.c.l.b16 %v4882
        %v6378 = vunpack.c.h.b16 %v4882
        %v6379 = vunpack.c.l.b16 %v4883
        %v6380 = vunpack.c.h.b16 %v4883
        %v6381 = vunpack.c.l.b16 %v4884
        %v6382 = vunpack.c.h.b16 %v4884
        %v6383 = vunpack.c.l.b16 %v4885
        %v6384 = vunpack.c.h.b16 %v4885
        %v6385 = vunpack.c.l.b16 %v4886
        %v6386 = vunpack.c.h.b16 %v4886
        %v6387 = vunpack.c.l.b16 %v4887
        %v6388 = vunpack.c.h.b16 %v4887
        %v6389 = vunpack.c.l.b16 %v4888
        %v6390 = vunpack.c.h.b16 %v4888
        %v6391 = vunpack.c.l.b16 %v4889
        %v6392 = vunpack.c.h.b16 %v4889
        %v6393 = vunpack.c.l.b16 %v4890
        %v6394 = vunpack.c.h.b16 %v4890
        %v6395 = vunpack.c.l.b16 %v4891
        %v6396 = vunpack.c.h.b16 %v4891
        %v6397 = vunpack.c.l.b16 %v4892
        %v6398 = vunpack.c.h.b16 %v4892
        %v6399 = vunpack.c.l.b16 %v4893
        %v6400 = vunpack.c.h.b16 %v4893
        %v6401 = vunpack.c.l.b16 %v4894
        %v6402 = vunpack.c.h.b16 %v4894
        %v6403 = vunpack.c.l.b16 %v4895
        %v6404 = vunpack.c.h.b16 %v4895
        %v6405 = vunpack.c.l.b16 %v4896
        %v6406 = vunpack.c.h.b16 %v4896
        %v6407 = vunpack.c.l.b16 %v4897
        %v6408 = vunpack.c.h.b16 %v4897
        %v6409 = vunpack.c.l.b16 %v4898
        %v6410 = vunpack.c.h.b16 %v4898
        %v6411 = vunpack.c.l.b16 %v4899
        %v6412 = vunpack.c.h.b16 %v4899
        %v6413 = vunpack.c.l.b16 %v4900
        %v6414 = vunpack.c.h.b16 %v4900
        %v6415 = vunpack.c.l.b16 %v4901
        %v6416 = vunpack.c.h.b16 %v4901
        %v6417 = vunpack.c.l.b16 %v4902
        %v6418 = vunpack.c.h.b16 %v4902
        %v6419 = vunpack.c.l.b16 %v4903
        %v6420 = vunpack.c.h.b16 %v4903
        %v6421 = vunpack.c.l.b16 %v4904
        %v6422 = vunpack.c.h.b16 %v4904
        %v6423 = vunpack.c.l.b16 %v4905
        %v6424 = vunpack.c.h.b16 %v4905
        %v6425 = vunpack.c.l.b16 %v4906
        %v6426 = vunpack.c.h.b16 %v4906
        %v6427 = vunpack.c.l.b16 %v4907
        %v6428 = vunpack.c.h.b16 %v4907
        %v6429 = vunpack.c.l.b16 %v4908
        %v6430 = vunpack.c.h.b16 %v4908
        %v6431 = vunpack.c.l.b16 %v4909
        %v6432 = vunpack.c.h.b16 %v4909
        %v6433 = vunpack.c.l.b16 %v4910
        %v6434 = vunpack.c.h.b16 %v4910
        %v6435 = vunpack.c.l.b16 %v4911
        %v6436 = vunpack.c.h.b16 %v4911
        %v6437 = vunpack.c.l.b16 %v4912
        %v6438 = vunpack.c.h.b16 %v4912
        %v6439 = vunpack.c.l.b16 %v4913
        %v6440 = vunpack.c.h.b16 %v4913
        %v6441 = vunpack.c.l.b16 %v4914
        %v6442 = vunpack.c.h.b16 %v4914
        %v6443 = vunpack.c.l.b16 %v4915
        %v6444 = vunpack.c.h.b16 %v4915
        %v6445 = vunpack.c.l.b16 %v4916
        %v6446 = vunpack.c.h.b16 %v4916
        %v6447 = vunpack.c.l.b16 %v4917
        %v6448 = vunpack.c.h.b16 %v4917
        %v6449 = vunpack.c.l.b16 %v4918
        %v6450 = vunpack.c.h.b16 %v4918
        %v6451 = vunpack.c.l.b16 %v4919
        %v6452 = vunpack.c.h.b16 %v4919
        %v6453 = vunpack.c.l.b16 %v4920
        %v6454 = vunpack.c.h.b16 %v4920
        %v6455 = vunpack.c.l.b16 %v4921
        %v6456 = vunpack.c.h.b16 %v4921
        %v6457 = vunpack.c.l.b16 %v4922
        %v6458 = vunpack.c.h.b16 %v4922
        %v6459 = vunpack.c.l.b16 %v4923
        %v6460 = vunpack.c.h.b16 %v4923
        %v6461 = vunpack.c.l.b16 %v4924
        %v6462 = vunpack.c.h.b16 %v4924
        %v6463 = vunpack.c.l.b16 %v4925
        %v6464 = vunpack.c.h.b16 %v4925
        %v6465 = vunpack.c.l.b16 %v4926
        %v6466 = vunpack.c.h.b16 %v4926
        %v6467 = vunpack.c.l.b16 %v4927
        %v6468 = vunpack.c.h.b16 %v4927
        %v6469 = vunpack.c.l.b16 %v4928
        %v6470 = vunpack.c.h.b16 %v4928
        %v6471 = vunpack.c.l.b16 %v4929
        %v6472 = vunpack.c.h.b16 %v4929
        %v6473 = vunpack.c.l.b16 %v4930
        %v6474 = vunpack.c.h.b16 %v4930
        %v6475 = vunpack.c.l.b16 %v4931
        %v6476 = vunpack.c.h.b16 %v4931
        %v6477 = vunpack.c.l.b16 %v4932
        %v6478 = vunpack.c.h.b16 %v4932
        %v6479 = vunpack.c.l.b16 %v4933
        %v6480 = vunpack.c.h.b16 %v4933
        %v6481 = vunpack.c.l.b16 %v4934
        %v6482 = vunpack.c.h.b16 %v4934
        %v6483 = vunpack.c.l.b16 %v4935
        %v6484 = vunpack.c.h.b16 %v4935
        %v6485 = vunpack.c.l.b16 %v4936
        %v6486 = vunpack.c.h.b16 %v4936
        %v6487 = vunpack.c.l.b16 %v4937
        %v6488 = vunpack.c.h.b16 %v4937
        %v6489 = vunpack.c.l.b16 %v4938
        %v6490 = vunpack.c.h.b16 %v4938
        %v6491 = vunpack.c.l.b16 %v4939
        %v6492 = vunpack.c.h.b16 %v4939
        %v6493 = vunpack.c.l.b16 %v4940
        %v6494 = vunpack.c.h.b16 %v4940
        %v6495 = vunpack.c.l.b16 %v4941
        %v6496 = vunpack.c.h.b16 %v4941
        %v6497 = vunpack.c.l.b16 %v4942
        %v6498 = vunpack.c.h.b16 %v4942
        %v6499 = vunpack.c.l.b16 %v4943
        %v6500 = vunpack.c.h.b16 %v4943
        %v6501 = vunpack.c.l.b16 %v4944
        %v6502 = vunpack.c.h.b16 %v4944
        %v6503 = vunpack.c.l.b16 %v4945
        %v6504 = vunpack.c.h.b16 %v4945
        %v6505 = vunpack.c.l.b16 %v4946
        %v6506 = vunpack.c.h.b16 %v4946
        %v6507 = vunpack.c.l.b16 %v4947
        %v6508 = vunpack.c.h.b16 %v4947
        %v6509 = vunpack.c.l.b16 %v4948
        %v6510 = vunpack.c.h.b16 %v4948
        %v6511 = vunpack.c.l.b16 %v4949
        %v6512 = vunpack.c.h.b16 %v4949
        %v6513 = vunpack.c.l.b16 %v4950
        %v6514 = vunpack.c.h.b16 %v4950
        %v6515 = vunpack.c.l.b16 %v4951
        %v6516 = vunpack.c.h.b16 %v4951
        %v6517 = vunpack.c.l.b16 %v4952
        %v6518 = vunpack.c.h.b16 %v4952
        %v6519 = vunpack.c.l.b16 %v4953
        %v6520 = vunpack.c.h.b16 %v4953
        %v6521 = vunpack.c.l.b16 %v4954
        %v6522 = vunpack.c.h.b16 %v4954
        %v6523 = vunpack.c.l.b16 %v4955
        %v6524 = vunpack.c.h.b16 %v4955
        %v6525 = vunpack.c.l.b16 %v4956
        %v6526 = vunpack.c.h.b16 %v4956
        %v6527 = vunpack.c.l.b16 %v4957
        %v6528 = vunpack.c.h.b16 %v4957
        %v6529 = vunpack.c.l.b16 %v4958
        %v6530 = vunpack.c.h.b16 %v4958
        %v6531 = vunpack.c.l.b16 %v4959
        %v6532 = vunpack.c.h.b16 %v4959
        %v6533 = vunpack.c.l.b16 %v4960
        %v6534 = vunpack.c.h.b16 %v4960
        %v6535 = vunpack.c.l.b16 %v4961
        %v6536 = vunpack.c.h.b16 %v4961
        %v6537 = vunpack.c.l.b16 %v4962
        %v6538 = vunpack.c.h.b16 %v4962
        %v6539 = vunpack.c.l.b16 %v4963
        %v6540 = vunpack.c.h.b16 %v4963
        %v6541 = vunpack.c.l.b16 %v4964
        %v6542 = vunpack.c.h.b16 %v4964
        %v6543 = vpack.c.b16 %v5527, %v5519
        %v6544 = vpack.c.b16 %v5528, %v5520
        %v6545 = vpack.c.b16 %v5529, %v5521
        %v6546 = vpack.c.b16 %v5530, %v5522
        %v6547 = vpack.c.b16 %v5531, %v5523
        %v6548 = vpack.c.b16 %v5532, %v5524
        %v6549 = vpack.c.b16 %v5533, %v5525
        %v6550 = vpack.c.b16 %v5534, %v5526
        %v6551 = vpack.c.b16 %v5543, %v5535
        %v6552 = vpack.c.b16 %v5544, %v5536
        %v6553 = vpack.c.b16 %v5545, %v5537
        %v6554 = vpack.c.b16 %v5546, %v5538
        %v6555 = vpack.c.b16 %v5547, %v5539
        %v6556 = vpack.c.b16 %v5548, %v5540
        %v6557 = vpack.c.b16 %v5549, %v5541
        %v6558 = vpack.c.b16 %v5550, %v5542
        %v6559 = vpack.c.b16 %v5559, %v5551
        %v6560 = vpack.c.b16 %v5560, %v5552
        %v6561 = vpack.c.b16 %v5561, %v5553
        %v6562 = vpack.c.b16 %v5562, %v5554
        %v6563 = vpack.c.b16 %v5563, %v5555
        %v6564 = vpack.c.b16 %v5564, %v5556
        %v6565 = vpack.c.b16 %v5565, %v5557
        %v6566 = vpack.c.b16 %v5566, %v5558
        %v6567 = vpack.c.b16 %v5575, %v5567
        %v6568 = vpack.c.b16 %v5576, %v5568
        %v6569 = vpack.c.b16 %v5577, %v5569
        %v6570 = vpack.c.b16 %v5578, %v5570
        %v6571 = vpack.c.b16 %v5579, %v5571
        %v6572 = vpack.c.b16 %v5580, %v5572
        %v6573 = vpack.c.b16 %v5581, %v5573
        %v6574 = vpack.c.b16 %v5582, %v5574
        %v6575 = vpack.c.b16 %v5591, %v5583
        %v6576 = vpack.c.b16 %v5592, %v5584
        %v6577 = vpack.c.b16 %v5593, %v5585
        %v6578 = vpack.c.b16 %v5594, %v5586
        %v6579 = vpack.c.b16 %v5595, %v5587
        %v6580 = vpack.c.b16 %v5596, %v5588
        %v6581 = vpack.c.b16 %v5597, %v5589
        %v6582 = vpack.c.b16 %v5598, %v5590
        %v6583 = vpack.c.b16 %v5607, %v5599
        %v6584 = vpack.c.b16 %v5608, %v5600
        %v6585 = vpack.c.b16 %v5609, %v5601
        %v6586 = vpack.c.b16 %v5610, %v5602
        %v6587 = vpack.c.b16 %v5611, %v5603
        %v6588 = vpack.c.b16 %v5612, %v5604
        %v6589 = vpack.c.b16 %v5613, %v5605
        %v6590 = vpack.c.b16 %v5614, %v5606
        %v6591 = vpack.c.b16 %v5623, %v5615
        %v6592 = vpack.c.b16 %v5624, %v5616
        %v6593 = vpack.c.b16 %v5625, %v5617
        %v6594 = vpack.c.b16 %v5626, %v5618
        %v6595 = vpack.c.b16 %v5627, %v5619
        %v6596 = vpack.c.b16 %v5628, %v5620
        %v6597 = vpack.c.b16 %v5629, %v5621
        %v6598 = vpack.c.b16 %v5630, %v5622
        %v6599 = vpack.c.b16 %v5639, %v5631
        %v6600 = vpack.c.b16 %v5640, %v5632
        %v6601 = vpack.c.b16 %v5641, %v5633
        %v6602 = vpack.c.b16 %v5642, %v5634
        %v6603 = vpack.c.b16 %v5643, %v5635
        %v6604 = vpack.c.b16 %v5644, %v5636
        %v6605 = vpack.c.b16 %v5645, %v5637
        %v6606 = vpack.c.b16 %v5646, %v5638
        %v6607 = vpack.c.b16 %v5655, %v5647
        %v6608 = vpack.c.b16 %v5656, %v5648
        %v6609 = vpack.c.b16 %v5657, %v5649
        %v6610 = vpack.c.b16 %v5658, %v5650
        %v6611 = vpack.c.b16 %v5659, %v5651
        %v6612 = vpack.c.b16 %v5660, %v5652
        %v6613 = vpack.c.b16 %v5661, %v5653
        %v6614 = vpack.c.b16 %v5662, %v5654
        %v6615 = vpack.c.b16 %v5671, %v5663
        %v6616 = vpack.c.b16 %v5672, %v5664
        %v6617 = vpack.c.b16 %v5673, %v5665
        %v6618 = vpack.c.b16 %v5674, %v5666
        %v6619 = vpack.c.b16 %v5675, %v5667
        %v6620 = vpack.c.b16 %v5676, %v5668
        %v6621 = vpack.c.b16 %v5677, %v5669
        %v6622 = vpack.c.b16 %v5678, %v5670
        %v6623 = vpack.c.b16 %v5687, %v5679
        %v6624 = vpack.c.b16 %v5688, %v5680
        %v6625 = vpack.c.b16 %v5689, %v5681
        %v6626 = vpack.c.b16 %v5690, %v5682
        %v6627 = vpack.c.b16 %v5691, %v5683
        %v6628 = vpack.c.b16 %v5692, %v5684
        %v6629 = vpack.c.b16 %v5693, %v5685
        %v6630 = vpack.c.b16 %v5694, %v5686
        %v6631 = vpack.c.b16 %v5703, %v5695
        %v6632 = vpack.c.b16 %v5704, %v5696
        %v6633 = vpack.c.b16 %v5705, %v5697
        %v6634 = vpack.c.b16 %v5706, %v5698
        %v6635 = vpack.c.b16 %v5707, %v5699
        %v6636 = vpack.c.b16 %v5708, %v5700
        %v6637 = vpack.c.b16 %v5709, %v5701
        %v6638 = vpack.c.b16 %v5710, %v5702
        %v6639 = vpack.c.b16 %v5719, %v5711
        %v6640 = vpack.c.b16 %v5720, %v5712
        %v6641 = vpack.c.b16 %v5721, %v5713
        %v6642 = vpack.c.b16 %v5722, %v5714
        %v6643 = vpack.c.b16 %v5723, %v5715
        %v6644 = vpack.c.b16 %v5724, %v5716
        %v6645 = vpack.c.b16 %v5725, %v5717
        %v6646 = vpack.c.b16 %v5726, %v5718
        %v6647 = vpack.c.b16 %v5735, %v5727
        %v6648 = vpack.c.b16 %v5736, %v5728
        %v6649 = vpack.c.b16 %v5737, %v5729
        %v6650 = vpack.c.b16 %v5738, %v5730
        %v6651 = vpack.c.b16 %v5739, %v5731
        %v6652 = vpack.c.b16 %v5740, %v5732
        %v6653 = vpack.c.b16 %v5741, %v5733
        %v6654 = vpack.c.b16 %v5742, %v5734
        %v6655 = vpack.c.b16 %v5751, %v5743
        %v6656 = vpack.c.b16 %v5752, %v5744
        %v6657 = vpack.c.b16 %v5753, %v5745
        %v6658 = vpack.c.b16 %v5754, %v5746
        %v6659 = vpack.c.b16 %v5755, %v5747
        %v6660 = vpack.c.b16 %v5756, %v5748
        %v6661 = vpack.c.b16 %v5757, %v5749
        %v6662 = vpack.c.b16 %v5758, %v5750
        %v6663 = vpack.c.b16 %v5767, %v5759
        %v6664 = vpack.c.b16 %v5768, %v5760
        %v6665 = vpack.c.b16 %v5769, %v5761
        %v6666 = vpack.c.b16 %v5770, %v5762
        %v6667 = vpack.c.b16 %v5771, %v5763
        %v6668 = vpack.c.b16 %v5772, %v5764
        %v6669 = vpack.c.b16 %v5773, %v5765
        %v6670 = vpack.c.b16 %v5774, %v5766
        %v6671 = vpack.c.b16 %v5783, %v5775
        %v6672 = vpack.c.b16 %v5784, %v5776
        %v6673 = vpack.c.b16 %v5785, %v5777
        %v6674 = vpack.c.b16 %v5786, %v5778
        %v6675 = vpack.c.b16 %v5787, %v5779
        %v6676 = vpack.c.b16 %v5788, %v5780
        %v6677 = vpack.c.b16 %v5789, %v5781
        %v6678 = vpack.c.b16 %v5790, %v5782
        %v6679 = vpack.c.b16 %v5799, %v5791
        %v6680 = vpack.c.b16 %v5800, %v5792
        %v6681 = vpack.c.b16 %v5801, %v5793
        %v6682 = vpack.c.b16 %v5802, %v5794
        %v6683 = vpack.c.b16 %v5803, %v5795
        %v6684 = vpack.c.b16 %v5804, %v5796
        %v6685 = vpack.c.b16 %v5805, %v5797
        %v6686 = vpack.c.b16 %v5806, %v5798
        %v6687 = vpack.c.b16 %v5815, %v5807
        %v6688 = vpack.c.b16 %v5816, %v5808
        %v6689 = vpack.c.b16 %v5817, %v5809
        %v6690 = vpack.c.b16 %v5818, %v5810
        %v6691 = vpack.c.b16 %v5819, %v5811
        %v6692 = vpack.c.b16 %v5820, %v5812
        %v6693 = vpack.c.b16 %v5821, %v5813
        %v6694 = vpack.c.b16 %v5822, %v5814
        %v6695 = vpack.c.b16 %v5831, %v5823
        %v6696 = vpack.c.b16 %v5832, %v5824
        %v6697 = vpack.c.b16 %v5833, %v5825
        %v6698 = vpack.c.b16 %v5834, %v5826
        %v6699 = vpack.c.b16 %v5835, %v5827
        %v6700 = vpack.c.b16 %v5836, %v5828
        %v6701 = vpack.c.b16 %v5837, %v5829
        %v6702 = vpack.c.b16 %v5838, %v5830
        %v6703 = vpack.c.b16 %v5847, %v5839
        %v6704 = vpack.c.b16 %v5848, %v5840
        %v6705 = vpack.c.b16 %v5849, %v5841
        %v6706 = vpack.c.b16 %v5850, %v5842
        %v6707 = vpack.c.b16 %v5851, %v5843
        %v6708 = vpack.c.b16 %v5852, %v5844
        %v6709 = vpack.c.b16 %v5853, %v5845
        %v6710 = vpack.c.b16 %v5854, %v5846
        %v6711 = vpack.c.b16 %v5863, %v5855
        %v6712 = vpack.c.b16 %v5864, %v5856
        %v6713 = vpack.c.b16 %v5865, %v5857
        %v6714 = vpack.c.b16 %v5866, %v5858
        %v6715 = vpack.c.b16 %v5867, %v5859
        %v6716 = vpack.c.b16 %v5868, %v5860
        %v6717 = vpack.c.b16 %v5869, %v5861
        %v6718 = vpack.c.b16 %v5870, %v5862
        %v6719 = vpack.c.b16 %v5879, %v5871
        %v6720 = vpack.c.b16 %v5880, %v5872
        %v6721 = vpack.c.b16 %v5881, %v5873
        %v6722 = vpack.c.b16 %v5882, %v5874
        %v6723 = vpack.c.b16 %v5883, %v5875
        %v6724 = vpack.c.b16 %v5884, %v5876
        %v6725 = vpack.c.b16 %v5885, %v5877
        %v6726 = vpack.c.b16 %v5886, %v5878
        %v6727 = vpack.c.b16 %v5895, %v5887
        %v6728 = vpack.c.b16 %v5896, %v5888
        %v6729 = vpack.c.b16 %v5897, %v5889
        %v6730 = vpack.c.b16 %v5898, %v5890
        %v6731 = vpack.c.b16 %v5899, %v5891
        %v6732 = vpack.c.b16 %v5900, %v5892
        %v6733 = vpack.c.b16 %v5901, %v5893
        %v6734 = vpack.c.b16 %v5902, %v5894
        %v6735 = vpack.c.b16 %v5911, %v5903
        %v6736 = vpack.c.b16 %v5912, %v5904
        %v6737 = vpack.c.b16 %v5913, %v5905
        %v6738 = vpack.c.b16 %v5914, %v5906
        %v6739 = vpack.c.b16 %v5915, %v5907
        %v6740 = vpack.c.b16 %v5916, %v5908
        %v6741 = vpack.c.b16 %v5917, %v5909
        %v6742 = vpack.c.b16 %v5918, %v5910
        %v6743 = vpack.c.b16 %v5927, %v5919
        %v6744 = vpack.c.b16 %v5928, %v5920
        %v6745 = vpack.c.b16 %v5929, %v5921
        %v6746 = vpack.c.b16 %v5930, %v5922
        %v6747 = vpack.c.b16 %v5931, %v5923
        %v6748 = vpack.c.b16 %v5932, %v5924
        %v6749 = vpack.c.b16 %v5933, %v5925
        %v6750 = vpack.c.b16 %v5934, %v5926
        %v6751 = vpack.c.b16 %v5943, %v5935
        %v6752 = vpack.c.b16 %v5944, %v5936
        %v6753 = vpack.c.b16 %v5945, %v5937
        %v6754 = vpack.c.b16 %v5946, %v5938
        %v6755 = vpack.c.b16 %v5947, %v5939
        %v6756 = vpack.c.b16 %v5948, %v5940
        %v6757 = vpack.c.b16 %v5949, %v5941
        %v6758 = vpack.c.b16 %v5950, %v5942
        %v6759 = vpack.c.b16 %v5959, %v5951
        %v6760 = vpack.c.b16 %v5960, %v5952
        %v6761 = vpack.c.b16 %v5961, %v5953
        %v6762 = vpack.c.b16 %v5962, %v5954
        %v6763 = vpack.c.b16 %v5963, %v5955
        %v6764 = vpack.c.b16 %v5964, %v5956
        %v6765 = vpack.c.b16 %v5965, %v5957
        %v6766 = vpack.c.b16 %v5966, %v5958
        %v6767 = vpack.c.b16 %v5975, %v5967
        %v6768 = vpack.c.b16 %v5976, %v5968
        %v6769 = vpack.c.b16 %v5977, %v5969
        %v6770 = vpack.c.b16 %v5978, %v5970
        %v6771 = vpack.c.b16 %v5979, %v5971
        %v6772 = vpack.c.b16 %v5980, %v5972
        %v6773 = vpack.c.b16 %v5981, %v5973
        %v6774 = vpack.c.b16 %v5982, %v5974
        %v6775 = vpack.c.b16 %v5991, %v5983
        %v6776 = vpack.c.b16 %v5992, %v5984
        %v6777 = vpack.c.b16 %v5993, %v5985
        %v6778 = vpack.c.b16 %v5994, %v5986
        %v6779 = vpack.c.b16 %v5995, %v5987
        %v6780 = vpack.c.b16 %v5996, %v5988
        %v6781 = vpack.c.b16 %v5997, %v5989
        %v6782 = vpack.c.b16 %v5998, %v5990
        %v6783 = vpack.c.b16 %v6007, %v5999
        %v6784 = vpack.c.b16 %v6008, %v6000
        %v6785 = vpack.c.b16 %v6009, %v6001
        %v6786 = vpack.c.b16 %v6010, %v6002
        %v6787 = vpack.c.b16 %v6011, %v6003
        %v6788 = vpack.c.b16 %v6012, %v6004
        %v6789 = vpack.c.b16 %v6013, %v6005
        %v6790 = vpack.c.b16 %v6014, %v6006
        %v6791 = vpack.c.b16 %v6023, %v6015
        %v6792 = vpack.c.b16 %v6024, %v6016
        %v6793 = vpack.c.b16 %v6025, %v6017
        %v6794 = vpack.c.b16 %v6026, %v6018
        %v6795 = vpack.c.b16 %v6027, %v6019
        %v6796 = vpack.c.b16 %v6028, %v6020
        %v6797 = vpack.c.b16 %v6029, %v6021
        %v6798 = vpack.c.b16 %v6030, %v6022
        %v6799 = vpack.c.b16 %v6039, %v6031
        %v6800 = vpack.c.b16 %v6040, %v6032
        %v6801 = vpack.c.b16 %v6041, %v6033
        %v6802 = vpack.c.b16 %v6042, %v6034
        %v6803 = vpack.c.b16 %v6043, %v6035
        %v6804 = vpack.c.b16 %v6044, %v6036
        %v6805 = vpack.c.b16 %v6045, %v6037
        %v6806 = vpack.c.b16 %v6046, %v6038
        %v6807 = vpack.c.b16 %v6055, %v6047
        %v6808 = vpack.c.b16 %v6056, %v6048
        %v6809 = vpack.c.b16 %v6057, %v6049
        %v6810 = vpack.c.b16 %v6058, %v6050
        %v6811 = vpack.c.b16 %v6059, %v6051
        %v6812 = vpack.c.b16 %v6060, %v6052
        %v6813 = vpack.c.b16 %v6061, %v6053
        %v6814 = vpack.c.b16 %v6062, %v6054
        %v6815 = vpack.c.b16 %v6071, %v6063
        %v6816 = vpack.c.b16 %v6072, %v6064
        %v6817 = vpack.c.b16 %v6073, %v6065
        %v6818 = vpack.c.b16 %v6074, %v6066
        %v6819 = vpack.c.b16 %v6075, %v6067
        %v6820 = vpack.c.b16 %v6076, %v6068
        %v6821 = vpack.c.b16 %v6077, %v6069
        %v6822 = vpack.c.b16 %v6078, %v6070
        %v6823 = vpack.c.b16 %v6087, %v6079
        %v6824 = vpack.c.b16 %v6088, %v6080
        %v6825 = vpack.c.b16 %v6089, %v6081
        %v6826 = vpack.c.b16 %v6090, %v6082
        %v6827 = vpack.c.b16 %v6091, %v6083
        %v6828 = vpack.c.b16 %v6092, %v6084
        %v6829 = vpack.c.b16 %v6093, %v6085
        %v6830 = vpack.c.b16 %v6094, %v6086
        %v6831 = vpack.c.b16 %v6103, %v6095
        %v6832 = vpack.c.b16 %v6104, %v6096
        %v6833 = vpack.c.b16 %v6105, %v6097
        %v6834 = vpack.c.b16 %v6106, %v6098
        %v6835 = vpack.c.b16 %v6107, %v6099
        %v6836 = vpack.c.b16 %v6108, %v6100
        %v6837 = vpack.c.b16 %v6109, %v6101
        %v6838 = vpack.c.b16 %v6110, %v6102
        %v6839 = vpack.c.b16 %v6119, %v6111
        %v6840 = vpack.c.b16 %v6120, %v6112
        %v6841 = vpack.c.b16 %v6121, %v6113
        %v6842 = vpack.c.b16 %v6122, %v6114
        %v6843 = vpack.c.b16 %v6123, %v6115
        %v6844 = vpack.c.b16 %v6124, %v6116
        %v6845 = vpack.c.b16 %v6125, %v6117
        %v6846 = vpack.c.b16 %v6126, %v6118
        %v6847 = vpack.c.b16 %v6135, %v6127
        %v6848 = vpack.c.b16 %v6136, %v6128
        %v6849 = vpack.c.b16 %v6137, %v6129
        %v6850 = vpack.c.b16 %v6138, %v6130
        %v6851 = vpack.c.b16 %v6139, %v6131
        %v6852 = vpack.c.b16 %v6140, %v6132
        %v6853 = vpack.c.b16 %v6141, %v6133
        %v6854 = vpack.c.b16 %v6142, %v6134
        %v6855 = vpack.c.b16 %v6151, %v6143
        %v6856 = vpack.c.b16 %v6152, %v6144
        %v6857 = vpack.c.b16 %v6153, %v6145
        %v6858 = vpack.c.b16 %v6154, %v6146
        %v6859 = vpack.c.b16 %v6155, %v6147
        %v6860 = vpack.c.b16 %v6156, %v6148
        %v6861 = vpack.c.b16 %v6157, %v6149
        %v6862 = vpack.c.b16 %v6158, %v6150
        %v6863 = vpack.c.b16 %v6167, %v6159
        %v6864 = vpack.c.b16 %v6168, %v6160
        %v6865 = vpack.c.b16 %v6169, %v6161
        %v6866 = vpack.c.b16 %v6170, %v6162
        %v6867 = vpack.c.b16 %v6171, %v6163
        %v6868 = vpack.c.b16 %v6172, %v6164
        %v6869 = vpack.c.b16 %v6173, %v6165
        %v6870 = vpack.c.b16 %v6174, %v6166
        %v6871 = vpack.c.b16 %v6183, %v6175
        %v6872 = vpack.c.b16 %v6184, %v6176
        %v6873 = vpack.c.b16 %v6185, %v6177
        %v6874 = vpack.c.b16 %v6186, %v6178
        %v6875 = vpack.c.b16 %v6187, %v6179
        %v6876 = vpack.c.b16 %v6188, %v6180
        %v6877 = vpack.c.b16 %v6189, %v6181
        %v6878 = vpack.c.b16 %v6190, %v6182
        %v6879 = vpack.c.b16 %v6199, %v6191
        %v6880 = vpack.c.b16 %v6200, %v6192
        %v6881 = vpack.c.b16 %v6201, %v6193
        %v6882 = vpack.c.b16 %v6202, %v6194
        %v6883 = vpack.c.b16 %v6203, %v6195
        %v6884 = vpack.c.b16 %v6204, %v6196
        %v6885 = vpack.c.b16 %v6205, %v6197
        %v6886 = vpack.c.b16 %v6206, %v6198
        %v6887 = vpack.c.b16 %v6215, %v6207
        %v6888 = vpack.c.b16 %v6216, %v6208
        %v6889 = vpack.c.b16 %v6217, %v6209
        %v6890 = vpack.c.b16 %v6218, %v6210
        %v6891 = vpack.c.b16 %v6219, %v6211
        %v6892 = vpack.c.b16 %v6220, %v6212
        %v6893 = vpack.c.b16 %v6221, %v6213
        %v6894 = vpack.c.b16 %v6222, %v6214
        %v6895 = vpack.c.b16 %v6231, %v6223
        %v6896 = vpack.c.b16 %v6232, %v6224
        %v6897 = vpack.c.b16 %v6233, %v6225
        %v6898 = vpack.c.b16 %v6234, %v6226
        %v6899 = vpack.c.b16 %v6235, %v6227
        %v6900 = vpack.c.b16 %v6236, %v6228
        %v6901 = vpack.c.b16 %v6237, %v6229
        %v6902 = vpack.c.b16 %v6238, %v6230
        %v6903 = vpack.c.b16 %v6247, %v6239
        %v6904 = vpack.c.b16 %v6248, %v6240
        %v6905 = vpack.c.b16 %v6249, %v6241
        %v6906 = vpack.c.b16 %v6250, %v6242
        %v6907 = vpack.c.b16 %v6251, %v6243
        %v6908 = vpack.c.b16 %v6252, %v6244
        %v6909 = vpack.c.b16 %v6253, %v6245
        %v6910 = vpack.c.b16 %v6254, %v6246
        %v6911 = vpack.c.b16 %v6263, %v6255
        %v6912 = vpack.c.b16 %v6264, %v6256
        %v6913 = vpack.c.b16 %v6265, %v6257
        %v6914 = vpack.c.b16 %v6266, %v6258
        %v6915 = vpack.c.b16 %v6267, %v6259
        %v6916 = vpack.c.b16 %v6268, %v6260
        %v6917 = vpack.c.b16 %v6269, %v6261
        %v6918 = vpack.c.b16 %v6270, %v6262
        %v6919 = vpack.c.b16 %v6279, %v6271
        %v6920 = vpack.c.b16 %v6280, %v6272
        %v6921 = vpack.c.b16 %v6281, %v6273
        %v6922 = vpack.c.b16 %v6282, %v6274
        %v6923 = vpack.c.b16 %v6283, %v6275
        %v6924 = vpack.c.b16 %v6284, %v6276
        %v6925 = vpack.c.b16 %v6285, %v6277
        %v6926 = vpack.c.b16 %v6286, %v6278
        %v6927 = vpack.c.b16 %v6295, %v6287
        %v6928 = vpack.c.b16 %v6296, %v6288
        %v6929 = vpack.c.b16 %v6297, %v6289
        %v6930 = vpack.c.b16 %v6298, %v6290
        %v6931 = vpack.c.b16 %v6299, %v6291
        %v6932 = vpack.c.b16 %v6300, %v6292
        %v6933 = vpack.c.b16 %v6301, %v6293
        %v6934 = vpack.c.b16 %v6302, %v6294
        %v6935 = vpack.c.b16 %v6311, %v6303
        %v6936 = vpack.c.b16 %v6312, %v6304
        %v6937 = vpack.c.b16 %v6313, %v6305
        %v6938 = vpack.c.b16 %v6314, %v6306
        %v6939 = vpack.c.b16 %v6315, %v6307
        %v6940 = vpack.c.b16 %v6316, %v6308
        %v6941 = vpack.c.b16 %v6317, %v6309
        %v6942 = vpack.c.b16 %v6318, %v6310
        %v6943 = vpack.c.b16 %v6327, %v6319
        %v6944 = vpack.c.b16 %v6328, %v6320
        %v6945 = vpack.c.b16 %v6329, %v6321
        %v6946 = vpack.c.b16 %v6330, %v6322
        %v6947 = vpack.c.b16 %v6331, %v6323
        %v6948 = vpack.c.b16 %v6332, %v6324
        %v6949 = vpack.c.b16 %v6333, %v6325
        %v6950 = vpack.c.b16 %v6334, %v6326
        %v6951 = vpack.c.b16 %v6343, %v6335
        %v6952 = vpack.c.b16 %v6344, %v6336
        %v6953 = vpack.c.b16 %v6345, %v6337
        %v6954 = vpack.c.b16 %v6346, %v6338
        %v6955 = vpack.c.b16 %v6347, %v6339
        %v6956 = vpack.c.b16 %v6348, %v6340
        %v6957 = vpack.c.b16 %v6349, %v6341
        %v6958 = vpack.c.b16 %v6350, %v6342
        %v6959 = vpack.c.b16 %v6359, %v6351
        %v6960 = vpack.c.b16 %v6360, %v6352
        %v6961 = vpack.c.b16 %v6361, %v6353
        %v6962 = vpack.c.b16 %v6362, %v6354
        %v6963 = vpack.c.b16 %v6363, %v6355
        %v6964 = vpack.c.b16 %v6364, %v6356
        %v6965 = vpack.c.b16 %v6365, %v6357
        %v6966 = vpack.c.b16 %v6366, %v6358
        %v6967 = vpack.c.b16 %v6375, %v6367
        %v6968 = vpack.c.b16 %v6376, %v6368
        %v6969 = vpack.c.b16 %v6377, %v6369
        %v6970 = vpack.c.b16 %v6378, %v6370
        %v6971 = vpack.c.b16 %v6379, %v6371
        %v6972 = vpack.c.b16 %v6380, %v6372
        %v6973 = vpack.c.b16 %v6381, %v6373
        %v6974 = vpack.c.b16 %v6382, %v6374
        %v6975 = vpack.c.b16 %v6391, %v6383
        %v6976 = vpack.c.b16 %v6392, %v6384
        %v6977 = vpack.c.b16 %v6393, %v6385
        %v6978 = vpack.c.b16 %v6394, %v6386
        %v6979 = vpack.c.b16 %v6395, %v6387
        %v6980 = vpack.c.b16 %v6396, %v6388
        %v6981 = vpack.c.b16 %v6397, %v6389
        %v6982 = vpack.c.b16 %v6398, %v6390
        %v6983 = vpack.c.b16 %v6407, %v6399
        %v6984 = vpack.c.b16 %v6408, %v6400
        %v6985 = vpack.c.b16 %v6409, %v6401
        %v6986 = vpack.c.b16 %v6410, %v6402
        %v6987 = vpack.c.b16 %v6411, %v6403
        %v6988 = vpack.c.b16 %v6412, %v6404
        %v6989 = vpack.c.b16 %v6413, %v6405
        %v6990 = vpack.c.b16 %v6414, %v6406
        %v6991 = vpack.c.b16 %v6423, %v6415
        %v6992 = vpack.c.b16 %v6424, %v6416
        %v6993 = vpack.c.b16 %v6425, %v6417
        %v6994 = vpack.c.b16 %v6426, %v6418
        %v6995 = vpack.c.b16 %v6427, %v6419
        %v6996 = vpack.c.b16 %v6428, %v6420
        %v6997 = vpack.c.b16 %v6429, %v6421
        %v6998 = vpack.c.b16 %v6430, %v6422
        %v6999 = vpack.c.b16 %v6439, %v6431
        %v7000 = vpack.c.b16 %v6440, %v6432
        %v7001 = vpack.c.b16 %v6441, %v6433
        %v7002 = vpack.c.b16 %v6442, %v6434
        %v7003 = vpack.c.b16 %v6443, %v6435
        %v7004 = vpack.c.b16 %v6444, %v6436
        %v7005 = vpack.c.b16 %v6445, %v6437
        %v7006 = vpack.c.b16 %v6446, %v6438
        %v7007 = vpack.c.b16 %v6455, %v6447
        %v7008 = vpack.c.b16 %v6456, %v6448
        %v7009 = vpack.c.b16 %v6457, %v6449
        %v7010 = vpack.c.b16 %v6458, %v6450
        %v7011 = vpack.c.b16 %v6459, %v6451
        %v7012 = vpack.c.b16 %v6460, %v6452
        %v7013 = vpack.c.b16 %v6461, %v6453
        %v7014 = vpack.c.b16 %v6462, %v6454
        %v7015 = vpack.c.b16 %v6471, %v6463
        %v7016 = vpack.c.b16 %v6472, %v6464
        %v7017 = vpack.c.b16 %v6473, %v6465
        %v7018 = vpack.c.b16 %v6474, %v6466
        %v7019 = vpack.c.b16 %v6475, %v6467
        %v7020 = vpack.c.b16 %v6476, %v6468
        %v7021 = vpack.c.b16 %v6477, %v6469
        %v7022 = vpack.c.b16 %v6478, %v6470
        %v7023 = vpack.c.b16 %v6487, %v6479
        %v7024 = vpack.c.b16 %v6488, %v6480
        %v7025 = vpack.c.b16 %v6489, %v6481
        %v7026 = vpack.c.b16 %v6490, %v6482
        %v7027 = vpack.c.b16 %v6491, %v6483
        %v7028 = vpack.c.b16 %v6492, %v6484
        %v7029 = vpack.c.b16 %v6493, %v6485
        %v7030 = vpack.c.b16 %v6494, %v6486
        %v7031 = vpack.c.b16 %v6503, %v6495
        %v7032 = vpack.c.b16 %v6504, %v6496
        %v7033 = vpack.c.b16 %v6505, %v6497
        %v7034 = vpack.c.b16 %v6506, %v6498
        %v7035 = vpack.c.b16 %v6507, %v6499
        %v7036 = vpack.c.b16 %v6508, %v6500
        %v7037 = vpack.c.b16 %v6509, %v6501
        %v7038 = vpack.c.b16 %v6510, %v6502
        %v7039 = vpack.c.b16 %v6519, %v6511
        %v7040 = vpack.c.b16 %v6520, %v6512
        %v7041 = vpack.c.b16 %v6521, %v6513
        %v7042 = vpack.c.b16 %v6522, %v6514
        %v7043 = vpack.c.b16 %v6523, %v6515
        %v7044 = vpack.c.b16 %v6524, %v6516
        %v7045 = vpack.c.b16 %v6525, %v6517
        %v7046 = vpack.c.b16 %v6526, %v6518
        %v7047 = vpack.c.b16 %v6535, %v6527
        %v7048 = vpack.c.b16 %v6536, %v6528
        %v7049 = vpack.c.b16 %v6537, %v6529
        %v7050 = vpack.c.b16 %v6538, %v6530
        %v7051 = vpack.c.b16 %v6539, %v6531
        %v7052 = vpack.c.b16 %v6540, %v6532
        %v7053 = vpack.c.b16 %v6541, %v6533
        %v7054 = vpack.c.b16 %v6542, %v6534
        %7567 = vmatprep.subr.bf16.mxu0 %v6600
        %7568 = vmatpush1.bf16.msra.mxu0 %v6599
        %7569 = vmatprep.subr.bf16.mxu0 %v6592
        %7570 = vmatpush1.bf16.msra.mxu0 %v6591
        %7571 = vmatprep.subr.bf16.mxu0 %v6584
        %7572 = vmatpush1.bf16.msra.mxu0 %v6583
        %7573 = vmatprep.subr.bf16.mxu0 %v6576
        %7574 = vmatpush1.bf16.msra.mxu0 %v6575
        %7575 = vmatprep.subr.bf16.mxu0 %v6568
        %7576 = vmatpush1.bf16.msra.mxu0 %v6567
        %7577 = vmatprep.subr.bf16.mxu0 %v6560
        %7578 = vmatpush1.bf16.msra.mxu0 %v6559
        %7579 = vmatprep.subr.bf16.mxu0 %v6552
        %7580 = vmatpush1.bf16.msra.mxu0 %v6551
        %7581 = vmatprep.subr.bf16.mxu0 %v6544
        %7582 = vmatpush1.bf16.msra.mxu0 %v6543
        %7583 = vmatprep.subr.bf16.mxu0 %v6664
        %7584 = vmatpush2.bf16.msra.mxu0 %v6663
        %7585 = vmatprep.subr.bf16.mxu0 %v6656
        %7586 = vmatpush2.bf16.msra.mxu0 %v6655
        %7587 = vmatprep.subr.bf16.mxu0 %v6648
        %7588 = vmatpush2.bf16.msra.mxu0 %v6647
        %7589 = vmatprep.subr.bf16.mxu0 %v6640
        %7590 = vmatpush2.bf16.msra.mxu0 %v6639
        %7591 = vmatprep.subr.bf16.mxu0 %v6632
        %7592 = vmatpush2.bf16.msra.mxu0 %v6631
        %7593 = vmatprep.subr.bf16.mxu0 %v6624
        %7594 = vmatpush2.bf16.msra.mxu0 %v6623
        %7595 = vmatprep.subr.bf16.mxu0 %v6616
        %7596 = vmatpush2.bf16.msra.mxu0 %v6615
        %7597 = vmatprep.subr.bf16.mxu0 %v6608
        %7598 = vmatpush2.bf16.msra.mxu0 %v6607
        %7599 = vmatprep.mubr.bf16.mxu0 %v4446
        %7600 = vmatmul.mubr.bf16.gmra.mxu0 %v4445
        %v7601 = vpop.f32.mrf.mxu0
        %v7602 = vadd.f32 %v4970, %v7601
        %v7603 = vpop.f32.mrf.mxu0
        %v7604 = vadd.f32 %v4974, %v7603
        %v7605 = vpop.f32.mrf.mxu0
        %v7606 = vadd.f32 %v4970, %v7605
        %v7607 = vpop.f32.mrf.mxu0
        %v7608 = vadd.f32 %v4974, %v7607
        %7609 = vdwg.mxu0
        %7610 = vmatprep.subr.bf16.mxu0 %v6728
        %7611 = vmatpush1.bf16.msra.mxu0 %v6727
        %7612 = vmatprep.subr.bf16.mxu0 %v6720
        %7613 = vmatpush1.bf16.msra.mxu0 %v6719
        %7614 = vmatprep.subr.bf16.mxu0 %v6712
        %7615 = vmatpush1.bf16.msra.mxu0 %v6711
        %7616 = vmatprep.subr.bf16.mxu0 %v6704
        %7617 = vmatpush1.bf16.msra.mxu0 %v6703
        %7618 = vmatprep.subr.bf16.mxu0 %v6696
        %7619 = vmatpush1.bf16.msra.mxu0 %v6695
        %7620 = vmatprep.subr.bf16.mxu0 %v6688
        %7621 = vmatpush1.bf16.msra.mxu0 %v6687
        %7622 = vmatprep.subr.bf16.mxu0 %v6680
        %7623 = vmatpush1.bf16.msra.mxu0 %v6679
        %7624 = vmatprep.subr.bf16.mxu0 %v6672
        %7625 = vmatpush1.bf16.msra.mxu0 %v6671
        %7626 = vmatprep.subr.bf16.mxu0 %v6792
        %7627 = vmatpush2.bf16.msra.mxu0 %v6791
        %7628 = vmatprep.subr.bf16.mxu0 %v6784
        %7629 = vmatpush2.bf16.msra.mxu0 %v6783
        %7630 = vmatprep.subr.bf16.mxu0 %v6776
        %7631 = vmatpush2.bf16.msra.mxu0 %v6775
        %7632 = vmatprep.subr.bf16.mxu0 %v6768
        %7633 = vmatpush2.bf16.msra.mxu0 %v6767
        %7634 = vmatprep.subr.bf16.mxu0 %v6760
        %7635 = vmatpush2.bf16.msra.mxu0 %v6759
        %7636 = vmatprep.subr.bf16.mxu0 %v6752
        %7637 = vmatpush2.bf16.msra.mxu0 %v6751
        %7638 = vmatprep.subr.bf16.mxu0 %v6744
        %7639 = vmatpush2.bf16.msra.mxu0 %v6743
        %7640 = vmatprep.subr.bf16.mxu0 %v6736
        %7641 = vmatpush2.bf16.msra.mxu0 %v6735
        %7642 = vmatprep.mubr.bf16.mxu0 %v4448
        %7643 = vmatmul.mubr.bf16.gmra.mxu0 %v4447
        %v7644 = vpop.f32.mrf.mxu0
        %v7645 = vadd.f32 %v7602, %v7644
        %v7646 = vpop.f32.mrf.mxu0
        %v7647 = vadd.f32 %v7604, %v7646
        %v7648 = vpop.f32.mrf.mxu0
        %v7649 = vadd.f32 %v7606, %v7648
        %v7650 = vpop.f32.mrf.mxu0
        %v7651 = vadd.f32 %v7608, %v7650
        %7652 = vdwg.mxu0
        %7653 = vmatprep.subr.bf16.mxu0 %v6856
        %7654 = vmatpush1.bf16.msra.mxu0 %v6855
        %7655 = vmatprep.subr.bf16.mxu0 %v6848
        %7656 = vmatpush1.bf16.msra.mxu0 %v6847
        %7657 = vmatprep.subr.bf16.mxu0 %v6840
        %7658 = vmatpush1.bf16.msra.mxu0 %v6839
        %7659 = vmatprep.subr.bf16.mxu0 %v6832
        %7660 = vmatpush1.bf16.msra.mxu0 %v6831
        %7661 = vmatprep.subr.bf16.mxu0 %v6824
        %7662 = vmatpush1.bf16.msra.mxu0 %v6823
        %7663 = vmatprep.subr.bf16.mxu0 %v6816
        %7664 = vmatpush1.bf16.msra.mxu0 %v6815
        %7665 = vmatprep.subr.bf16.mxu0 %v6808
        %7666 = vmatpush1.bf16.msra.mxu0 %v6807
        %7667 = vmatprep.subr.bf16.mxu0 %v6800
        %7668 = vmatpush1.bf16.msra.mxu0 %v6799
        %7669 = vmatprep.subr.bf16.mxu0 %v6920
        %7670 = vmatpush2.bf16.msra.mxu0 %v6919
        %7671 = vmatprep.subr.bf16.mxu0 %v6912
        %7672 = vmatpush2.bf16.msra.mxu0 %v6911
        %7673 = vmatprep.subr.bf16.mxu0 %v6904
        %7674 = vmatpush2.bf16.msra.mxu0 %v6903
        %7675 = vmatprep.subr.bf16.mxu0 %v6896
        %7676 = vmatpush2.bf16.msra.mxu0 %v6895
        %7677 = vmatprep.subr.bf16.mxu0 %v6888
        %7678 = vmatpush2.bf16.msra.mxu0 %v6887
        %7679 = vmatprep.subr.bf16.mxu0 %v6880
        %7680 = vmatpush2.bf16.msra.mxu0 %v6879
        %7681 = vmatprep.subr.bf16.mxu0 %v6872
        %7682 = vmatpush2.bf16.msra.mxu0 %v6871
        %7683 = vmatprep.subr.bf16.mxu0 %v6864
        %7684 = vmatpush2.bf16.msra.mxu0 %v6863
        %7685 = vmatprep.mubr.bf16.mxu0 %v4450
        %7686 = vmatmul.mubr.bf16.gmra.mxu0 %v4449
        %v7687 = vpop.f32.mrf.mxu0
        %v7688 = vadd.f32 %v7645, %v7687
        %v7689 = vpop.f32.mrf.mxu0
        %v7690 = vadd.f32 %v7647, %v7689
        %v7691 = vpop.f32.mrf.mxu0
        %v7692 = vadd.f32 %v7649, %v7691
        %v7693 = vpop.f32.mrf.mxu0
        %v7694 = vadd.f32 %v7651, %v7693
        %7695 = vdwg.mxu0
        %7696 = vmatprep.subr.bf16.mxu0 %v6984
        %7697 = vmatpush1.bf16.msra.mxu0 %v6983
        %7698 = vmatprep.subr.bf16.mxu0 %v6976
        %7699 = vmatpush1.bf16.msra.mxu0 %v6975
        %7700 = vmatprep.subr.bf16.mxu0 %v6968
        %7701 = vmatpush1.bf16.msra.mxu0 %v6967
        %7702 = vmatprep.subr.bf16.mxu0 %v6960
        %7703 = vmatpush1.bf16.msra.mxu0 %v6959
        %7704 = vmatprep.subr.bf16.mxu0 %v6952
        %7705 = vmatpush1.bf16.msra.mxu0 %v6951
        %7706 = vmatprep.subr.bf16.mxu0 %v6944
        %7707 = vmatpush1.bf16.msra.mxu0 %v6943
        %7708 = vmatprep.subr.bf16.mxu0 %v6936
        %7709 = vmatpush1.bf16.msra.mxu0 %v6935
        %7710 = vmatprep.subr.bf16.mxu0 %v6928
        %7711 = vmatpush1.bf16.msra.mxu0 %v6927
        %7712 = vmatprep.subr.bf16.mxu0 %v7048
        %7713 = vmatpush2.bf16.msra.mxu0 %v7047
        %7714 = vmatprep.subr.bf16.mxu0 %v7040
        %7715 = vmatpush2.bf16.msra.mxu0 %v7039
        %7716 = vmatprep.subr.bf16.mxu0 %v7032
        %7717 = vmatpush2.bf16.msra.mxu0 %v7031
        %7718 = vmatprep.subr.bf16.mxu0 %v7024
        %7719 = vmatpush2.bf16.msra.mxu0 %v7023
        %7720 = vmatprep.subr.bf16.mxu0 %v7016
        %7721 = vmatpush2.bf16.msra.mxu0 %v7015
        %7722 = vmatprep.subr.bf16.mxu0 %v7008
        %7723 = vmatpush2.bf16.msra.mxu0 %v7007
        %7724 = vmatprep.subr.bf16.mxu0 %v7000
        %7725 = vmatpush2.bf16.msra.mxu0 %v6999
        %7726 = vmatprep.subr.bf16.mxu0 %v6992
        %7727 = vmatpush2.bf16.msra.mxu0 %v6991
        %7728 = vmatprep.mubr.bf16.mxu0 %v4452
        %7729 = vmatmul.mubr.bf16.gmra.mxu0 %v4451
        %v7730 = vpop.f32.mrf.mxu0
        %v7731 = vadd.f32 %v7688, %v7730
        %v7732 = vpop.f32.mrf.mxu0
        %v7733 = vadd.f32 %v7690, %v7732
        %v7734 = vpop.f32.mrf.mxu0
        %v7735 = vadd.f32 %v7692, %v7734
        %v7736 = vpop.f32.mrf.mxu0
        %v7737 = vadd.f32 %v7694, %v7736
        %7738 = vdwg.mxu0
        %7739 = vmatprep.subr.bf16.mxu0 %v6602
        %7740 = vmatpush1.bf16.msra.mxu0 %v6601
        %7741 = vmatprep.subr.bf16.mxu0 %v6594
        %7742 = vmatpush1.bf16.msra.mxu0 %v6593
        %7743 = vmatprep.subr.bf16.mxu0 %v6586
        %7744 = vmatpush1.bf16.msra.mxu0 %v6585
        %7745 = vmatprep.subr.bf16.mxu0 %v6578
        %7746 = vmatpush1.bf16.msra.mxu0 %v6577
        %7747 = vmatprep.subr.bf16.mxu0 %v6570
        %7748 = vmatpush1.bf16.msra.mxu0 %v6569
        %7749 = vmatprep.subr.bf16.mxu0 %v6562
        %7750 = vmatpush1.bf16.msra.mxu0 %v6561
        %7751 = vmatprep.subr.bf16.mxu0 %v6554
        %7752 = vmatpush1.bf16.msra.mxu0 %v6553
        %7753 = vmatprep.subr.bf16.mxu0 %v6546
        %7754 = vmatpush1.bf16.msra.mxu0 %v6545
        %7755 = vmatprep.subr.bf16.mxu0 %v6666
        %7756 = vmatpush2.bf16.msra.mxu0 %v6665
        %7757 = vmatprep.subr.bf16.mxu0 %v6658
        %7758 = vmatpush2.bf16.msra.mxu0 %v6657
        %7759 = vmatprep.subr.bf16.mxu0 %v6650
        %7760 = vmatpush2.bf16.msra.mxu0 %v6649
        %7761 = vmatprep.subr.bf16.mxu0 %v6642
        %7762 = vmatpush2.bf16.msra.mxu0 %v6641
        %7763 = vmatprep.subr.bf16.mxu0 %v6634
        %7764 = vmatpush2.bf16.msra.mxu0 %v6633
        %7765 = vmatprep.subr.bf16.mxu0 %v6626
        %7766 = vmatpush2.bf16.msra.mxu0 %v6625
        %7767 = vmatprep.subr.bf16.mxu0 %v6618
        %7768 = vmatpush2.bf16.msra.mxu0 %v6617
        %7769 = vmatprep.subr.bf16.mxu0 %v6610
        %7770 = vmatpush2.bf16.msra.mxu0 %v6609
        %7771 = vmatprep.mubr.bf16.mxu0 %v4446
        %7772 = vmatmul.mubr.bf16.gmra.mxu0 %v4445
        %v7773 = vpop.f32.mrf.mxu0
        %v7774 = vadd.f32 %v4978, %v7773
        %v7775 = vpop.f32.mrf.mxu0
        %v7776 = vadd.f32 %v4982, %v7775
        %v7777 = vpop.f32.mrf.mxu0
        %v7778 = vadd.f32 %v4978, %v7777
        %v7779 = vpop.f32.mrf.mxu0
        %v7780 = vadd.f32 %v4982, %v7779
        %7781 = vdwg.mxu0
        %7782 = vmatprep.subr.bf16.mxu0 %v6730
        %7783 = vmatpush1.bf16.msra.mxu0 %v6729
        %7784 = vmatprep.subr.bf16.mxu0 %v6722
        %7785 = vmatpush1.bf16.msra.mxu0 %v6721
        %7786 = vmatprep.subr.bf16.mxu0 %v6714
        %7787 = vmatpush1.bf16.msra.mxu0 %v6713
        %7788 = vmatprep.subr.bf16.mxu0 %v6706
        %7789 = vmatpush1.bf16.msra.mxu0 %v6705
        %7790 = vmatprep.subr.bf16.mxu0 %v6698
        %7791 = vmatpush1.bf16.msra.mxu0 %v6697
        %7792 = vmatprep.subr.bf16.mxu0 %v6690
        %7793 = vmatpush1.bf16.msra.mxu0 %v6689
        %7794 = vmatprep.subr.bf16.mxu0 %v6682
        %7795 = vmatpush1.bf16.msra.mxu0 %v6681
        %7796 = vmatprep.subr.bf16.mxu0 %v6674
        %7797 = vmatpush1.bf16.msra.mxu0 %v6673
        %7798 = vmatprep.subr.bf16.mxu0 %v6794
        %7799 = vmatpush2.bf16.msra.mxu0 %v6793
        %7800 = vmatprep.subr.bf16.mxu0 %v6786
        %7801 = vmatpush2.bf16.msra.mxu0 %v6785
        %7802 = vmatprep.subr.bf16.mxu0 %v6778
        %7803 = vmatpush2.bf16.msra.mxu0 %v6777
        %7804 = vmatprep.subr.bf16.mxu0 %v6770
        %7805 = vmatpush2.bf16.msra.mxu0 %v6769
        %7806 = vmatprep.subr.bf16.mxu0 %v6762
        %7807 = vmatpush2.bf16.msra.mxu0 %v6761
        %7808 = vmatprep.subr.bf16.mxu0 %v6754
        %7809 = vmatpush2.bf16.msra.mxu0 %v6753
        %7810 = vmatprep.subr.bf16.mxu0 %v6746
        %7811 = vmatpush2.bf16.msra.mxu0 %v6745
        %7812 = vmatprep.subr.bf16.mxu0 %v6738
        %7813 = vmatpush2.bf16.msra.mxu0 %v6737
        %7814 = vmatprep.mubr.bf16.mxu0 %v4448
        %7815 = vmatmul.mubr.bf16.gmra.mxu0 %v4447
        %v7816 = vpop.f32.mrf.mxu0
        %v7817 = vadd.f32 %v7774, %v7816
        %v7818 = vpop.f32.mrf.mxu0
        %v7819 = vadd.f32 %v7776, %v7818
        %v7820 = vpop.f32.mrf.mxu0
        %v7821 = vadd.f32 %v7778, %v7820
        %v7822 = vpop.f32.mrf.mxu0
        %v7823 = vadd.f32 %v7780, %v7822
        %7824 = vdwg.mxu0
        %7825 = vmatprep.subr.bf16.mxu0 %v6858
        %7826 = vmatpush1.bf16.msra.mxu0 %v6857
        %7827 = vmatprep.subr.bf16.mxu0 %v6850
        %7828 = vmatpush1.bf16.msra.mxu0 %v6849
        %7829 = vmatprep.subr.bf16.mxu0 %v6842
        %7830 = vmatpush1.bf16.msra.mxu0 %v6841
        %7831 = vmatprep.subr.bf16.mxu0 %v6834
        %7832 = vmatpush1.bf16.msra.mxu0 %v6833
        %7833 = vmatprep.subr.bf16.mxu0 %v6826
        %7834 = vmatpush1.bf16.msra.mxu0 %v6825
        %7835 = vmatprep.subr.bf16.mxu0 %v6818
        %7836 = vmatpush1.bf16.msra.mxu0 %v6817
        %7837 = vmatprep.subr.bf16.mxu0 %v6810
        %7838 = vmatpush1.bf16.msra.mxu0 %v6809
        %7839 = vmatprep.subr.bf16.mxu0 %v6802
        %7840 = vmatpush1.bf16.msra.mxu0 %v6801
        %7841 = vmatprep.subr.bf16.mxu0 %v6922
        %7842 = vmatpush2.bf16.msra.mxu0 %v6921
        %7843 = vmatprep.subr.bf16.mxu0 %v6914
        %7844 = vmatpush2.bf16.msra.mxu0 %v6913
        %7845 = vmatprep.subr.bf16.mxu0 %v6906
        %7846 = vmatpush2.bf16.msra.mxu0 %v6905
        %7847 = vmatprep.subr.bf16.mxu0 %v6898
        %7848 = vmatpush2.bf16.msra.mxu0 %v6897
        %7849 = vmatprep.subr.bf16.mxu0 %v6890
        %7850 = vmatpush2.bf16.msra.mxu0 %v6889
        %7851 = vmatprep.subr.bf16.mxu0 %v6882
        %7852 = vmatpush2.bf16.msra.mxu0 %v6881
        %7853 = vmatprep.subr.bf16.mxu0 %v6874
        %7854 = vmatpush2.bf16.msra.mxu0 %v6873
        %7855 = vmatprep.subr.bf16.mxu0 %v6866
        %7856 = vmatpush2.bf16.msra.mxu0 %v6865
        %7857 = vmatprep.mubr.bf16.mxu0 %v4450
        %7858 = vmatmul.mubr.bf16.gmra.mxu0 %v4449
        %v7859 = vpop.f32.mrf.mxu0
        %v7860 = vadd.f32 %v7817, %v7859
        %v7861 = vpop.f32.mrf.mxu0
        %v7862 = vadd.f32 %v7819, %v7861
        %v7863 = vpop.f32.mrf.mxu0
        %v7864 = vadd.f32 %v7821, %v7863
        %v7865 = vpop.f32.mrf.mxu0
        %v7866 = vadd.f32 %v7823, %v7865
        %7867 = vdwg.mxu0
        %7868 = vmatprep.subr.bf16.mxu0 %v6986
        %7869 = vmatpush1.bf16.msra.mxu0 %v6985
        %7870 = vmatprep.subr.bf16.mxu0 %v6978
        %7871 = vmatpush1.bf16.msra.mxu0 %v6977
        %7872 = vmatprep.subr.bf16.mxu0 %v6970
        %7873 = vmatpush1.bf16.msra.mxu0 %v6969
        %7874 = vmatprep.subr.bf16.mxu0 %v6962
        %7875 = vmatpush1.bf16.msra.mxu0 %v6961
        %7876 = vmatprep.subr.bf16.mxu0 %v6954
        %7877 = vmatpush1.bf16.msra.mxu0 %v6953
        %7878 = vmatprep.subr.bf16.mxu0 %v6946
        %7879 = vmatpush1.bf16.msra.mxu0 %v6945
        %7880 = vmatprep.subr.bf16.mxu0 %v6938
        %7881 = vmatpush1.bf16.msra.mxu0 %v6937
        %7882 = vmatprep.subr.bf16.mxu0 %v6930
        %7883 = vmatpush1.bf16.msra.mxu0 %v6929
        %7884 = vmatprep.subr.bf16.mxu0 %v7050
        %7885 = vmatpush2.bf16.msra.mxu0 %v7049
        %7886 = vmatprep.subr.bf16.mxu0 %v7042
        %7887 = vmatpush2.bf16.msra.mxu0 %v7041
        %7888 = vmatprep.subr.bf16.mxu0 %v7034
        %7889 = vmatpush2.bf16.msra.mxu0 %v7033
        %7890 = vmatprep.subr.bf16.mxu0 %v7026
        %7891 = vmatpush2.bf16.msra.mxu0 %v7025
        %7892 = vmatprep.subr.bf16.mxu0 %v7018
        %7893 = vmatpush2.bf16.msra.mxu0 %v7017
        %7894 = vmatprep.subr.bf16.mxu0 %v7010
        %7895 = vmatpush2.bf16.msra.mxu0 %v7009
        %7896 = vmatprep.subr.bf16.mxu0 %v7002
        %7897 = vmatpush2.bf16.msra.mxu0 %v7001
        %7898 = vmatprep.subr.bf16.mxu0 %v6994
        %7899 = vmatpush2.bf16.msra.mxu0 %v6993
        %7900 = vmatprep.mubr.bf16.mxu0 %v4452
        %7901 = vmatmul.mubr.bf16.gmra.mxu0 %v4451
        %v7902 = vpop.f32.mrf.mxu0
        %v7903 = vadd.f32 %v7860, %v7902
        %v7904 = vpop.f32.mrf.mxu0
        %v7905 = vadd.f32 %v7862, %v7904
        %v7906 = vpop.f32.mrf.mxu0
        %v7907 = vadd.f32 %v7864, %v7906
        %v7908 = vpop.f32.mrf.mxu0
        %v7909 = vadd.f32 %v7866, %v7908
        %7910 = vdwg.mxu0
        %7911 = vmatprep.subr.bf16.mxu0 %v6604
        %7912 = vmatpush1.bf16.msra.mxu0 %v6603
        %7913 = vmatprep.subr.bf16.mxu0 %v6596
        %7914 = vmatpush1.bf16.msra.mxu0 %v6595
        %7915 = vmatprep.subr.bf16.mxu0 %v6588
        %7916 = vmatpush1.bf16.msra.mxu0 %v6587
        %7917 = vmatprep.subr.bf16.mxu0 %v6580
        %7918 = vmatpush1.bf16.msra.mxu0 %v6579
        %7919 = vmatprep.subr.bf16.mxu0 %v6572
        %7920 = vmatpush1.bf16.msra.mxu0 %v6571
        %7921 = vmatprep.subr.bf16.mxu0 %v6564
        %7922 = vmatpush1.bf16.msra.mxu0 %v6563
        %7923 = vmatprep.subr.bf16.mxu0 %v6556
        %7924 = vmatpush1.bf16.msra.mxu0 %v6555
        %7925 = vmatprep.subr.bf16.mxu0 %v6548
        %7926 = vmatpush1.bf16.msra.mxu0 %v6547
        %7927 = vmatprep.subr.bf16.mxu0 %v6668
        %7928 = vmatpush2.bf16.msra.mxu0 %v6667
        %7929 = vmatprep.subr.bf16.mxu0 %v6660
        %7930 = vmatpush2.bf16.msra.mxu0 %v6659
        %7931 = vmatprep.subr.bf16.mxu0 %v6652
        %7932 = vmatpush2.bf16.msra.mxu0 %v6651
        %7933 = vmatprep.subr.bf16.mxu0 %v6644
        %7934 = vmatpush2.bf16.msra.mxu0 %v6643
        %7935 = vmatprep.subr.bf16.mxu0 %v6636
        %7936 = vmatpush2.bf16.msra.mxu0 %v6635
        %7937 = vmatprep.subr.bf16.mxu0 %v6628
        %7938 = vmatpush2.bf16.msra.mxu0 %v6627
        %7939 = vmatprep.subr.bf16.mxu0 %v6620
        %7940 = vmatpush2.bf16.msra.mxu0 %v6619
        %7941 = vmatprep.subr.bf16.mxu0 %v6612
        %7942 = vmatpush2.bf16.msra.mxu0 %v6611
        %7943 = vmatprep.mubr.bf16.mxu0 %v4446
        %7944 = vmatmul.mubr.bf16.gmra.mxu0 %v4445
        %v7945 = vpop.f32.mrf.mxu0
        %v7946 = vadd.f32 %v4986, %v7945
        %v7947 = vpop.f32.mrf.mxu0
        %v7948 = vadd.f32 %v4990, %v7947
        %v7949 = vpop.f32.mrf.mxu0
        %v7950 = vadd.f32 %v4986, %v7949
        %v7951 = vpop.f32.mrf.mxu0
        %v7952 = vadd.f32 %v4990, %v7951
        %7953 = vdwg.mxu0
        %7954 = vmatprep.subr.bf16.mxu0 %v6732
        %7955 = vmatpush1.bf16.msra.mxu0 %v6731
        %7956 = vmatprep.subr.bf16.mxu0 %v6724
        %7957 = vmatpush1.bf16.msra.mxu0 %v6723
        %7958 = vmatprep.subr.bf16.mxu0 %v6716
        %7959 = vmatpush1.bf16.msra.mxu0 %v6715
        %7960 = vmatprep.subr.bf16.mxu0 %v6708
        %7961 = vmatpush1.bf16.msra.mxu0 %v6707
        %7962 = vmatprep.subr.bf16.mxu0 %v6700
        %7963 = vmatpush1.bf16.msra.mxu0 %v6699
        %7964 = vmatprep.subr.bf16.mxu0 %v6692
        %7965 = vmatpush1.bf16.msra.mxu0 %v6691
        %7966 = vmatprep.subr.bf16.mxu0 %v6684
        %7967 = vmatpush1.bf16.msra.mxu0 %v6683
        %7968 = vmatprep.subr.bf16.mxu0 %v6676
        %7969 = vmatpush1.bf16.msra.mxu0 %v6675
        %7970 = vmatprep.subr.bf16.mxu0 %v6796
        %7971 = vmatpush2.bf16.msra.mxu0 %v6795
        %7972 = vmatprep.subr.bf16.mxu0 %v6788
        %7973 = vmatpush2.bf16.msra.mxu0 %v6787
        %7974 = vmatprep.subr.bf16.mxu0 %v6780
        %7975 = vmatpush2.bf16.msra.mxu0 %v6779
        %7976 = vmatprep.subr.bf16.mxu0 %v6772
        %7977 = vmatpush2.bf16.msra.mxu0 %v6771
        %7978 = vmatprep.subr.bf16.mxu0 %v6764
        %7979 = vmatpush2.bf16.msra.mxu0 %v6763
        %7980 = vmatprep.subr.bf16.mxu0 %v6756
        %7981 = vmatpush2.bf16.msra.mxu0 %v6755
        %7982 = vmatprep.subr.bf16.mxu0 %v6748
        %7983 = vmatpush2.bf16.msra.mxu0 %v6747
        %7984 = vmatprep.subr.bf16.mxu0 %v6740
        %7985 = vmatpush2.bf16.msra.mxu0 %v6739
        %7986 = vmatprep.mubr.bf16.mxu0 %v4448
        %7987 = vmatmul.mubr.bf16.gmra.mxu0 %v4447
        %v7988 = vpop.f32.mrf.mxu0
        %v7989 = vadd.f32 %v7946, %v7988
        %v7990 = vpop.f32.mrf.mxu0
        %v7991 = vadd.f32 %v7948, %v7990
        %v7992 = vpop.f32.mrf.mxu0
        %v7993 = vadd.f32 %v7950, %v7992
        %v7994 = vpop.f32.mrf.mxu0
        %v7995 = vadd.f32 %v7952, %v7994
        %7996 = vdwg.mxu0
        %7997 = vmatprep.subr.bf16.mxu0 %v6860
        %7998 = vmatpush1.bf16.msra.mxu0 %v6859
        %7999 = vmatprep.subr.bf16.mxu0 %v6852
        %8000 = vmatpush1.bf16.msra.mxu0 %v6851
        %8001 = vmatprep.subr.bf16.mxu0 %v6844
        %8002 = vmatpush1.bf16.msra.mxu0 %v6843
        %8003 = vmatprep.subr.bf16.mxu0 %v6836
        %8004 = vmatpush1.bf16.msra.mxu0 %v6835
        %8005 = vmatprep.subr.bf16.mxu0 %v6828
        %8006 = vmatpush1.bf16.msra.mxu0 %v6827
        %8007 = vmatprep.subr.bf16.mxu0 %v6820
        %8008 = vmatpush1.bf16.msra.mxu0 %v6819
        %8009 = vmatprep.subr.bf16.mxu0 %v6812
        %8010 = vmatpush1.bf16.msra.mxu0 %v6811
        %8011 = vmatprep.subr.bf16.mxu0 %v6804
        %8012 = vmatpush1.bf16.msra.mxu0 %v6803
        %8013 = vmatprep.subr.bf16.mxu0 %v6924
        %8014 = vmatpush2.bf16.msra.mxu0 %v6923
        %8015 = vmatprep.subr.bf16.mxu0 %v6916
        %8016 = vmatpush2.bf16.msra.mxu0 %v6915
        %8017 = vmatprep.subr.bf16.mxu0 %v6908
        %8018 = vmatpush2.bf16.msra.mxu0 %v6907
        %8019 = vmatprep.subr.bf16.mxu0 %v6900
        %8020 = vmatpush2.bf16.msra.mxu0 %v6899
        %8021 = vmatprep.subr.bf16.mxu0 %v6892
        %8022 = vmatpush2.bf16.msra.mxu0 %v6891
        %8023 = vmatprep.subr.bf16.mxu0 %v6884
        %8024 = vmatpush2.bf16.msra.mxu0 %v6883
        %8025 = vmatprep.subr.bf16.mxu0 %v6876
        %8026 = vmatpush2.bf16.msra.mxu0 %v6875
        %8027 = vmatprep.subr.bf16.mxu0 %v6868
        %8028 = vmatpush2.bf16.msra.mxu0 %v6867
        %8029 = vmatprep.mubr.bf16.mxu0 %v4450
        %8030 = vmatmul.mubr.bf16.gmra.mxu0 %v4449
        %v8031 = vpop.f32.mrf.mxu0
        %v8032 = vadd.f32 %v7989, %v8031
        %v8033 = vpop.f32.mrf.mxu0
        %v8034 = vadd.f32 %v7991, %v8033
        %v8035 = vpop.f32.mrf.mxu0
        %v8036 = vadd.f32 %v7993, %v8035
        %v8037 = vpop.f32.mrf.mxu0
        %v8038 = vadd.f32 %v7995, %v8037
        %8039 = vdwg.mxu0
        %8040 = vmatprep.subr.bf16.mxu0 %v6988
        %8041 = vmatpush1.bf16.msra.mxu0 %v6987
        %8042 = vmatprep.subr.bf16.mxu0 %v6980
        %8043 = vmatpush1.bf16.msra.mxu0 %v6979
        %8044 = vmatprep.subr.bf16.mxu0 %v6972
        %8045 = vmatpush1.bf16.msra.mxu0 %v6971
        %8046 = vmatprep.subr.bf16.mxu0 %v6964
        %8047 = vmatpush1.bf16.msra.mxu0 %v6963
        %8048 = vmatprep.subr.bf16.mxu0 %v6956
        %8049 = vmatpush1.bf16.msra.mxu0 %v6955
        %8050 = vmatprep.subr.bf16.mxu0 %v6948
        %8051 = vmatpush1.bf16.msra.mxu0 %v6947
        %8052 = vmatprep.subr.bf16.mxu0 %v6940
        %8053 = vmatpush1.bf16.msra.mxu0 %v6939
        %8054 = vmatprep.subr.bf16.mxu0 %v6932
        %8055 = vmatpush1.bf16.msra.mxu0 %v6931
        %8056 = vmatprep.subr.bf16.mxu0 %v7052
        %8057 = vmatpush2.bf16.msra.mxu0 %v7051
        %8058 = vmatprep.subr.bf16.mxu0 %v7044
        %8059 = vmatpush2.bf16.msra.mxu0 %v7043
        %8060 = vmatprep.subr.bf16.mxu0 %v7036
        %8061 = vmatpush2.bf16.msra.mxu0 %v7035
        %8062 = vmatprep.subr.bf16.mxu0 %v7028
        %8063 = vmatpush2.bf16.msra.mxu0 %v7027
        %8064 = vmatprep.subr.bf16.mxu0 %v7020
        %8065 = vmatpush2.bf16.msra.mxu0 %v7019
        %8066 = vmatprep.subr.bf16.mxu0 %v7012
        %8067 = vmatpush2.bf16.msra.mxu0 %v7011
        %8068 = vmatprep.subr.bf16.mxu0 %v7004
        %8069 = vmatpush2.bf16.msra.mxu0 %v7003
        %8070 = vmatprep.subr.bf16.mxu0 %v6996
        %8071 = vmatpush2.bf16.msra.mxu0 %v6995
        %8072 = vmatprep.mubr.bf16.mxu0 %v4452
        %8073 = vmatmul.mubr.bf16.gmra.mxu0 %v4451
        %v8074 = vpop.f32.mrf.mxu0
        %v8075 = vadd.f32 %v8032, %v8074
        %v8076 = vpop.f32.mrf.mxu0
        %v8077 = vadd.f32 %v8034, %v8076
        %v8078 = vpop.f32.mrf.mxu0
        %v8079 = vadd.f32 %v8036, %v8078
        %v8080 = vpop.f32.mrf.mxu0
        %v8081 = vadd.f32 %v8038, %v8080
        %8082 = vdwg.mxu0
        %8083 = vmatprep.subr.bf16.mxu0 %v6606
        %8084 = vmatpush1.bf16.msra.mxu0 %v6605
        %8085 = vmatprep.subr.bf16.mxu0 %v6598
        %8086 = vmatpush1.bf16.msra.mxu0 %v6597
        %8087 = vmatprep.subr.bf16.mxu0 %v6590
        %8088 = vmatpush1.bf16.msra.mxu0 %v6589
        %8089 = vmatprep.subr.bf16.mxu0 %v6582
        %8090 = vmatpush1.bf16.msra.mxu0 %v6581
        %8091 = vmatprep.subr.bf16.mxu0 %v6574
        %8092 = vmatpush1.bf16.msra.mxu0 %v6573
        %8093 = vmatprep.subr.bf16.mxu0 %v6566
        %8094 = vmatpush1.bf16.msra.mxu0 %v6565
        %8095 = vmatprep.subr.bf16.mxu0 %v6558
        %8096 = vmatpush1.bf16.msra.mxu0 %v6557
        %8097 = vmatprep.subr.bf16.mxu0 %v6550
        %8098 = vmatpush1.bf16.msra.mxu0 %v6549
        %8099 = vmatprep.subr.bf16.mxu0 %v6670
        %8100 = vmatpush2.bf16.msra.mxu0 %v6669
        %8101 = vmatprep.subr.bf16.mxu0 %v6662
        %8102 = vmatpush2.bf16.msra.mxu0 %v6661
        %8103 = vmatprep.subr.bf16.mxu0 %v6654
        %8104 = vmatpush2.bf16.msra.mxu0 %v6653
        %8105 = vmatprep.subr.bf16.mxu0 %v6646
        %8106 = vmatpush2.bf16.msra.mxu0 %v6645
        %8107 = vmatprep.subr.bf16.mxu0 %v6638
        %8108 = vmatpush2.bf16.msra.mxu0 %v6637
        %8109 = vmatprep.subr.bf16.mxu0 %v6630
        %8110 = vmatpush2.bf16.msra.mxu0 %v6629
        %8111 = vmatprep.subr.bf16.mxu0 %v6622
        %8112 = vmatpush2.bf16.msra.mxu0 %v6621
        %8113 = vmatprep.subr.bf16.mxu0 %v6614
        %8114 = vmatpush2.bf16.msra.mxu0 %v6613
        %8115 = vmatprep.mubr.bf16.mxu0 %v4446
        %8116 = vmatmul.mubr.bf16.gmra.mxu0 %v4445
        %v8117 = vpop.f32.mrf.mxu0
        %v8118 = vadd.f32 %v4994, %v8117
        %v8119 = vpop.f32.mrf.mxu0
        %v8120 = vadd.f32 %v4998, %v8119
        %v8121 = vpop.f32.mrf.mxu0
        %v8122 = vadd.f32 %v4994, %v8121
        %v8123 = vpop.f32.mrf.mxu0
        %v8124 = vadd.f32 %v4998, %v8123
        %8125 = vdwg.mxu0
        %8126 = vmatprep.subr.bf16.mxu0 %v6734
        %8127 = vmatpush1.bf16.msra.mxu0 %v6733
        %8128 = vmatprep.subr.bf16.mxu0 %v6726
        %8129 = vmatpush1.bf16.msra.mxu0 %v6725
        %8130 = vmatprep.subr.bf16.mxu0 %v6718
        %8131 = vmatpush1.bf16.msra.mxu0 %v6717
        %8132 = vmatprep.subr.bf16.mxu0 %v6710
        %8133 = vmatpush1.bf16.msra.mxu0 %v6709
        %8134 = vmatprep.subr.bf16.mxu0 %v6702
        %8135 = vmatpush1.bf16.msra.mxu0 %v6701
        %8136 = vmatprep.subr.bf16.mxu0 %v6694
        %8137 = vmatpush1.bf16.msra.mxu0 %v6693
        %8138 = vmatprep.subr.bf16.mxu0 %v6686
        %8139 = vmatpush1.bf16.msra.mxu0 %v6685
        %8140 = vmatprep.subr.bf16.mxu0 %v6678
        %8141 = vmatpush1.bf16.msra.mxu0 %v6677
        %8142 = vmatprep.subr.bf16.mxu0 %v6798
        %8143 = vmatpush2.bf16.msra.mxu0 %v6797
        %8144 = vmatprep.subr.bf16.mxu0 %v6790
        %8145 = vmatpush2.bf16.msra.mxu0 %v6789
        %8146 = vmatprep.subr.bf16.mxu0 %v6782
        %8147 = vmatpush2.bf16.msra.mxu0 %v6781
        %8148 = vmatprep.subr.bf16.mxu0 %v6774
        %8149 = vmatpush2.bf16.msra.mxu0 %v6773
        %8150 = vmatprep.subr.bf16.mxu0 %v6766
        %8151 = vmatpush2.bf16.msra.mxu0 %v6765
        %8152 = vmatprep.subr.bf16.mxu0 %v6758
        %8153 = vmatpush2.bf16.msra.mxu0 %v6757
        %8154 = vmatprep.subr.bf16.mxu0 %v6750
        %8155 = vmatpush2.bf16.msra.mxu0 %v6749
        %8156 = vmatprep.subr.bf16.mxu0 %v6742
        %8157 = vmatpush2.bf16.msra.mxu0 %v6741
        %8158 = vmatprep.mubr.bf16.mxu0 %v4448
        %8159 = vmatmul.mubr.bf16.gmra.mxu0 %v4447
        %v8160 = vpop.f32.mrf.mxu0
        %v8161 = vadd.f32 %v8118, %v8160
        %v8162 = vpop.f32.mrf.mxu0
        %v8163 = vadd.f32 %v8120, %v8162
        %v8164 = vpop.f32.mrf.mxu0
        %v8165 = vadd.f32 %v8122, %v8164
        %v8166 = vpop.f32.mrf.mxu0
        %v8167 = vadd.f32 %v8124, %v8166
        %8168 = vdwg.mxu0
        %8169 = vmatprep.subr.bf16.mxu0 %v6862
        %8170 = vmatpush1.bf16.msra.mxu0 %v6861
        %8171 = vmatprep.subr.bf16.mxu0 %v6854
        %8172 = vmatpush1.bf16.msra.mxu0 %v6853
        %8173 = vmatprep.subr.bf16.mxu0 %v6846
        %8174 = vmatpush1.bf16.msra.mxu0 %v6845
        %8175 = vmatprep.subr.bf16.mxu0 %v6838
        %8176 = vmatpush1.bf16.msra.mxu0 %v6837
        %8177 = vmatprep.subr.bf16.mxu0 %v6830
        %8178 = vmatpush1.bf16.msra.mxu0 %v6829
        %8179 = vmatprep.subr.bf16.mxu0 %v6822
        %8180 = vmatpush1.bf16.msra.mxu0 %v6821
        %8181 = vmatprep.subr.bf16.mxu0 %v6814
        %8182 = vmatpush1.bf16.msra.mxu0 %v6813
        %8183 = vmatprep.subr.bf16.mxu0 %v6806
        %8184 = vmatpush1.bf16.msra.mxu0 %v6805
        %8185 = vmatprep.subr.bf16.mxu0 %v6926
        %8186 = vmatpush2.bf16.msra.mxu0 %v6925
        %8187 = vmatprep.subr.bf16.mxu0 %v6918
        %8188 = vmatpush2.bf16.msra.mxu0 %v6917
        %8189 = vmatprep.subr.bf16.mxu0 %v6910
        %8190 = vmatpush2.bf16.msra.mxu0 %v6909
        %8191 = vmatprep.subr.bf16.mxu0 %v6902
        %8192 = vmatpush2.bf16.msra.mxu0 %v6901
        %8193 = vmatprep.subr.bf16.mxu0 %v6894
        %8194 = vmatpush2.bf16.msra.mxu0 %v6893
        %8195 = vmatprep.subr.bf16.mxu0 %v6886
        %8196 = vmatpush2.bf16.msra.mxu0 %v6885
        %8197 = vmatprep.subr.bf16.mxu0 %v6878
        %8198 = vmatpush2.bf16.msra.mxu0 %v6877
        %8199 = vmatprep.subr.bf16.mxu0 %v6870
        %8200 = vmatpush2.bf16.msra.mxu0 %v6869
        %8201 = vmatprep.mubr.bf16.mxu0 %v4450
        %8202 = vmatmul.mubr.bf16.gmra.mxu0 %v4449
        %v8203 = vpop.f32.mrf.mxu0
        %v8204 = vadd.f32 %v8161, %v8203
        %v8205 = vpop.f32.mrf.mxu0
        %v8206 = vadd.f32 %v8163, %v8205
        %v8207 = vpop.f32.mrf.mxu0
        %v8208 = vadd.f32 %v8165, %v8207
        %v8209 = vpop.f32.mrf.mxu0
        %v8210 = vadd.f32 %v8167, %v8209
        %8211 = vdwg.mxu0
        %8212 = vmatprep.subr.bf16.mxu0 %v6990
        %8213 = vmatpush1.bf16.msra.mxu0 %v6989
        %8214 = vmatprep.subr.bf16.mxu0 %v6982
        %8215 = vmatpush1.bf16.msra.mxu0 %v6981
        %8216 = vmatprep.subr.bf16.mxu0 %v6974
        %8217 = vmatpush1.bf16.msra.mxu0 %v6973
        %8218 = vmatprep.subr.bf16.mxu0 %v6966
        %8219 = vmatpush1.bf16.msra.mxu0 %v6965
        %8220 = vmatprep.subr.bf16.mxu0 %v6958
        %8221 = vmatpush1.bf16.msra.mxu0 %v6957
        %8222 = vmatprep.subr.bf16.mxu0 %v6950
        %8223 = vmatpush1.bf16.msra.mxu0 %v6949
        %8224 = vmatprep.subr.bf16.mxu0 %v6942
        %8225 = vmatpush1.bf16.msra.mxu0 %v6941
        %8226 = vmatprep.subr.bf16.mxu0 %v6934
        %8227 = vmatpush1.bf16.msra.mxu0 %v6933
        %8228 = vmatprep.subr.bf16.mxu0 %v7054
        %8229 = vmatpush2.bf16.msra.mxu0 %v7053
        %8230 = vmatprep.subr.bf16.mxu0 %v7046
        %8231 = vmatpush2.bf16.msra.mxu0 %v7045
        %8232 = vmatprep.subr.bf16.mxu0 %v7038
        %8233 = vmatpush2.bf16.msra.mxu0 %v7037
        %8234 = vmatprep.subr.bf16.mxu0 %v7030
        %8235 = vmatpush2.bf16.msra.mxu0 %v7029
        %8236 = vmatprep.subr.bf16.mxu0 %v7022
        %8237 = vmatpush2.bf16.msra.mxu0 %v7021
        %8238 = vmatprep.subr.bf16.mxu0 %v7014
        %8239 = vmatpush2.bf16.msra.mxu0 %v7013
        %8240 = vmatprep.subr.bf16.mxu0 %v7006
        %8241 = vmatpush2.bf16.msra.mxu0 %v7005
        %8242 = vmatprep.subr.bf16.mxu0 %v6998
        %8243 = vmatpush2.bf16.msra.mxu0 %v6997
        %8244 = vmatprep.mubr.bf16.mxu0 %v4452
        %8245 = vmatmul.mubr.bf16.gmra.mxu0 %v4451
        %v8246 = vpop.f32.mrf.mxu0
        %v8247 = vadd.f32 %v8204, %v8246
        %v8248 = vpop.f32.mrf.mxu0
        %v8249 = vadd.f32 %v8206, %v8248
        %v8250 = vpop.f32.mrf.mxu0
        %v8251 = vadd.f32 %v8208, %v8250
        %v8252 = vpop.f32.mrf.mxu0
        %v8253 = vadd.f32 %v8210, %v8252
        %8254 = vdwg.mxu0
        %v8255 = vmax.f32 %v7731, 0.0
        %v8256 = vmax.f32 %v7733, 0.0
        %v8257 = vmax.f32 %v7903, 0.0
        %v8258 = vmax.f32 %v7905, 0.0
        %v8259 = vmax.f32 %v8075, 0.0
        %v8260 = vmax.f32 %v8077, 0.0
        %v8261 = vmax.f32 %v8247, 0.0
        %v8262 = vmax.f32 %v8249, 0.0
        %v8263 = vmax.f32 %v7735, 0.0
        %v8264 = vmax.f32 %v7737, 0.0
        %v8265 = vmax.f32 %v7907, 0.0
        %v8266 = vmax.f32 %v7909, 0.0
        %v8267 = vmax.f32 %v8079, 0.0
        %v8268 = vmax.f32 %v8081, 0.0
        %v8269 = vmax.f32 %v8251, 0.0
        %v8270 = vmax.f32 %v8253, 0.0
        %8271 = vst [vmem:[%s572] sm:$0xff] %v8255
        %8272 = vst [vmem:[%s572 + $0x8] sm:$0xff] %v8256
        %8273 = vst [vmem:[%s572 + $0x10] sm:$0xff] %v8257
        %8274 = vst [vmem:[%s572 + $0x18] sm:$0xff] %v8258
        %8275 = vst [vmem:[%s572 + $0x20] sm:$0xff] %v8259
        %8276 = vst [vmem:[%s572 + $0x28] sm:$0xff] %v8260
        %8277 = vst [vmem:[%s572 + $0x30] sm:$0xff] %v8261
        %8278 = vst [vmem:[%s572 + $0x38] sm:$0xff] %v8262
        %8279 = vst [vmem:[%s572 + $0x40] sm:$0xff] %v8263
        %8280 = vst [vmem:[%s572 + $0x48] sm:$0xff] %v8264
        %8281 = vst [vmem:[%s572 + $0x50] sm:$0xff] %v8265
        %8282 = vst [vmem:[%s572 + $0x58] sm:$0xff] %v8266
        %8283 = vst [vmem:[%s572 + $0x60] sm:$0xff] %v8267
        %8284 = vst [vmem:[%s572 + $0x68] sm:$0xff] %v8268
        %8285 = vst [vmem:[%s572 + $0x70] sm:$0xff] %v8269
        %8286 = vst [vmem:[%s572 + $0x78] sm:$0xff] %v8270
        %v8287 = vpack.c.bf16 %v8263, %v8255
        %v8288 = vpack.c.bf16 %v8264, %v8256
        %v8289 = vpack.c.bf16 %v8265, %v8257
        %v8290 = vpack.c.bf16 %v8266, %v8258
        %v8291 = vpack.c.bf16 %v8267, %v8259
        %v8292 = vpack.c.bf16 %v8268, %v8260
        %v8293 = vpack.c.bf16 %v8269, %v8261
        %v8294 = vpack.c.bf16 %v8270, %v8262
        %v8295 = vld [vmem:[%s493] sm:$0xf]
        %v8296 = vld [vmem:[%s493 + $0x4] sm:$0xf]
        %v8297 = vld [vmem:[%s493 + $0x8] sm:$0xf]
        %v8298 = vld [vmem:[%s493 + $0xc] sm:$0xf]
        %v8299 = vld [vmem:[%s493 + $0x10] sm:$0xf]
        %v8300 = vld [vmem:[%s493 + $0x14] sm:$0xf]
        %v8301 = vld [vmem:[%s493 + $0x18] sm:$0xf]
        %v8302 = vld [vmem:[%s493 + $0x1c] sm:$0xf]
        %v8303 = vld [vmem:[%s493 + $0x20] sm:$0xf]
        %v8304 = vld [vmem:[%s493 + $0x24] sm:$0xf]
        %v8305 = vld [vmem:[%s493 + $0x28] sm:$0xf]
        %v8306 = vld [vmem:[%s493 + $0x2c] sm:$0xf]
        %v8307 = vld [vmem:[%s493 + $0x30] sm:$0xf]
        %v8308 = vld [vmem:[%s493 + $0x34] sm:$0xf]
        %v8309 = vld [vmem:[%s493 + $0x38] sm:$0xf]
        %v8310 = vld [vmem:[%s493 + $0x3c] sm:$0xf]
        %v8311 = vld [vmem:[%s493 + $0x40] sm:$0xf]
        %v8312 = vld [vmem:[%s493 + $0x44] sm:$0xf]
        %v8313 = vld [vmem:[%s493 + $0x48] sm:$0xf]
        %v8314 = vld [vmem:[%s493 + $0x4c] sm:$0xf]
        %v8315 = vld [vmem:[%s493 + $0x50] sm:$0xf]
        %v8316 = vld [vmem:[%s493 + $0x54] sm:$0xf]
        %v8317 = vld [vmem:[%s493 + $0x58] sm:$0xf]
        %v8318 = vld [vmem:[%s493 + $0x5c] sm:$0xf]
        %v8319 = vld [vmem:[%s493 + $0x60] sm:$0xf]
        %v8320 = vld [vmem:[%s493 + $0x64] sm:$0xf]
        %v8321 = vld [vmem:[%s493 + $0x68] sm:$0xf]
        %v8322 = vld [vmem:[%s493 + $0x6c] sm:$0xf]
        %v8323 = vld [vmem:[%s493 + $0x70] sm:$0xf]
        %v8324 = vld [vmem:[%s493 + $0x74] sm:$0xf]
        %v8325 = vld [vmem:[%s493 + $0x78] sm:$0xf]
        %v8326 = vld [vmem:[%s493 + $0x7c] sm:$0xf]
        %v8327 = vld [vmem:[%s493 + $0x80] sm:$0xf]
        %v8328 = vld [vmem:[%s493 + $0x84] sm:$0xf]
        %v8329 = vld [vmem:[%s493 + $0x88] sm:$0xf]
        %v8330 = vld [vmem:[%s493 + $0x8c] sm:$0xf]
        %v8331 = vld [vmem:[%s493 + $0x90] sm:$0xf]
        %v8332 = vld [vmem:[%s493 + $0x94] sm:$0xf]
        %v8333 = vld [vmem:[%s493 + $0x98] sm:$0xf]
        %v8334 = vld [vmem:[%s493 + $0x9c] sm:$0xf]
        %v8335 = vld [vmem:[%s493 + $0xa0] sm:$0xf]
        %v8336 = vld [vmem:[%s493 + $0xa4] sm:$0xf]
        %v8337 = vld [vmem:[%s493 + $0xa8] sm:$0xf]
        %v8338 = vld [vmem:[%s493 + $0xac] sm:$0xf]
        %v8339 = vld [vmem:[%s493 + $0xb0] sm:$0xf]
        %v8340 = vld [vmem:[%s493 + $0xb4] sm:$0xf]
        %v8341 = vld [vmem:[%s493 + $0xb8] sm:$0xf]
        %v8342 = vld [vmem:[%s493 + $0xbc] sm:$0xf]
        %v8343 = vld [vmem:[%s493 + $0xc0] sm:$0xf]
        %v8344 = vld [vmem:[%s493 + $0xc4] sm:$0xf]
        %v8345 = vld [vmem:[%s493 + $0xc8] sm:$0xf]
        %v8346 = vld [vmem:[%s493 + $0xcc] sm:$0xf]
        %v8347 = vld [vmem:[%s493 + $0xd0] sm:$0xf]
        %v8348 = vld [vmem:[%s493 + $0xd4] sm:$0xf]
        %v8349 = vld [vmem:[%s493 + $0xd8] sm:$0xf]
        %v8350 = vld [vmem:[%s493 + $0xdc] sm:$0xf]
        %v8351 = vld [vmem:[%s493 + $0xe0] sm:$0xf]
        %v8352 = vld [vmem:[%s493 + $0xe4] sm:$0xf]
        %v8353 = vld [vmem:[%s493 + $0xe8] sm:$0xf]
        %v8354 = vld [vmem:[%s493 + $0xec] sm:$0xf]
        %v8355 = vld [vmem:[%s493 + $0xf0] sm:$0xf]
        %v8356 = vld [vmem:[%s493 + $0xf4] sm:$0xf]
        %v8357 = vld [vmem:[%s493 + $0xf8] sm:$0xf]
        %v8358 = vld [vmem:[%s493 + $0xfc] sm:$0xf]
        %v8359 = vld [vmem:[%s493 + $0x100] sm:$0xf]
        %v8360 = vld [vmem:[%s493 + $0x104] sm:$0xf]
        %v8361 = vld [vmem:[%s493 + $0x108] sm:$0xf]
        %v8362 = vld [vmem:[%s493 + $0x10c] sm:$0xf]
        %v8363 = vld [vmem:[%s493 + $0x110] sm:$0xf]
        %v8364 = vld [vmem:[%s493 + $0x114] sm:$0xf]
        %v8365 = vld [vmem:[%s493 + $0x118] sm:$0xf]
        %v8366 = vld [vmem:[%s493 + $0x11c] sm:$0xf]
        %v8367 = vld [vmem:[%s493 + $0x120] sm:$0xf]
        %v8368 = vld [vmem:[%s493 + $0x124] sm:$0xf]
        %v8369 = vld [vmem:[%s493 + $0x128] sm:$0xf]
        %v8370 = vld [vmem:[%s493 + $0x12c] sm:$0xf]
        %v8371 = vld [vmem:[%s493 + $0x130] sm:$0xf]
        %v8372 = vld [vmem:[%s493 + $0x134] sm:$0xf]
        %v8373 = vld [vmem:[%s493 + $0x138] sm:$0xf]
        %v8374 = vld [vmem:[%s493 + $0x13c] sm:$0xf]
        %v8375 = vld [vmem:[%s493 + $0x140] sm:$0xf]
        %v8376 = vld [vmem:[%s493 + $0x144] sm:$0xf]
        %v8377 = vld [vmem:[%s493 + $0x148] sm:$0xf]
        %v8378 = vld [vmem:[%s493 + $0x14c] sm:$0xf]
        %v8379 = vld [vmem:[%s493 + $0x150] sm:$0xf]
        %v8380 = vld [vmem:[%s493 + $0x154] sm:$0xf]
        %v8381 = vld [vmem:[%s493 + $0x158] sm:$0xf]
        %v8382 = vld [vmem:[%s493 + $0x15c] sm:$0xf]
        %v8383 = vld [vmem:[%s493 + $0x160] sm:$0xf]
        %v8384 = vld [vmem:[%s493 + $0x164] sm:$0xf]
        %v8385 = vld [vmem:[%s493 + $0x168] sm:$0xf]
        %v8386 = vld [vmem:[%s493 + $0x16c] sm:$0xf]
        %v8387 = vld [vmem:[%s493 + $0x170] sm:$0xf]
        %v8388 = vld [vmem:[%s493 + $0x174] sm:$0xf]
        %v8389 = vld [vmem:[%s493 + $0x178] sm:$0xf]
        %v8390 = vld [vmem:[%s493 + $0x17c] sm:$0xf]
        %v8391 = vld [vmem:[%s493 + $0x180] sm:$0xf]
        %v8392 = vld [vmem:[%s493 + $0x184] sm:$0xf]
        %v8393 = vld [vmem:[%s493 + $0x188] sm:$0xf]
        %v8394 = vld [vmem:[%s493 + $0x18c] sm:$0xf]
        %v8395 = vld [vmem:[%s493 + $0x190] sm:$0xf]
        %v8396 = vld [vmem:[%s493 + $0x194] sm:$0xf]
        %v8397 = vld [vmem:[%s493 + $0x198] sm:$0xf]
        %v8398 = vld [vmem:[%s493 + $0x19c] sm:$0xf]
        %v8399 = vld [vmem:[%s493 + $0x1a0] sm:$0xf]
        %v8400 = vld [vmem:[%s493 + $0x1a4] sm:$0xf]
        %v8401 = vld [vmem:[%s493 + $0x1a8] sm:$0xf]
        %v8402 = vld [vmem:[%s493 + $0x1ac] sm:$0xf]
        %v8403 = vld [vmem:[%s493 + $0x1b0] sm:$0xf]
        %v8404 = vld [vmem:[%s493 + $0x1b4] sm:$0xf]
        %v8405 = vld [vmem:[%s493 + $0x1b8] sm:$0xf]
        %v8406 = vld [vmem:[%s493 + $0x1bc] sm:$0xf]
        %v8407 = vld [vmem:[%s493 + $0x1c0] sm:$0xf]
        %v8408 = vld [vmem:[%s493 + $0x1c4] sm:$0xf]
        %v8409 = vld [vmem:[%s493 + $0x1c8] sm:$0xf]
        %v8410 = vld [vmem:[%s493 + $0x1cc] sm:$0xf]
        %v8411 = vld [vmem:[%s493 + $0x1d0] sm:$0xf]
        %v8412 = vld [vmem:[%s493 + $0x1d4] sm:$0xf]
        %v8413 = vld [vmem:[%s493 + $0x1d8] sm:$0xf]
        %v8414 = vld [vmem:[%s493 + $0x1dc] sm:$0xf]
        %v8415 = vld [vmem:[%s493 + $0x1e0] sm:$0xf]
        %v8416 = vld [vmem:[%s493 + $0x1e4] sm:$0xf]
        %v8417 = vld [vmem:[%s493 + $0x1e8] sm:$0xf]
        %v8418 = vld [vmem:[%s493 + $0x1ec] sm:$0xf]
        %v8419 = vld [vmem:[%s493 + $0x1f0] sm:$0xf]
        %v8420 = vld [vmem:[%s493 + $0x1f4] sm:$0xf]
        %v8421 = vld [vmem:[%s493 + $0x1f8] sm:$0xf]
        %v8422 = vld [vmem:[%s493 + $0x1fc] sm:$0xf]
        %v8423 = vld [vmem:[%s501] sm:$0x1]
        %v8425 = vlaneseq
        %v8426 = vshrl.u32 %v8425, 7
        %v8427 = vsub.s32 0, %v8426
        %v8428 = vrot.slane %v8423, %v8427
        %v8558 = vunpack.c.l.b16 %v8295
        %v8559 = vunpack.c.l.b16 %v8296
        %v8560 = vunpack.c.l.b16 %v8297
        %v8561 = vunpack.c.l.b16 %v8298
        %v8562 = vunpack.c.l.b16 %v8299
        %v8563 = vunpack.c.l.b16 %v8300
        %v8564 = vunpack.c.l.b16 %v8301
        %v8565 = vunpack.c.l.b16 %v8302
        %v8566 = vunpack.c.l.b16 %v8303
        %v8567 = vunpack.c.l.b16 %v8304
        %v8568 = vunpack.c.l.b16 %v8305
        %v8569 = vunpack.c.l.b16 %v8306
        %v8570 = vunpack.c.l.b16 %v8307
        %v8571 = vunpack.c.l.b16 %v8308
        %v8572 = vunpack.c.l.b16 %v8309
        %v8573 = vunpack.c.l.b16 %v8310
        %v8574 = vunpack.c.l.b16 %v8311
        %v8575 = vunpack.c.l.b16 %v8312
        %v8576 = vunpack.c.l.b16 %v8313
        %v8577 = vunpack.c.l.b16 %v8314
        %v8578 = vunpack.c.l.b16 %v8315
        %v8579 = vunpack.c.l.b16 %v8316
        %v8580 = vunpack.c.l.b16 %v8317
        %v8581 = vunpack.c.l.b16 %v8318
        %v8582 = vunpack.c.l.b16 %v8319
        %v8583 = vunpack.c.l.b16 %v8320
        %v8584 = vunpack.c.l.b16 %v8321
        %v8585 = vunpack.c.l.b16 %v8322
        %v8586 = vunpack.c.l.b16 %v8323
        %v8587 = vunpack.c.l.b16 %v8324
        %v8588 = vunpack.c.l.b16 %v8325
        %v8589 = vunpack.c.l.b16 %v8326
        %v8590 = vunpack.c.l.b16 %v8327
        %v8591 = vunpack.c.l.b16 %v8328
        %v8592 = vunpack.c.l.b16 %v8329
        %v8593 = vunpack.c.l.b16 %v8330
        %v8594 = vunpack.c.l.b16 %v8331
        %v8595 = vunpack.c.l.b16 %v8332
        %v8596 = vunpack.c.l.b16 %v8333
        %v8597 = vunpack.c.l.b16 %v8334
        %v8598 = vunpack.c.l.b16 %v8335
        %v8599 = vunpack.c.l.b16 %v8336
        %v8600 = vunpack.c.l.b16 %v8337
        %v8601 = vunpack.c.l.b16 %v8338
        %v8602 = vunpack.c.l.b16 %v8339
        %v8603 = vunpack.c.l.b16 %v8340
        %v8604 = vunpack.c.l.b16 %v8341
        %v8605 = vunpack.c.l.b16 %v8342
        %v8606 = vunpack.c.l.b16 %v8343
        %v8607 = vunpack.c.l.b16 %v8344
        %v8608 = vunpack.c.l.b16 %v8345
        %v8609 = vunpack.c.l.b16 %v8346
        %v8610 = vunpack.c.l.b16 %v8347
        %v8611 = vunpack.c.l.b16 %v8348
        %v8612 = vunpack.c.l.b16 %v8349
        %v8613 = vunpack.c.l.b16 %v8350
        %v8614 = vunpack.c.l.b16 %v8351
        %v8615 = vunpack.c.l.b16 %v8352
        %v8616 = vunpack.c.l.b16 %v8353
        %v8617 = vunpack.c.l.b16 %v8354
        %v8618 = vunpack.c.l.b16 %v8355
        %v8619 = vunpack.c.l.b16 %v8356
        %v8620 = vunpack.c.l.b16 %v8357
        %v8621 = vunpack.c.l.b16 %v8358
        %v8622 = vunpack.c.l.b16 %v8359
        %v8623 = vunpack.c.l.b16 %v8360
        %v8624 = vunpack.c.l.b16 %v8361
        %v8625 = vunpack.c.l.b16 %v8362
        %v8626 = vunpack.c.l.b16 %v8363
        %v8627 = vunpack.c.l.b16 %v8364
        %v8628 = vunpack.c.l.b16 %v8365
        %v8629 = vunpack.c.l.b16 %v8366
        %v8630 = vunpack.c.l.b16 %v8367
        %v8631 = vunpack.c.l.b16 %v8368
        %v8632 = vunpack.c.l.b16 %v8369
        %v8633 = vunpack.c.l.b16 %v8370
        %v8634 = vunpack.c.l.b16 %v8371
        %v8635 = vunpack.c.l.b16 %v8372
        %v8636 = vunpack.c.l.b16 %v8373
        %v8637 = vunpack.c.l.b16 %v8374
        %v8638 = vunpack.c.l.b16 %v8375
        %v8639 = vunpack.c.l.b16 %v8376
        %v8640 = vunpack.c.l.b16 %v8377
        %v8641 = vunpack.c.l.b16 %v8378
        %v8642 = vunpack.c.l.b16 %v8379
        %v8643 = vunpack.c.l.b16 %v8380
        %v8644 = vunpack.c.l.b16 %v8381
        %v8645 = vunpack.c.l.b16 %v8382
        %v8646 = vunpack.c.l.b16 %v8383
        %v8647 = vunpack.c.l.b16 %v8384
        %v8648 = vunpack.c.l.b16 %v8385
        %v8649 = vunpack.c.l.b16 %v8386
        %v8650 = vunpack.c.l.b16 %v8387
        %v8651 = vunpack.c.l.b16 %v8388
        %v8652 = vunpack.c.l.b16 %v8389
        %v8653 = vunpack.c.l.b16 %v8390
        %v8654 = vunpack.c.l.b16 %v8391
        %v8655 = vunpack.c.l.b16 %v8392
        %v8656 = vunpack.c.l.b16 %v8393
        %v8657 = vunpack.c.l.b16 %v8394
        %v8658 = vunpack.c.l.b16 %v8395
        %v8659 = vunpack.c.l.b16 %v8396
        %v8660 = vunpack.c.l.b16 %v8397
        %v8661 = vunpack.c.l.b16 %v8398
        %v8662 = vunpack.c.l.b16 %v8399
        %v8663 = vunpack.c.l.b16 %v8400
        %v8664 = vunpack.c.l.b16 %v8401
        %v8665 = vunpack.c.l.b16 %v8402
        %v8666 = vunpack.c.l.b16 %v8403
        %v8667 = vunpack.c.l.b16 %v8404
        %v8668 = vunpack.c.l.b16 %v8405
        %v8669 = vunpack.c.l.b16 %v8406
        %v8670 = vunpack.c.l.b16 %v8407
        %v8671 = vunpack.c.l.b16 %v8408
        %v8672 = vunpack.c.l.b16 %v8409
        %v8673 = vunpack.c.l.b16 %v8410
        %v8674 = vunpack.c.l.b16 %v8411
        %v8675 = vunpack.c.l.b16 %v8412
        %v8676 = vunpack.c.l.b16 %v8413
        %v8677 = vunpack.c.l.b16 %v8414
        %v8678 = vunpack.c.l.b16 %v8415
        %v8679 = vunpack.c.l.b16 %v8416
        %v8680 = vunpack.c.l.b16 %v8417
        %v8681 = vunpack.c.l.b16 %v8418
        %v8682 = vunpack.c.l.b16 %v8419
        %v8683 = vunpack.c.l.b16 %v8420
        %v8684 = vunpack.c.l.b16 %v8421
        %v8685 = vunpack.c.l.b16 %v8422
        %v8686 = vpack.c.b16 %v8559, %v8558
        %v8687 = vpack.c.b16 %v8561, %v8560
        %v8688 = vpack.c.b16 %v8563, %v8562
        %v8689 = vpack.c.b16 %v8565, %v8564
        %v8690 = vpack.c.b16 %v8567, %v8566
        %v8691 = vpack.c.b16 %v8569, %v8568
        %v8692 = vpack.c.b16 %v8571, %v8570
        %v8693 = vpack.c.b16 %v8573, %v8572
        %v8694 = vpack.c.b16 %v8575, %v8574
        %v8695 = vpack.c.b16 %v8577, %v8576
        %v8696 = vpack.c.b16 %v8579, %v8578
        %v8697 = vpack.c.b16 %v8581, %v8580
        %v8698 = vpack.c.b16 %v8583, %v8582
        %v8699 = vpack.c.b16 %v8585, %v8584
        %v8700 = vpack.c.b16 %v8587, %v8586
        %v8701 = vpack.c.b16 %v8589, %v8588
        %v8702 = vpack.c.b16 %v8591, %v8590
        %v8703 = vpack.c.b16 %v8593, %v8592
        %v8704 = vpack.c.b16 %v8595, %v8594
        %v8705 = vpack.c.b16 %v8597, %v8596
        %v8706 = vpack.c.b16 %v8599, %v8598
        %v8707 = vpack.c.b16 %v8601, %v8600
        %v8708 = vpack.c.b16 %v8603, %v8602
        %v8709 = vpack.c.b16 %v8605, %v8604
        %v8710 = vpack.c.b16 %v8607, %v8606
        %v8711 = vpack.c.b16 %v8609, %v8608
        %v8712 = vpack.c.b16 %v8611, %v8610
        %v8713 = vpack.c.b16 %v8613, %v8612
        %v8714 = vpack.c.b16 %v8615, %v8614
        %v8715 = vpack.c.b16 %v8617, %v8616
        %v8716 = vpack.c.b16 %v8619, %v8618
        %v8717 = vpack.c.b16 %v8621, %v8620
        %v8718 = vpack.c.b16 %v8623, %v8622
        %v8719 = vpack.c.b16 %v8625, %v8624
        %v8720 = vpack.c.b16 %v8627, %v8626
        %v8721 = vpack.c.b16 %v8629, %v8628
        %v8722 = vpack.c.b16 %v8631, %v8630
        %v8723 = vpack.c.b16 %v8633, %v8632
        %v8724 = vpack.c.b16 %v8635, %v8634
        %v8725 = vpack.c.b16 %v8637, %v8636
        %v8726 = vpack.c.b16 %v8639, %v8638
        %v8727 = vpack.c.b16 %v8641, %v8640
        %v8728 = vpack.c.b16 %v8643, %v8642
        %v8729 = vpack.c.b16 %v8645, %v8644
        %v8730 = vpack.c.b16 %v8647, %v8646
        %v8731 = vpack.c.b16 %v8649, %v8648
        %v8732 = vpack.c.b16 %v8651, %v8650
        %v8733 = vpack.c.b16 %v8653, %v8652
        %v8734 = vpack.c.b16 %v8655, %v8654
        %v8735 = vpack.c.b16 %v8657, %v8656
        %v8736 = vpack.c.b16 %v8659, %v8658
        %v8737 = vpack.c.b16 %v8661, %v8660
        %v8738 = vpack.c.b16 %v8663, %v8662
        %v8739 = vpack.c.b16 %v8665, %v8664
        %v8740 = vpack.c.b16 %v8667, %v8666
        %v8741 = vpack.c.b16 %v8669, %v8668
        %v8742 = vpack.c.b16 %v8671, %v8670
        %v8743 = vpack.c.b16 %v8673, %v8672
        %v8744 = vpack.c.b16 %v8675, %v8674
        %v8745 = vpack.c.b16 %v8677, %v8676
        %v8746 = vpack.c.b16 %v8679, %v8678
        %v8747 = vpack.c.b16 %v8681, %v8680
        %v8748 = vpack.c.b16 %v8683, %v8682
        %v8749 = vpack.c.b16 %v8685, %v8684
        %8814 = vmatprep.subr.bf16.mxu0 0
        %8815 = vmatpush1.bf16.msra.mxu0 %v8693
        %8816 = vmatprep.subr.bf16.mxu0 0
        %8817 = vmatpush1.bf16.msra.mxu0 %v8692
        %8818 = vmatprep.subr.bf16.mxu0 0
        %8819 = vmatpush1.bf16.msra.mxu0 %v8691
        %8820 = vmatprep.subr.bf16.mxu0 0
        %8821 = vmatpush1.bf16.msra.mxu0 %v8690
        %8822 = vmatprep.subr.bf16.mxu0 0
        %8823 = vmatpush1.bf16.msra.mxu0 %v8689
        %8824 = vmatprep.subr.bf16.mxu0 0
        %8825 = vmatpush1.bf16.msra.mxu0 %v8688
        %8826 = vmatprep.subr.bf16.mxu0 0
        %8827 = vmatpush1.bf16.msra.mxu0 %v8687
        %8828 = vmatprep.subr.bf16.mxu0 0
        %8829 = vmatpush1.bf16.msra.mxu0 %v8686
        %8830 = vmatprep.subr.bf16.mxu0 0
        %8831 = vmatpush2.bf16.msra.mxu0 %v8701
        %8832 = vmatprep.subr.bf16.mxu0 0
        %8833 = vmatpush2.bf16.msra.mxu0 %v8700
        %8834 = vmatprep.subr.bf16.mxu0 0
        %8835 = vmatpush2.bf16.msra.mxu0 %v8699
        %8836 = vmatprep.subr.bf16.mxu0 0
        %8837 = vmatpush2.bf16.msra.mxu0 %v8698
        %8838 = vmatprep.subr.bf16.mxu0 0
        %8839 = vmatpush2.bf16.msra.mxu0 %v8697
        %8840 = vmatprep.subr.bf16.mxu0 0
        %8841 = vmatpush2.bf16.msra.mxu0 %v8696
        %8842 = vmatprep.subr.bf16.mxu0 0
        %8843 = vmatpush2.bf16.msra.mxu0 %v8695
        %8844 = vmatprep.subr.bf16.mxu0 0
        %8845 = vmatpush2.bf16.msra.mxu0 %v8694
        %8846 = vmatprep.mubr.bf16.mxu0 %v8288
        %8847 = vmatmul.mubr.bf16.gmra.mxu0 %v8287
        %v8848 = vpop.f32.mrf.mxu0
        %v8849 = vadd.f32 %v8428, %v8848
        %v8850 = vpop.f32.mrf.mxu0
        %v8851 = vpop.f32.mrf.mxu0
        %v8852 = vadd.f32 %v8428, %v8851
        %v8853 = vpop.f32.mrf.mxu0
        %8854 = vdwg.mxu0
        %8855 = vmatprep.subr.bf16.mxu0 0
        %8856 = vmatpush1.bf16.msra.mxu0 %v8709
        %8857 = vmatprep.subr.bf16.mxu0 0
        %8858 = vmatpush1.bf16.msra.mxu0 %v8708
        %8859 = vmatprep.subr.bf16.mxu0 0
        %8860 = vmatpush1.bf16.msra.mxu0 %v8707
        %8861 = vmatprep.subr.bf16.mxu0 0
        %8862 = vmatpush1.bf16.msra.mxu0 %v8706
        %8863 = vmatprep.subr.bf16.mxu0 0
        %8864 = vmatpush1.bf16.msra.mxu0 %v8705
        %8865 = vmatprep.subr.bf16.mxu0 0
        %8866 = vmatpush1.bf16.msra.mxu0 %v8704
        %8867 = vmatprep.subr.bf16.mxu0 0
        %8868 = vmatpush1.bf16.msra.mxu0 %v8703
        %8869 = vmatprep.subr.bf16.mxu0 0
        %8870 = vmatpush1.bf16.msra.mxu0 %v8702
        %8871 = vmatprep.subr.bf16.mxu0 0
        %8872 = vmatpush2.bf16.msra.mxu0 %v8717
        %8873 = vmatprep.subr.bf16.mxu0 0
        %8874 = vmatpush2.bf16.msra.mxu0 %v8716
        %8875 = vmatprep.subr.bf16.mxu0 0
        %8876 = vmatpush2.bf16.msra.mxu0 %v8715
        %8877 = vmatprep.subr.bf16.mxu0 0
        %8878 = vmatpush2.bf16.msra.mxu0 %v8714
        %8879 = vmatprep.subr.bf16.mxu0 0
        %8880 = vmatpush2.bf16.msra.mxu0 %v8713
        %8881 = vmatprep.subr.bf16.mxu0 0
        %8882 = vmatpush2.bf16.msra.mxu0 %v8712
        %8883 = vmatprep.subr.bf16.mxu0 0
        %8884 = vmatpush2.bf16.msra.mxu0 %v8711
        %8885 = vmatprep.subr.bf16.mxu0 0
        %8886 = vmatpush2.bf16.msra.mxu0 %v8710
        %8887 = vmatprep.mubr.bf16.mxu0 %v8290
        %8888 = vmatmul.mubr.bf16.gmra.mxu0 %v8289
        %v8889 = vpop.f32.mrf.mxu0
        %v8890 = vadd.f32 %v8849, %v8889
        %v8891 = vpop.f32.mrf.mxu0
        %v8892 = vpop.f32.mrf.mxu0
        %v8893 = vadd.f32 %v8852, %v8892
        %v8894 = vpop.f32.mrf.mxu0
        %8895 = vdwg.mxu0
        %8896 = vmatprep.subr.bf16.mxu0 0
        %8897 = vmatpush1.bf16.msra.mxu0 %v8725
        %8898 = vmatprep.subr.bf16.mxu0 0
        %8899 = vmatpush1.bf16.msra.mxu0 %v8724
        %8900 = vmatprep.subr.bf16.mxu0 0
        %8901 = vmatpush1.bf16.msra.mxu0 %v8723
        %8902 = vmatprep.subr.bf16.mxu0 0
        %8903 = vmatpush1.bf16.msra.mxu0 %v8722
        %8904 = vmatprep.subr.bf16.mxu0 0
        %8905 = vmatpush1.bf16.msra.mxu0 %v8721
        %8906 = vmatprep.subr.bf16.mxu0 0
        %8907 = vmatpush1.bf16.msra.mxu0 %v8720
        %8908 = vmatprep.subr.bf16.mxu0 0
        %8909 = vmatpush1.bf16.msra.mxu0 %v8719
        %8910 = vmatprep.subr.bf16.mxu0 0
        %8911 = vmatpush1.bf16.msra.mxu0 %v8718
        %8912 = vmatprep.subr.bf16.mxu0 0
        %8913 = vmatpush2.bf16.msra.mxu0 %v8733
        %8914 = vmatprep.subr.bf16.mxu0 0
        %8915 = vmatpush2.bf16.msra.mxu0 %v8732
        %8916 = vmatprep.subr.bf16.mxu0 0
        %8917 = vmatpush2.bf16.msra.mxu0 %v8731
        %8918 = vmatprep.subr.bf16.mxu0 0
        %8919 = vmatpush2.bf16.msra.mxu0 %v8730
        %8920 = vmatprep.subr.bf16.mxu0 0
        %8921 = vmatpush2.bf16.msra.mxu0 %v8729
        %8922 = vmatprep.subr.bf16.mxu0 0
        %8923 = vmatpush2.bf16.msra.mxu0 %v8728
        %8924 = vmatprep.subr.bf16.mxu0 0
        %8925 = vmatpush2.bf16.msra.mxu0 %v8727
        %8926 = vmatprep.subr.bf16.mxu0 0
        %8927 = vmatpush2.bf16.msra.mxu0 %v8726
        %8928 = vmatprep.mubr.bf16.mxu0 %v8292
        %8929 = vmatmul.mubr.bf16.gmra.mxu0 %v8291
        %v8930 = vpop.f32.mrf.mxu0
        %v8931 = vadd.f32 %v8890, %v8930
        %v8932 = vpop.f32.mrf.mxu0
        %v8933 = vpop.f32.mrf.mxu0
        %v8934 = vadd.f32 %v8893, %v8933
        %v8935 = vpop.f32.mrf.mxu0
        %8936 = vdwg.mxu0
        %8937 = vmatprep.subr.bf16.mxu0 0
        %8938 = vmatpush1.bf16.msra.mxu0 %v8741
        %8939 = vmatprep.subr.bf16.mxu0 0
        %8940 = vmatpush1.bf16.msra.mxu0 %v8740
        %8941 = vmatprep.subr.bf16.mxu0 0
        %8942 = vmatpush1.bf16.msra.mxu0 %v8739
        %8943 = vmatprep.subr.bf16.mxu0 0
        %8944 = vmatpush1.bf16.msra.mxu0 %v8738
        %8945 = vmatprep.subr.bf16.mxu0 0
        %8946 = vmatpush1.bf16.msra.mxu0 %v8737
        %8947 = vmatprep.subr.bf16.mxu0 0
        %8948 = vmatpush1.bf16.msra.mxu0 %v8736
        %8949 = vmatprep.subr.bf16.mxu0 0
        %8950 = vmatpush1.bf16.msra.mxu0 %v8735
        %8951 = vmatprep.subr.bf16.mxu0 0
        %8952 = vmatpush1.bf16.msra.mxu0 %v8734
        %8953 = vmatprep.subr.bf16.mxu0 0
        %8954 = vmatpush2.bf16.msra.mxu0 %v8749
        %8955 = vmatprep.subr.bf16.mxu0 0
        %8956 = vmatpush2.bf16.msra.mxu0 %v8748
        %8957 = vmatprep.subr.bf16.mxu0 0
        %8958 = vmatpush2.bf16.msra.mxu0 %v8747
        %8959 = vmatprep.subr.bf16.mxu0 0
        %8960 = vmatpush2.bf16.msra.mxu0 %v8746
        %8961 = vmatprep.subr.bf16.mxu0 0
        %8962 = vmatpush2.bf16.msra.mxu0 %v8745
        %8963 = vmatprep.subr.bf16.mxu0 0
        %8964 = vmatpush2.bf16.msra.mxu0 %v8744
        %8965 = vmatprep.subr.bf16.mxu0 0
        %8966 = vmatpush2.bf16.msra.mxu0 %v8743
        %8967 = vmatprep.subr.bf16.mxu0 0
        %8968 = vmatpush2.bf16.msra.mxu0 %v8742
        %8969 = vmatprep.mubr.bf16.mxu0 %v8294
        %8970 = vmatmul.mubr.bf16.gmra.mxu0 %v8293
        %v8971 = vpop.f32.mrf.mxu0
        %v8972 = vadd.f32 %v8931, %v8971
        %v8973 = vpop.f32.mrf.mxu0
        %v8974 = vpop.f32.mrf.mxu0
        %v8975 = vadd.f32 %v8934, %v8974
        %v8976 = vpop.f32.mrf.mxu0
        %8977 = vdwg.mxu0
        %8978 = vst [vmem:[%s577] sm:$0xff] %v8972
        %8979 = vst [vmem:[%s577 + $0x8] sm:$0xff] %v8975
        %p8980 = scmp.lt.s32.totalorder %s32, 1
        %s8981 = scalar_select %p8980, %s32, 1
        %s8982 = smul.addr %s8981, 16
        %s8983 = smul.addr %s8982, 8
        %s8984 = scalar_lea.vmem %s7, %s8983
        %p8985 = scmp.lt.s32.totalorder %s32, 1
        %s8986 = scalar_select %p8985, %s32, 1
        %s8987 = smul.addr %s8986, 2
        %s8988 = smul.addr %s8987, 8
        %s8989 = scalar_lea.vmem %s8, %s8988
        // Predicated region
        $region96: #{model_forward.1} parent=66 // pred_check
          %p8990 = pneg %p232
        $region97: #{model_forward.1} parent=66 // pred_check_branch
          %8992 = sbr.rel (%p8990) target = $region99
        $region98: #{model_forward.1} parent=66 // pred_region
          _
        $region99: #{model_forward.1} parent=66 // pred_fallthru
          _
        // Predicated region
        $region100: #{model_forward.1} parent=66 // pred_check
          %p8993 = pneg %p258
        $region101: #{model_forward.1} parent=66 // pred_check_branch
          %8995 = sbr.rel (%p8993) target = $region103
        $region102: #{model_forward.1} parent=66 // pred_region
          _
        $region103: #{model_forward.1} parent=66 // pred_fallthru
          _
      $region67: #{model_forward.1} parent=5 // pred_fallthru
        _
      %p8996 = scmp.le.s32.totalorder 2, %s27
      // Predicated region
      $region104: #{model_forward.1} parent=5 // pred_check
        %p8997 = pneg %p8996
      $region105: #{model_forward.1} parent=5 // pred_check_branch
        %8999 = sbr.rel (%p8997) target = $region107
      $region106: #{model_forward.1} parent=5 // pred_region
        %s9000 = ssub.s32 %s27, 2
        // Predicated region
        $region108: #{model_forward.1} parent=106 // pred_check
          %p9001 = pneg %p238
        $region109: #{model_forward.1} parent=106 // pred_check_branch
          %9003 = sbr.rel (%p9001) target = $region111
        $region110: #{model_forward.1} parent=106 // pred_region
          %p9004 = scmp.lt.s32.totalorder %s33, 1
          %s9005 = scalar_select %p9004, %s33, 1
          %s9006 = smul.addr %s9005, 16
          %s9007 = smul.addr %s9006, 8
          %s9008 = scalar_lea.vmem %s7, %s9007
        $region111: #{model_forward.1} parent=106 // pred_fallthru
          _
        // Predicated region
        $region112: #{model_forward.1} parent=106 // pred_check
          %p9009 = pneg %p264
        $region113: #{model_forward.1} parent=106 // pred_check_branch
          %9011 = sbr.rel (%p9009) target = $region115
        $region114: #{model_forward.1} parent=106 // pred_region
          %p9012 = scmp.lt.s32.totalorder %s33, 1
          %s9013 = scalar_select %p9012, %s33, 1
          %s9014 = smul.addr %s9013, 2
          %s9015 = smul.addr %s9014, 8
          %s9016 = scalar_lea.vmem %s8, %s9015
        $region115: #{model_forward.1} parent=106 // pred_fallthru
          _
      $region107: #{model_forward.1} parent=5 // pred_fallthru
        _
    $region6: #{model_forward.1} parent=1 // loop_footer
      %s31 = sadd.s32 1, %s27
    $region7: #{model_forward.1} parent=1 // loop_footer_branch
      %26 = sbr.rel target = $region3
    $region8: #{model_forward.1} parent=1 // loop_exit
      _
    %9017 = vsyncpa [#allocation4], 1
    %s9018 = scalar_lea.sflag [#allocation4], 1
    %9019 = vsyncpa %s9018, 1
    %9020 = vsyncpa [#allocation6], 1
    %s9021 = scalar_lea.sflag [#allocation6], 1
    %9022 = vsyncpa %s9021, 1
    %9023 = vsyncpa [#allocation9], 1
    %s9024 = scalar_lea.sflag [#allocation9], 1
    %9025 = vsyncpa %s9024, 1
    %9026 = vsyncpa [#allocation12], 1
    %s9027 = scalar_lea.sflag [#allocation12], 1
    %9028 = vsyncpa %s9027, 1

</llo_original>
